<compile_context>
chip_gen: v5e
topology: v5e:2x2
jax: 0.10.0
libtpu: 0.0.40
codegen_flags: <defaults>
</compile_context>

<pallas_src>
import functools

import jax
import jax.numpy as jnp
from jax.experimental import pallas as pl
from jax.experimental.pallas import tpu as pltpu

KH = KW = 5                       # conv kernel size
IMG = 32                          # spatial size implied by the fc (32*5*5 in)
LANE = 128                        # TPU lane width
BLOCK_B = 16                      # images per grid step (multiple of 16)
_VMEM_LIMIT = 32 * 1024 * 1024    # scoped-VMEM cap; kernel uses < 8 MiB


def _round_up(x, m):
    return (x + m - 1) // m * m


# ----------------------------------------------------------------------------
# Fused Pallas kernel: conv1+ReLU+pool -> conv2+ReLU+pool -> FC, per batch block
# ----------------------------------------------------------------------------
def _cnn_fused_kernel(x_ref, w1_ref, b1_ref, w2_ref, b2_ref, wf_ref, bf_ref,
                      o_ref, *, bb, kd1, ph1h, n1, ph2, n2, nf):
    """One batch block (bb images) of the whole network.

    x_ref  : [H/4, bb, 4*kd1] bf16 - input rows packed 4 per sublane row, each
             row NHWC-flattened (w*Cin+ci) and zero-padded to kd1 lanes.
    w1_ref : [2, KH*kd1, n1] bf16  - layer-1 block-Toeplitz weights, indexed by
             output-column parity q; the 5 kernel-row blocks are concatenated
             along K so each parity needs one MXU matmul.
    w2_ref : [2, KH*n1, n2] bf16   - same for layer 2 (K blocks are n1 wide).
    b*_ref : [1, n*] f32           - biases tiled over pooled width (padded).
    wf_ref : [ph2, n2, nf] bf16    - FC weight per pooled row, with PyTorch's
                                     NCHW flatten folded into the layout.
    bf_ref : [1, nf] f32
    o_ref  : [bb, nf] f32 logits (first n_classes columns are real).

    conv[2*rp+p, 2*wp+q] = sum_i x[2*rp+p+i] @ Wtoep[i, q], so the 2x2 max-pool
    is the elementwise max over the four (p, q) parity accumulators and
    bias + ReLU commute with it.  Batch is folded into the matmul M dimension.
    """

    def conv_pool(lhs_fn, w_ref, b_row):
        pooled = None
        for p in (0, 1):                 # pre-pool output-row parity
            lhs = lhs_fn(p)              # [rows*bb, K] bf16
            for q in (0, 1):             # pre-pool output-column parity
                d = jnp.dot(lhs, w_ref[q], preferred_element_type=jnp.float32)
                pooled = d if pooled is None else jnp.maximum(pooled, d)
        return jnp.maximum(pooled + b_row, 0.0).astype(jnp.bfloat16)

    # ---- layer 1: even (base=0) and odd (base=2) pooled rows are computed by
    # separate matmul groups so layer 2 gets its row-parity split from
    # contiguous slices only.  Every x_ref window is contiguous & 128-aligned.
    def lhs1(base):
        def build(p):
            parts = []
            for i in range(KH):
                t = base + p + i         # input-row offset for this K block
                sl = x_ref[pl.ds(t // 4, ph1h), :, pl.ds((t % 4) * kd1, kd1)]
                parts.append(sl.reshape(ph1h * bb, kd1))
            return jnp.concatenate(parts, axis=1)        # [ph1h*bb, KH*kd1]
        return build

    b1_row = b1_ref[...]
    out1_e = conv_pool(lhs1(0), w1_ref, b1_row).reshape(ph1h, bb, n1)
    out1_o = conv_pool(lhs1(2), w1_ref, b1_row).reshape(ph1h, bb, n1)

    # ---- layer 2 (out1 never leaves VMEM) ----
    def lhs2(p):
        parts = []
        for i in range(KH):
            t = p + i
            src = out1_e if t % 2 == 0 else out1_o
            parts.append(src[t // 2:t // 2 + ph2].reshape(ph2 * bb, n1))
        return jnp.concatenate(parts, axis=1)            # [ph2*bb, KH*n1]

    out2 = conv_pool(lhs2, w2_ref, b2_ref[...]).reshape(ph2, bb, n2)

    # ---- FC: y[b] = sum_h out2[h, b, :] @ Wfc[h] + bias ----
    acc = None
    for h in range(ph2):
        d = jnp.dot(out2[h], wf_ref[h], preferred_element_type=jnp.float32)
        acc = d if acc is None else acc + d
    o_ref[...] = acc + bf_ref[...]


# ----------------------------------------------------------------------------
# Weight preparation (hoisted out of the jitted forward; run once per params)
# ----------------------------------------------------------------------------
def _build_toeplitz_weights(wt, *, W, Cin, kd_pad, n_pad):
    """[2, KH*kd_pad, n_pad] bf16 block-Toeplitz weights, 5 kernel-row blocks
    concatenated along K:
      out[q, i*kd_pad + w*Cin + ci, wp*Cout + co] = wt[co, ci, i, w - 2*wp - q]
    (zero when w - 2*wp - q is outside [0, KW))."""
    Cout = wt.shape[0]
    PW = (W - KW + 1) // 2
    w_idx = jnp.arange(W)[:, None]          # [W, 1]
    wp_idx = jnp.arange(PW)[None, :]        # [1, PW]
    per_q = []
    for q in (0, 1):
        j = w_idx - 2 * wp_idx - q                              # [W, PW]
        valid = ((j >= 0) & (j < KW)).astype(jnp.float32)
        blocks = []
        for i in range(KH):
            wt_i = jnp.transpose(wt[:, :, i, :], (2, 1, 0)).astype(jnp.float32)
            g = wt_i[jnp.clip(j, 0, KW - 1)] * valid[:, :, None, None]
            g = jnp.transpose(g, (0, 2, 1, 3)).reshape(W * Cin, PW * Cout)
            blocks.append(jnp.pad(
                g, ((0, kd_pad - W * Cin), (0, n_pad - PW * Cout))))
        per_q.append(jnp.concatenate(blocks, axis=0))           # [KH*kd_pad, n_pad]
    return jnp.stack(per_q).astype(jnp.bfloat16)


def _tile_bias(b, pw, n_pad):
    t = jnp.tile(b.astype(jnp.float32), pw)
    return jnp.pad(t, (0, n_pad - t.shape[0])).reshape(1, n_pad)


def _build_fc_weight(wf, *, ph, pw, cout, n2, nf):
    """[ph, n2, nf] bf16: wfc[h, wp*cout+co, n] = wf[n, co*ph*pw + h*pw + wp]
    (PyTorch NCHW flatten folded into the weight layout; zero-padded)."""
    n_cls = wf.shape[0]
    a = wf.reshape(n_cls, cout, ph, pw)           # [n, co, h, wp]
    a = jnp.transpose(a, (2, 3, 1, 0))            # [h, wp, co, n]
    a = a.reshape(ph, pw * cout, n_cls)
    a = jnp.pad(a, ((0, 0), (0, n2 - pw * cout), (0, nf - n_cls)))
    return a.astype(jnp.bfloat16)


def prepare_params(params):
    """Precompute all kernel weight layouts once per parameter set."""
    w1, b1, w2, b2, wf, bf = params
    cout1, cin1 = w1.shape[0], w1.shape[1]
    cout2 = w2.shape[0]
    n_cls = wf.shape[0]

    ph1 = pw1 = (IMG - KW + 1) // 2               # 14
    ph2 = pw2 = (pw1 - KW + 1) // 2               # 5
    assert wf.shape[1] == cout2 * ph2 * pw2, "fc expects a 32x32 input"

    kd1 = _round_up(IMG * cin1, LANE)             # 128
    n1 = _round_up(pw1 * cout1, LANE)             # 256
    n2 = _round_up(pw2 * cout2, LANE)             # 256
    nf = _round_up(n_cls, LANE)                   # 128

    return (
        _build_toeplitz_weights(w1, W=IMG, Cin=cin1, kd_pad=kd1, n_pad=n1),
        _tile_bias(b1, pw1, n1),
        _build_toeplitz_weights(w2, W=pw1, Cin=cout1, kd_pad=n1, n_pad=n2),
        _tile_bias(b2, pw2, n2),
        _build_fc_weight(wf, ph=ph2, pw=pw2, cout=cout2, n2=n2, nf=nf),
        jnp.pad(bf.astype(jnp.float32), (0, nf - n_cls)).reshape(1, nf),
    )


# ----------------------------------------------------------------------------
# Full forward pass
# ----------------------------------------------------------------------------
@functools.partial(jax.jit, static_argnames=("n_classes", "block_b"))
def cnn_forward(x_nchw, prepared, *, n_classes=10, block_b=BLOCK_B):
    """x_nchw: [B, 3, 32, 32] float32  ->  logits [B, n_classes] float32."""
    w1_t, b1_t, w2_t, b2_t, wf_t, bf_t = prepared
    B, cin, H, W = x_nchw.shape
    assert H == IMG and W == IMG
    assert block_b % 16 == 0  # keeps every in-kernel reshape sublane-tile aligned

    kd1 = w1_t.shape[1] // KH
    n1, n2 = w1_t.shape[2], w2_t.shape[2]
    ph2, nf = wf_t.shape[0], wf_t.shape[2]
    ph1h = ((H - KH + 1) // 2) // 2               # 7 = half the pooled height

    # NCHW -> NHWC rows flattened as (w*Cin+ci), zero-padded to kd1 lanes, four
    # input rows packed per sublane row, batch on the second axis so every
    # kernel-side slice/reshape is contiguous and tile-aligned: [H/4, B, 4*kd1].
    x = jnp.transpose(x_nchw, (0, 2, 3, 1)).reshape(B, H, W * cin)
    x = jnp.pad(x.astype(jnp.bfloat16), ((0, 0), (0, 0), (0, kd1 - W * cin)))
    x = jnp.transpose(x.reshape(B, H // 4, 4 * kd1), (1, 0, 2))

    bb = block_b
    b_pad = _round_up(B, bb)
    if b_pad != B:
        x = jnp.pad(x, ((0, 0), (0, b_pad - B), (0, 0)))

    kernel = functools.partial(_cnn_fused_kernel, bb=bb, kd1=kd1, ph1h=ph1h,
                               n1=n1, ph2=ph2, n2=n2, nf=nf)

    # NOTE(v7x): with 2 TensorCores per chip, choose B so b_pad // bb >= 2 (and
    # ideally even) to keep both cores busy; the ~2.3 MiB of weights stay
    # resident (constant index_map), so VMEM use is ~7 MiB << 64 MiB.
    y_full = pl.pallas_call(
        kernel,
        out_shape=jax.ShapeDtypeStruct((b_pad, nf), jnp.float32),
        grid=(b_pad // bb,),
        in_specs=[
            pl.BlockSpec((H // 4, bb, 4 * kd1), lambda bi: (0, bi, 0)),
            pl.BlockSpec(w1_t.shape, lambda bi: (0, 0, 0)),   # resident weights
            pl.BlockSpec(b1_t.shape, lambda bi: (0, 0)),
            pl.BlockSpec(w2_t.shape, lambda bi: (0, 0, 0)),
            pl.BlockSpec(b2_t.shape, lambda bi: (0, 0)),
            pl.BlockSpec(wf_t.shape, lambda bi: (0, 0, 0)),
            pl.BlockSpec(bf_t.shape, lambda bi: (0, 0)),
        ],
        out_specs=pl.BlockSpec((bb, nf), lambda bi: (bi, 0)),
        compiler_params=pltpu.CompilerParams(
            dimension_semantics=("parallel",),
            vmem_limit_bytes=_VMEM_LIMIT),
    )(x, w1_t, b1_t, w2_t, b2_t, wf_t, bf_t)
    return y_full[:B, :n_classes]


# ----------------------------------------------------------------------------
# Pure-JAX reference (mirrors the PyTorch module, f32)
# ----------------------------------------------------------------------------
def _reference_forward(x, params):
    w1, b1, w2, b2, wf, bf = params

    def conv_relu(x, w, b):
        y = jax.lax.conv_general_dilated(
            x, w, window_strides=(1, 1), padding="VALID",
            dimension_numbers=("NCHW", "OIHW", "NCHW"))
        return jax.nn.relu(y + b[None, :, None, None])

    def pool(x):
        return jax.lax.reduce_window(
            x, -jnp.inf, jax.lax.max, (1, 1, 2, 2), (1, 1, 2, 2), "VALID")

    o1 = pool(conv_relu(x, w1, b1))
    o2 = pool(conv_relu(o1, w2, b2))
    flat = o2.reshape(x.shape[0], -1)
    return flat @ wf.T + bf


def init_params(key):
    """Deterministic synthetic parameters with the PyTorch shapes."""
    k1, k2, k3, k4, k5, k6 = jax.random.split(key, 6)
    w1 = jax.random.normal(k1, (16, 3, 5, 5), jnp.float32) * 0.1      # conv1 w
    b1 = jax.random.normal(k2, (16,), jnp.float32) * 0.1              # conv1 b
    w2 = jax.random.normal(k3, (32, 16, 5, 5), jnp.float32) * 0.05    # conv2 w
    b2 = jax.random.normal(k4, (32,), jnp.float32) * 0.05             # conv2 b
    wf = jax.random.normal(k5, (10, 32 * 5 * 5), jnp.float32) * 0.02  # fc w [out,in]
    bf = jax.random.normal(k6, (10,), jnp.float32) * 0.02             # fc b
    return (w1, b1, w2, b2, wf, bf)


if __name__ == "__main__":
    key = jax.random.PRNGKey(0)
    pkey, xkey = jax.random.split(key)
    params = init_params(pkey)
    # Input consistent with the module: fc expects 32*5*5, so spatial must be 32.
    x = jax.random.normal(xkey, (2, 3, 32, 32), jnp.float32)

    prepared = prepare_params(params)           # one-time weight layout prep
    y = jax.block_until_ready(cnn_forward(x, prepared))
    assert y.shape == (2, 10) and y.dtype == jnp.float32

    # Loose tolerance: Pallas path uses bf16 operands (f32 accumulate).
    y_ref = jax.block_until_ready(_reference_forward(x, params))
    assert bool(jnp.allclose(y, y_ref, atol=1e-1, rtol=1e-1))

    print("KERNEL_OK")
</pallas_src>

<mosaic_0001>
module attributes {stable_mosaic.version = 11 : i64} {
  func.func @_cnn_fused_kernel(%arg0: i32, %arg1: memref<8x16x512xbf16, #tpu.memory_space<vmem>>, %arg2: memref<2x640x256xbf16, #tpu.memory_space<vmem>>, %arg3: memref<1x256xf32, #tpu.memory_space<vmem>>, %arg4: memref<2x1280x256xbf16, #tpu.memory_space<vmem>>, %arg5: memref<1x256xf32, #tpu.memory_space<vmem>>, %arg6: memref<5x256x128xbf16, #tpu.memory_space<vmem>>, %arg7: memref<1x128xf32, #tpu.memory_space<vmem>>, %arg8: memref<16x128xf32, #tpu.memory_space<vmem>>) attributes {dimension_semantics = [#tpu.dimension_semantics<parallel>], iteration_bounds = array<i64: 1>, scalar_prefetch = 0 : i64, scratch_operands = 0 : i64, tpu.core_type = #tpu.core_type<tc>, window_params = [{transform_indices = @transform_0, window_bounds = array<i64: 8, 16, 512>}, {pipeline_mode = #tpu.pipeline_mode<synchronous>, transform_indices = @transform_1, window_bounds = array<i64: 2, 640, 256>}, {pipeline_mode = #tpu.pipeline_mode<synchronous>, transform_indices = @transform_2, window_bounds = array<i64: 1, 256>}, {pipeline_mode = #tpu.pipeline_mode<synchronous>, transform_indices = @transform_3, window_bounds = array<i64: 2, 1280, 256>}, {pipeline_mode = #tpu.pipeline_mode<synchronous>, transform_indices = @transform_4, window_bounds = array<i64: 1, 256>}, {pipeline_mode = #tpu.pipeline_mode<synchronous>, transform_indices = @transform_5, window_bounds = array<i64: 5, 256, 128>}, {pipeline_mode = #tpu.pipeline_mode<synchronous>, transform_indices = @transform_6, window_bounds = array<i64: 1, 128>}, {transform_indices = @transform_7, window_bounds = array<i64: 16, 128>}]} {
    %c0 = arith.constant 0 : index
    %c0_0 = arith.constant 0 : index
    %0 = vector.load %arg3[%c0, %c0_0] : memref<1x256xf32, #tpu.memory_space<vmem>>, vector<1x256xf32>
    %c0_1 = arith.constant 0 : index
    %c0_2 = arith.constant 0 : index
    %c0_3 = arith.constant 0 : index
    %1 = vector.load %arg1[%c0_1, %c0_2, %c0_3] : memref<8x16x512xbf16, #tpu.memory_space<vmem>>, vector<7x16x128xbf16>
    %2 = vector.shape_cast %1 : vector<7x16x128xbf16> to vector<112x128xbf16>
    %c0_4 = arith.constant 0 : index
    %c0_5 = arith.constant 0 : index
    %c128 = arith.constant 128 : index
    %3 = vector.load %arg1[%c0_4, %c0_5, %c128] : memref<8x16x512xbf16, #tpu.memory_space<vmem>>, vector<7x16x128xbf16>
    %4 = vector.shape_cast %3 : vector<7x16x128xbf16> to vector<112x128xbf16>
    %c0_6 = arith.constant 0 : index
    %c0_7 = arith.constant 0 : index
    %c256 = arith.constant 256 : index
    %5 = vector.load %arg1[%c0_6, %c0_7, %c256] : memref<8x16x512xbf16, #tpu.memory_space<vmem>>, vector<7x16x128xbf16>
    %6 = vector.shape_cast %5 : vector<7x16x128xbf16> to vector<112x128xbf16>
    %c0_8 = arith.constant 0 : index
    %c0_9 = arith.constant 0 : index
    %c384 = arith.constant 384 : index
    %7 = vector.load %arg1[%c0_8, %c0_9, %c384] : memref<8x16x512xbf16, #tpu.memory_space<vmem>>, vector<7x16x128xbf16>
    %8 = vector.shape_cast %7 : vector<7x16x128xbf16> to vector<112x128xbf16>
    %c1 = arith.constant 1 : index
    %c0_10 = arith.constant 0 : index
    %c0_11 = arith.constant 0 : index
    %9 = vector.load %arg1[%c1, %c0_10, %c0_11] : memref<8x16x512xbf16, #tpu.memory_space<vmem>>, vector<7x16x128xbf16>
    %10 = vector.shape_cast %9 : vector<7x16x128xbf16> to vector<112x128xbf16>
    %11 = tpu.concatenate %2, %4, %6, %8, %10 in 1 : vector<112x128xbf16>, vector<112x128xbf16>, vector<112x128xbf16>, vector<112x128xbf16>, vector<112x128xbf16> -> vector<112x640xbf16>
    %c0_12 = arith.constant 0 : index
    %c0_13 = arith.constant 0 : index
    %c0_14 = arith.constant 0 : index
    %12 = vector.load %arg2[%c0_12, %c0_13, %c0_14] : memref<2x640x256xbf16, #tpu.memory_space<vmem>>, vector<1x640x256xbf16>
    %13 = vector.shape_cast %12 : vector<1x640x256xbf16> to vector<640x256xbf16>
    %cst = arith.constant dense<0.000000e+00> : vector<112x256xf32>
    %14 = tpu.matmul %11, %13, %cst {dimension_numbers = #tpu.dot_dimension_numbers<[1], [0], [0], [1], [0, 0, 1, 1], [], []>} : vector<112x640xbf16>, vector<640x256xbf16>, vector<112x256xf32> -> vector<112x256xf32>
    %c1_15 = arith.constant 1 : index
    %c0_16 = arith.constant 0 : index
    %c0_17 = arith.constant 0 : index
    %15 = vector.load %arg2[%c1_15, %c0_16, %c0_17] : memref<2x640x256xbf16, #tpu.memory_space<vmem>>, vector<1x640x256xbf16>
    %16 = vector.shape_cast %15 : vector<1x640x256xbf16> to vector<640x256xbf16>
    %cst_18 = arith.constant dense<0.000000e+00> : vector<112x256xf32>
    %17 = tpu.matmul %11, %16, %cst_18 {dimension_numbers = #tpu.dot_dimension_numbers<[1], [0], [0], [1], [0, 0, 1, 1], [], []>} : vector<112x640xbf16>, vector<640x256xbf16>, vector<112x256xf32> -> vector<112x256xf32>
    %18 = arith.maximumf %14, %17 : vector<112x256xf32>
    %c0_19 = arith.constant 0 : index
    %c0_20 = arith.constant 0 : index
    %c128_21 = arith.constant 128 : index
    %19 = vector.load %arg1[%c0_19, %c0_20, %c128_21] : memref<8x16x512xbf16, #tpu.memory_space<vmem>>, vector<7x16x128xbf16>
    %20 = vector.shape_cast %19 : vector<7x16x128xbf16> to vector<112x128xbf16>
    %c0_22 = arith.constant 0 : index
    %c0_23 = arith.constant 0 : index
    %c256_24 = arith.constant 256 : index
    %21 = vector.load %arg1[%c0_22, %c0_23, %c256_24] : memref<8x16x512xbf16, #tpu.memory_space<vmem>>, vector<7x16x128xbf16>
    %22 = vector.shape_cast %21 : vector<7x16x128xbf16> to vector<112x128xbf16>
    %c0_25 = arith.constant 0 : index
    %c0_26 = arith.constant 0 : index
    %c384_27 = arith.constant 384 : index
    %23 = vector.load %arg1[%c0_25, %c0_26, %c384_27] : memref<8x16x512xbf16, #tpu.memory_space<vmem>>, vector<7x16x128xbf16>
    %24 = vector.shape_cast %23 : vector<7x16x128xbf16> to vector<112x128xbf16>
    %c1_28 = arith.constant 1 : index
    %c0_29 = arith.constant 0 : index
    %c0_30 = arith.constant 0 : index
    %25 = vector.load %arg1[%c1_28, %c0_29, %c0_30] : memref<8x16x512xbf16, #tpu.memory_space<vmem>>, vector<7x16x128xbf16>
    %26 = vector.shape_cast %25 : vector<7x16x128xbf16> to vector<112x128xbf16>
    %c1_31 = arith.constant 1 : index
    %c0_32 = arith.constant 0 : index
    %c128_33 = arith.constant 128 : index
    %27 = vector.load %arg1[%c1_31, %c0_32, %c128_33] : memref<8x16x512xbf16, #tpu.memory_space<vmem>>, vector<7x16x128xbf16>
    %28 = vector.shape_cast %27 : vector<7x16x128xbf16> to vector<112x128xbf16>
    %29 = tpu.concatenate %20, %22, %24, %26, %28 in 1 : vector<112x128xbf16>, vector<112x128xbf16>, vector<112x128xbf16>, vector<112x128xbf16>, vector<112x128xbf16> -> vector<112x640xbf16>
    %c0_34 = arith.constant 0 : index
    %c0_35 = arith.constant 0 : index
    %c0_36 = arith.constant 0 : index
    %30 = vector.load %arg2[%c0_34, %c0_35, %c0_36] : memref<2x640x256xbf16, #tpu.memory_space<vmem>>, vector<1x640x256xbf16>
    %31 = vector.shape_cast %30 : vector<1x640x256xbf16> to vector<640x256xbf16>
    %cst_37 = arith.constant dense<0.000000e+00> : vector<112x256xf32>
    %32 = tpu.matmul %29, %31, %cst_37 {dimension_numbers = #tpu.dot_dimension_numbers<[1], [0], [0], [1], [0, 0, 1, 1], [], []>} : vector<112x640xbf16>, vector<640x256xbf16>, vector<112x256xf32> -> vector<112x256xf32>
    %33 = arith.maximumf %18, %32 : vector<112x256xf32>
    %c1_38 = arith.constant 1 : index
    %c0_39 = arith.constant 0 : index
    %c0_40 = arith.constant 0 : index
    %34 = vector.load %arg2[%c1_38, %c0_39, %c0_40] : memref<2x640x256xbf16, #tpu.memory_space<vmem>>, vector<1x640x256xbf16>
    %35 = vector.shape_cast %34 : vector<1x640x256xbf16> to vector<640x256xbf16>
    %cst_41 = arith.constant dense<0.000000e+00> : vector<112x256xf32>
    %36 = tpu.matmul %29, %35, %cst_41 {dimension_numbers = #tpu.dot_dimension_numbers<[1], [0], [0], [1], [0, 0, 1, 1], [], []>} : vector<112x640xbf16>, vector<640x256xbf16>, vector<112x256xf32> -> vector<112x256xf32>
    %37 = arith.maximumf %33, %36 : vector<112x256xf32>
    %38 = vector.broadcast %0 : vector<1x256xf32> to vector<112x256xf32>
    %39 = arith.addf %37, %38 : vector<112x256xf32>
    %cst_42 = arith.constant 0.000000e+00 : f32
    %40 = vector.broadcast %cst_42 : f32 to vector<112x256xf32>
    %41 = arith.maximumf %39, %40 : vector<112x256xf32>
    %42 = arith.truncf %41 : vector<112x256xf32> to vector<112x256xbf16>
    %43 = vector.shape_cast %42 : vector<112x256xbf16> to vector<7x16x256xbf16>
    %c0_43 = arith.constant 0 : index
    %c0_44 = arith.constant 0 : index
    %c256_45 = arith.constant 256 : index
    %44 = vector.load %arg1[%c0_43, %c0_44, %c256_45] : memref<8x16x512xbf16, #tpu.memory_space<vmem>>, vector<7x16x128xbf16>
    %45 = vector.shape_cast %44 : vector<7x16x128xbf16> to vector<112x128xbf16>
    %c0_46 = arith.constant 0 : index
    %c0_47 = arith.constant 0 : index
    %c384_48 = arith.constant 384 : index
    %46 = vector.load %arg1[%c0_46, %c0_47, %c384_48] : memref<8x16x512xbf16, #tpu.memory_space<vmem>>, vector<7x16x128xbf16>
    %47 = vector.shape_cast %46 : vector<7x16x128xbf16> to vector<112x128xbf16>
    %c1_49 = arith.constant 1 : index
    %c0_50 = arith.constant 0 : index
    %c0_51 = arith.constant 0 : index
    %48 = vector.load %arg1[%c1_49, %c0_50, %c0_51] : memref<8x16x512xbf16, #tpu.memory_space<vmem>>, vector<7x16x128xbf16>
    %49 = vector.shape_cast %48 : vector<7x16x128xbf16> to vector<112x128xbf16>
    %c1_52 = arith.constant 1 : index
    %c0_53 = arith.constant 0 : index
    %c128_54 = arith.constant 128 : index
    %50 = vector.load %arg1[%c1_52, %c0_53, %c128_54] : memref<8x16x512xbf16, #tpu.memory_space<vmem>>, vector<7x16x128xbf16>
    %51 = vector.shape_cast %50 : vector<7x16x128xbf16> to vector<112x128xbf16>
    %c1_55 = arith.constant 1 : index
    %c0_56 = arith.constant 0 : index
    %c256_57 = arith.constant 256 : index
    %52 = vector.load %arg1[%c1_55, %c0_56, %c256_57] : memref<8x16x512xbf16, #tpu.memory_space<vmem>>, vector<7x16x128xbf16>
    %53 = vector.shape_cast %52 : vector<7x16x128xbf16> to vector<112x128xbf16>
    %54 = tpu.concatenate %45, %47, %49, %51, %53 in 1 : vector<112x128xbf16>, vector<112x128xbf16>, vector<112x128xbf16>, vector<112x128xbf16>, vector<112x128xbf16> -> vector<112x640xbf16>
    %c0_58 = arith.constant 0 : index
    %c0_59 = arith.constant 0 : index
    %c0_60 = arith.constant 0 : index
    %55 = vector.load %arg2[%c0_58, %c0_59, %c0_60] : memref<2x640x256xbf16, #tpu.memory_space<vmem>>, vector<1x640x256xbf16>
    %56 = vector.shape_cast %55 : vector<1x640x256xbf16> to vector<640x256xbf16>
    %cst_61 = arith.constant dense<0.000000e+00> : vector<112x256xf32>
    %57 = tpu.matmul %54, %56, %cst_61 {dimension_numbers = #tpu.dot_dimension_numbers<[1], [0], [0], [1], [0, 0, 1, 1], [], []>} : vector<112x640xbf16>, vector<640x256xbf16>, vector<112x256xf32> -> vector<112x256xf32>
    %c1_62 = arith.constant 1 : index
    %c0_63 = arith.constant 0 : index
    %c0_64 = arith.constant 0 : index
    %58 = vector.load %arg2[%c1_62, %c0_63, %c0_64] : memref<2x640x256xbf16, #tpu.memory_space<vmem>>, vector<1x640x256xbf16>
    %59 = vector.shape_cast %58 : vector<1x640x256xbf16> to vector<640x256xbf16>
    %cst_65 = arith.constant dense<0.000000e+00> : vector<112x256xf32>
    %60 = tpu.matmul %54, %59, %cst_65 {dimension_numbers = #tpu.dot_dimension_numbers<[1], [0], [0], [1], [0, 0, 1, 1], [], []>} : vector<112x640xbf16>, vector<640x256xbf16>, vector<112x256xf32> -> vector<112x256xf32>
    %61 = arith.maximumf %57, %60 : vector<112x256xf32>
    %c0_66 = arith.constant 0 : index
    %c0_67 = arith.constant 0 : index
    %c384_68 = arith.constant 384 : index
    %62 = vector.load %arg1[%c0_66, %c0_67, %c384_68] : memref<8x16x512xbf16, #tpu.memory_space<vmem>>, vector<7x16x128xbf16>
    %63 = vector.shape_cast %62 : vector<7x16x128xbf16> to vector<112x128xbf16>
    %c1_69 = arith.constant 1 : index
    %c0_70 = arith.constant 0 : index
    %c0_71 = arith.constant 0 : index
    %64 = vector.load %arg1[%c1_69, %c0_70, %c0_71] : memref<8x16x512xbf16, #tpu.memory_space<vmem>>, vector<7x16x128xbf16>
    %65 = vector.shape_cast %64 : vector<7x16x128xbf16> to vector<112x128xbf16>
    %c1_72 = arith.constant 1 : index
    %c0_73 = arith.constant 0 : index
    %c128_74 = arith.constant 128 : index
    %66 = vector.load %arg1[%c1_72, %c0_73, %c128_74] : memref<8x16x512xbf16, #tpu.memory_space<vmem>>, vector<7x16x128xbf16>
    %67 = vector.shape_cast %66 : vector<7x16x128xbf16> to vector<112x128xbf16>
    %c1_75 = arith.constant 1 : index
    %c0_76 = arith.constant 0 : index
    %c256_77 = arith.constant 256 : index
    %68 = vector.load %arg1[%c1_75, %c0_76, %c256_77] : memref<8x16x512xbf16, #tpu.memory_space<vmem>>, vector<7x16x128xbf16>
    %69 = vector.shape_cast %68 : vector<7x16x128xbf16> to vector<112x128xbf16>
    %c1_78 = arith.constant 1 : index
    %c0_79 = arith.constant 0 : index
    %c384_80 = arith.constant 384 : index
    %70 = vector.load %arg1[%c1_78, %c0_79, %c384_80] : memref<8x16x512xbf16, #tpu.memory_space<vmem>>, vector<7x16x128xbf16>
    %71 = vector.shape_cast %70 : vector<7x16x128xbf16> to vector<112x128xbf16>
    %72 = tpu.concatenate %63, %65, %67, %69, %71 in 1 : vector<112x128xbf16>, vector<112x128xbf16>, vector<112x128xbf16>, vector<112x128xbf16>, vector<112x128xbf16> -> vector<112x640xbf16>
    %c0_81 = arith.constant 0 : index
    %c0_82 = arith.constant 0 : index
    %c0_83 = arith.constant 0 : index
    %73 = vector.load %arg2[%c0_81, %c0_82, %c0_83] : memref<2x640x256xbf16, #tpu.memory_space<vmem>>, vector<1x640x256xbf16>
    %74 = vector.shape_cast %73 : vector<1x640x256xbf16> to vector<640x256xbf16>
    %cst_84 = arith.constant dense<0.000000e+00> : vector<112x256xf32>
    %75 = tpu.matmul %72, %74, %cst_84 {dimension_numbers = #tpu.dot_dimension_numbers<[1], [0], [0], [1], [0, 0, 1, 1], [], []>} : vector<112x640xbf16>, vector<640x256xbf16>, vector<112x256xf32> -> vector<112x256xf32>
    %76 = arith.maximumf %61, %75 : vector<112x256xf32>
    %c1_85 = arith.constant 1 : index
    %c0_86 = arith.constant 0 : index
    %c0_87 = arith.constant 0 : index
    %77 = vector.load %arg2[%c1_85, %c0_86, %c0_87] : memref<2x640x256xbf16, #tpu.memory_space<vmem>>, vector<1x640x256xbf16>
    %78 = vector.shape_cast %77 : vector<1x640x256xbf16> to vector<640x256xbf16>
    %cst_88 = arith.constant dense<0.000000e+00> : vector<112x256xf32>
    %79 = tpu.matmul %72, %78, %cst_88 {dimension_numbers = #tpu.dot_dimension_numbers<[1], [0], [0], [1], [0, 0, 1, 1], [], []>} : vector<112x640xbf16>, vector<640x256xbf16>, vector<112x256xf32> -> vector<112x256xf32>
    %80 = arith.maximumf %76, %79 : vector<112x256xf32>
    %81 = vector.broadcast %0 : vector<1x256xf32> to vector<112x256xf32>
    %82 = arith.addf %80, %81 : vector<112x256xf32>
    %cst_89 = arith.constant 0.000000e+00 : f32
    %83 = vector.broadcast %cst_89 : f32 to vector<112x256xf32>
    %84 = arith.maximumf %82, %83 : vector<112x256xf32>
    %85 = arith.truncf %84 : vector<112x256xf32> to vector<112x256xbf16>
    %86 = vector.shape_cast %85 : vector<112x256xbf16> to vector<7x16x256xbf16>
    %c0_90 = arith.constant 0 : index
    %c0_91 = arith.constant 0 : index
    %87 = vector.load %arg5[%c0_90, %c0_91] : memref<1x256xf32, #tpu.memory_space<vmem>>, vector<1x256xf32>
    %88 = vector.extract_strided_slice %43 {offsets = [0, 0, 0], sizes = [5, 16, 256], strides = [1, 1, 1]} : vector<7x16x256xbf16> to vector<5x16x256xbf16>
    %89 = vector.shape_cast %88 : vector<5x16x256xbf16> to vector<80x256xbf16>
    %90 = vector.extract_strided_slice %86 {offsets = [0, 0, 0], sizes = [5, 16, 256], strides = [1, 1, 1]} : vector<7x16x256xbf16> to vector<5x16x256xbf16>
    %91 = vector.shape_cast %90 : vector<5x16x256xbf16> to vector<80x256xbf16>
    %92 = vector.extract_strided_slice %43 {offsets = [1, 0, 0], sizes = [5, 16, 256], strides = [1, 1, 1]} : vector<7x16x256xbf16> to vector<5x16x256xbf16>
    %93 = vector.shape_cast %92 : vector<5x16x256xbf16> to vector<80x256xbf16>
    %94 = vector.extract_strided_slice %86 {offsets = [1, 0, 0], sizes = [5, 16, 256], strides = [1, 1, 1]} : vector<7x16x256xbf16> to vector<5x16x256xbf16>
    %95 = vector.shape_cast %94 : vector<5x16x256xbf16> to vector<80x256xbf16>
    %96 = vector.extract_strided_slice %43 {offsets = [2, 0, 0], sizes = [5, 16, 256], strides = [1, 1, 1]} : vector<7x16x256xbf16> to vector<5x16x256xbf16>
    %97 = vector.shape_cast %96 : vector<5x16x256xbf16> to vector<80x256xbf16>
    %98 = tpu.concatenate %89, %91, %93, %95, %97 in 1 : vector<80x256xbf16>, vector<80x256xbf16>, vector<80x256xbf16>, vector<80x256xbf16>, vector<80x256xbf16> -> vector<80x1280xbf16>
    %c0_92 = arith.constant 0 : index
    %c0_93 = arith.constant 0 : index
    %c0_94 = arith.constant 0 : index
    %99 = vector.load %arg4[%c0_92, %c0_93, %c0_94] : memref<2x1280x256xbf16, #tpu.memory_space<vmem>>, vector<1x1280x256xbf16>
    %100 = vector.shape_cast %99 : vector<1x1280x256xbf16> to vector<1280x256xbf16>
    %cst_95 = arith.constant dense<0.000000e+00> : vector<80x256xf32>
    %101 = tpu.matmul %98, %100, %cst_95 {dimension_numbers = #tpu.dot_dimension_numbers<[1], [0], [0], [1], [0, 0, 1, 1], [], []>} : vector<80x1280xbf16>, vector<1280x256xbf16>, vector<80x256xf32> -> vector<80x256xf32>
    %c1_96 = arith.constant 1 : index
    %c0_97 = arith.constant 0 : index
    %c0_98 = arith.constant 0 : index
    %102 = vector.load %arg4[%c1_96, %c0_97, %c0_98] : memref<2x1280x256xbf16, #tpu.memory_space<vmem>>, vector<1x1280x256xbf16>
    %103 = vector.shape_cast %102 : vector<1x1280x256xbf16> to vector<1280x256xbf16>
    %cst_99 = arith.constant dense<0.000000e+00> : vector<80x256xf32>
    %104 = tpu.matmul %98, %103, %cst_99 {dimension_numbers = #tpu.dot_dimension_numbers<[1], [0], [0], [1], [0, 0, 1, 1], [], []>} : vector<80x1280xbf16>, vector<1280x256xbf16>, vector<80x256xf32> -> vector<80x256xf32>
    %105 = arith.maximumf %101, %104 : vector<80x256xf32>
    %106 = vector.extract_strided_slice %86 {offsets = [0, 0, 0], sizes = [5, 16, 256], strides = [1, 1, 1]} : vector<7x16x256xbf16> to vector<5x16x256xbf16>
    %107 = vector.shape_cast %106 : vector<5x16x256xbf16> to vector<80x256xbf16>
    %108 = vector.extract_strided_slice %43 {offsets = [1, 0, 0], sizes = [5, 16, 256], strides = [1, 1, 1]} : vector<7x16x256xbf16> to vector<5x16x256xbf16>
    %109 = vector.shape_cast %108 : vector<5x16x256xbf16> to vector<80x256xbf16>
    %110 = vector.extract_strided_slice %86 {offsets = [1, 0, 0], sizes = [5, 16, 256], strides = [1, 1, 1]} : vector<7x16x256xbf16> to vector<5x16x256xbf16>
    %111 = vector.shape_cast %110 : vector<5x16x256xbf16> to vector<80x256xbf16>
    %112 = vector.extract_strided_slice %43 {offsets = [2, 0, 0], sizes = [5, 16, 256], strides = [1, 1, 1]} : vector<7x16x256xbf16> to vector<5x16x256xbf16>
    %113 = vector.shape_cast %112 : vector<5x16x256xbf16> to vector<80x256xbf16>
    %114 = vector.extract_strided_slice %86 {offsets = [2, 0, 0], sizes = [5, 16, 256], strides = [1, 1, 1]} : vector<7x16x256xbf16> to vector<5x16x256xbf16>
    %115 = vector.shape_cast %114 : vector<5x16x256xbf16> to vector<80x256xbf16>
    %116 = tpu.concatenate %107, %109, %111, %113, %115 in 1 : vector<80x256xbf16>, vector<80x256xbf16>, vector<80x256xbf16>, vector<80x256xbf16>, vector<80x256xbf16> -> vector<80x1280xbf16>
    %c0_100 = arith.constant 0 : index
    %c0_101 = arith.constant 0 : index
    %c0_102 = arith.constant 0 : index
    %117 = vector.load %arg4[%c0_100, %c0_101, %c0_102] : memref<2x1280x256xbf16, #tpu.memory_space<vmem>>, vector<1x1280x256xbf16>
    %118 = vector.shape_cast %117 : vector<1x1280x256xbf16> to vector<1280x256xbf16>
    %cst_103 = arith.constant dense<0.000000e+00> : vector<80x256xf32>
    %119 = tpu.matmul %116, %118, %cst_103 {dimension_numbers = #tpu.dot_dimension_numbers<[1], [0], [0], [1], [0, 0, 1, 1], [], []>} : vector<80x1280xbf16>, vector<1280x256xbf16>, vector<80x256xf32> -> vector<80x256xf32>
    %120 = arith.maximumf %105, %119 : vector<80x256xf32>
    %c1_104 = arith.constant 1 : index
    %c0_105 = arith.constant 0 : index
    %c0_106 = arith.constant 0 : index
    %121 = vector.load %arg4[%c1_104, %c0_105, %c0_106] : memref<2x1280x256xbf16, #tpu.memory_space<vmem>>, vector<1x1280x256xbf16>
    %122 = vector.shape_cast %121 : vector<1x1280x256xbf16> to vector<1280x256xbf16>
    %cst_107 = arith.constant dense<0.000000e+00> : vector<80x256xf32>
    %123 = tpu.matmul %116, %122, %cst_107 {dimension_numbers = #tpu.dot_dimension_numbers<[1], [0], [0], [1], [0, 0, 1, 1], [], []>} : vector<80x1280xbf16>, vector<1280x256xbf16>, vector<80x256xf32> -> vector<80x256xf32>
    %124 = arith.maximumf %120, %123 : vector<80x256xf32>
    %125 = vector.broadcast %87 : vector<1x256xf32> to vector<80x256xf32>
    %126 = arith.addf %124, %125 : vector<80x256xf32>
    %cst_108 = arith.constant 0.000000e+00 : f32
    %127 = vector.broadcast %cst_108 : f32 to vector<80x256xf32>
    %128 = arith.maximumf %126, %127 : vector<80x256xf32>
    %129 = arith.truncf %128 : vector<80x256xf32> to vector<80x256xbf16>
    %130 = vector.shape_cast %129 : vector<80x256xbf16> to vector<5x16x256xbf16>
    %131 = vector.extract_strided_slice %130 {offsets = [0, 0, 0], sizes = [1, 16, 256], strides = [1, 1, 1]} : vector<5x16x256xbf16> to vector<1x16x256xbf16>
    %132 = vector.shape_cast %131 : vector<1x16x256xbf16> to vector<16x256xbf16>
    %c0_109 = arith.constant 0 : index
    %c0_110 = arith.constant 0 : index
    %c0_111 = arith.constant 0 : index
    %133 = vector.load %arg6[%c0_109, %c0_110, %c0_111] : memref<5x256x128xbf16, #tpu.memory_space<vmem>>, vector<1x256x128xbf16>
    %134 = vector.shape_cast %133 : vector<1x256x128xbf16> to vector<256x128xbf16>
    %cst_112 = arith.constant dense<0.000000e+00> : vector<16x128xf32>
    %135 = tpu.matmul %132, %134, %cst_112 {dimension_numbers = #tpu.dot_dimension_numbers<[1], [0], [0], [1], [0, 0, 1, 1], [], []>} : vector<16x256xbf16>, vector<256x128xbf16>, vector<16x128xf32> -> vector<16x128xf32>
    %136 = vector.extract_strided_slice %130 {offsets = [1, 0, 0], sizes = [1, 16, 256], strides = [1, 1, 1]} : vector<5x16x256xbf16> to vector<1x16x256xbf16>
    %137 = vector.shape_cast %136 : vector<1x16x256xbf16> to vector<16x256xbf16>
    %c1_113 = arith.constant 1 : index
    %c0_114 = arith.constant 0 : index
    %c0_115 = arith.constant 0 : index
    %138 = vector.load %arg6[%c1_113, %c0_114, %c0_115] : memref<5x256x128xbf16, #tpu.memory_space<vmem>>, vector<1x256x128xbf16>
    %139 = vector.shape_cast %138 : vector<1x256x128xbf16> to vector<256x128xbf16>
    %cst_116 = arith.constant dense<0.000000e+00> : vector<16x128xf32>
    %140 = tpu.matmul %137, %139, %cst_116 {dimension_numbers = #tpu.dot_dimension_numbers<[1], [0], [0], [1], [0, 0, 1, 1], [], []>} : vector<16x256xbf16>, vector<256x128xbf16>, vector<16x128xf32> -> vector<16x128xf32>
    %141 = arith.addf %135, %140 : vector<16x128xf32>
    %142 = vector.extract_strided_slice %130 {offsets = [2, 0, 0], sizes = [1, 16, 256], strides = [1, 1, 1]} : vector<5x16x256xbf16> to vector<1x16x256xbf16>
    %143 = vector.shape_cast %142 : vector<1x16x256xbf16> to vector<16x256xbf16>
    %c2 = arith.constant 2 : index
    %c0_117 = arith.constant 0 : index
    %c0_118 = arith.constant 0 : index
    %144 = vector.load %arg6[%c2, %c0_117, %c0_118] : memref<5x256x128xbf16, #tpu.memory_space<vmem>>, vector<1x256x128xbf16>
    %145 = vector.shape_cast %144 : vector<1x256x128xbf16> to vector<256x128xbf16>
    %cst_119 = arith.constant dense<0.000000e+00> : vector<16x128xf32>
    %146 = tpu.matmul %143, %145, %cst_119 {dimension_numbers = #tpu.dot_dimension_numbers<[1], [0], [0], [1], [0, 0, 1, 1], [], []>} : vector<16x256xbf16>, vector<256x128xbf16>, vector<16x128xf32> -> vector<16x128xf32>
    %147 = arith.addf %141, %146 : vector<16x128xf32>
    %148 = vector.extract_strided_slice %130 {offsets = [3, 0, 0], sizes = [1, 16, 256], strides = [1, 1, 1]} : vector<5x16x256xbf16> to vector<1x16x256xbf16>
    %149 = vector.shape_cast %148 : vector<1x16x256xbf16> to vector<16x256xbf16>
    %c3 = arith.constant 3 : index
    %c0_120 = arith.constant 0 : index
    %c0_121 = arith.constant 0 : index
    %150 = vector.load %arg6[%c3, %c0_120, %c0_121] : memref<5x256x128xbf16, #tpu.memory_space<vmem>>, vector<1x256x128xbf16>
    %151 = vector.shape_cast %150 : vector<1x256x128xbf16> to vector<256x128xbf16>
    %cst_122 = arith.constant dense<0.000000e+00> : vector<16x128xf32>
    %152 = tpu.matmul %149, %151, %cst_122 {dimension_numbers = #tpu.dot_dimension_numbers<[1], [0], [0], [1], [0, 0, 1, 1], [], []>} : vector<16x256xbf16>, vector<256x128xbf16>, vector<16x128xf32> -> vector<16x128xf32>
    %153 = arith.addf %147, %152 : vector<16x128xf32>
    %154 = vector.extract_strided_slice %130 {offsets = [4, 0, 0], sizes = [1, 16, 256], strides = [1, 1, 1]} : vector<5x16x256xbf16> to vector<1x16x256xbf16>
    %155 = vector.shape_cast %154 : vector<1x16x256xbf16> to vector<16x256xbf16>
    %c4 = arith.constant 4 : index
    %c0_123 = arith.constant 0 : index
    %c0_124 = arith.constant 0 : index
    %156 = vector.load %arg6[%c4, %c0_123, %c0_124] : memref<5x256x128xbf16, #tpu.memory_space<vmem>>, vector<1x256x128xbf16>
    %157 = vector.shape_cast %156 : vector<1x256x128xbf16> to vector<256x128xbf16>
    %cst_125 = arith.constant dense<0.000000e+00> : vector<16x128xf32>
    %158 = tpu.matmul %155, %157, %cst_125 {dimension_numbers = #tpu.dot_dimension_numbers<[1], [0], [0], [1], [0, 0, 1, 1], [], []>} : vector<16x256xbf16>, vector<256x128xbf16>, vector<16x128xf32> -> vector<16x128xf32>
    %159 = arith.addf %153, %158 : vector<16x128xf32>
    %c0_126 = arith.constant 0 : index
    %c0_127 = arith.constant 0 : index
    %160 = vector.load %arg7[%c0_126, %c0_127] : memref<1x128xf32, #tpu.memory_space<vmem>>, vector<1x128xf32>
    %161 = vector.broadcast %160 : vector<1x128xf32> to vector<16x128xf32>
    %162 = arith.addf %159, %161 : vector<16x128xf32>
    %c0_128 = arith.constant 0 : index
    %c0_129 = arith.constant 0 : index
    %163 = vector.load %arg8[%c0_128, %c0_129] : memref<16x128xf32, #tpu.memory_space<vmem>>, vector<16x128xf32>
    tpu.vector_store %arg8[%c0_128, %c0_129], %162 {strides = array<i32>} : memref<16x128xf32, #tpu.memory_space<vmem>>, vector<16x128xf32>,
    return
  }
  func.func @transform_0(%arg0: i32) -> (i32, i32, i32) {
    %c0_i32 = arith.constant 0 : i32
    %c0_i32_0 = arith.constant 0 : i32
    %c0_i32_1 = arith.constant 0 : i32
    return %c0_i32, %arg0, %c0_i32_0 : i32, i32, i32
  }
  func.func @transform_1(%arg0: i32) -> (i32, i32, i32) {
    %c0_i32 = arith.constant 0 : i32
    %c0_i32_0 = arith.constant 0 : i32
    %c0_i32_1 = arith.constant 0 : i32
    %c0_i32_2 = arith.constant 0 : i32
    return %c0_i32, %c0_i32_0, %c0_i32_1 : i32, i32, i32
  }
  func.func @transform_2(%arg0: i32) -> (i32, i32) {
    %c0_i32 = arith.constant 0 : i32
    %c0_i32_0 = arith.constant 0 : i32
    %c0_i32_1 = arith.constant 0 : i32
    return %c0_i32, %c0_i32_0 : i32, i32
  }
  func.func @transform_3(%arg0: i32) -> (i32, i32, i32) {
    %c0_i32 = arith.constant 0 : i32
    %c0_i32_0 = arith.constant 0 : i32
    %c0_i32_1 = arith.constant 0 : i32
    %c0_i32_2 = arith.constant 0 : i32
    return %c0_i32, %c0_i32_0, %c0_i32_1 : i32, i32, i32
  }
  func.func @transform_4(%arg0: i32) -> (i32, i32) {
    %c0_i32 = arith.constant 0 : i32
    %c0_i32_0 = arith.constant 0 : i32
    %c0_i32_1 = arith.constant 0 : i32
    return %c0_i32, %c0_i32_0 : i32, i32
  }
  func.func @transform_5(%arg0: i32) -> (i32, i32, i32) {
    %c0_i32 = arith.constant 0 : i32
    %c0_i32_0 = arith.constant 0 : i32
    %c0_i32_1 = arith.constant 0 : i32
    %c0_i32_2 = arith.constant 0 : i32
    return %c0_i32, %c0_i32_0, %c0_i32_1 : i32, i32, i32
  }
  func.func @transform_6(%arg0: i32) -> (i32, i32) {
    %c0_i32 = arith.constant 0 : i32
    %c0_i32_0 = arith.constant 0 : i32
    %c0_i32_1 = arith.constant 0 : i32
    return %c0_i32, %c0_i32_0 : i32, i32
  }
  func.func @transform_7(%arg0: i32) -> (i32, i32) {
    %c0_i32 = arith.constant 0 : i32
    %c0_i32_0 = arith.constant 0 : i32
    return %arg0, %c0_i32 : i32, i32
  }
}

</mosaic_0001>

<llo_original>
// kernel: cnn_forward.1
$region0: #{cnn_forward.1}
  #allocation0 [shape = 'u32[]', space=smem, size = 0x4, offset = 0x4, fixed_abs, tag = 'smem constant byte address 0x4 - core index']
  #allocation1 [shape = 'u32[72,128]{1,0:T(1,128)}', space=vmem, size = 0x9000, scoped, tag = 'internal scratch']
  %s0 = inlined_call_operand.vmem [shape: bf16[8,16,512], index: 0, kind: input, shape index: {}]
  %s1 = inlined_call_operand.hbm [shape: bf16[2,640,256], index: 1, kind: input, shape index: {}]
  %s2 = inlined_call_operand.hbm [shape: f32[1,256], index: 2, kind: input, shape index: {}]
  %s3 = inlined_call_operand.hbm [shape: bf16[2,1280,256], index: 3, kind: input, shape index: {}]
  %s4 = inlined_call_operand.hbm [shape: f32[1,256], index: 4, kind: input, shape index: {}]
  %s5 = inlined_call_operand.hbm [shape: bf16[5,256,128], index: 5, kind: input, shape index: {}]
  %s6 = inlined_call_operand.hbm [shape: f32[1,128], index: 6, kind: input, shape index: {}]
  %s7 = inlined_call_operand.vmem [shape: f32[16,128], index: 7, kind: output, shape index: {}]
  %s8 = sld [smem:[#allocation0]]
  $region62: #{cnn_forward.1} parent=0
    _
  %s10 = ssub.s32 1, %s8
  %s11 = scalar_select 0, %s10, %s8
  $region1: #{cnn_forward.1} parent=0
    #allocation2 [shape = 'u8[655360]{0}', space=vmem, size = 0xa0000, scoped, tag = 'input window, operand 1, single buffered']
    #allocation3 [shape = 's32[1]{0}', space=sflag, size = 0x4, scoped, tag = 'scoped memory for cnn_forward.1']
    #allocation4 [shape = 'u8[1024]{0}', space=vmem, size = 0x400, scoped, tag = 'input window, operand 2, single buffered']
    #allocation5 [shape = 's32[1]{0}', space=sflag, size = 0x4, scoped, tag = 'scoped memory for cnn_forward.1']
    #allocation6 [shape = 'u8[1310720]{0}', space=vmem, size = 0x140000, scoped, tag = 'input window, operand 3, single buffered']
    #allocation7 [shape = 'u8[1024]{0}', space=vmem, size = 0x400, scoped, tag = 'input window, operand 4, single buffered']
    #allocation8 [shape = 's32[1]{0}', space=sflag, size = 0x4, scoped, tag = 'scoped memory for cnn_forward.1']
    #allocation9 [shape = 'u8[327680]{0}', space=vmem, size = 0x50000, scoped, tag = 'input window, operand 5, single buffered']
    #allocation10 [shape = 'u8[512]{0}', space=vmem, size = 0x400, scoped, tag = 'input window, operand 6, single buffered']
    #allocation11 [shape = 's32[1]{0}', space=sflag, size = 0x4, scoped, tag = 'scoped memory for cnn_forward.1']
    %12 = vsyncpa [#allocation3], 0
    %13 = vsyncpa [#allocation5], 0
    %14 = vsyncpa [#allocation8], 0
    %15 = vsyncpa [#allocation11], 0
    // Predicated region
    $region2: #{cnn_forward.1} parent=1 // pred_check
      _
    $region3: #{cnn_forward.1} parent=1 // pred_check_branch
      %17 = sbr.rel (0) target = $region5
    $region4: #{cnn_forward.1} parent=1 // pred_region
      _
    $region5: #{cnn_forward.1} parent=1 // pred_fallthru
      _
    // Predicated region
    $region6: #{cnn_forward.1} parent=1 // pred_check
      _
    $region7: #{cnn_forward.1} parent=1 // pred_check_branch
      %19 = sbr.rel (0) target = $region9
    $region8: #{cnn_forward.1} parent=1 // pred_region
      %21 = vsyncadd [#allocation3], 0
      %s22 = sshll.u32 %s1, 4
      %s23 = int_to_ptr.hbm [resolvable:$true] %s22
      %s24 = sshll.u32 [#allocation2], 4
      %s25 = int_to_ptr.vmem [resolvable:$true] %s24
      %30 = dma.hbm_to_vmem [thread:$0]  %s23, 20480, %s25, [#allocation3], 128, 128, 8
    $region9: #{cnn_forward.1} parent=1 // pred_fallthru
      _
    // Predicated region
    $region10: #{cnn_forward.1} parent=1 // pred_check
      _
    $region11: #{cnn_forward.1} parent=1 // pred_check_branch
      %32 = sbr.rel (0) target = $region13
    $region12: #{cnn_forward.1} parent=1 // pred_region
      %34 = vsyncadd [#allocation5], 0
      %s36 = sshll.u32 %s2, 4
      %s37 = int_to_ptr.hbm [resolvable:$true] %s36
      %s38 = sshll.u32 [#allocation4], 4
      %s39 = int_to_ptr.vmem [resolvable:$true] %s38
      %41 = dma.hbm_to_vmem [thread:$0]  %s37, 32, %s39, [#allocation5]
    $region13: #{cnn_forward.1} parent=1 // pred_fallthru
      _
    // Predicated region
    $region14: #{cnn_forward.1} parent=1 // pred_check
      _
    $region15: #{cnn_forward.1} parent=1 // pred_check_branch
      %43 = sbr.rel (0) target = $region17
    $region16: #{cnn_forward.1} parent=1 // pred_region
      %45 = vsyncadd [#allocation5], 0
      %s46 = sshll.u32 %s3, 4
      %s47 = int_to_ptr.hbm [resolvable:$true] %s46
      %s48 = sshll.u32 [#allocation6], 4
      %s49 = int_to_ptr.vmem [resolvable:$true] %s48
      %54 = dma.hbm_to_vmem [thread:$0]  %s47, 40960, %s49, [#allocation5], 128, 128, 8
    $region17: #{cnn_forward.1} parent=1 // pred_fallthru
      _
    // Predicated region
    $region18: #{cnn_forward.1} parent=1 // pred_check
      _
    $region19: #{cnn_forward.1} parent=1 // pred_check_branch
      %56 = sbr.rel (0) target = $region21
    $region20: #{cnn_forward.1} parent=1 // pred_region
      %58 = vsyncadd [#allocation8], 0
      %s60 = sshll.u32 %s4, 4
      %s61 = int_to_ptr.hbm [resolvable:$true] %s60
      %s62 = sshll.u32 [#allocation7], 4
      %s63 = int_to_ptr.vmem [resolvable:$true] %s62
      %65 = dma.hbm_to_vmem [thread:$0]  %s61, 32, %s63, [#allocation8]
    $region21: #{cnn_forward.1} parent=1 // pred_fallthru
      _
    // Predicated region
    $region22: #{cnn_forward.1} parent=1 // pred_check
      _
    $region23: #{cnn_forward.1} parent=1 // pred_check_branch
      %67 = sbr.rel (0) target = $region25
    $region24: #{cnn_forward.1} parent=1 // pred_region
      %69 = vsyncadd [#allocation8], 0
      %s70 = sshll.u32 %s5, 4
      %s71 = int_to_ptr.hbm [resolvable:$true] %s70
      %s72 = sshll.u32 [#allocation9], 4
      %s73 = int_to_ptr.vmem [resolvable:$true] %s72
      %78 = dma.hbm_to_vmem [thread:$0]  %s71, 10240, %s73, [#allocation8], 64, 64, 4
    $region25: #{cnn_forward.1} parent=1 // pred_fallthru
      _
    // Predicated region
    $region26: #{cnn_forward.1} parent=1 // pred_check
      _
    $region27: #{cnn_forward.1} parent=1 // pred_check_branch
      %80 = sbr.rel (0) target = $region29
    $region28: #{cnn_forward.1} parent=1 // pred_region
      %82 = vsyncadd [#allocation11], 0
      %s84 = sshll.u32 %s6, 4
      %s85 = int_to_ptr.hbm [resolvable:$true] %s84
      %s86 = sshll.u32 [#allocation10], 4
      %s87 = int_to_ptr.vmem [resolvable:$true] %s86
      %89 = dma.hbm_to_vmem [thread:$0]  %s85, 16, %s87, [#allocation11]
    $region29: #{cnn_forward.1} parent=1 // pred_fallthru
      _
    // Predicated region
    $region30: #{cnn_forward.1} parent=1 // pred_check
      _
    $region31: #{cnn_forward.1} parent=1 // pred_check_branch
      %91 = sbr.rel (0) target = $region33
    $region32: #{cnn_forward.1} parent=1 // pred_region
      %93 = dma.done [#allocation3], 20480
    $region33: #{cnn_forward.1} parent=1 // pred_fallthru
      _
    // Predicated region
    $region34: #{cnn_forward.1} parent=1 // pred_check
      _
    $region35: #{cnn_forward.1} parent=1 // pred_check_branch
      %95 = sbr.rel (0) target = $region37
    $region36: #{cnn_forward.1} parent=1 // pred_region
      %97 = dma.done [#allocation5], 32
    $region37: #{cnn_forward.1} parent=1 // pred_fallthru
      _
    // Predicated region
    $region38: #{cnn_forward.1} parent=1 // pred_check
      _
    $region39: #{cnn_forward.1} parent=1 // pred_check_branch
      %99 = sbr.rel (0) target = $region41
    $region40: #{cnn_forward.1} parent=1 // pred_region
      %101 = dma.done [#allocation5], 40960
    $region41: #{cnn_forward.1} parent=1 // pred_fallthru
      _
    // Predicated region
    $region42: #{cnn_forward.1} parent=1 // pred_check
      _
    $region43: #{cnn_forward.1} parent=1 // pred_check_branch
      %103 = sbr.rel (0) target = $region45
    $region44: #{cnn_forward.1} parent=1 // pred_region
      %105 = dma.done [#allocation8], 32
    $region45: #{cnn_forward.1} parent=1 // pred_fallthru
      _
    // Predicated region
    $region46: #{cnn_forward.1} parent=1 // pred_check
      _
    $region47: #{cnn_forward.1} parent=1 // pred_check_branch
      %107 = sbr.rel (0) target = $region49
    $region48: #{cnn_forward.1} parent=1 // pred_region
      %109 = dma.done [#allocation8], 10240
    $region49: #{cnn_forward.1} parent=1 // pred_fallthru
      _
    // Predicated region
    $region50: #{cnn_forward.1} parent=1 // pred_check
      _
    $region51: #{cnn_forward.1} parent=1 // pred_check_branch
      %111 = sbr.rel (0) target = $region53
    $region52: #{cnn_forward.1} parent=1 // pred_region
      %113 = dma.done [#allocation11], 16
    $region53: #{cnn_forward.1} parent=1 // pred_fallthru
      _
    %v114 = vld [vmem:[#allocation4] sm:$0x3]
    %v115 = vld [vmem:[%s0] sm:$0xf]
    %v116 = vld [vmem:[%s0 + $0x10] sm:$0xf]
    %v117 = vld [vmem:[%s0 + $0x20] sm:$0xf]
    %v118 = vld [vmem:[%s0 + $0x30] sm:$0xf]
    %v119 = vld [vmem:[%s0 + $0x40] sm:$0xf]
    %v120 = vld [vmem:[%s0 + $0x50] sm:$0xf]
    %v121 = vld [vmem:[%s0 + $0x60] sm:$0xf]
    %v122 = vld [vmem:[%s0 + $0x70] sm:$0xf]
    %v123 = vld [vmem:[%s0 + $0x80] sm:$0xf]
    %v124 = vld [vmem:[%s0 + $0x90] sm:$0xf]
    %v125 = vld [vmem:[%s0 + $0xa0] sm:$0xf]
    %v126 = vld [vmem:[%s0 + $0xb0] sm:$0xf]
    %v127 = vld [vmem:[%s0 + $0xc0] sm:$0xf]
    %v128 = vld [vmem:[%s0 + $0xd0] sm:$0xf]
    %v129 = vld [vmem:[%s0 + $0x4] sm:$0xf]
    %v130 = vld [vmem:[%s0 + $0x14] sm:$0xf]
    %v131 = vld [vmem:[%s0 + $0x24] sm:$0xf]
    %v132 = vld [vmem:[%s0 + $0x34] sm:$0xf]
    %v133 = vld [vmem:[%s0 + $0x44] sm:$0xf]
    %v134 = vld [vmem:[%s0 + $0x54] sm:$0xf]
    %v135 = vld [vmem:[%s0 + $0x64] sm:$0xf]
    %v136 = vld [vmem:[%s0 + $0x74] sm:$0xf]
    %v137 = vld [vmem:[%s0 + $0x84] sm:$0xf]
    %v138 = vld [vmem:[%s0 + $0x94] sm:$0xf]
    %v139 = vld [vmem:[%s0 + $0xa4] sm:$0xf]
    %v140 = vld [vmem:[%s0 + $0xb4] sm:$0xf]
    %v141 = vld [vmem:[%s0 + $0xc4] sm:$0xf]
    %v142 = vld [vmem:[%s0 + $0xd4] sm:$0xf]
    %v143 = vld [vmem:[%s0 + $0x8] sm:$0xf]
    %v144 = vld [vmem:[%s0 + $0x18] sm:$0xf]
    %v145 = vld [vmem:[%s0 + $0x28] sm:$0xf]
    %v146 = vld [vmem:[%s0 + $0x38] sm:$0xf]
    %v147 = vld [vmem:[%s0 + $0x48] sm:$0xf]
    %v148 = vld [vmem:[%s0 + $0x58] sm:$0xf]
    %v149 = vld [vmem:[%s0 + $0x68] sm:$0xf]
    %v150 = vld [vmem:[%s0 + $0x78] sm:$0xf]
    %v151 = vld [vmem:[%s0 + $0x88] sm:$0xf]
    %v152 = vld [vmem:[%s0 + $0x98] sm:$0xf]
    %v153 = vld [vmem:[%s0 + $0xa8] sm:$0xf]
    %v154 = vld [vmem:[%s0 + $0xb8] sm:$0xf]
    %v155 = vld [vmem:[%s0 + $0xc8] sm:$0xf]
    %v156 = vld [vmem:[%s0 + $0xd8] sm:$0xf]
    %v157 = vld [vmem:[%s0 + $0xc] sm:$0xf]
    %v158 = vld [vmem:[%s0 + $0x1c] sm:$0xf]
    %v159 = vld [vmem:[%s0 + $0x2c] sm:$0xf]
    %v160 = vld [vmem:[%s0 + $0x3c] sm:$0xf]
    %v161 = vld [vmem:[%s0 + $0x4c] sm:$0xf]
    %v162 = vld [vmem:[%s0 + $0x5c] sm:$0xf]
    %v163 = vld [vmem:[%s0 + $0x6c] sm:$0xf]
    %v164 = vld [vmem:[%s0 + $0x7c] sm:$0xf]
    %v165 = vld [vmem:[%s0 + $0x8c] sm:$0xf]
    %v166 = vld [vmem:[%s0 + $0x9c] sm:$0xf]
    %v167 = vld [vmem:[%s0 + $0xac] sm:$0xf]
    %v168 = vld [vmem:[%s0 + $0xbc] sm:$0xf]
    %v169 = vld [vmem:[%s0 + $0xcc] sm:$0xf]
    %v170 = vld [vmem:[%s0 + $0xdc] sm:$0xf]
    %s171 = scalar_lea.vmem %s0, 32
    %v172 = vld [vmem:[%s171] sm:$0xf]
    %v173 = vld [vmem:[%s171 + $0x10] sm:$0xf]
    %v174 = vld [vmem:[%s171 + $0x20] sm:$0xf]
    %v175 = vld [vmem:[%s171 + $0x30] sm:$0xf]
    %v176 = vld [vmem:[%s171 + $0x40] sm:$0xf]
    %v177 = vld [vmem:[%s171 + $0x50] sm:$0xf]
    %v178 = vld [vmem:[%s171 + $0x60] sm:$0xf]
    %v179 = vld [vmem:[%s171 + $0x70] sm:$0xf]
    %v180 = vld [vmem:[%s171 + $0x80] sm:$0xf]
    %v181 = vld [vmem:[%s171 + $0x90] sm:$0xf]
    %v182 = vld [vmem:[%s171 + $0xa0] sm:$0xf]
    %v183 = vld [vmem:[%s171 + $0xb0] sm:$0xf]
    %v184 = vld [vmem:[%s171 + $0xc0] sm:$0xf]
    %v185 = vld [vmem:[%s171 + $0xd0] sm:$0xf]
    %v200 = vunpack.c.l.b16 %v115
    %v201 = vunpack.c.l.b16 %v116
    %v202 = vunpack.c.l.b16 %v117
    %v203 = vunpack.c.l.b16 %v118
    %v204 = vunpack.c.l.b16 %v119
    %v205 = vunpack.c.l.b16 %v120
    %v206 = vunpack.c.l.b16 %v121
    %v207 = vunpack.c.l.b16 %v122
    %v208 = vunpack.c.l.b16 %v123
    %v209 = vunpack.c.l.b16 %v124
    %v210 = vunpack.c.l.b16 %v125
    %v211 = vunpack.c.l.b16 %v126
    %v212 = vunpack.c.l.b16 %v127
    %v213 = vunpack.c.l.b16 %v128
    %v214 = vpack.c.b16 %v201, %v200
    %v215 = vpack.c.b16 %v203, %v202
    %v216 = vpack.c.b16 %v205, %v204
    %v217 = vpack.c.b16 %v207, %v206
    %v218 = vpack.c.b16 %v209, %v208
    %v219 = vpack.c.b16 %v211, %v210
    %v220 = vpack.c.b16 %v213, %v212
    %v242 = vunpack.c.l.b16 %v129
    %v243 = vunpack.c.l.b16 %v130
    %v244 = vunpack.c.l.b16 %v131
    %v245 = vunpack.c.l.b16 %v132
    %v246 = vunpack.c.l.b16 %v133
    %v247 = vunpack.c.l.b16 %v134
    %v248 = vunpack.c.l.b16 %v135
    %v249 = vunpack.c.l.b16 %v136
    %v250 = vunpack.c.l.b16 %v137
    %v251 = vunpack.c.l.b16 %v138
    %v252 = vunpack.c.l.b16 %v139
    %v253 = vunpack.c.l.b16 %v140
    %v254 = vunpack.c.l.b16 %v141
    %v255 = vunpack.c.l.b16 %v142
    %v256 = vpack.c.b16 %v243, %v242
    %v257 = vpack.c.b16 %v245, %v244
    %v258 = vpack.c.b16 %v247, %v246
    %v259 = vpack.c.b16 %v249, %v248
    %v260 = vpack.c.b16 %v251, %v250
    %v261 = vpack.c.b16 %v253, %v252
    %v262 = vpack.c.b16 %v255, %v254
    %v284 = vunpack.c.l.b16 %v143
    %v285 = vunpack.c.l.b16 %v144
    %v286 = vunpack.c.l.b16 %v145
    %v287 = vunpack.c.l.b16 %v146
    %v288 = vunpack.c.l.b16 %v147
    %v289 = vunpack.c.l.b16 %v148
    %v290 = vunpack.c.l.b16 %v149
    %v291 = vunpack.c.l.b16 %v150
    %v292 = vunpack.c.l.b16 %v151
    %v293 = vunpack.c.l.b16 %v152
    %v294 = vunpack.c.l.b16 %v153
    %v295 = vunpack.c.l.b16 %v154
    %v296 = vunpack.c.l.b16 %v155
    %v297 = vunpack.c.l.b16 %v156
    %v298 = vpack.c.b16 %v285, %v284
    %v299 = vpack.c.b16 %v287, %v286
    %v300 = vpack.c.b16 %v289, %v288
    %v301 = vpack.c.b16 %v291, %v290
    %v302 = vpack.c.b16 %v293, %v292
    %v303 = vpack.c.b16 %v295, %v294
    %v304 = vpack.c.b16 %v297, %v296
    %v326 = vunpack.c.l.b16 %v157
    %v327 = vunpack.c.l.b16 %v158
    %v328 = vunpack.c.l.b16 %v159
    %v329 = vunpack.c.l.b16 %v160
    %v330 = vunpack.c.l.b16 %v161
    %v331 = vunpack.c.l.b16 %v162
    %v332 = vunpack.c.l.b16 %v163
    %v333 = vunpack.c.l.b16 %v164
    %v334 = vunpack.c.l.b16 %v165
    %v335 = vunpack.c.l.b16 %v166
    %v336 = vunpack.c.l.b16 %v167
    %v337 = vunpack.c.l.b16 %v168
    %v338 = vunpack.c.l.b16 %v169
    %v339 = vunpack.c.l.b16 %v170
    %v340 = vpack.c.b16 %v327, %v326
    %v341 = vpack.c.b16 %v329, %v328
    %v342 = vpack.c.b16 %v331, %v330
    %v343 = vpack.c.b16 %v333, %v332
    %v344 = vpack.c.b16 %v335, %v334
    %v345 = vpack.c.b16 %v337, %v336
    %v346 = vpack.c.b16 %v339, %v338
    %v368 = vunpack.c.l.b16 %v172
    %v369 = vunpack.c.l.b16 %v173
    %v370 = vunpack.c.l.b16 %v174
    %v371 = vunpack.c.l.b16 %v175
    %v372 = vunpack.c.l.b16 %v176
    %v373 = vunpack.c.l.b16 %v177
    %v374 = vunpack.c.l.b16 %v178
    %v375 = vunpack.c.l.b16 %v179
    %v376 = vunpack.c.l.b16 %v180
    %v377 = vunpack.c.l.b16 %v181
    %v378 = vunpack.c.l.b16 %v182
    %v379 = vunpack.c.l.b16 %v183
    %v380 = vunpack.c.l.b16 %v184
    %v381 = vunpack.c.l.b16 %v185
    %v382 = vpack.c.b16 %v369, %v368
    %v383 = vpack.c.b16 %v371, %v370
    %v384 = vpack.c.b16 %v373, %v372
    %v385 = vpack.c.b16 %v375, %v374
    %v386 = vpack.c.b16 %v377, %v376
    %v387 = vpack.c.b16 %v379, %v378
    %v388 = vpack.c.b16 %v381, %v380
    %v396 = vld [vmem:[#allocation2] sm:$0xff]
    %v397 = vld [vmem:[#allocation2 + $0x8] sm:$0xff]
    %v398 = vld [vmem:[#allocation2 + $0x10] sm:$0xff]
    %v399 = vld [vmem:[#allocation2 + $0x18] sm:$0xff]
    %v400 = vld [vmem:[#allocation2 + $0x20] sm:$0xff]
    %v401 = vld [vmem:[#allocation2 + $0x28] sm:$0xff]
    %v402 = vld [vmem:[#allocation2 + $0x30] sm:$0xff]
    %v403 = vld [vmem:[#allocation2 + $0x38] sm:$0xff]
    %v404 = vld [vmem:[#allocation2 + $0x40] sm:$0xff]
    %v405 = vld [vmem:[#allocation2 + $0x48] sm:$0xff]
    %v406 = vld [vmem:[#allocation2 + $0x50] sm:$0xff]
    %v407 = vld [vmem:[#allocation2 + $0x58] sm:$0xff]
    %v408 = vld [vmem:[#allocation2 + $0x60] sm:$0xff]
    %v409 = vld [vmem:[#allocation2 + $0x68] sm:$0xff]
    %v410 = vld [vmem:[#allocation2 + $0x70] sm:$0xff]
    %v411 = vld [vmem:[#allocation2 + $0x78] sm:$0xff]
    %v412 = vld [vmem:[#allocation2 + $0x80] sm:$0xff]
    %v413 = vld [vmem:[#allocation2 + $0x88] sm:$0xff]
    %v414 = vld [vmem:[#allocation2 + $0x90] sm:$0xff]
    %v415 = vld [vmem:[#allocation2 + $0x98] sm:$0xff]
    %v416 = vld [vmem:[#allocation2 + $0xa0] sm:$0xff]
    %v417 = vld [vmem:[#allocation2 + $0xa8] sm:$0xff]
    %v418 = vld [vmem:[#allocation2 + $0xb0] sm:$0xff]
    %v419 = vld [vmem:[#allocation2 + $0xb8] sm:$0xff]
    %v420 = vld [vmem:[#allocation2 + $0xc0] sm:$0xff]
    %v421 = vld [vmem:[#allocation2 + $0xc8] sm:$0xff]
    %v422 = vld [vmem:[#allocation2 + $0xd0] sm:$0xff]
    %v423 = vld [vmem:[#allocation2 + $0xd8] sm:$0xff]
    %v424 = vld [vmem:[#allocation2 + $0xe0] sm:$0xff]
    %v425 = vld [vmem:[#allocation2 + $0xe8] sm:$0xff]
    %v426 = vld [vmem:[#allocation2 + $0xf0] sm:$0xff]
    %v427 = vld [vmem:[#allocation2 + $0xf8] sm:$0xff]
    %v428 = vld [vmem:[#allocation2 + $0x100] sm:$0xff]
    %v429 = vld [vmem:[#allocation2 + $0x108] sm:$0xff]
    %v430 = vld [vmem:[#allocation2 + $0x110] sm:$0xff]
    %v431 = vld [vmem:[#allocation2 + $0x118] sm:$0xff]
    %v432 = vld [vmem:[#allocation2 + $0x120] sm:$0xff]
    %v433 = vld [vmem:[#allocation2 + $0x128] sm:$0xff]
    %v434 = vld [vmem:[#allocation2 + $0x130] sm:$0xff]
    %v435 = vld [vmem:[#allocation2 + $0x138] sm:$0xff]
    %v436 = vld [vmem:[#allocation2 + $0x140] sm:$0xff]
    %v437 = vld [vmem:[#allocation2 + $0x148] sm:$0xff]
    %v438 = vld [vmem:[#allocation2 + $0x150] sm:$0xff]
    %v439 = vld [vmem:[#allocation2 + $0x158] sm:$0xff]
    %v440 = vld [vmem:[#allocation2 + $0x160] sm:$0xff]
    %v441 = vld [vmem:[#allocation2 + $0x168] sm:$0xff]
    %v442 = vld [vmem:[#allocation2 + $0x170] sm:$0xff]
    %v443 = vld [vmem:[#allocation2 + $0x178] sm:$0xff]
    %v444 = vld [vmem:[#allocation2 + $0x180] sm:$0xff]
    %v445 = vld [vmem:[#allocation2 + $0x188] sm:$0xff]
    %v446 = vld [vmem:[#allocation2 + $0x190] sm:$0xff]
    %v447 = vld [vmem:[#allocation2 + $0x198] sm:$0xff]
    %v448 = vld [vmem:[#allocation2 + $0x1a0] sm:$0xff]
    %v449 = vld [vmem:[#allocation2 + $0x1a8] sm:$0xff]
    %v450 = vld [vmem:[#allocation2 + $0x1b0] sm:$0xff]
    %v451 = vld [vmem:[#allocation2 + $0x1b8] sm:$0xff]
    %v452 = vld [vmem:[#allocation2 + $0x1c0] sm:$0xff]
    %v453 = vld [vmem:[#allocation2 + $0x1c8] sm:$0xff]
    %v454 = vld [vmem:[#allocation2 + $0x1d0] sm:$0xff]
    %v455 = vld [vmem:[#allocation2 + $0x1d8] sm:$0xff]
    %v456 = vld [vmem:[#allocation2 + $0x1e0] sm:$0xff]
    %v457 = vld [vmem:[#allocation2 + $0x1e8] sm:$0xff]
    %v458 = vld [vmem:[#allocation2 + $0x1f0] sm:$0xff]
    %v459 = vld [vmem:[#allocation2 + $0x1f8] sm:$0xff]
    %v460 = vld [vmem:[#allocation2 + $0x200] sm:$0xff]
    %v461 = vld [vmem:[#allocation2 + $0x208] sm:$0xff]
    %v462 = vld [vmem:[#allocation2 + $0x210] sm:$0xff]
    %v463 = vld [vmem:[#allocation2 + $0x218] sm:$0xff]
    %v464 = vld [vmem:[#allocation2 + $0x220] sm:$0xff]
    %v465 = vld [vmem:[#allocation2 + $0x228] sm:$0xff]
    %v466 = vld [vmem:[#allocation2 + $0x230] sm:$0xff]
    %v467 = vld [vmem:[#allocation2 + $0x238] sm:$0xff]
    %v468 = vld [vmem:[#allocation2 + $0x240] sm:$0xff]
    %v469 = vld [vmem:[#allocation2 + $0x248] sm:$0xff]
    %v470 = vld [vmem:[#allocation2 + $0x250] sm:$0xff]
    %v471 = vld [vmem:[#allocation2 + $0x258] sm:$0xff]
    %v472 = vld [vmem:[#allocation2 + $0x260] sm:$0xff]
    %v473 = vld [vmem:[#allocation2 + $0x268] sm:$0xff]
    %v474 = vld [vmem:[#allocation2 + $0x270] sm:$0xff]
    %v475 = vld [vmem:[#allocation2 + $0x278] sm:$0xff]
    %v556 = vunpack.c.l.b16 %v396
    %v557 = vunpack.c.h.b16 %v396
    %v558 = vunpack.c.l.b16 %v397
    %v559 = vunpack.c.h.b16 %v397
    %v560 = vunpack.c.l.b16 %v398
    %v561 = vunpack.c.h.b16 %v398
    %v562 = vunpack.c.l.b16 %v399
    %v563 = vunpack.c.h.b16 %v399
    %v564 = vunpack.c.l.b16 %v400
    %v565 = vunpack.c.h.b16 %v400
    %v566 = vunpack.c.l.b16 %v401
    %v567 = vunpack.c.h.b16 %v401
    %v568 = vunpack.c.l.b16 %v402
    %v569 = vunpack.c.h.b16 %v402
    %v570 = vunpack.c.l.b16 %v403
    %v571 = vunpack.c.h.b16 %v403
    %v572 = vunpack.c.l.b16 %v404
    %v573 = vunpack.c.h.b16 %v404
    %v574 = vunpack.c.l.b16 %v405
    %v575 = vunpack.c.h.b16 %v405
    %v576 = vunpack.c.l.b16 %v406
    %v577 = vunpack.c.h.b16 %v406
    %v578 = vunpack.c.l.b16 %v407
    %v579 = vunpack.c.h.b16 %v407
    %v580 = vunpack.c.l.b16 %v408
    %v581 = vunpack.c.h.b16 %v408
    %v582 = vunpack.c.l.b16 %v409
    %v583 = vunpack.c.h.b16 %v409
    %v584 = vunpack.c.l.b16 %v410
    %v585 = vunpack.c.h.b16 %v410
    %v586 = vunpack.c.l.b16 %v411
    %v587 = vunpack.c.h.b16 %v411
    %v588 = vunpack.c.l.b16 %v412
    %v589 = vunpack.c.h.b16 %v412
    %v590 = vunpack.c.l.b16 %v413
    %v591 = vunpack.c.h.b16 %v413
    %v592 = vunpack.c.l.b16 %v414
    %v593 = vunpack.c.h.b16 %v414
    %v594 = vunpack.c.l.b16 %v415
    %v595 = vunpack.c.h.b16 %v415
    %v596 = vunpack.c.l.b16 %v416
    %v597 = vunpack.c.h.b16 %v416
    %v598 = vunpack.c.l.b16 %v417
    %v599 = vunpack.c.h.b16 %v417
    %v600 = vunpack.c.l.b16 %v418
    %v601 = vunpack.c.h.b16 %v418
    %v602 = vunpack.c.l.b16 %v419
    %v603 = vunpack.c.h.b16 %v419
    %v604 = vunpack.c.l.b16 %v420
    %v605 = vunpack.c.h.b16 %v420
    %v606 = vunpack.c.l.b16 %v421
    %v607 = vunpack.c.h.b16 %v421
    %v608 = vunpack.c.l.b16 %v422
    %v609 = vunpack.c.h.b16 %v422
    %v610 = vunpack.c.l.b16 %v423
    %v611 = vunpack.c.h.b16 %v423
    %v612 = vunpack.c.l.b16 %v424
    %v613 = vunpack.c.h.b16 %v424
    %v614 = vunpack.c.l.b16 %v425
    %v615 = vunpack.c.h.b16 %v425
    %v616 = vunpack.c.l.b16 %v426
    %v617 = vunpack.c.h.b16 %v426
    %v618 = vunpack.c.l.b16 %v427
    %v619 = vunpack.c.h.b16 %v427
    %v620 = vunpack.c.l.b16 %v428
    %v621 = vunpack.c.h.b16 %v428
    %v622 = vunpack.c.l.b16 %v429
    %v623 = vunpack.c.h.b16 %v429
    %v624 = vunpack.c.l.b16 %v430
    %v625 = vunpack.c.h.b16 %v430
    %v626 = vunpack.c.l.b16 %v431
    %v627 = vunpack.c.h.b16 %v431
    %v628 = vunpack.c.l.b16 %v432
    %v629 = vunpack.c.h.b16 %v432
    %v630 = vunpack.c.l.b16 %v433
    %v631 = vunpack.c.h.b16 %v433
    %v632 = vunpack.c.l.b16 %v434
    %v633 = vunpack.c.h.b16 %v434
    %v634 = vunpack.c.l.b16 %v435
    %v635 = vunpack.c.h.b16 %v435
    %v636 = vunpack.c.l.b16 %v436
    %v637 = vunpack.c.h.b16 %v436
    %v638 = vunpack.c.l.b16 %v437
    %v639 = vunpack.c.h.b16 %v437
    %v640 = vunpack.c.l.b16 %v438
    %v641 = vunpack.c.h.b16 %v438
    %v642 = vunpack.c.l.b16 %v439
    %v643 = vunpack.c.h.b16 %v439
    %v644 = vunpack.c.l.b16 %v440
    %v645 = vunpack.c.h.b16 %v440
    %v646 = vunpack.c.l.b16 %v441
    %v647 = vunpack.c.h.b16 %v441
    %v648 = vunpack.c.l.b16 %v442
    %v649 = vunpack.c.h.b16 %v442
    %v650 = vunpack.c.l.b16 %v443
    %v651 = vunpack.c.h.b16 %v443
    %v652 = vunpack.c.l.b16 %v444
    %v653 = vunpack.c.h.b16 %v444
    %v654 = vunpack.c.l.b16 %v445
    %v655 = vunpack.c.h.b16 %v445
    %v656 = vunpack.c.l.b16 %v446
    %v657 = vunpack.c.h.b16 %v446
    %v658 = vunpack.c.l.b16 %v447
    %v659 = vunpack.c.h.b16 %v447
    %v660 = vunpack.c.l.b16 %v448
    %v661 = vunpack.c.h.b16 %v448
    %v662 = vunpack.c.l.b16 %v449
    %v663 = vunpack.c.h.b16 %v449
    %v664 = vunpack.c.l.b16 %v450
    %v665 = vunpack.c.h.b16 %v450
    %v666 = vunpack.c.l.b16 %v451
    %v667 = vunpack.c.h.b16 %v451
    %v668 = vunpack.c.l.b16 %v452
    %v669 = vunpack.c.h.b16 %v452
    %v670 = vunpack.c.l.b16 %v453
    %v671 = vunpack.c.h.b16 %v453
    %v672 = vunpack.c.l.b16 %v454
    %v673 = vunpack.c.h.b16 %v454
    %v674 = vunpack.c.l.b16 %v455
    %v675 = vunpack.c.h.b16 %v455
    %v676 = vunpack.c.l.b16 %v456
    %v677 = vunpack.c.h.b16 %v456
    %v678 = vunpack.c.l.b16 %v457
    %v679 = vunpack.c.h.b16 %v457
    %v680 = vunpack.c.l.b16 %v458
    %v681 = vunpack.c.h.b16 %v458
    %v682 = vunpack.c.l.b16 %v459
    %v683 = vunpack.c.h.b16 %v459
    %v684 = vunpack.c.l.b16 %v460
    %v685 = vunpack.c.h.b16 %v460
    %v686 = vunpack.c.l.b16 %v461
    %v687 = vunpack.c.h.b16 %v461
    %v688 = vunpack.c.l.b16 %v462
    %v689 = vunpack.c.h.b16 %v462
    %v690 = vunpack.c.l.b16 %v463
    %v691 = vunpack.c.h.b16 %v463
    %v692 = vunpack.c.l.b16 %v464
    %v693 = vunpack.c.h.b16 %v464
    %v694 = vunpack.c.l.b16 %v465
    %v695 = vunpack.c.h.b16 %v465
    %v696 = vunpack.c.l.b16 %v466
    %v697 = vunpack.c.h.b16 %v466
    %v698 = vunpack.c.l.b16 %v467
    %v699 = vunpack.c.h.b16 %v467
    %v700 = vunpack.c.l.b16 %v468
    %v701 = vunpack.c.h.b16 %v468
    %v702 = vunpack.c.l.b16 %v469
    %v703 = vunpack.c.h.b16 %v469
    %v704 = vunpack.c.l.b16 %v470
    %v705 = vunpack.c.h.b16 %v470
    %v706 = vunpack.c.l.b16 %v471
    %v707 = vunpack.c.h.b16 %v471
    %v708 = vunpack.c.l.b16 %v472
    %v709 = vunpack.c.h.b16 %v472
    %v710 = vunpack.c.l.b16 %v473
    %v711 = vunpack.c.h.b16 %v473
    %v712 = vunpack.c.l.b16 %v474
    %v713 = vunpack.c.h.b16 %v474
    %v714 = vunpack.c.l.b16 %v475
    %v715 = vunpack.c.h.b16 %v475
    %v716 = vpack.c.b16 %v558, %v556
    %v717 = vpack.c.b16 %v559, %v557
    %v718 = vpack.c.b16 %v562, %v560
    %v719 = vpack.c.b16 %v563, %v561
    %v720 = vpack.c.b16 %v566, %v564
    %v721 = vpack.c.b16 %v567, %v565
    %v722 = vpack.c.b16 %v570, %v568
    %v723 = vpack.c.b16 %v571, %v569
    %v724 = vpack.c.b16 %v574, %v572
    %v725 = vpack.c.b16 %v575, %v573
    %v726 = vpack.c.b16 %v578, %v576
    %v727 = vpack.c.b16 %v579, %v577
    %v728 = vpack.c.b16 %v582, %v580
    %v729 = vpack.c.b16 %v583, %v581
    %v730 = vpack.c.b16 %v586, %v584
    %v731 = vpack.c.b16 %v587, %v585
    %v732 = vpack.c.b16 %v590, %v588
    %v733 = vpack.c.b16 %v591, %v589
    %v734 = vpack.c.b16 %v594, %v592
    %v735 = vpack.c.b16 %v595, %v593
    %v736 = vpack.c.b16 %v598, %v596
    %v737 = vpack.c.b16 %v599, %v597
    %v738 = vpack.c.b16 %v602, %v600
    %v739 = vpack.c.b16 %v603, %v601
    %v740 = vpack.c.b16 %v606, %v604
    %v741 = vpack.c.b16 %v607, %v605
    %v742 = vpack.c.b16 %v610, %v608
    %v743 = vpack.c.b16 %v611, %v609
    %v744 = vpack.c.b16 %v614, %v612
    %v745 = vpack.c.b16 %v615, %v613
    %v746 = vpack.c.b16 %v618, %v616
    %v747 = vpack.c.b16 %v619, %v617
    %v748 = vpack.c.b16 %v622, %v620
    %v749 = vpack.c.b16 %v623, %v621
    %v750 = vpack.c.b16 %v626, %v624
    %v751 = vpack.c.b16 %v627, %v625
    %v752 = vpack.c.b16 %v630, %v628
    %v753 = vpack.c.b16 %v631, %v629
    %v754 = vpack.c.b16 %v634, %v632
    %v755 = vpack.c.b16 %v635, %v633
    %v756 = vpack.c.b16 %v638, %v636
    %v757 = vpack.c.b16 %v639, %v637
    %v758 = vpack.c.b16 %v642, %v640
    %v759 = vpack.c.b16 %v643, %v641
    %v760 = vpack.c.b16 %v646, %v644
    %v761 = vpack.c.b16 %v647, %v645
    %v762 = vpack.c.b16 %v650, %v648
    %v763 = vpack.c.b16 %v651, %v649
    %v764 = vpack.c.b16 %v654, %v652
    %v765 = vpack.c.b16 %v655, %v653
    %v766 = vpack.c.b16 %v658, %v656
    %v767 = vpack.c.b16 %v659, %v657
    %v768 = vpack.c.b16 %v662, %v660
    %v769 = vpack.c.b16 %v663, %v661
    %v770 = vpack.c.b16 %v666, %v664
    %v771 = vpack.c.b16 %v667, %v665
    %v772 = vpack.c.b16 %v670, %v668
    %v773 = vpack.c.b16 %v671, %v669
    %v774 = vpack.c.b16 %v674, %v672
    %v775 = vpack.c.b16 %v675, %v673
    %v776 = vpack.c.b16 %v678, %v676
    %v777 = vpack.c.b16 %v679, %v677
    %v778 = vpack.c.b16 %v682, %v680
    %v779 = vpack.c.b16 %v683, %v681
    %v780 = vpack.c.b16 %v686, %v684
    %v781 = vpack.c.b16 %v687, %v685
    %v782 = vpack.c.b16 %v690, %v688
    %v783 = vpack.c.b16 %v691, %v689
    %v784 = vpack.c.b16 %v694, %v692
    %v785 = vpack.c.b16 %v695, %v693
    %v786 = vpack.c.b16 %v698, %v696
    %v787 = vpack.c.b16 %v699, %v697
    %v788 = vpack.c.b16 %v702, %v700
    %v789 = vpack.c.b16 %v703, %v701
    %v790 = vpack.c.b16 %v706, %v704
    %v791 = vpack.c.b16 %v707, %v705
    %v792 = vpack.c.b16 %v710, %v708
    %v793 = vpack.c.b16 %v711, %v709
    %v794 = vpack.c.b16 %v714, %v712
    %v795 = vpack.c.b16 %v715, %v713
    %876 = vmatpush.bf16.msra.mxu0 %v730
    %877 = vmatpush.bf16.msra.mxu0 %v728
    %878 = vmatpush.bf16.msra.mxu0 %v726
    %879 = vmatpush.bf16.msra.mxu0 %v724
    %880 = vmatpush.bf16.msra.mxu0 %v722
    %881 = vmatpush.bf16.msra.mxu0 %v720
    %882 = vmatpush.bf16.msra.mxu0 %v718
    %883 = vmatpush.bf16.msra.mxu0 %v716
    %884 = vmatmul.bf16.gmra.mxu0 %v214
    %v885 = vpop.f32.mrf.mxu0
    %v886 = vadd.f32 0.0, %v885
    %v887 = vpop.f32.mrf.mxu0
    %v888 = vadd.f32 0.0, %v887
    %889 = vmatmul.bf16.gmra.mxu0 %v215
    %v890 = vpop.f32.mrf.mxu0
    %v891 = vadd.f32 0.0, %v890
    %v892 = vpop.f32.mrf.mxu0
    %v893 = vadd.f32 0.0, %v892
    %894 = vmatmul.bf16.gmra.mxu0 %v216
    %v895 = vpop.f32.mrf.mxu0
    %v896 = vadd.f32 0.0, %v895
    %v897 = vpop.f32.mrf.mxu0
    %v898 = vadd.f32 0.0, %v897
    %899 = vmatmul.bf16.gmra.mxu0 %v217
    %v900 = vpop.f32.mrf.mxu0
    %v901 = vadd.f32 0.0, %v900
    %v902 = vpop.f32.mrf.mxu0
    %v903 = vadd.f32 0.0, %v902
    %904 = vmatmul.bf16.gmra.mxu0 %v218
    %v905 = vpop.f32.mrf.mxu0
    %v906 = vadd.f32 0.0, %v905
    %v907 = vpop.f32.mrf.mxu0
    %v908 = vadd.f32 0.0, %v907
    %909 = vmatmul.bf16.gmra.mxu0 %v219
    %v910 = vpop.f32.mrf.mxu0
    %v911 = vadd.f32 0.0, %v910
    %v912 = vpop.f32.mrf.mxu0
    %v913 = vadd.f32 0.0, %v912
    %914 = vmatmul.bf16.gmra.mxu0 %v220
    %v915 = vpop.f32.mrf.mxu0
    %v916 = vadd.f32 0.0, %v915
    %v917 = vpop.f32.mrf.mxu0
    %v918 = vadd.f32 0.0, %v917
    %919 = vdwg.mxu0
    %920 = vmatpush.bf16.msra.mxu0 %v746
    %921 = vmatpush.bf16.msra.mxu0 %v744
    %922 = vmatpush.bf16.msra.mxu0 %v742
    %923 = vmatpush.bf16.msra.mxu0 %v740
    %924 = vmatpush.bf16.msra.mxu0 %v738
    %925 = vmatpush.bf16.msra.mxu0 %v736
    %926 = vmatpush.bf16.msra.mxu0 %v734
    %927 = vmatpush.bf16.msra.mxu0 %v732
    %928 = vmatmul.bf16.gmra.mxu0 %v256
    %v929 = vpop.f32.mrf.mxu0
    %v930 = vadd.f32 %v886, %v929
    %v931 = vpop.f32.mrf.mxu0
    %v932 = vadd.f32 %v888, %v931
    %933 = vmatmul.bf16.gmra.mxu0 %v257
    %v934 = vpop.f32.mrf.mxu0
    %v935 = vadd.f32 %v891, %v934
    %v936 = vpop.f32.mrf.mxu0
    %v937 = vadd.f32 %v893, %v936
    %938 = vmatmul.bf16.gmra.mxu0 %v258
    %v939 = vpop.f32.mrf.mxu0
    %v940 = vadd.f32 %v896, %v939
    %v941 = vpop.f32.mrf.mxu0
    %v942 = vadd.f32 %v898, %v941
    %943 = vmatmul.bf16.gmra.mxu0 %v259
    %v944 = vpop.f32.mrf.mxu0
    %v945 = vadd.f32 %v901, %v944
    %v946 = vpop.f32.mrf.mxu0
    %v947 = vadd.f32 %v903, %v946
    %948 = vmatmul.bf16.gmra.mxu0 %v260
    %v949 = vpop.f32.mrf.mxu0
    %v950 = vadd.f32 %v906, %v949
    %v951 = vpop.f32.mrf.mxu0
    %v952 = vadd.f32 %v908, %v951
    %953 = vmatmul.bf16.gmra.mxu0 %v261
    %v954 = vpop.f32.mrf.mxu0
    %v955 = vadd.f32 %v911, %v954
    %v956 = vpop.f32.mrf.mxu0
    %v957 = vadd.f32 %v913, %v956
    %958 = vmatmul.bf16.gmra.mxu0 %v262
    %v959 = vpop.f32.mrf.mxu0
    %v960 = vadd.f32 %v916, %v959
    %v961 = vpop.f32.mrf.mxu0
    %v962 = vadd.f32 %v918, %v961
    %963 = vdwg.mxu0
    %964 = vmatpush.bf16.msra.mxu0 %v762
    %965 = vmatpush.bf16.msra.mxu0 %v760
    %966 = vmatpush.bf16.msra.mxu0 %v758
    %967 = vmatpush.bf16.msra.mxu0 %v756
    %968 = vmatpush.bf16.msra.mxu0 %v754
    %969 = vmatpush.bf16.msra.mxu0 %v752
    %970 = vmatpush.bf16.msra.mxu0 %v750
    %971 = vmatpush.bf16.msra.mxu0 %v748
    %972 = vmatmul.bf16.gmra.mxu0 %v298
    %v973 = vpop.f32.mrf.mxu0
    %v974 = vadd.f32 %v930, %v973
    %v975 = vpop.f32.mrf.mxu0
    %v976 = vadd.f32 %v932, %v975
    %977 = vmatmul.bf16.gmra.mxu0 %v299
    %v978 = vpop.f32.mrf.mxu0
    %v979 = vadd.f32 %v935, %v978
    %v980 = vpop.f32.mrf.mxu0
    %v981 = vadd.f32 %v937, %v980
    %982 = vmatmul.bf16.gmra.mxu0 %v300
    %v983 = vpop.f32.mrf.mxu0
    %v984 = vadd.f32 %v940, %v983
    %v985 = vpop.f32.mrf.mxu0
    %v986 = vadd.f32 %v942, %v985
    %987 = vmatmul.bf16.gmra.mxu0 %v301
    %v988 = vpop.f32.mrf.mxu0
    %v989 = vadd.f32 %v945, %v988
    %v990 = vpop.f32.mrf.mxu0
    %v991 = vadd.f32 %v947, %v990
    %992 = vmatmul.bf16.gmra.mxu0 %v302
    %v993 = vpop.f32.mrf.mxu0
    %v994 = vadd.f32 %v950, %v993
    %v995 = vpop.f32.mrf.mxu0
    %v996 = vadd.f32 %v952, %v995
    %997 = vmatmul.bf16.gmra.mxu0 %v303
    %v998 = vpop.f32.mrf.mxu0
    %v999 = vadd.f32 %v955, %v998
    %v1000 = vpop.f32.mrf.mxu0
    %v1001 = vadd.f32 %v957, %v1000
    %1002 = vmatmul.bf16.gmra.mxu0 %v304
    %v1003 = vpop.f32.mrf.mxu0
    %v1004 = vadd.f32 %v960, %v1003
    %v1005 = vpop.f32.mrf.mxu0
    %v1006 = vadd.f32 %v962, %v1005
    %1007 = vdwg.mxu0
    %1008 = vmatpush.bf16.msra.mxu0 %v778
    %1009 = vmatpush.bf16.msra.mxu0 %v776
    %1010 = vmatpush.bf16.msra.mxu0 %v774
    %1011 = vmatpush.bf16.msra.mxu0 %v772
    %1012 = vmatpush.bf16.msra.mxu0 %v770
    %1013 = vmatpush.bf16.msra.mxu0 %v768
    %1014 = vmatpush.bf16.msra.mxu0 %v766
    %1015 = vmatpush.bf16.msra.mxu0 %v764
    %1016 = vmatmul.bf16.gmra.mxu0 %v340
    %v1017 = vpop.f32.mrf.mxu0
    %v1018 = vadd.f32 %v974, %v1017
    %v1019 = vpop.f32.mrf.mxu0
    %v1020 = vadd.f32 %v976, %v1019
    %1021 = vmatmul.bf16.gmra.mxu0 %v341
    %v1022 = vpop.f32.mrf.mxu0
    %v1023 = vadd.f32 %v979, %v1022
    %v1024 = vpop.f32.mrf.mxu0
    %v1025 = vadd.f32 %v981, %v1024
    %1026 = vmatmul.bf16.gmra.mxu0 %v342
    %v1027 = vpop.f32.mrf.mxu0
    %v1028 = vadd.f32 %v984, %v1027
    %v1029 = vpop.f32.mrf.mxu0
    %v1030 = vadd.f32 %v986, %v1029
    %1031 = vmatmul.bf16.gmra.mxu0 %v343
    %v1032 = vpop.f32.mrf.mxu0
    %v1033 = vadd.f32 %v989, %v1032
    %v1034 = vpop.f32.mrf.mxu0
    %v1035 = vadd.f32 %v991, %v1034
    %1036 = vmatmul.bf16.gmra.mxu0 %v344
    %v1037 = vpop.f32.mrf.mxu0
    %v1038 = vadd.f32 %v994, %v1037
    %v1039 = vpop.f32.mrf.mxu0
    %v1040 = vadd.f32 %v996, %v1039
    %1041 = vmatmul.bf16.gmra.mxu0 %v345
    %v1042 = vpop.f32.mrf.mxu0
    %v1043 = vadd.f32 %v999, %v1042
    %v1044 = vpop.f32.mrf.mxu0
    %v1045 = vadd.f32 %v1001, %v1044
    %1046 = vmatmul.bf16.gmra.mxu0 %v346
    %v1047 = vpop.f32.mrf.mxu0
    %v1048 = vadd.f32 %v1004, %v1047
    %v1049 = vpop.f32.mrf.mxu0
    %v1050 = vadd.f32 %v1006, %v1049
    %1051 = vdwg.mxu0
    %1052 = vmatpush.bf16.msra.mxu0 %v794
    %1053 = vmatpush.bf16.msra.mxu0 %v792
    %1054 = vmatpush.bf16.msra.mxu0 %v790
    %1055 = vmatpush.bf16.msra.mxu0 %v788
    %1056 = vmatpush.bf16.msra.mxu0 %v786
    %1057 = vmatpush.bf16.msra.mxu0 %v784
    %1058 = vmatpush.bf16.msra.mxu0 %v782
    %1059 = vmatpush.bf16.msra.mxu0 %v780
    %1060 = vmatmul.bf16.gmra.mxu0 %v382
    %v1061 = vpop.f32.mrf.mxu0
    %v1062 = vadd.f32 %v1018, %v1061
    %v1063 = vpop.f32.mrf.mxu0
    %v1064 = vadd.f32 %v1020, %v1063
    %1065 = vmatmul.bf16.gmra.mxu0 %v383
    %v1066 = vpop.f32.mrf.mxu0
    %v1067 = vadd.f32 %v1023, %v1066
    %v1068 = vpop.f32.mrf.mxu0
    %v1069 = vadd.f32 %v1025, %v1068
    %1070 = vmatmul.bf16.gmra.mxu0 %v384
    %v1071 = vpop.f32.mrf.mxu0
    %v1072 = vadd.f32 %v1028, %v1071
    %v1073 = vpop.f32.mrf.mxu0
    %v1074 = vadd.f32 %v1030, %v1073
    %1075 = vmatmul.bf16.gmra.mxu0 %v385
    %v1076 = vpop.f32.mrf.mxu0
    %v1077 = vadd.f32 %v1033, %v1076
    %v1078 = vpop.f32.mrf.mxu0
    %v1079 = vadd.f32 %v1035, %v1078
    %1080 = vmatmul.bf16.gmra.mxu0 %v386
    %v1081 = vpop.f32.mrf.mxu0
    %v1082 = vadd.f32 %v1038, %v1081
    %v1083 = vpop.f32.mrf.mxu0
    %v1084 = vadd.f32 %v1040, %v1083
    %1085 = vmatmul.bf16.gmra.mxu0 %v387
    %v1086 = vpop.f32.mrf.mxu0
    %v1087 = vadd.f32 %v1043, %v1086
    %v1088 = vpop.f32.mrf.mxu0
    %v1089 = vadd.f32 %v1045, %v1088
    %1090 = vmatmul.bf16.gmra.mxu0 %v388
    %v1091 = vpop.f32.mrf.mxu0
    %v1092 = vadd.f32 %v1048, %v1091
    %v1093 = vpop.f32.mrf.mxu0
    %v1094 = vadd.f32 %v1050, %v1093
    %1095 = vdwg.mxu0
    %1096 = vmatpush.bf16.msra.mxu0 %v731
    %1097 = vmatpush.bf16.msra.mxu0 %v729
    %1098 = vmatpush.bf16.msra.mxu0 %v727
    %1099 = vmatpush.bf16.msra.mxu0 %v725
    %1100 = vmatpush.bf16.msra.mxu0 %v723
    %1101 = vmatpush.bf16.msra.mxu0 %v721
    %1102 = vmatpush.bf16.msra.mxu0 %v719
    %1103 = vmatpush.bf16.msra.mxu0 %v717
    %1104 = vmatmul.bf16.gmra.mxu0 %v214
    %v1105 = vpop.f32.mrf.mxu0
    %v1106 = vadd.f32 0.0, %v1105
    %v1107 = vpop.f32.mrf.mxu0
    %v1108 = vadd.f32 0.0, %v1107
    %1109 = vmatmul.bf16.gmra.mxu0 %v215
    %v1110 = vpop.f32.mrf.mxu0
    %v1111 = vadd.f32 0.0, %v1110
    %v1112 = vpop.f32.mrf.mxu0
    %v1113 = vadd.f32 0.0, %v1112
    %1114 = vmatmul.bf16.gmra.mxu0 %v216
    %v1115 = vpop.f32.mrf.mxu0
    %v1116 = vadd.f32 0.0, %v1115
    %v1117 = vpop.f32.mrf.mxu0
    %v1118 = vadd.f32 0.0, %v1117
    %1119 = vmatmul.bf16.gmra.mxu0 %v217
    %v1120 = vpop.f32.mrf.mxu0
    %v1121 = vadd.f32 0.0, %v1120
    %v1122 = vpop.f32.mrf.mxu0
    %v1123 = vadd.f32 0.0, %v1122
    %1124 = vmatmul.bf16.gmra.mxu0 %v218
    %v1125 = vpop.f32.mrf.mxu0
    %v1126 = vadd.f32 0.0, %v1125
    %v1127 = vpop.f32.mrf.mxu0
    %v1128 = vadd.f32 0.0, %v1127
    %1129 = vmatmul.bf16.gmra.mxu0 %v219
    %v1130 = vpop.f32.mrf.mxu0
    %v1131 = vadd.f32 0.0, %v1130
    %v1132 = vpop.f32.mrf.mxu0
    %v1133 = vadd.f32 0.0, %v1132
    %1134 = vmatmul.bf16.gmra.mxu0 %v220
    %v1135 = vpop.f32.mrf.mxu0
    %v1136 = vadd.f32 0.0, %v1135
    %v1137 = vpop.f32.mrf.mxu0
    %v1138 = vadd.f32 0.0, %v1137
    %1139 = vdwg.mxu0
    %1140 = vmatpush.bf16.msra.mxu0 %v747
    %1141 = vmatpush.bf16.msra.mxu0 %v745
    %1142 = vmatpush.bf16.msra.mxu0 %v743
    %1143 = vmatpush.bf16.msra.mxu0 %v741
    %1144 = vmatpush.bf16.msra.mxu0 %v739
    %1145 = vmatpush.bf16.msra.mxu0 %v737
    %1146 = vmatpush.bf16.msra.mxu0 %v735
    %1147 = vmatpush.bf16.msra.mxu0 %v733
    %1148 = vmatmul.bf16.gmra.mxu0 %v256
    %v1149 = vpop.f32.mrf.mxu0
    %v1150 = vadd.f32 %v1106, %v1149
    %v1151 = vpop.f32.mrf.mxu0
    %v1152 = vadd.f32 %v1108, %v1151
    %1153 = vmatmul.bf16.gmra.mxu0 %v257
    %v1154 = vpop.f32.mrf.mxu0
    %v1155 = vadd.f32 %v1111, %v1154
    %v1156 = vpop.f32.mrf.mxu0
    %v1157 = vadd.f32 %v1113, %v1156
    %1158 = vmatmul.bf16.gmra.mxu0 %v258
    %v1159 = vpop.f32.mrf.mxu0
    %v1160 = vadd.f32 %v1116, %v1159
    %v1161 = vpop.f32.mrf.mxu0
    %v1162 = vadd.f32 %v1118, %v1161
    %1163 = vmatmul.bf16.gmra.mxu0 %v259
    %v1164 = vpop.f32.mrf.mxu0
    %v1165 = vadd.f32 %v1121, %v1164
    %v1166 = vpop.f32.mrf.mxu0
    %v1167 = vadd.f32 %v1123, %v1166
    %1168 = vmatmul.bf16.gmra.mxu0 %v260
    %v1169 = vpop.f32.mrf.mxu0
    %v1170 = vadd.f32 %v1126, %v1169
    %v1171 = vpop.f32.mrf.mxu0
    %v1172 = vadd.f32 %v1128, %v1171
    %1173 = vmatmul.bf16.gmra.mxu0 %v261
    %v1174 = vpop.f32.mrf.mxu0
    %v1175 = vadd.f32 %v1131, %v1174
    %v1176 = vpop.f32.mrf.mxu0
    %v1177 = vadd.f32 %v1133, %v1176
    %1178 = vmatmul.bf16.gmra.mxu0 %v262
    %v1179 = vpop.f32.mrf.mxu0
    %v1180 = vadd.f32 %v1136, %v1179
    %v1181 = vpop.f32.mrf.mxu0
    %v1182 = vadd.f32 %v1138, %v1181
    %1183 = vdwg.mxu0
    %1184 = vmatpush.bf16.msra.mxu0 %v763
    %1185 = vmatpush.bf16.msra.mxu0 %v761
    %1186 = vmatpush.bf16.msra.mxu0 %v759
    %1187 = vmatpush.bf16.msra.mxu0 %v757
    %1188 = vmatpush.bf16.msra.mxu0 %v755
    %1189 = vmatpush.bf16.msra.mxu0 %v753
    %1190 = vmatpush.bf16.msra.mxu0 %v751
    %1191 = vmatpush.bf16.msra.mxu0 %v749
    %1192 = vmatmul.bf16.gmra.mxu0 %v298
    %v1193 = vpop.f32.mrf.mxu0
    %v1194 = vadd.f32 %v1150, %v1193
    %v1195 = vpop.f32.mrf.mxu0
    %v1196 = vadd.f32 %v1152, %v1195
    %1197 = vmatmul.bf16.gmra.mxu0 %v299
    %v1198 = vpop.f32.mrf.mxu0
    %v1199 = vadd.f32 %v1155, %v1198
    %v1200 = vpop.f32.mrf.mxu0
    %v1201 = vadd.f32 %v1157, %v1200
    %1202 = vmatmul.bf16.gmra.mxu0 %v300
    %v1203 = vpop.f32.mrf.mxu0
    %v1204 = vadd.f32 %v1160, %v1203
    %v1205 = vpop.f32.mrf.mxu0
    %v1206 = vadd.f32 %v1162, %v1205
    %1207 = vmatmul.bf16.gmra.mxu0 %v301
    %v1208 = vpop.f32.mrf.mxu0
    %v1209 = vadd.f32 %v1165, %v1208
    %v1210 = vpop.f32.mrf.mxu0
    %v1211 = vadd.f32 %v1167, %v1210
    %1212 = vmatmul.bf16.gmra.mxu0 %v302
    %v1213 = vpop.f32.mrf.mxu0
    %v1214 = vadd.f32 %v1170, %v1213
    %v1215 = vpop.f32.mrf.mxu0
    %v1216 = vadd.f32 %v1172, %v1215
    %1217 = vmatmul.bf16.gmra.mxu0 %v303
    %v1218 = vpop.f32.mrf.mxu0
    %v1219 = vadd.f32 %v1175, %v1218
    %v1220 = vpop.f32.mrf.mxu0
    %v1221 = vadd.f32 %v1177, %v1220
    %1222 = vmatmul.bf16.gmra.mxu0 %v304
    %v1223 = vpop.f32.mrf.mxu0
    %v1224 = vadd.f32 %v1180, %v1223
    %v1225 = vpop.f32.mrf.mxu0
    %v1226 = vadd.f32 %v1182, %v1225
    %1227 = vdwg.mxu0
    %1228 = vmatpush.bf16.msra.mxu0 %v779
    %1229 = vmatpush.bf16.msra.mxu0 %v777
    %1230 = vmatpush.bf16.msra.mxu0 %v775
    %1231 = vmatpush.bf16.msra.mxu0 %v773
    %1232 = vmatpush.bf16.msra.mxu0 %v771
    %1233 = vmatpush.bf16.msra.mxu0 %v769
    %1234 = vmatpush.bf16.msra.mxu0 %v767
    %1235 = vmatpush.bf16.msra.mxu0 %v765
    %1236 = vmatmul.bf16.gmra.mxu0 %v340
    %v1237 = vpop.f32.mrf.mxu0
    %v1238 = vadd.f32 %v1194, %v1237
    %v1239 = vpop.f32.mrf.mxu0
    %v1240 = vadd.f32 %v1196, %v1239
    %1241 = vmatmul.bf16.gmra.mxu0 %v341
    %v1242 = vpop.f32.mrf.mxu0
    %v1243 = vadd.f32 %v1199, %v1242
    %v1244 = vpop.f32.mrf.mxu0
    %v1245 = vadd.f32 %v1201, %v1244
    %1246 = vmatmul.bf16.gmra.mxu0 %v342
    %v1247 = vpop.f32.mrf.mxu0
    %v1248 = vadd.f32 %v1204, %v1247
    %v1249 = vpop.f32.mrf.mxu0
    %v1250 = vadd.f32 %v1206, %v1249
    %1251 = vmatmul.bf16.gmra.mxu0 %v343
    %v1252 = vpop.f32.mrf.mxu0
    %v1253 = vadd.f32 %v1209, %v1252
    %v1254 = vpop.f32.mrf.mxu0
    %v1255 = vadd.f32 %v1211, %v1254
    %1256 = vmatmul.bf16.gmra.mxu0 %v344
    %v1257 = vpop.f32.mrf.mxu0
    %v1258 = vadd.f32 %v1214, %v1257
    %v1259 = vpop.f32.mrf.mxu0
    %v1260 = vadd.f32 %v1216, %v1259
    %1261 = vmatmul.bf16.gmra.mxu0 %v345
    %v1262 = vpop.f32.mrf.mxu0
    %v1263 = vadd.f32 %v1219, %v1262
    %v1264 = vpop.f32.mrf.mxu0
    %v1265 = vadd.f32 %v1221, %v1264
    %1266 = vmatmul.bf16.gmra.mxu0 %v346
    %v1267 = vpop.f32.mrf.mxu0
    %v1268 = vadd.f32 %v1224, %v1267
    %v1269 = vpop.f32.mrf.mxu0
    %v1270 = vadd.f32 %v1226, %v1269
    %1271 = vdwg.mxu0
    %1272 = vmatpush.bf16.msra.mxu0 %v795
    %1273 = vmatpush.bf16.msra.mxu0 %v793
    %1274 = vmatpush.bf16.msra.mxu0 %v791
    %1275 = vmatpush.bf16.msra.mxu0 %v789
    %1276 = vmatpush.bf16.msra.mxu0 %v787
    %1277 = vmatpush.bf16.msra.mxu0 %v785
    %1278 = vmatpush.bf16.msra.mxu0 %v783
    %1279 = vmatpush.bf16.msra.mxu0 %v781
    %1280 = vmatmul.bf16.gmra.mxu0 %v382
    %v1281 = vpop.f32.mrf.mxu0
    %v1282 = vadd.f32 %v1238, %v1281
    %v1283 = vpop.f32.mrf.mxu0
    %v1284 = vadd.f32 %v1240, %v1283
    %1285 = vmatmul.bf16.gmra.mxu0 %v383
    %v1286 = vpop.f32.mrf.mxu0
    %v1287 = vadd.f32 %v1243, %v1286
    %v1288 = vpop.f32.mrf.mxu0
    %v1289 = vadd.f32 %v1245, %v1288
    %1290 = vmatmul.bf16.gmra.mxu0 %v384
    %v1291 = vpop.f32.mrf.mxu0
    %v1292 = vadd.f32 %v1248, %v1291
    %v1293 = vpop.f32.mrf.mxu0
    %v1294 = vadd.f32 %v1250, %v1293
    %1295 = vmatmul.bf16.gmra.mxu0 %v385
    %v1296 = vpop.f32.mrf.mxu0
    %v1297 = vadd.f32 %v1253, %v1296
    %v1298 = vpop.f32.mrf.mxu0
    %v1299 = vadd.f32 %v1255, %v1298
    %1300 = vmatmul.bf16.gmra.mxu0 %v386
    %v1301 = vpop.f32.mrf.mxu0
    %v1302 = vadd.f32 %v1258, %v1301
    %v1303 = vpop.f32.mrf.mxu0
    %v1304 = vadd.f32 %v1260, %v1303
    %1305 = vmatmul.bf16.gmra.mxu0 %v387
    %v1306 = vpop.f32.mrf.mxu0
    %v1307 = vadd.f32 %v1263, %v1306
    %v1308 = vpop.f32.mrf.mxu0
    %v1309 = vadd.f32 %v1265, %v1308
    %1310 = vmatmul.bf16.gmra.mxu0 %v388
    %v1311 = vpop.f32.mrf.mxu0
    %v1312 = vadd.f32 %v1268, %v1311
    %v1313 = vpop.f32.mrf.mxu0
    %v1314 = vadd.f32 %v1270, %v1313
    %1315 = vdwg.mxu0
    %s1316 = scalar_lea.vmem [#allocation2], 640
    %v1317 = vld [vmem:[%s1316] sm:$0xff]
    %v1318 = vld [vmem:[%s1316 + $0x8] sm:$0xff]
    %v1319 = vld [vmem:[%s1316 + $0x10] sm:$0xff]
    %v1320 = vld [vmem:[%s1316 + $0x18] sm:$0xff]
    %v1321 = vld [vmem:[%s1316 + $0x20] sm:$0xff]
    %v1322 = vld [vmem:[%s1316 + $0x28] sm:$0xff]
    %v1323 = vld [vmem:[%s1316 + $0x30] sm:$0xff]
    %v1324 = vld [vmem:[%s1316 + $0x38] sm:$0xff]
    %v1325 = vld [vmem:[%s1316 + $0x40] sm:$0xff]
    %v1326 = vld [vmem:[%s1316 + $0x48] sm:$0xff]
    %v1327 = vld [vmem:[%s1316 + $0x50] sm:$0xff]
    %v1328 = vld [vmem:[%s1316 + $0x58] sm:$0xff]
    %v1329 = vld [vmem:[%s1316 + $0x60] sm:$0xff]
    %v1330 = vld [vmem:[%s1316 + $0x68] sm:$0xff]
    %v1331 = vld [vmem:[%s1316 + $0x70] sm:$0xff]
    %v1332 = vld [vmem:[%s1316 + $0x78] sm:$0xff]
    %v1333 = vld [vmem:[%s1316 + $0x80] sm:$0xff]
    %v1334 = vld [vmem:[%s1316 + $0x88] sm:$0xff]
    %v1335 = vld [vmem:[%s1316 + $0x90] sm:$0xff]
    %v1336 = vld [vmem:[%s1316 + $0x98] sm:$0xff]
    %v1337 = vld [vmem:[%s1316 + $0xa0] sm:$0xff]
    %v1338 = vld [vmem:[%s1316 + $0xa8] sm:$0xff]
    %v1339 = vld [vmem:[%s1316 + $0xb0] sm:$0xff]
    %v1340 = vld [vmem:[%s1316 + $0xb8] sm:$0xff]
    %v1341 = vld [vmem:[%s1316 + $0xc0] sm:$0xff]
    %v1342 = vld [vmem:[%s1316 + $0xc8] sm:$0xff]
    %v1343 = vld [vmem:[%s1316 + $0xd0] sm:$0xff]
    %v1344 = vld [vmem:[%s1316 + $0xd8] sm:$0xff]
    %v1345 = vld [vmem:[%s1316 + $0xe0] sm:$0xff]
    %v1346 = vld [vmem:[%s1316 + $0xe8] sm:$0xff]
    %v1347 = vld [vmem:[%s1316 + $0xf0] sm:$0xff]
    %v1348 = vld [vmem:[%s1316 + $0xf8] sm:$0xff]
    %v1349 = vld [vmem:[%s1316 + $0x100] sm:$0xff]
    %v1350 = vld [vmem:[%s1316 + $0x108] sm:$0xff]
    %v1351 = vld [vmem:[%s1316 + $0x110] sm:$0xff]
    %v1352 = vld [vmem:[%s1316 + $0x118] sm:$0xff]
    %v1353 = vld [vmem:[%s1316 + $0x120] sm:$0xff]
    %v1354 = vld [vmem:[%s1316 + $0x128] sm:$0xff]
    %v1355 = vld [vmem:[%s1316 + $0x130] sm:$0xff]
    %v1356 = vld [vmem:[%s1316 + $0x138] sm:$0xff]
    %v1357 = vld [vmem:[%s1316 + $0x140] sm:$0xff]
    %v1358 = vld [vmem:[%s1316 + $0x148] sm:$0xff]
    %v1359 = vld [vmem:[%s1316 + $0x150] sm:$0xff]
    %v1360 = vld [vmem:[%s1316 + $0x158] sm:$0xff]
    %v1361 = vld [vmem:[%s1316 + $0x160] sm:$0xff]
    %v1362 = vld [vmem:[%s1316 + $0x168] sm:$0xff]
    %v1363 = vld [vmem:[%s1316 + $0x170] sm:$0xff]
    %v1364 = vld [vmem:[%s1316 + $0x178] sm:$0xff]
    %v1365 = vld [vmem:[%s1316 + $0x180] sm:$0xff]
    %v1366 = vld [vmem:[%s1316 + $0x188] sm:$0xff]
    %v1367 = vld [vmem:[%s1316 + $0x190] sm:$0xff]
    %v1368 = vld [vmem:[%s1316 + $0x198] sm:$0xff]
    %v1369 = vld [vmem:[%s1316 + $0x1a0] sm:$0xff]
    %v1370 = vld [vmem:[%s1316 + $0x1a8] sm:$0xff]
    %v1371 = vld [vmem:[%s1316 + $0x1b0] sm:$0xff]
    %v1372 = vld [vmem:[%s1316 + $0x1b8] sm:$0xff]
    %v1373 = vld [vmem:[%s1316 + $0x1c0] sm:$0xff]
    %v1374 = vld [vmem:[%s1316 + $0x1c8] sm:$0xff]
    %v1375 = vld [vmem:[%s1316 + $0x1d0] sm:$0xff]
    %v1376 = vld [vmem:[%s1316 + $0x1d8] sm:$0xff]
    %v1377 = vld [vmem:[%s1316 + $0x1e0] sm:$0xff]
    %v1378 = vld [vmem:[%s1316 + $0x1e8] sm:$0xff]
    %v1379 = vld [vmem:[%s1316 + $0x1f0] sm:$0xff]
    %v1380 = vld [vmem:[%s1316 + $0x1f8] sm:$0xff]
    %v1381 = vld [vmem:[%s1316 + $0x200] sm:$0xff]
    %v1382 = vld [vmem:[%s1316 + $0x208] sm:$0xff]
    %v1383 = vld [vmem:[%s1316 + $0x210] sm:$0xff]
    %v1384 = vld [vmem:[%s1316 + $0x218] sm:$0xff]
    %v1385 = vld [vmem:[%s1316 + $0x220] sm:$0xff]
    %v1386 = vld [vmem:[%s1316 + $0x228] sm:$0xff]
    %v1387 = vld [vmem:[%s1316 + $0x230] sm:$0xff]
    %v1388 = vld [vmem:[%s1316 + $0x238] sm:$0xff]
    %v1389 = vld [vmem:[%s1316 + $0x240] sm:$0xff]
    %v1390 = vld [vmem:[%s1316 + $0x248] sm:$0xff]
    %v1391 = vld [vmem:[%s1316 + $0x250] sm:$0xff]
    %v1392 = vld [vmem:[%s1316 + $0x258] sm:$0xff]
    %v1393 = vld [vmem:[%s1316 + $0x260] sm:$0xff]
    %v1394 = vld [vmem:[%s1316 + $0x268] sm:$0xff]
    %v1395 = vld [vmem:[%s1316 + $0x270] sm:$0xff]
    %v1396 = vld [vmem:[%s1316 + $0x278] sm:$0xff]
    %v1477 = vunpack.c.l.b16 %v1317
    %v1478 = vunpack.c.h.b16 %v1317
    %v1479 = vunpack.c.l.b16 %v1318
    %v1480 = vunpack.c.h.b16 %v1318
    %v1481 = vunpack.c.l.b16 %v1319
    %v1482 = vunpack.c.h.b16 %v1319
    %v1483 = vunpack.c.l.b16 %v1320
    %v1484 = vunpack.c.h.b16 %v1320
    %v1485 = vunpack.c.l.b16 %v1321
    %v1486 = vunpack.c.h.b16 %v1321
    %v1487 = vunpack.c.l.b16 %v1322
    %v1488 = vunpack.c.h.b16 %v1322
    %v1489 = vunpack.c.l.b16 %v1323
    %v1490 = vunpack.c.h.b16 %v1323
    %v1491 = vunpack.c.l.b16 %v1324
    %v1492 = vunpack.c.h.b16 %v1324
    %v1493 = vunpack.c.l.b16 %v1325
    %v1494 = vunpack.c.h.b16 %v1325
    %v1495 = vunpack.c.l.b16 %v1326
    %v1496 = vunpack.c.h.b16 %v1326
    %v1497 = vunpack.c.l.b16 %v1327
    %v1498 = vunpack.c.h.b16 %v1327
    %v1499 = vunpack.c.l.b16 %v1328
    %v1500 = vunpack.c.h.b16 %v1328
    %v1501 = vunpack.c.l.b16 %v1329
    %v1502 = vunpack.c.h.b16 %v1329
    %v1503 = vunpack.c.l.b16 %v1330
    %v1504 = vunpack.c.h.b16 %v1330
    %v1505 = vunpack.c.l.b16 %v1331
    %v1506 = vunpack.c.h.b16 %v1331
    %v1507 = vunpack.c.l.b16 %v1332
    %v1508 = vunpack.c.h.b16 %v1332
    %v1509 = vunpack.c.l.b16 %v1333
    %v1510 = vunpack.c.h.b16 %v1333
    %v1511 = vunpack.c.l.b16 %v1334
    %v1512 = vunpack.c.h.b16 %v1334
    %v1513 = vunpack.c.l.b16 %v1335
    %v1514 = vunpack.c.h.b16 %v1335
    %v1515 = vunpack.c.l.b16 %v1336
    %v1516 = vunpack.c.h.b16 %v1336
    %v1517 = vunpack.c.l.b16 %v1337
    %v1518 = vunpack.c.h.b16 %v1337
    %v1519 = vunpack.c.l.b16 %v1338
    %v1520 = vunpack.c.h.b16 %v1338
    %v1521 = vunpack.c.l.b16 %v1339
    %v1522 = vunpack.c.h.b16 %v1339
    %v1523 = vunpack.c.l.b16 %v1340
    %v1524 = vunpack.c.h.b16 %v1340
    %v1525 = vunpack.c.l.b16 %v1341
    %v1526 = vunpack.c.h.b16 %v1341
    %v1527 = vunpack.c.l.b16 %v1342
    %v1528 = vunpack.c.h.b16 %v1342
    %v1529 = vunpack.c.l.b16 %v1343
    %v1530 = vunpack.c.h.b16 %v1343
    %v1531 = vunpack.c.l.b16 %v1344
    %v1532 = vunpack.c.h.b16 %v1344
    %v1533 = vunpack.c.l.b16 %v1345
    %v1534 = vunpack.c.h.b16 %v1345
    %v1535 = vunpack.c.l.b16 %v1346
    %v1536 = vunpack.c.h.b16 %v1346
    %v1537 = vunpack.c.l.b16 %v1347
    %v1538 = vunpack.c.h.b16 %v1347
    %v1539 = vunpack.c.l.b16 %v1348
    %v1540 = vunpack.c.h.b16 %v1348
    %v1541 = vunpack.c.l.b16 %v1349
    %v1542 = vunpack.c.h.b16 %v1349
    %v1543 = vunpack.c.l.b16 %v1350
    %v1544 = vunpack.c.h.b16 %v1350
    %v1545 = vunpack.c.l.b16 %v1351
    %v1546 = vunpack.c.h.b16 %v1351
    %v1547 = vunpack.c.l.b16 %v1352
    %v1548 = vunpack.c.h.b16 %v1352
    %v1549 = vunpack.c.l.b16 %v1353
    %v1550 = vunpack.c.h.b16 %v1353
    %v1551 = vunpack.c.l.b16 %v1354
    %v1552 = vunpack.c.h.b16 %v1354
    %v1553 = vunpack.c.l.b16 %v1355
    %v1554 = vunpack.c.h.b16 %v1355
    %v1555 = vunpack.c.l.b16 %v1356
    %v1556 = vunpack.c.h.b16 %v1356
    %v1557 = vunpack.c.l.b16 %v1357
    %v1558 = vunpack.c.h.b16 %v1357
    %v1559 = vunpack.c.l.b16 %v1358
    %v1560 = vunpack.c.h.b16 %v1358
    %v1561 = vunpack.c.l.b16 %v1359
    %v1562 = vunpack.c.h.b16 %v1359
    %v1563 = vunpack.c.l.b16 %v1360
    %v1564 = vunpack.c.h.b16 %v1360
    %v1565 = vunpack.c.l.b16 %v1361
    %v1566 = vunpack.c.h.b16 %v1361
    %v1567 = vunpack.c.l.b16 %v1362
    %v1568 = vunpack.c.h.b16 %v1362
    %v1569 = vunpack.c.l.b16 %v1363
    %v1570 = vunpack.c.h.b16 %v1363
    %v1571 = vunpack.c.l.b16 %v1364
    %v1572 = vunpack.c.h.b16 %v1364
    %v1573 = vunpack.c.l.b16 %v1365
    %v1574 = vunpack.c.h.b16 %v1365
    %v1575 = vunpack.c.l.b16 %v1366
    %v1576 = vunpack.c.h.b16 %v1366
    %v1577 = vunpack.c.l.b16 %v1367
    %v1578 = vunpack.c.h.b16 %v1367
    %v1579 = vunpack.c.l.b16 %v1368
    %v1580 = vunpack.c.h.b16 %v1368
    %v1581 = vunpack.c.l.b16 %v1369
    %v1582 = vunpack.c.h.b16 %v1369
    %v1583 = vunpack.c.l.b16 %v1370
    %v1584 = vunpack.c.h.b16 %v1370
    %v1585 = vunpack.c.l.b16 %v1371
    %v1586 = vunpack.c.h.b16 %v1371
    %v1587 = vunpack.c.l.b16 %v1372
    %v1588 = vunpack.c.h.b16 %v1372
    %v1589 = vunpack.c.l.b16 %v1373
    %v1590 = vunpack.c.h.b16 %v1373
    %v1591 = vunpack.c.l.b16 %v1374
    %v1592 = vunpack.c.h.b16 %v1374
    %v1593 = vunpack.c.l.b16 %v1375
    %v1594 = vunpack.c.h.b16 %v1375
    %v1595 = vunpack.c.l.b16 %v1376
    %v1596 = vunpack.c.h.b16 %v1376
    %v1597 = vunpack.c.l.b16 %v1377
    %v1598 = vunpack.c.h.b16 %v1377
    %v1599 = vunpack.c.l.b16 %v1378
    %v1600 = vunpack.c.h.b16 %v1378
    %v1601 = vunpack.c.l.b16 %v1379
    %v1602 = vunpack.c.h.b16 %v1379
    %v1603 = vunpack.c.l.b16 %v1380
    %v1604 = vunpack.c.h.b16 %v1380
    %v1605 = vunpack.c.l.b16 %v1381
    %v1606 = vunpack.c.h.b16 %v1381
    %v1607 = vunpack.c.l.b16 %v1382
    %v1608 = vunpack.c.h.b16 %v1382
    %v1609 = vunpack.c.l.b16 %v1383
    %v1610 = vunpack.c.h.b16 %v1383
    %v1611 = vunpack.c.l.b16 %v1384
    %v1612 = vunpack.c.h.b16 %v1384
    %v1613 = vunpack.c.l.b16 %v1385
    %v1614 = vunpack.c.h.b16 %v1385
    %v1615 = vunpack.c.l.b16 %v1386
    %v1616 = vunpack.c.h.b16 %v1386
    %v1617 = vunpack.c.l.b16 %v1387
    %v1618 = vunpack.c.h.b16 %v1387
    %v1619 = vunpack.c.l.b16 %v1388
    %v1620 = vunpack.c.h.b16 %v1388
    %v1621 = vunpack.c.l.b16 %v1389
    %v1622 = vunpack.c.h.b16 %v1389
    %v1623 = vunpack.c.l.b16 %v1390
    %v1624 = vunpack.c.h.b16 %v1390
    %v1625 = vunpack.c.l.b16 %v1391
    %v1626 = vunpack.c.h.b16 %v1391
    %v1627 = vunpack.c.l.b16 %v1392
    %v1628 = vunpack.c.h.b16 %v1392
    %v1629 = vunpack.c.l.b16 %v1393
    %v1630 = vunpack.c.h.b16 %v1393
    %v1631 = vunpack.c.l.b16 %v1394
    %v1632 = vunpack.c.h.b16 %v1394
    %v1633 = vunpack.c.l.b16 %v1395
    %v1634 = vunpack.c.h.b16 %v1395
    %v1635 = vunpack.c.l.b16 %v1396
    %v1636 = vunpack.c.h.b16 %v1396
    %v1637 = vpack.c.b16 %v1479, %v1477
    %v1638 = vpack.c.b16 %v1480, %v1478
    %v1639 = vpack.c.b16 %v1483, %v1481
    %v1640 = vpack.c.b16 %v1484, %v1482
    %v1641 = vpack.c.b16 %v1487, %v1485
    %v1642 = vpack.c.b16 %v1488, %v1486
    %v1643 = vpack.c.b16 %v1491, %v1489
    %v1644 = vpack.c.b16 %v1492, %v1490
    %v1645 = vpack.c.b16 %v1495, %v1493
    %v1646 = vpack.c.b16 %v1496, %v1494
    %v1647 = vpack.c.b16 %v1499, %v1497
    %v1648 = vpack.c.b16 %v1500, %v1498
    %v1649 = vpack.c.b16 %v1503, %v1501
    %v1650 = vpack.c.b16 %v1504, %v1502
    %v1651 = vpack.c.b16 %v1507, %v1505
    %v1652 = vpack.c.b16 %v1508, %v1506
    %v1653 = vpack.c.b16 %v1511, %v1509
    %v1654 = vpack.c.b16 %v1512, %v1510
    %v1655 = vpack.c.b16 %v1515, %v1513
    %v1656 = vpack.c.b16 %v1516, %v1514
    %v1657 = vpack.c.b16 %v1519, %v1517
    %v1658 = vpack.c.b16 %v1520, %v1518
    %v1659 = vpack.c.b16 %v1523, %v1521
    %v1660 = vpack.c.b16 %v1524, %v1522
    %v1661 = vpack.c.b16 %v1527, %v1525
    %v1662 = vpack.c.b16 %v1528, %v1526
    %v1663 = vpack.c.b16 %v1531, %v1529
    %v1664 = vpack.c.b16 %v1532, %v1530
    %v1665 = vpack.c.b16 %v1535, %v1533
    %v1666 = vpack.c.b16 %v1536, %v1534
    %v1667 = vpack.c.b16 %v1539, %v1537
    %v1668 = vpack.c.b16 %v1540, %v1538
    %v1669 = vpack.c.b16 %v1543, %v1541
    %v1670 = vpack.c.b16 %v1544, %v1542
    %v1671 = vpack.c.b16 %v1547, %v1545
    %v1672 = vpack.c.b16 %v1548, %v1546
    %v1673 = vpack.c.b16 %v1551, %v1549
    %v1674 = vpack.c.b16 %v1552, %v1550
    %v1675 = vpack.c.b16 %v1555, %v1553
    %v1676 = vpack.c.b16 %v1556, %v1554
    %v1677 = vpack.c.b16 %v1559, %v1557
    %v1678 = vpack.c.b16 %v1560, %v1558
    %v1679 = vpack.c.b16 %v1563, %v1561
    %v1680 = vpack.c.b16 %v1564, %v1562
    %v1681 = vpack.c.b16 %v1567, %v1565
    %v1682 = vpack.c.b16 %v1568, %v1566
    %v1683 = vpack.c.b16 %v1571, %v1569
    %v1684 = vpack.c.b16 %v1572, %v1570
    %v1685 = vpack.c.b16 %v1575, %v1573
    %v1686 = vpack.c.b16 %v1576, %v1574
    %v1687 = vpack.c.b16 %v1579, %v1577
    %v1688 = vpack.c.b16 %v1580, %v1578
    %v1689 = vpack.c.b16 %v1583, %v1581
    %v1690 = vpack.c.b16 %v1584, %v1582
    %v1691 = vpack.c.b16 %v1587, %v1585
    %v1692 = vpack.c.b16 %v1588, %v1586
    %v1693 = vpack.c.b16 %v1591, %v1589
    %v1694 = vpack.c.b16 %v1592, %v1590
    %v1695 = vpack.c.b16 %v1595, %v1593
    %v1696 = vpack.c.b16 %v1596, %v1594
    %v1697 = vpack.c.b16 %v1599, %v1597
    %v1698 = vpack.c.b16 %v1600, %v1598
    %v1699 = vpack.c.b16 %v1603, %v1601
    %v1700 = vpack.c.b16 %v1604, %v1602
    %v1701 = vpack.c.b16 %v1607, %v1605
    %v1702 = vpack.c.b16 %v1608, %v1606
    %v1703 = vpack.c.b16 %v1611, %v1609
    %v1704 = vpack.c.b16 %v1612, %v1610
    %v1705 = vpack.c.b16 %v1615, %v1613
    %v1706 = vpack.c.b16 %v1616, %v1614
    %v1707 = vpack.c.b16 %v1619, %v1617
    %v1708 = vpack.c.b16 %v1620, %v1618
    %v1709 = vpack.c.b16 %v1623, %v1621
    %v1710 = vpack.c.b16 %v1624, %v1622
    %v1711 = vpack.c.b16 %v1627, %v1625
    %v1712 = vpack.c.b16 %v1628, %v1626
    %v1713 = vpack.c.b16 %v1631, %v1629
    %v1714 = vpack.c.b16 %v1632, %v1630
    %v1715 = vpack.c.b16 %v1635, %v1633
    %v1716 = vpack.c.b16 %v1636, %v1634
    %1797 = vmatpush.bf16.msra.mxu0 %v1651
    %1798 = vmatpush.bf16.msra.mxu0 %v1649
    %1799 = vmatpush.bf16.msra.mxu0 %v1647
    %1800 = vmatpush.bf16.msra.mxu0 %v1645
    %1801 = vmatpush.bf16.msra.mxu0 %v1643
    %1802 = vmatpush.bf16.msra.mxu0 %v1641
    %1803 = vmatpush.bf16.msra.mxu0 %v1639
    %1804 = vmatpush.bf16.msra.mxu0 %v1637
    %1805 = vmatmul.bf16.gmra.mxu0 %v214
    %v1806 = vpop.f32.mrf.mxu0
    %v1807 = vadd.f32 0.0, %v1806
    %v1808 = vpop.f32.mrf.mxu0
    %v1809 = vadd.f32 0.0, %v1808
    %1810 = vmatmul.bf16.gmra.mxu0 %v215
    %v1811 = vpop.f32.mrf.mxu0
    %v1812 = vadd.f32 0.0, %v1811
    %v1813 = vpop.f32.mrf.mxu0
    %v1814 = vadd.f32 0.0, %v1813
    %1815 = vmatmul.bf16.gmra.mxu0 %v216
    %v1816 = vpop.f32.mrf.mxu0
    %v1817 = vadd.f32 0.0, %v1816
    %v1818 = vpop.f32.mrf.mxu0
    %v1819 = vadd.f32 0.0, %v1818
    %1820 = vmatmul.bf16.gmra.mxu0 %v217
    %v1821 = vpop.f32.mrf.mxu0
    %v1822 = vadd.f32 0.0, %v1821
    %v1823 = vpop.f32.mrf.mxu0
    %v1824 = vadd.f32 0.0, %v1823
    %1825 = vmatmul.bf16.gmra.mxu0 %v218
    %v1826 = vpop.f32.mrf.mxu0
    %v1827 = vadd.f32 0.0, %v1826
    %v1828 = vpop.f32.mrf.mxu0
    %v1829 = vadd.f32 0.0, %v1828
    %1830 = vmatmul.bf16.gmra.mxu0 %v219
    %v1831 = vpop.f32.mrf.mxu0
    %v1832 = vadd.f32 0.0, %v1831
    %v1833 = vpop.f32.mrf.mxu0
    %v1834 = vadd.f32 0.0, %v1833
    %1835 = vmatmul.bf16.gmra.mxu0 %v220
    %v1836 = vpop.f32.mrf.mxu0
    %v1837 = vadd.f32 0.0, %v1836
    %v1838 = vpop.f32.mrf.mxu0
    %v1839 = vadd.f32 0.0, %v1838
    %1840 = vdwg.mxu0
    %1841 = vmatpush.bf16.msra.mxu0 %v1667
    %1842 = vmatpush.bf16.msra.mxu0 %v1665
    %1843 = vmatpush.bf16.msra.mxu0 %v1663
    %1844 = vmatpush.bf16.msra.mxu0 %v1661
    %1845 = vmatpush.bf16.msra.mxu0 %v1659
    %1846 = vmatpush.bf16.msra.mxu0 %v1657
    %1847 = vmatpush.bf16.msra.mxu0 %v1655
    %1848 = vmatpush.bf16.msra.mxu0 %v1653
    %1849 = vmatmul.bf16.gmra.mxu0 %v256
    %v1850 = vpop.f32.mrf.mxu0
    %v1851 = vadd.f32 %v1807, %v1850
    %v1852 = vpop.f32.mrf.mxu0
    %v1853 = vadd.f32 %v1809, %v1852
    %1854 = vmatmul.bf16.gmra.mxu0 %v257
    %v1855 = vpop.f32.mrf.mxu0
    %v1856 = vadd.f32 %v1812, %v1855
    %v1857 = vpop.f32.mrf.mxu0
    %v1858 = vadd.f32 %v1814, %v1857
    %1859 = vmatmul.bf16.gmra.mxu0 %v258
    %v1860 = vpop.f32.mrf.mxu0
    %v1861 = vadd.f32 %v1817, %v1860
    %v1862 = vpop.f32.mrf.mxu0
    %v1863 = vadd.f32 %v1819, %v1862
    %1864 = vmatmul.bf16.gmra.mxu0 %v259
    %v1865 = vpop.f32.mrf.mxu0
    %v1866 = vadd.f32 %v1822, %v1865
    %v1867 = vpop.f32.mrf.mxu0
    %v1868 = vadd.f32 %v1824, %v1867
    %1869 = vmatmul.bf16.gmra.mxu0 %v260
    %v1870 = vpop.f32.mrf.mxu0
    %v1871 = vadd.f32 %v1827, %v1870
    %v1872 = vpop.f32.mrf.mxu0
    %v1873 = vadd.f32 %v1829, %v1872
    %1874 = vmatmul.bf16.gmra.mxu0 %v261
    %v1875 = vpop.f32.mrf.mxu0
    %v1876 = vadd.f32 %v1832, %v1875
    %v1877 = vpop.f32.mrf.mxu0
    %v1878 = vadd.f32 %v1834, %v1877
    %1879 = vmatmul.bf16.gmra.mxu0 %v262
    %v1880 = vpop.f32.mrf.mxu0
    %v1881 = vadd.f32 %v1837, %v1880
    %v1882 = vpop.f32.mrf.mxu0
    %v1883 = vadd.f32 %v1839, %v1882
    %1884 = vdwg.mxu0
    %1885 = vmatpush.bf16.msra.mxu0 %v1683
    %1886 = vmatpush.bf16.msra.mxu0 %v1681
    %1887 = vmatpush.bf16.msra.mxu0 %v1679
    %1888 = vmatpush.bf16.msra.mxu0 %v1677
    %1889 = vmatpush.bf16.msra.mxu0 %v1675
    %1890 = vmatpush.bf16.msra.mxu0 %v1673
    %1891 = vmatpush.bf16.msra.mxu0 %v1671
    %1892 = vmatpush.bf16.msra.mxu0 %v1669
    %1893 = vmatmul.bf16.gmra.mxu0 %v298
    %v1894 = vpop.f32.mrf.mxu0
    %v1895 = vadd.f32 %v1851, %v1894
    %v1896 = vpop.f32.mrf.mxu0
    %v1897 = vadd.f32 %v1853, %v1896
    %1898 = vmatmul.bf16.gmra.mxu0 %v299
    %v1899 = vpop.f32.mrf.mxu0
    %v1900 = vadd.f32 %v1856, %v1899
    %v1901 = vpop.f32.mrf.mxu0
    %v1902 = vadd.f32 %v1858, %v1901
    %1903 = vmatmul.bf16.gmra.mxu0 %v300
    %v1904 = vpop.f32.mrf.mxu0
    %v1905 = vadd.f32 %v1861, %v1904
    %v1906 = vpop.f32.mrf.mxu0
    %v1907 = vadd.f32 %v1863, %v1906
    %1908 = vmatmul.bf16.gmra.mxu0 %v301
    %v1909 = vpop.f32.mrf.mxu0
    %v1910 = vadd.f32 %v1866, %v1909
    %v1911 = vpop.f32.mrf.mxu0
    %v1912 = vadd.f32 %v1868, %v1911
    %1913 = vmatmul.bf16.gmra.mxu0 %v302
    %v1914 = vpop.f32.mrf.mxu0
    %v1915 = vadd.f32 %v1871, %v1914
    %v1916 = vpop.f32.mrf.mxu0
    %v1917 = vadd.f32 %v1873, %v1916
    %1918 = vmatmul.bf16.gmra.mxu0 %v303
    %v1919 = vpop.f32.mrf.mxu0
    %v1920 = vadd.f32 %v1876, %v1919
    %v1921 = vpop.f32.mrf.mxu0
    %v1922 = vadd.f32 %v1878, %v1921
    %1923 = vmatmul.bf16.gmra.mxu0 %v304
    %v1924 = vpop.f32.mrf.mxu0
    %v1925 = vadd.f32 %v1881, %v1924
    %v1926 = vpop.f32.mrf.mxu0
    %v1927 = vadd.f32 %v1883, %v1926
    %1928 = vdwg.mxu0
    %1929 = vmatpush.bf16.msra.mxu0 %v1699
    %1930 = vmatpush.bf16.msra.mxu0 %v1697
    %1931 = vmatpush.bf16.msra.mxu0 %v1695
    %1932 = vmatpush.bf16.msra.mxu0 %v1693
    %1933 = vmatpush.bf16.msra.mxu0 %v1691
    %1934 = vmatpush.bf16.msra.mxu0 %v1689
    %1935 = vmatpush.bf16.msra.mxu0 %v1687
    %1936 = vmatpush.bf16.msra.mxu0 %v1685
    %1937 = vmatmul.bf16.gmra.mxu0 %v340
    %v1938 = vpop.f32.mrf.mxu0
    %v1939 = vadd.f32 %v1895, %v1938
    %v1940 = vpop.f32.mrf.mxu0
    %v1941 = vadd.f32 %v1897, %v1940
    %1942 = vmatmul.bf16.gmra.mxu0 %v341
    %v1943 = vpop.f32.mrf.mxu0
    %v1944 = vadd.f32 %v1900, %v1943
    %v1945 = vpop.f32.mrf.mxu0
    %v1946 = vadd.f32 %v1902, %v1945
    %1947 = vmatmul.bf16.gmra.mxu0 %v342
    %v1948 = vpop.f32.mrf.mxu0
    %v1949 = vadd.f32 %v1905, %v1948
    %v1950 = vpop.f32.mrf.mxu0
    %v1951 = vadd.f32 %v1907, %v1950
    %1952 = vmatmul.bf16.gmra.mxu0 %v343
    %v1953 = vpop.f32.mrf.mxu0
    %v1954 = vadd.f32 %v1910, %v1953
    %v1955 = vpop.f32.mrf.mxu0
    %v1956 = vadd.f32 %v1912, %v1955
    %1957 = vmatmul.bf16.gmra.mxu0 %v344
    %v1958 = vpop.f32.mrf.mxu0
    %v1959 = vadd.f32 %v1915, %v1958
    %v1960 = vpop.f32.mrf.mxu0
    %v1961 = vadd.f32 %v1917, %v1960
    %1962 = vmatmul.bf16.gmra.mxu0 %v345
    %v1963 = vpop.f32.mrf.mxu0
    %v1964 = vadd.f32 %v1920, %v1963
    %v1965 = vpop.f32.mrf.mxu0
    %v1966 = vadd.f32 %v1922, %v1965
    %1967 = vmatmul.bf16.gmra.mxu0 %v346
    %v1968 = vpop.f32.mrf.mxu0
    %v1969 = vadd.f32 %v1925, %v1968
    %v1970 = vpop.f32.mrf.mxu0
    %v1971 = vadd.f32 %v1927, %v1970
    %1972 = vdwg.mxu0
    %1973 = vmatpush.bf16.msra.mxu0 %v1715
    %1974 = vmatpush.bf16.msra.mxu0 %v1713
    %1975 = vmatpush.bf16.msra.mxu0 %v1711
    %1976 = vmatpush.bf16.msra.mxu0 %v1709
    %1977 = vmatpush.bf16.msra.mxu0 %v1707
    %1978 = vmatpush.bf16.msra.mxu0 %v1705
    %1979 = vmatpush.bf16.msra.mxu0 %v1703
    %1980 = vmatpush.bf16.msra.mxu0 %v1701
    %1981 = vmatmul.bf16.gmra.mxu0 %v382
    %v1982 = vpop.f32.mrf.mxu0
    %v1983 = vadd.f32 %v1939, %v1982
    %v1984 = vpop.f32.mrf.mxu0
    %v1985 = vadd.f32 %v1941, %v1984
    %1986 = vmatmul.bf16.gmra.mxu0 %v383
    %v1987 = vpop.f32.mrf.mxu0
    %v1988 = vadd.f32 %v1944, %v1987
    %v1989 = vpop.f32.mrf.mxu0
    %v1990 = vadd.f32 %v1946, %v1989
    %1991 = vmatmul.bf16.gmra.mxu0 %v384
    %v1992 = vpop.f32.mrf.mxu0
    %v1993 = vadd.f32 %v1949, %v1992
    %v1994 = vpop.f32.mrf.mxu0
    %v1995 = vadd.f32 %v1951, %v1994
    %1996 = vmatmul.bf16.gmra.mxu0 %v385
    %v1997 = vpop.f32.mrf.mxu0
    %v1998 = vadd.f32 %v1954, %v1997
    %v1999 = vpop.f32.mrf.mxu0
    %v2000 = vadd.f32 %v1956, %v1999
    %2001 = vmatmul.bf16.gmra.mxu0 %v386
    %v2002 = vpop.f32.mrf.mxu0
    %v2003 = vadd.f32 %v1959, %v2002
    %v2004 = vpop.f32.mrf.mxu0
    %v2005 = vadd.f32 %v1961, %v2004
    %2006 = vmatmul.bf16.gmra.mxu0 %v387
    %v2007 = vpop.f32.mrf.mxu0
    %v2008 = vadd.f32 %v1964, %v2007
    %v2009 = vpop.f32.mrf.mxu0
    %v2010 = vadd.f32 %v1966, %v2009
    %2011 = vmatmul.bf16.gmra.mxu0 %v388
    %v2012 = vpop.f32.mrf.mxu0
    %v2013 = vadd.f32 %v1969, %v2012
    %v2014 = vpop.f32.mrf.mxu0
    %v2015 = vadd.f32 %v1971, %v2014
    %2016 = vdwg.mxu0
    %2017 = vmatpush.bf16.msra.mxu0 %v1652
    %2018 = vmatpush.bf16.msra.mxu0 %v1650
    %2019 = vmatpush.bf16.msra.mxu0 %v1648
    %2020 = vmatpush.bf16.msra.mxu0 %v1646
    %2021 = vmatpush.bf16.msra.mxu0 %v1644
    %2022 = vmatpush.bf16.msra.mxu0 %v1642
    %2023 = vmatpush.bf16.msra.mxu0 %v1640
    %2024 = vmatpush.bf16.msra.mxu0 %v1638
    %2025 = vmatmul.bf16.gmra.mxu0 %v214
    %v2026 = vpop.f32.mrf.mxu0
    %v2027 = vadd.f32 0.0, %v2026
    %v2028 = vpop.f32.mrf.mxu0
    %v2029 = vadd.f32 0.0, %v2028
    %2030 = vmatmul.bf16.gmra.mxu0 %v215
    %v2031 = vpop.f32.mrf.mxu0
    %v2032 = vadd.f32 0.0, %v2031
    %v2033 = vpop.f32.mrf.mxu0
    %v2034 = vadd.f32 0.0, %v2033
    %2035 = vmatmul.bf16.gmra.mxu0 %v216
    %v2036 = vpop.f32.mrf.mxu0
    %v2037 = vadd.f32 0.0, %v2036
    %v2038 = vpop.f32.mrf.mxu0
    %v2039 = vadd.f32 0.0, %v2038
    %2040 = vmatmul.bf16.gmra.mxu0 %v217
    %v2041 = vpop.f32.mrf.mxu0
    %v2042 = vadd.f32 0.0, %v2041
    %v2043 = vpop.f32.mrf.mxu0
    %v2044 = vadd.f32 0.0, %v2043
    %2045 = vmatmul.bf16.gmra.mxu0 %v218
    %v2046 = vpop.f32.mrf.mxu0
    %v2047 = vadd.f32 0.0, %v2046
    %v2048 = vpop.f32.mrf.mxu0
    %v2049 = vadd.f32 0.0, %v2048
    %2050 = vmatmul.bf16.gmra.mxu0 %v219
    %v2051 = vpop.f32.mrf.mxu0
    %v2052 = vadd.f32 0.0, %v2051
    %v2053 = vpop.f32.mrf.mxu0
    %v2054 = vadd.f32 0.0, %v2053
    %2055 = vmatmul.bf16.gmra.mxu0 %v220
    %v2056 = vpop.f32.mrf.mxu0
    %v2057 = vadd.f32 0.0, %v2056
    %v2058 = vpop.f32.mrf.mxu0
    %v2059 = vadd.f32 0.0, %v2058
    %2060 = vdwg.mxu0
    %2061 = vmatpush.bf16.msra.mxu0 %v1668
    %2062 = vmatpush.bf16.msra.mxu0 %v1666
    %2063 = vmatpush.bf16.msra.mxu0 %v1664
    %2064 = vmatpush.bf16.msra.mxu0 %v1662
    %2065 = vmatpush.bf16.msra.mxu0 %v1660
    %2066 = vmatpush.bf16.msra.mxu0 %v1658
    %2067 = vmatpush.bf16.msra.mxu0 %v1656
    %2068 = vmatpush.bf16.msra.mxu0 %v1654
    %2069 = vmatmul.bf16.gmra.mxu0 %v256
    %v2070 = vpop.f32.mrf.mxu0
    %v2071 = vadd.f32 %v2027, %v2070
    %v2072 = vpop.f32.mrf.mxu0
    %v2073 = vadd.f32 %v2029, %v2072
    %2074 = vmatmul.bf16.gmra.mxu0 %v257
    %v2075 = vpop.f32.mrf.mxu0
    %v2076 = vadd.f32 %v2032, %v2075
    %v2077 = vpop.f32.mrf.mxu0
    %v2078 = vadd.f32 %v2034, %v2077
    %2079 = vmatmul.bf16.gmra.mxu0 %v258
    %v2080 = vpop.f32.mrf.mxu0
    %v2081 = vadd.f32 %v2037, %v2080
    %v2082 = vpop.f32.mrf.mxu0
    %v2083 = vadd.f32 %v2039, %v2082
    %2084 = vmatmul.bf16.gmra.mxu0 %v259
    %v2085 = vpop.f32.mrf.mxu0
    %v2086 = vadd.f32 %v2042, %v2085
    %v2087 = vpop.f32.mrf.mxu0
    %v2088 = vadd.f32 %v2044, %v2087
    %2089 = vmatmul.bf16.gmra.mxu0 %v260
    %v2090 = vpop.f32.mrf.mxu0
    %v2091 = vadd.f32 %v2047, %v2090
    %v2092 = vpop.f32.mrf.mxu0
    %v2093 = vadd.f32 %v2049, %v2092
    %2094 = vmatmul.bf16.gmra.mxu0 %v261
    %v2095 = vpop.f32.mrf.mxu0
    %v2096 = vadd.f32 %v2052, %v2095
    %v2097 = vpop.f32.mrf.mxu0
    %v2098 = vadd.f32 %v2054, %v2097
    %2099 = vmatmul.bf16.gmra.mxu0 %v262
    %v2100 = vpop.f32.mrf.mxu0
    %v2101 = vadd.f32 %v2057, %v2100
    %v2102 = vpop.f32.mrf.mxu0
    %v2103 = vadd.f32 %v2059, %v2102
    %2104 = vdwg.mxu0
    %2105 = vmatpush.bf16.msra.mxu0 %v1684
    %2106 = vmatpush.bf16.msra.mxu0 %v1682
    %2107 = vmatpush.bf16.msra.mxu0 %v1680
    %2108 = vmatpush.bf16.msra.mxu0 %v1678
    %2109 = vmatpush.bf16.msra.mxu0 %v1676
    %2110 = vmatpush.bf16.msra.mxu0 %v1674
    %2111 = vmatpush.bf16.msra.mxu0 %v1672
    %2112 = vmatpush.bf16.msra.mxu0 %v1670
    %2113 = vmatmul.bf16.gmra.mxu0 %v298
    %v2114 = vpop.f32.mrf.mxu0
    %v2115 = vadd.f32 %v2071, %v2114
    %v2116 = vpop.f32.mrf.mxu0
    %v2117 = vadd.f32 %v2073, %v2116
    %2118 = vmatmul.bf16.gmra.mxu0 %v299
    %v2119 = vpop.f32.mrf.mxu0
    %v2120 = vadd.f32 %v2076, %v2119
    %v2121 = vpop.f32.mrf.mxu0
    %v2122 = vadd.f32 %v2078, %v2121
    %2123 = vmatmul.bf16.gmra.mxu0 %v300
    %v2124 = vpop.f32.mrf.mxu0
    %v2125 = vadd.f32 %v2081, %v2124
    %v2126 = vpop.f32.mrf.mxu0
    %v2127 = vadd.f32 %v2083, %v2126
    %2128 = vmatmul.bf16.gmra.mxu0 %v301
    %v2129 = vpop.f32.mrf.mxu0
    %v2130 = vadd.f32 %v2086, %v2129
    %v2131 = vpop.f32.mrf.mxu0
    %v2132 = vadd.f32 %v2088, %v2131
    %2133 = vmatmul.bf16.gmra.mxu0 %v302
    %v2134 = vpop.f32.mrf.mxu0
    %v2135 = vadd.f32 %v2091, %v2134
    %v2136 = vpop.f32.mrf.mxu0
    %v2137 = vadd.f32 %v2093, %v2136
    %2138 = vmatmul.bf16.gmra.mxu0 %v303
    %v2139 = vpop.f32.mrf.mxu0
    %v2140 = vadd.f32 %v2096, %v2139
    %v2141 = vpop.f32.mrf.mxu0
    %v2142 = vadd.f32 %v2098, %v2141
    %2143 = vmatmul.bf16.gmra.mxu0 %v304
    %v2144 = vpop.f32.mrf.mxu0
    %v2145 = vadd.f32 %v2101, %v2144
    %v2146 = vpop.f32.mrf.mxu0
    %v2147 = vadd.f32 %v2103, %v2146
    %2148 = vdwg.mxu0
    %2149 = vmatpush.bf16.msra.mxu0 %v1700
    %2150 = vmatpush.bf16.msra.mxu0 %v1698
    %2151 = vmatpush.bf16.msra.mxu0 %v1696
    %2152 = vmatpush.bf16.msra.mxu0 %v1694
    %2153 = vmatpush.bf16.msra.mxu0 %v1692
    %2154 = vmatpush.bf16.msra.mxu0 %v1690
    %2155 = vmatpush.bf16.msra.mxu0 %v1688
    %2156 = vmatpush.bf16.msra.mxu0 %v1686
    %2157 = vmatmul.bf16.gmra.mxu0 %v340
    %v2158 = vpop.f32.mrf.mxu0
    %v2159 = vadd.f32 %v2115, %v2158
    %v2160 = vpop.f32.mrf.mxu0
    %v2161 = vadd.f32 %v2117, %v2160
    %2162 = vmatmul.bf16.gmra.mxu0 %v341
    %v2163 = vpop.f32.mrf.mxu0
    %v2164 = vadd.f32 %v2120, %v2163
    %v2165 = vpop.f32.mrf.mxu0
    %v2166 = vadd.f32 %v2122, %v2165
    %2167 = vmatmul.bf16.gmra.mxu0 %v342
    %v2168 = vpop.f32.mrf.mxu0
    %v2169 = vadd.f32 %v2125, %v2168
    %v2170 = vpop.f32.mrf.mxu0
    %v2171 = vadd.f32 %v2127, %v2170
    %2172 = vmatmul.bf16.gmra.mxu0 %v343
    %v2173 = vpop.f32.mrf.mxu0
    %v2174 = vadd.f32 %v2130, %v2173
    %v2175 = vpop.f32.mrf.mxu0
    %v2176 = vadd.f32 %v2132, %v2175
    %2177 = vmatmul.bf16.gmra.mxu0 %v344
    %v2178 = vpop.f32.mrf.mxu0
    %v2179 = vadd.f32 %v2135, %v2178
    %v2180 = vpop.f32.mrf.mxu0
    %v2181 = vadd.f32 %v2137, %v2180
    %2182 = vmatmul.bf16.gmra.mxu0 %v345
    %v2183 = vpop.f32.mrf.mxu0
    %v2184 = vadd.f32 %v2140, %v2183
    %v2185 = vpop.f32.mrf.mxu0
    %v2186 = vadd.f32 %v2142, %v2185
    %2187 = vmatmul.bf16.gmra.mxu0 %v346
    %v2188 = vpop.f32.mrf.mxu0
    %v2189 = vadd.f32 %v2145, %v2188
    %v2190 = vpop.f32.mrf.mxu0
    %v2191 = vadd.f32 %v2147, %v2190
    %2192 = vdwg.mxu0
    %2193 = vmatpush.bf16.msra.mxu0 %v1716
    %2194 = vmatpush.bf16.msra.mxu0 %v1714
    %2195 = vmatpush.bf16.msra.mxu0 %v1712
    %2196 = vmatpush.bf16.msra.mxu0 %v1710
    %2197 = vmatpush.bf16.msra.mxu0 %v1708
    %2198 = vmatpush.bf16.msra.mxu0 %v1706
    %2199 = vmatpush.bf16.msra.mxu0 %v1704
    %2200 = vmatpush.bf16.msra.mxu0 %v1702
    %2201 = vmatmul.bf16.gmra.mxu0 %v382
    %v2202 = vpop.f32.mrf.mxu0
    %v2203 = vadd.f32 %v2159, %v2202
    %v2204 = vpop.f32.mrf.mxu0
    %v2205 = vadd.f32 %v2161, %v2204
    %2206 = vmatmul.bf16.gmra.mxu0 %v383
    %v2207 = vpop.f32.mrf.mxu0
    %v2208 = vadd.f32 %v2164, %v2207
    %v2209 = vpop.f32.mrf.mxu0
    %v2210 = vadd.f32 %v2166, %v2209
    %2211 = vmatmul.bf16.gmra.mxu0 %v384
    %v2212 = vpop.f32.mrf.mxu0
    %v2213 = vadd.f32 %v2169, %v2212
    %v2214 = vpop.f32.mrf.mxu0
    %v2215 = vadd.f32 %v2171, %v2214
    %2216 = vmatmul.bf16.gmra.mxu0 %v385
    %v2217 = vpop.f32.mrf.mxu0
    %v2218 = vadd.f32 %v2174, %v2217
    %v2219 = vpop.f32.mrf.mxu0
    %v2220 = vadd.f32 %v2176, %v2219
    %2221 = vmatmul.bf16.gmra.mxu0 %v386
    %v2222 = vpop.f32.mrf.mxu0
    %v2223 = vadd.f32 %v2179, %v2222
    %v2224 = vpop.f32.mrf.mxu0
    %v2225 = vadd.f32 %v2181, %v2224
    %2226 = vmatmul.bf16.gmra.mxu0 %v387
    %v2227 = vpop.f32.mrf.mxu0
    %v2228 = vadd.f32 %v2184, %v2227
    %v2229 = vpop.f32.mrf.mxu0
    %v2230 = vadd.f32 %v2186, %v2229
    %2231 = vmatmul.bf16.gmra.mxu0 %v388
    %v2232 = vpop.f32.mrf.mxu0
    %v2233 = vadd.f32 %v2189, %v2232
    %v2234 = vpop.f32.mrf.mxu0
    %v2235 = vadd.f32 %v2191, %v2234
    %2236 = vdwg.mxu0
    %v2237 = vmax.f32 %v1062, %v1983
    %v2238 = vmax.f32 %v1282, %v2203
    %v2239 = vmax.f32 %v1064, %v1985
    %v2240 = vmax.f32 %v1284, %v2205
    %v2241 = vmax.f32 %v1067, %v1988
    %v2242 = vmax.f32 %v1287, %v2208
    %v2243 = vmax.f32 %v1069, %v1990
    %v2244 = vmax.f32 %v1289, %v2210
    %v2245 = vmax.f32 %v1072, %v1993
    %v2246 = vmax.f32 %v1292, %v2213
    %v2247 = vmax.f32 %v1074, %v1995
    %v2248 = vmax.f32 %v1294, %v2215
    %v2249 = vmax.f32 %v1077, %v1998
    %v2250 = vmax.f32 %v1297, %v2218
    %v2251 = vmax.f32 %v1079, %v2000
    %v2252 = vmax.f32 %v1299, %v2220
    %v2253 = vmax.f32 %v1082, %v2003
    %v2254 = vmax.f32 %v1302, %v2223
    %v2255 = vmax.f32 %v1084, %v2005
    %v2256 = vmax.f32 %v1304, %v2225
    %v2257 = vmax.f32 %v1087, %v2008
    %v2258 = vmax.f32 %v1307, %v2228
    %v2259 = vmax.f32 %v1089, %v2010
    %v2260 = vmax.f32 %v1309, %v2230
    %v2261 = vmax.f32 %v1092, %v2013
    %v2262 = vmax.f32 %v1312, %v2233
    %v2263 = vmax.f32 %v1094, %v2015
    %v2264 = vmax.f32 %v1314, %v2235
    %v2265 = vld [vmem:[%s171 + $0x4] sm:$0xf]
    %v2266 = vld [vmem:[%s171 + $0x14] sm:$0xf]
    %v2267 = vld [vmem:[%s171 + $0x24] sm:$0xf]
    %v2268 = vld [vmem:[%s171 + $0x34] sm:$0xf]
    %v2269 = vld [vmem:[%s171 + $0x44] sm:$0xf]
    %v2270 = vld [vmem:[%s171 + $0x54] sm:$0xf]
    %v2271 = vld [vmem:[%s171 + $0x64] sm:$0xf]
    %v2272 = vld [vmem:[%s171 + $0x74] sm:$0xf]
    %v2273 = vld [vmem:[%s171 + $0x84] sm:$0xf]
    %v2274 = vld [vmem:[%s171 + $0x94] sm:$0xf]
    %v2275 = vld [vmem:[%s171 + $0xa4] sm:$0xf]
    %v2276 = vld [vmem:[%s171 + $0xb4] sm:$0xf]
    %v2277 = vld [vmem:[%s171 + $0xc4] sm:$0xf]
    %v2278 = vld [vmem:[%s171 + $0xd4] sm:$0xf]
    %v2293 = vunpack.c.l.b16 %v2265
    %v2294 = vunpack.c.l.b16 %v2266
    %v2295 = vunpack.c.l.b16 %v2267
    %v2296 = vunpack.c.l.b16 %v2268
    %v2297 = vunpack.c.l.b16 %v2269
    %v2298 = vunpack.c.l.b16 %v2270
    %v2299 = vunpack.c.l.b16 %v2271
    %v2300 = vunpack.c.l.b16 %v2272
    %v2301 = vunpack.c.l.b16 %v2273
    %v2302 = vunpack.c.l.b16 %v2274
    %v2303 = vunpack.c.l.b16 %v2275
    %v2304 = vunpack.c.l.b16 %v2276
    %v2305 = vunpack.c.l.b16 %v2277
    %v2306 = vunpack.c.l.b16 %v2278
    %v2307 = vpack.c.b16 %v2294, %v2293
    %v2308 = vpack.c.b16 %v2296, %v2295
    %v2309 = vpack.c.b16 %v2298, %v2297
    %v2310 = vpack.c.b16 %v2300, %v2299
    %v2311 = vpack.c.b16 %v2302, %v2301
    %v2312 = vpack.c.b16 %v2304, %v2303
    %v2313 = vpack.c.b16 %v2306, %v2305
    %2321 = vmatpush.bf16.msra.mxu0 %v730
    %2322 = vmatpush.bf16.msra.mxu0 %v728
    %2323 = vmatpush.bf16.msra.mxu0 %v726
    %2324 = vmatpush.bf16.msra.mxu0 %v724
    %2325 = vmatpush.bf16.msra.mxu0 %v722
    %2326 = vmatpush.bf16.msra.mxu0 %v720
    %2327 = vmatpush.bf16.msra.mxu0 %v718
    %2328 = vmatpush.bf16.msra.mxu0 %v716
    %2329 = vmatmul.bf16.gmra.mxu0 %v256
    %v2330 = vpop.f32.mrf.mxu0
    %v2331 = vadd.f32 0.0, %v2330
    %v2332 = vpop.f32.mrf.mxu0
    %v2333 = vadd.f32 0.0, %v2332
    %2334 = vmatmul.bf16.gmra.mxu0 %v257
    %v2335 = vpop.f32.mrf.mxu0
    %v2336 = vadd.f32 0.0, %v2335
    %v2337 = vpop.f32.mrf.mxu0
    %v2338 = vadd.f32 0.0, %v2337
    %2339 = vmatmul.bf16.gmra.mxu0 %v258
    %v2340 = vpop.f32.mrf.mxu0
    %v2341 = vadd.f32 0.0, %v2340
    %v2342 = vpop.f32.mrf.mxu0
    %v2343 = vadd.f32 0.0, %v2342
    %2344 = vmatmul.bf16.gmra.mxu0 %v259
    %v2345 = vpop.f32.mrf.mxu0
    %v2346 = vadd.f32 0.0, %v2345
    %v2347 = vpop.f32.mrf.mxu0
    %v2348 = vadd.f32 0.0, %v2347
    %2349 = vmatmul.bf16.gmra.mxu0 %v260
    %v2350 = vpop.f32.mrf.mxu0
    %v2351 = vadd.f32 0.0, %v2350
    %v2352 = vpop.f32.mrf.mxu0
    %v2353 = vadd.f32 0.0, %v2352
    %2354 = vmatmul.bf16.gmra.mxu0 %v261
    %v2355 = vpop.f32.mrf.mxu0
    %v2356 = vadd.f32 0.0, %v2355
    %v2357 = vpop.f32.mrf.mxu0
    %v2358 = vadd.f32 0.0, %v2357
    %2359 = vmatmul.bf16.gmra.mxu0 %v262
    %v2360 = vpop.f32.mrf.mxu0
    %v2361 = vadd.f32 0.0, %v2360
    %v2362 = vpop.f32.mrf.mxu0
    %v2363 = vadd.f32 0.0, %v2362
    %2364 = vdwg.mxu0
    %2365 = vmatpush.bf16.msra.mxu0 %v746
    %2366 = vmatpush.bf16.msra.mxu0 %v744
    %2367 = vmatpush.bf16.msra.mxu0 %v742
    %2368 = vmatpush.bf16.msra.mxu0 %v740
    %2369 = vmatpush.bf16.msra.mxu0 %v738
    %2370 = vmatpush.bf16.msra.mxu0 %v736
    %2371 = vmatpush.bf16.msra.mxu0 %v734
    %2372 = vmatpush.bf16.msra.mxu0 %v732
    %2373 = vmatmul.bf16.gmra.mxu0 %v298
    %v2374 = vpop.f32.mrf.mxu0
    %v2375 = vadd.f32 %v2331, %v2374
    %v2376 = vpop.f32.mrf.mxu0
    %v2377 = vadd.f32 %v2333, %v2376
    %2378 = vmatmul.bf16.gmra.mxu0 %v299
    %v2379 = vpop.f32.mrf.mxu0
    %v2380 = vadd.f32 %v2336, %v2379
    %v2381 = vpop.f32.mrf.mxu0
    %v2382 = vadd.f32 %v2338, %v2381
    %2383 = vmatmul.bf16.gmra.mxu0 %v300
    %v2384 = vpop.f32.mrf.mxu0
    %v2385 = vadd.f32 %v2341, %v2384
    %v2386 = vpop.f32.mrf.mxu0
    %v2387 = vadd.f32 %v2343, %v2386
    %2388 = vmatmul.bf16.gmra.mxu0 %v301
    %v2389 = vpop.f32.mrf.mxu0
    %v2390 = vadd.f32 %v2346, %v2389
    %v2391 = vpop.f32.mrf.mxu0
    %v2392 = vadd.f32 %v2348, %v2391
    %2393 = vmatmul.bf16.gmra.mxu0 %v302
    %v2394 = vpop.f32.mrf.mxu0
    %v2395 = vadd.f32 %v2351, %v2394
    %v2396 = vpop.f32.mrf.mxu0
    %v2397 = vadd.f32 %v2353, %v2396
    %2398 = vmatmul.bf16.gmra.mxu0 %v303
    %v2399 = vpop.f32.mrf.mxu0
    %v2400 = vadd.f32 %v2356, %v2399
    %v2401 = vpop.f32.mrf.mxu0
    %v2402 = vadd.f32 %v2358, %v2401
    %2403 = vmatmul.bf16.gmra.mxu0 %v304
    %v2404 = vpop.f32.mrf.mxu0
    %v2405 = vadd.f32 %v2361, %v2404
    %v2406 = vpop.f32.mrf.mxu0
    %v2407 = vadd.f32 %v2363, %v2406
    %2408 = vdwg.mxu0
    %2409 = vmatpush.bf16.msra.mxu0 %v762
    %2410 = vmatpush.bf16.msra.mxu0 %v760
    %2411 = vmatpush.bf16.msra.mxu0 %v758
    %2412 = vmatpush.bf16.msra.mxu0 %v756
    %2413 = vmatpush.bf16.msra.mxu0 %v754
    %2414 = vmatpush.bf16.msra.mxu0 %v752
    %2415 = vmatpush.bf16.msra.mxu0 %v750
    %2416 = vmatpush.bf16.msra.mxu0 %v748
    %2417 = vmatmul.bf16.gmra.mxu0 %v340
    %v2418 = vpop.f32.mrf.mxu0
    %v2419 = vadd.f32 %v2375, %v2418
    %v2420 = vpop.f32.mrf.mxu0
    %v2421 = vadd.f32 %v2377, %v2420
    %2422 = vmatmul.bf16.gmra.mxu0 %v341
    %v2423 = vpop.f32.mrf.mxu0
    %v2424 = vadd.f32 %v2380, %v2423
    %v2425 = vpop.f32.mrf.mxu0
    %v2426 = vadd.f32 %v2382, %v2425
    %2427 = vmatmul.bf16.gmra.mxu0 %v342
    %v2428 = vpop.f32.mrf.mxu0
    %v2429 = vadd.f32 %v2385, %v2428
    %v2430 = vpop.f32.mrf.mxu0
    %v2431 = vadd.f32 %v2387, %v2430
    %2432 = vmatmul.bf16.gmra.mxu0 %v343
    %v2433 = vpop.f32.mrf.mxu0
    %v2434 = vadd.f32 %v2390, %v2433
    %v2435 = vpop.f32.mrf.mxu0
    %v2436 = vadd.f32 %v2392, %v2435
    %2437 = vmatmul.bf16.gmra.mxu0 %v344
    %v2438 = vpop.f32.mrf.mxu0
    %v2439 = vadd.f32 %v2395, %v2438
    %v2440 = vpop.f32.mrf.mxu0
    %v2441 = vadd.f32 %v2397, %v2440
    %2442 = vmatmul.bf16.gmra.mxu0 %v345
    %v2443 = vpop.f32.mrf.mxu0
    %v2444 = vadd.f32 %v2400, %v2443
    %v2445 = vpop.f32.mrf.mxu0
    %v2446 = vadd.f32 %v2402, %v2445
    %2447 = vmatmul.bf16.gmra.mxu0 %v346
    %v2448 = vpop.f32.mrf.mxu0
    %v2449 = vadd.f32 %v2405, %v2448
    %v2450 = vpop.f32.mrf.mxu0
    %v2451 = vadd.f32 %v2407, %v2450
    %2452 = vdwg.mxu0
    %2453 = vmatpush.bf16.msra.mxu0 %v778
    %2454 = vmatpush.bf16.msra.mxu0 %v776
    %2455 = vmatpush.bf16.msra.mxu0 %v774
    %2456 = vmatpush.bf16.msra.mxu0 %v772
    %2457 = vmatpush.bf16.msra.mxu0 %v770
    %2458 = vmatpush.bf16.msra.mxu0 %v768
    %2459 = vmatpush.bf16.msra.mxu0 %v766
    %2460 = vmatpush.bf16.msra.mxu0 %v764
    %2461 = vmatmul.bf16.gmra.mxu0 %v382
    %v2462 = vpop.f32.mrf.mxu0
    %v2463 = vadd.f32 %v2419, %v2462
    %v2464 = vpop.f32.mrf.mxu0
    %v2465 = vadd.f32 %v2421, %v2464
    %2466 = vmatmul.bf16.gmra.mxu0 %v383
    %v2467 = vpop.f32.mrf.mxu0
    %v2468 = vadd.f32 %v2424, %v2467
    %v2469 = vpop.f32.mrf.mxu0
    %v2470 = vadd.f32 %v2426, %v2469
    %2471 = vmatmul.bf16.gmra.mxu0 %v384
    %v2472 = vpop.f32.mrf.mxu0
    %v2473 = vadd.f32 %v2429, %v2472
    %v2474 = vpop.f32.mrf.mxu0
    %v2475 = vadd.f32 %v2431, %v2474
    %2476 = vmatmul.bf16.gmra.mxu0 %v385
    %v2477 = vpop.f32.mrf.mxu0
    %v2478 = vadd.f32 %v2434, %v2477
    %v2479 = vpop.f32.mrf.mxu0
    %v2480 = vadd.f32 %v2436, %v2479
    %2481 = vmatmul.bf16.gmra.mxu0 %v386
    %v2482 = vpop.f32.mrf.mxu0
    %v2483 = vadd.f32 %v2439, %v2482
    %v2484 = vpop.f32.mrf.mxu0
    %v2485 = vadd.f32 %v2441, %v2484
    %2486 = vmatmul.bf16.gmra.mxu0 %v387
    %v2487 = vpop.f32.mrf.mxu0
    %v2488 = vadd.f32 %v2444, %v2487
    %v2489 = vpop.f32.mrf.mxu0
    %v2490 = vadd.f32 %v2446, %v2489
    %2491 = vmatmul.bf16.gmra.mxu0 %v388
    %v2492 = vpop.f32.mrf.mxu0
    %v2493 = vadd.f32 %v2449, %v2492
    %v2494 = vpop.f32.mrf.mxu0
    %v2495 = vadd.f32 %v2451, %v2494
    %2496 = vdwg.mxu0
    %2497 = vmatpush.bf16.msra.mxu0 %v794
    %2498 = vmatpush.bf16.msra.mxu0 %v792
    %2499 = vmatpush.bf16.msra.mxu0 %v790
    %2500 = vmatpush.bf16.msra.mxu0 %v788
    %2501 = vmatpush.bf16.msra.mxu0 %v786
    %2502 = vmatpush.bf16.msra.mxu0 %v784
    %2503 = vmatpush.bf16.msra.mxu0 %v782
    %2504 = vmatpush.bf16.msra.mxu0 %v780
    %2505 = vmatmul.bf16.gmra.mxu0 %v2307
    %v2506 = vpop.f32.mrf.mxu0
    %v2507 = vadd.f32 %v2463, %v2506
    %v2508 = vpop.f32.mrf.mxu0
    %v2509 = vadd.f32 %v2465, %v2508
    %2510 = vmatmul.bf16.gmra.mxu0 %v2308
    %v2511 = vpop.f32.mrf.mxu0
    %v2512 = vadd.f32 %v2468, %v2511
    %v2513 = vpop.f32.mrf.mxu0
    %v2514 = vadd.f32 %v2470, %v2513
    %2515 = vmatmul.bf16.gmra.mxu0 %v2309
    %v2516 = vpop.f32.mrf.mxu0
    %v2517 = vadd.f32 %v2473, %v2516
    %v2518 = vpop.f32.mrf.mxu0
    %v2519 = vadd.f32 %v2475, %v2518
    %2520 = vmatmul.bf16.gmra.mxu0 %v2310
    %v2521 = vpop.f32.mrf.mxu0
    %v2522 = vadd.f32 %v2478, %v2521
    %v2523 = vpop.f32.mrf.mxu0
    %v2524 = vadd.f32 %v2480, %v2523
    %2525 = vmatmul.bf16.gmra.mxu0 %v2311
    %v2526 = vpop.f32.mrf.mxu0
    %v2527 = vadd.f32 %v2483, %v2526
    %v2528 = vpop.f32.mrf.mxu0
    %v2529 = vadd.f32 %v2485, %v2528
    %2530 = vmatmul.bf16.gmra.mxu0 %v2312
    %v2531 = vpop.f32.mrf.mxu0
    %v2532 = vadd.f32 %v2488, %v2531
    %v2533 = vpop.f32.mrf.mxu0
    %v2534 = vadd.f32 %v2490, %v2533
    %2535 = vmatmul.bf16.gmra.mxu0 %v2313
    %v2536 = vpop.f32.mrf.mxu0
    %v2537 = vadd.f32 %v2493, %v2536
    %v2538 = vpop.f32.mrf.mxu0
    %v2539 = vadd.f32 %v2495, %v2538
    %2540 = vdwg.mxu0
    %2541 = vmatpush.bf16.msra.mxu0 %v731
    %2542 = vmatpush.bf16.msra.mxu0 %v729
    %2543 = vmatpush.bf16.msra.mxu0 %v727
    %2544 = vmatpush.bf16.msra.mxu0 %v725
    %2545 = vmatpush.bf16.msra.mxu0 %v723
    %2546 = vmatpush.bf16.msra.mxu0 %v721
    %2547 = vmatpush.bf16.msra.mxu0 %v719
    %2548 = vmatpush.bf16.msra.mxu0 %v717
    %2549 = vmatmul.bf16.gmra.mxu0 %v256
    %v2550 = vpop.f32.mrf.mxu0
    %v2551 = vadd.f32 0.0, %v2550
    %v2552 = vpop.f32.mrf.mxu0
    %v2553 = vadd.f32 0.0, %v2552
    %2554 = vmatmul.bf16.gmra.mxu0 %v257
    %v2555 = vpop.f32.mrf.mxu0
    %v2556 = vadd.f32 0.0, %v2555
    %v2557 = vpop.f32.mrf.mxu0
    %v2558 = vadd.f32 0.0, %v2557
    %2559 = vmatmul.bf16.gmra.mxu0 %v258
    %v2560 = vpop.f32.mrf.mxu0
    %v2561 = vadd.f32 0.0, %v2560
    %v2562 = vpop.f32.mrf.mxu0
    %v2563 = vadd.f32 0.0, %v2562
    %2564 = vmatmul.bf16.gmra.mxu0 %v259
    %v2565 = vpop.f32.mrf.mxu0
    %v2566 = vadd.f32 0.0, %v2565
    %v2567 = vpop.f32.mrf.mxu0
    %v2568 = vadd.f32 0.0, %v2567
    %2569 = vmatmul.bf16.gmra.mxu0 %v260
    %v2570 = vpop.f32.mrf.mxu0
    %v2571 = vadd.f32 0.0, %v2570
    %v2572 = vpop.f32.mrf.mxu0
    %v2573 = vadd.f32 0.0, %v2572
    %2574 = vmatmul.bf16.gmra.mxu0 %v261
    %v2575 = vpop.f32.mrf.mxu0
    %v2576 = vadd.f32 0.0, %v2575
    %v2577 = vpop.f32.mrf.mxu0
    %v2578 = vadd.f32 0.0, %v2577
    %2579 = vmatmul.bf16.gmra.mxu0 %v262
    %v2580 = vpop.f32.mrf.mxu0
    %v2581 = vadd.f32 0.0, %v2580
    %v2582 = vpop.f32.mrf.mxu0
    %v2583 = vadd.f32 0.0, %v2582
    %2584 = vdwg.mxu0
    %2585 = vmatpush.bf16.msra.mxu0 %v747
    %2586 = vmatpush.bf16.msra.mxu0 %v745
    %2587 = vmatpush.bf16.msra.mxu0 %v743
    %2588 = vmatpush.bf16.msra.mxu0 %v741
    %2589 = vmatpush.bf16.msra.mxu0 %v739
    %2590 = vmatpush.bf16.msra.mxu0 %v737
    %2591 = vmatpush.bf16.msra.mxu0 %v735
    %2592 = vmatpush.bf16.msra.mxu0 %v733
    %2593 = vmatmul.bf16.gmra.mxu0 %v298
    %v2594 = vpop.f32.mrf.mxu0
    %v2595 = vadd.f32 %v2551, %v2594
    %v2596 = vpop.f32.mrf.mxu0
    %v2597 = vadd.f32 %v2553, %v2596
    %2598 = vmatmul.bf16.gmra.mxu0 %v299
    %v2599 = vpop.f32.mrf.mxu0
    %v2600 = vadd.f32 %v2556, %v2599
    %v2601 = vpop.f32.mrf.mxu0
    %v2602 = vadd.f32 %v2558, %v2601
    %2603 = vmatmul.bf16.gmra.mxu0 %v300
    %v2604 = vpop.f32.mrf.mxu0
    %v2605 = vadd.f32 %v2561, %v2604
    %v2606 = vpop.f32.mrf.mxu0
    %v2607 = vadd.f32 %v2563, %v2606
    %2608 = vmatmul.bf16.gmra.mxu0 %v301
    %v2609 = vpop.f32.mrf.mxu0
    %v2610 = vadd.f32 %v2566, %v2609
    %v2611 = vpop.f32.mrf.mxu0
    %v2612 = vadd.f32 %v2568, %v2611
    %2613 = vmatmul.bf16.gmra.mxu0 %v302
    %v2614 = vpop.f32.mrf.mxu0
    %v2615 = vadd.f32 %v2571, %v2614
    %v2616 = vpop.f32.mrf.mxu0
    %v2617 = vadd.f32 %v2573, %v2616
    %2618 = vmatmul.bf16.gmra.mxu0 %v303
    %v2619 = vpop.f32.mrf.mxu0
    %v2620 = vadd.f32 %v2576, %v2619
    %v2621 = vpop.f32.mrf.mxu0
    %v2622 = vadd.f32 %v2578, %v2621
    %2623 = vmatmul.bf16.gmra.mxu0 %v304
    %v2624 = vpop.f32.mrf.mxu0
    %v2625 = vadd.f32 %v2581, %v2624
    %v2626 = vpop.f32.mrf.mxu0
    %v2627 = vadd.f32 %v2583, %v2626
    %2628 = vdwg.mxu0
    %2629 = vmatpush.bf16.msra.mxu0 %v763
    %2630 = vmatpush.bf16.msra.mxu0 %v761
    %2631 = vmatpush.bf16.msra.mxu0 %v759
    %2632 = vmatpush.bf16.msra.mxu0 %v757
    %2633 = vmatpush.bf16.msra.mxu0 %v755
    %2634 = vmatpush.bf16.msra.mxu0 %v753
    %2635 = vmatpush.bf16.msra.mxu0 %v751
    %2636 = vmatpush.bf16.msra.mxu0 %v749
    %2637 = vmatmul.bf16.gmra.mxu0 %v340
    %v2638 = vpop.f32.mrf.mxu0
    %v2639 = vadd.f32 %v2595, %v2638
    %v2640 = vpop.f32.mrf.mxu0
    %v2641 = vadd.f32 %v2597, %v2640
    %2642 = vmatmul.bf16.gmra.mxu0 %v341
    %v2643 = vpop.f32.mrf.mxu0
    %v2644 = vadd.f32 %v2600, %v2643
    %v2645 = vpop.f32.mrf.mxu0
    %v2646 = vadd.f32 %v2602, %v2645
    %2647 = vmatmul.bf16.gmra.mxu0 %v342
    %v2648 = vpop.f32.mrf.mxu0
    %v2649 = vadd.f32 %v2605, %v2648
    %v2650 = vpop.f32.mrf.mxu0
    %v2651 = vadd.f32 %v2607, %v2650
    %2652 = vmatmul.bf16.gmra.mxu0 %v343
    %v2653 = vpop.f32.mrf.mxu0
    %v2654 = vadd.f32 %v2610, %v2653
    %v2655 = vpop.f32.mrf.mxu0
    %v2656 = vadd.f32 %v2612, %v2655
    %2657 = vmatmul.bf16.gmra.mxu0 %v344
    %v2658 = vpop.f32.mrf.mxu0
    %v2659 = vadd.f32 %v2615, %v2658
    %v2660 = vpop.f32.mrf.mxu0
    %v2661 = vadd.f32 %v2617, %v2660
    %2662 = vmatmul.bf16.gmra.mxu0 %v345
    %v2663 = vpop.f32.mrf.mxu0
    %v2664 = vadd.f32 %v2620, %v2663
    %v2665 = vpop.f32.mrf.mxu0
    %v2666 = vadd.f32 %v2622, %v2665
    %2667 = vmatmul.bf16.gmra.mxu0 %v346
    %v2668 = vpop.f32.mrf.mxu0
    %v2669 = vadd.f32 %v2625, %v2668
    %v2670 = vpop.f32.mrf.mxu0
    %v2671 = vadd.f32 %v2627, %v2670
    %2672 = vdwg.mxu0
    %2673 = vmatpush.bf16.msra.mxu0 %v779
    %2674 = vmatpush.bf16.msra.mxu0 %v777
    %2675 = vmatpush.bf16.msra.mxu0 %v775
    %2676 = vmatpush.bf16.msra.mxu0 %v773
    %2677 = vmatpush.bf16.msra.mxu0 %v771
    %2678 = vmatpush.bf16.msra.mxu0 %v769
    %2679 = vmatpush.bf16.msra.mxu0 %v767
    %2680 = vmatpush.bf16.msra.mxu0 %v765
    %2681 = vmatmul.bf16.gmra.mxu0 %v382
    %v2682 = vpop.f32.mrf.mxu0
    %v2683 = vadd.f32 %v2639, %v2682
    %v2684 = vpop.f32.mrf.mxu0
    %v2685 = vadd.f32 %v2641, %v2684
    %2686 = vmatmul.bf16.gmra.mxu0 %v383
    %v2687 = vpop.f32.mrf.mxu0
    %v2688 = vadd.f32 %v2644, %v2687
    %v2689 = vpop.f32.mrf.mxu0
    %v2690 = vadd.f32 %v2646, %v2689
    %2691 = vmatmul.bf16.gmra.mxu0 %v384
    %v2692 = vpop.f32.mrf.mxu0
    %v2693 = vadd.f32 %v2649, %v2692
    %v2694 = vpop.f32.mrf.mxu0
    %v2695 = vadd.f32 %v2651, %v2694
    %2696 = vmatmul.bf16.gmra.mxu0 %v385
    %v2697 = vpop.f32.mrf.mxu0
    %v2698 = vadd.f32 %v2654, %v2697
    %v2699 = vpop.f32.mrf.mxu0
    %v2700 = vadd.f32 %v2656, %v2699
    %2701 = vmatmul.bf16.gmra.mxu0 %v386
    %v2702 = vpop.f32.mrf.mxu0
    %v2703 = vadd.f32 %v2659, %v2702
    %v2704 = vpop.f32.mrf.mxu0
    %v2705 = vadd.f32 %v2661, %v2704
    %2706 = vmatmul.bf16.gmra.mxu0 %v387
    %v2707 = vpop.f32.mrf.mxu0
    %v2708 = vadd.f32 %v2664, %v2707
    %v2709 = vpop.f32.mrf.mxu0
    %v2710 = vadd.f32 %v2666, %v2709
    %2711 = vmatmul.bf16.gmra.mxu0 %v388
    %v2712 = vpop.f32.mrf.mxu0
    %v2713 = vadd.f32 %v2669, %v2712
    %v2714 = vpop.f32.mrf.mxu0
    %v2715 = vadd.f32 %v2671, %v2714
    %2716 = vdwg.mxu0
    %2717 = vmatpush.bf16.msra.mxu0 %v795
    %2718 = vmatpush.bf16.msra.mxu0 %v793
    %2719 = vmatpush.bf16.msra.mxu0 %v791
    %2720 = vmatpush.bf16.msra.mxu0 %v789
    %2721 = vmatpush.bf16.msra.mxu0 %v787
    %2722 = vmatpush.bf16.msra.mxu0 %v785
    %2723 = vmatpush.bf16.msra.mxu0 %v783
    %2724 = vmatpush.bf16.msra.mxu0 %v781
    %2725 = vmatmul.bf16.gmra.mxu0 %v2307
    %v2726 = vpop.f32.mrf.mxu0
    %v2727 = vadd.f32 %v2683, %v2726
    %v2728 = vpop.f32.mrf.mxu0
    %v2729 = vadd.f32 %v2685, %v2728
    %2730 = vmatmul.bf16.gmra.mxu0 %v2308
    %v2731 = vpop.f32.mrf.mxu0
    %v2732 = vadd.f32 %v2688, %v2731
    %v2733 = vpop.f32.mrf.mxu0
    %v2734 = vadd.f32 %v2690, %v2733
    %2735 = vmatmul.bf16.gmra.mxu0 %v2309
    %v2736 = vpop.f32.mrf.mxu0
    %v2737 = vadd.f32 %v2693, %v2736
    %v2738 = vpop.f32.mrf.mxu0
    %v2739 = vadd.f32 %v2695, %v2738
    %2740 = vmatmul.bf16.gmra.mxu0 %v2310
    %v2741 = vpop.f32.mrf.mxu0
    %v2742 = vadd.f32 %v2698, %v2741
    %v2743 = vpop.f32.mrf.mxu0
    %v2744 = vadd.f32 %v2700, %v2743
    %2745 = vmatmul.bf16.gmra.mxu0 %v2311
    %v2746 = vpop.f32.mrf.mxu0
    %v2747 = vadd.f32 %v2703, %v2746
    %v2748 = vpop.f32.mrf.mxu0
    %v2749 = vadd.f32 %v2705, %v2748
    %2750 = vmatmul.bf16.gmra.mxu0 %v2312
    %v2751 = vpop.f32.mrf.mxu0
    %v2752 = vadd.f32 %v2708, %v2751
    %v2753 = vpop.f32.mrf.mxu0
    %v2754 = vadd.f32 %v2710, %v2753
    %2755 = vmatmul.bf16.gmra.mxu0 %v2313
    %v2756 = vpop.f32.mrf.mxu0
    %v2757 = vadd.f32 %v2713, %v2756
    %v2758 = vpop.f32.mrf.mxu0
    %v2759 = vadd.f32 %v2715, %v2758
    %2760 = vdwg.mxu0
    %v2761 = vmax.f32 %v2237, %v2507
    %v2762 = vmax.f32 %v2238, %v2727
    %v2763 = vmax.f32 %v2239, %v2509
    %v2764 = vmax.f32 %v2240, %v2729
    %v2765 = vmax.f32 %v2241, %v2512
    %v2766 = vmax.f32 %v2242, %v2732
    %v2767 = vmax.f32 %v2243, %v2514
    %v2768 = vmax.f32 %v2244, %v2734
    %v2769 = vmax.f32 %v2245, %v2517
    %v2770 = vmax.f32 %v2246, %v2737
    %v2771 = vmax.f32 %v2247, %v2519
    %v2772 = vmax.f32 %v2248, %v2739
    %v2773 = vmax.f32 %v2249, %v2522
    %v2774 = vmax.f32 %v2250, %v2742
    %v2775 = vmax.f32 %v2251, %v2524
    %v2776 = vmax.f32 %v2252, %v2744
    %v2777 = vmax.f32 %v2253, %v2527
    %v2778 = vmax.f32 %v2254, %v2747
    %v2779 = vmax.f32 %v2255, %v2529
    %v2780 = vmax.f32 %v2256, %v2749
    %v2781 = vmax.f32 %v2257, %v2532
    %v2782 = vmax.f32 %v2258, %v2752
    %v2783 = vmax.f32 %v2259, %v2534
    %v2784 = vmax.f32 %v2260, %v2754
    %v2785 = vmax.f32 %v2261, %v2537
    %v2786 = vmax.f32 %v2262, %v2757
    %v2787 = vmax.f32 %v2263, %v2539
    %v2788 = vmax.f32 %v2264, %v2759
    %2789 = vmatpush.bf16.msra.mxu0 %v1651
    %2790 = vmatpush.bf16.msra.mxu0 %v1649
    %2791 = vmatpush.bf16.msra.mxu0 %v1647
    %2792 = vmatpush.bf16.msra.mxu0 %v1645
    %2793 = vmatpush.bf16.msra.mxu0 %v1643
    %2794 = vmatpush.bf16.msra.mxu0 %v1641
    %2795 = vmatpush.bf16.msra.mxu0 %v1639
    %2796 = vmatpush.bf16.msra.mxu0 %v1637
    %2797 = vmatmul.bf16.gmra.mxu0 %v256
    %v2798 = vpop.f32.mrf.mxu0
    %v2799 = vadd.f32 0.0, %v2798
    %v2800 = vpop.f32.mrf.mxu0
    %v2801 = vadd.f32 0.0, %v2800
    %2802 = vmatmul.bf16.gmra.mxu0 %v257
    %v2803 = vpop.f32.mrf.mxu0
    %v2804 = vadd.f32 0.0, %v2803
    %v2805 = vpop.f32.mrf.mxu0
    %v2806 = vadd.f32 0.0, %v2805
    %2807 = vmatmul.bf16.gmra.mxu0 %v258
    %v2808 = vpop.f32.mrf.mxu0
    %v2809 = vadd.f32 0.0, %v2808
    %v2810 = vpop.f32.mrf.mxu0
    %v2811 = vadd.f32 0.0, %v2810
    %2812 = vmatmul.bf16.gmra.mxu0 %v259
    %v2813 = vpop.f32.mrf.mxu0
    %v2814 = vadd.f32 0.0, %v2813
    %v2815 = vpop.f32.mrf.mxu0
    %v2816 = vadd.f32 0.0, %v2815
    %2817 = vmatmul.bf16.gmra.mxu0 %v260
    %v2818 = vpop.f32.mrf.mxu0
    %v2819 = vadd.f32 0.0, %v2818
    %v2820 = vpop.f32.mrf.mxu0
    %v2821 = vadd.f32 0.0, %v2820
    %2822 = vmatmul.bf16.gmra.mxu0 %v261
    %v2823 = vpop.f32.mrf.mxu0
    %v2824 = vadd.f32 0.0, %v2823
    %v2825 = vpop.f32.mrf.mxu0
    %v2826 = vadd.f32 0.0, %v2825
    %2827 = vmatmul.bf16.gmra.mxu0 %v262
    %v2828 = vpop.f32.mrf.mxu0
    %v2829 = vadd.f32 0.0, %v2828
    %v2830 = vpop.f32.mrf.mxu0
    %v2831 = vadd.f32 0.0, %v2830
    %2832 = vdwg.mxu0
    %2833 = vmatpush.bf16.msra.mxu0 %v1667
    %2834 = vmatpush.bf16.msra.mxu0 %v1665
    %2835 = vmatpush.bf16.msra.mxu0 %v1663
    %2836 = vmatpush.bf16.msra.mxu0 %v1661
    %2837 = vmatpush.bf16.msra.mxu0 %v1659
    %2838 = vmatpush.bf16.msra.mxu0 %v1657
    %2839 = vmatpush.bf16.msra.mxu0 %v1655
    %2840 = vmatpush.bf16.msra.mxu0 %v1653
    %2841 = vmatmul.bf16.gmra.mxu0 %v298
    %v2842 = vpop.f32.mrf.mxu0
    %v2843 = vadd.f32 %v2799, %v2842
    %v2844 = vpop.f32.mrf.mxu0
    %v2845 = vadd.f32 %v2801, %v2844
    %2846 = vmatmul.bf16.gmra.mxu0 %v299
    %v2847 = vpop.f32.mrf.mxu0
    %v2848 = vadd.f32 %v2804, %v2847
    %v2849 = vpop.f32.mrf.mxu0
    %v2850 = vadd.f32 %v2806, %v2849
    %2851 = vmatmul.bf16.gmra.mxu0 %v300
    %v2852 = vpop.f32.mrf.mxu0
    %v2853 = vadd.f32 %v2809, %v2852
    %v2854 = vpop.f32.mrf.mxu0
    %v2855 = vadd.f32 %v2811, %v2854
    %2856 = vmatmul.bf16.gmra.mxu0 %v301
    %v2857 = vpop.f32.mrf.mxu0
    %v2858 = vadd.f32 %v2814, %v2857
    %v2859 = vpop.f32.mrf.mxu0
    %v2860 = vadd.f32 %v2816, %v2859
    %2861 = vmatmul.bf16.gmra.mxu0 %v302
    %v2862 = vpop.f32.mrf.mxu0
    %v2863 = vadd.f32 %v2819, %v2862
    %v2864 = vpop.f32.mrf.mxu0
    %v2865 = vadd.f32 %v2821, %v2864
    %2866 = vmatmul.bf16.gmra.mxu0 %v303
    %v2867 = vpop.f32.mrf.mxu0
    %v2868 = vadd.f32 %v2824, %v2867
    %v2869 = vpop.f32.mrf.mxu0
    %v2870 = vadd.f32 %v2826, %v2869
    %2871 = vmatmul.bf16.gmra.mxu0 %v304
    %v2872 = vpop.f32.mrf.mxu0
    %v2873 = vadd.f32 %v2829, %v2872
    %v2874 = vpop.f32.mrf.mxu0
    %v2875 = vadd.f32 %v2831, %v2874
    %2876 = vdwg.mxu0
    %2877 = vmatpush.bf16.msra.mxu0 %v1683
    %2878 = vmatpush.bf16.msra.mxu0 %v1681
    %2879 = vmatpush.bf16.msra.mxu0 %v1679
    %2880 = vmatpush.bf16.msra.mxu0 %v1677
    %2881 = vmatpush.bf16.msra.mxu0 %v1675
    %2882 = vmatpush.bf16.msra.mxu0 %v1673
    %2883 = vmatpush.bf16.msra.mxu0 %v1671
    %2884 = vmatpush.bf16.msra.mxu0 %v1669
    %2885 = vmatmul.bf16.gmra.mxu0 %v340
    %v2886 = vpop.f32.mrf.mxu0
    %v2887 = vadd.f32 %v2843, %v2886
    %v2888 = vpop.f32.mrf.mxu0
    %v2889 = vadd.f32 %v2845, %v2888
    %2890 = vmatmul.bf16.gmra.mxu0 %v341
    %v2891 = vpop.f32.mrf.mxu0
    %v2892 = vadd.f32 %v2848, %v2891
    %v2893 = vpop.f32.mrf.mxu0
    %v2894 = vadd.f32 %v2850, %v2893
    %2895 = vmatmul.bf16.gmra.mxu0 %v342
    %v2896 = vpop.f32.mrf.mxu0
    %v2897 = vadd.f32 %v2853, %v2896
    %v2898 = vpop.f32.mrf.mxu0
    %v2899 = vadd.f32 %v2855, %v2898
    %2900 = vmatmul.bf16.gmra.mxu0 %v343
    %v2901 = vpop.f32.mrf.mxu0
    %v2902 = vadd.f32 %v2858, %v2901
    %v2903 = vpop.f32.mrf.mxu0
    %v2904 = vadd.f32 %v2860, %v2903
    %2905 = vmatmul.bf16.gmra.mxu0 %v344
    %v2906 = vpop.f32.mrf.mxu0
    %v2907 = vadd.f32 %v2863, %v2906
    %v2908 = vpop.f32.mrf.mxu0
    %v2909 = vadd.f32 %v2865, %v2908
    %2910 = vmatmul.bf16.gmra.mxu0 %v345
    %v2911 = vpop.f32.mrf.mxu0
    %v2912 = vadd.f32 %v2868, %v2911
    %v2913 = vpop.f32.mrf.mxu0
    %v2914 = vadd.f32 %v2870, %v2913
    %2915 = vmatmul.bf16.gmra.mxu0 %v346
    %v2916 = vpop.f32.mrf.mxu0
    %v2917 = vadd.f32 %v2873, %v2916
    %v2918 = vpop.f32.mrf.mxu0
    %v2919 = vadd.f32 %v2875, %v2918
    %2920 = vdwg.mxu0
    %2921 = vmatpush.bf16.msra.mxu0 %v1699
    %2922 = vmatpush.bf16.msra.mxu0 %v1697
    %2923 = vmatpush.bf16.msra.mxu0 %v1695
    %2924 = vmatpush.bf16.msra.mxu0 %v1693
    %2925 = vmatpush.bf16.msra.mxu0 %v1691
    %2926 = vmatpush.bf16.msra.mxu0 %v1689
    %2927 = vmatpush.bf16.msra.mxu0 %v1687
    %2928 = vmatpush.bf16.msra.mxu0 %v1685
    %2929 = vmatmul.bf16.gmra.mxu0 %v382
    %v2930 = vpop.f32.mrf.mxu0
    %v2931 = vadd.f32 %v2887, %v2930
    %v2932 = vpop.f32.mrf.mxu0
    %v2933 = vadd.f32 %v2889, %v2932
    %2934 = vmatmul.bf16.gmra.mxu0 %v383
    %v2935 = vpop.f32.mrf.mxu0
    %v2936 = vadd.f32 %v2892, %v2935
    %v2937 = vpop.f32.mrf.mxu0
    %v2938 = vadd.f32 %v2894, %v2937
    %2939 = vmatmul.bf16.gmra.mxu0 %v384
    %v2940 = vpop.f32.mrf.mxu0
    %v2941 = vadd.f32 %v2897, %v2940
    %v2942 = vpop.f32.mrf.mxu0
    %v2943 = vadd.f32 %v2899, %v2942
    %2944 = vmatmul.bf16.gmra.mxu0 %v385
    %v2945 = vpop.f32.mrf.mxu0
    %v2946 = vadd.f32 %v2902, %v2945
    %v2947 = vpop.f32.mrf.mxu0
    %v2948 = vadd.f32 %v2904, %v2947
    %2949 = vmatmul.bf16.gmra.mxu0 %v386
    %v2950 = vpop.f32.mrf.mxu0
    %v2951 = vadd.f32 %v2907, %v2950
    %v2952 = vpop.f32.mrf.mxu0
    %v2953 = vadd.f32 %v2909, %v2952
    %2954 = vmatmul.bf16.gmra.mxu0 %v387
    %v2955 = vpop.f32.mrf.mxu0
    %v2956 = vadd.f32 %v2912, %v2955
    %v2957 = vpop.f32.mrf.mxu0
    %v2958 = vadd.f32 %v2914, %v2957
    %2959 = vmatmul.bf16.gmra.mxu0 %v388
    %v2960 = vpop.f32.mrf.mxu0
    %v2961 = vadd.f32 %v2917, %v2960
    %v2962 = vpop.f32.mrf.mxu0
    %v2963 = vadd.f32 %v2919, %v2962
    %2964 = vdwg.mxu0
    %2965 = vmatpush.bf16.msra.mxu0 %v1715
    %2966 = vmatpush.bf16.msra.mxu0 %v1713
    %2967 = vmatpush.bf16.msra.mxu0 %v1711
    %2968 = vmatpush.bf16.msra.mxu0 %v1709
    %2969 = vmatpush.bf16.msra.mxu0 %v1707
    %2970 = vmatpush.bf16.msra.mxu0 %v1705
    %2971 = vmatpush.bf16.msra.mxu0 %v1703
    %2972 = vmatpush.bf16.msra.mxu0 %v1701
    %2973 = vmatmul.bf16.gmra.mxu0 %v2307
    %v2974 = vpop.f32.mrf.mxu0
    %v2975 = vadd.f32 %v2931, %v2974
    %v2976 = vpop.f32.mrf.mxu0
    %v2977 = vadd.f32 %v2933, %v2976
    %2978 = vmatmul.bf16.gmra.mxu0 %v2308
    %v2979 = vpop.f32.mrf.mxu0
    %v2980 = vadd.f32 %v2936, %v2979
    %v2981 = vpop.f32.mrf.mxu0
    %v2982 = vadd.f32 %v2938, %v2981
    %2983 = vmatmul.bf16.gmra.mxu0 %v2309
    %v2984 = vpop.f32.mrf.mxu0
    %v2985 = vadd.f32 %v2941, %v2984
    %v2986 = vpop.f32.mrf.mxu0
    %v2987 = vadd.f32 %v2943, %v2986
    %2988 = vmatmul.bf16.gmra.mxu0 %v2310
    %v2989 = vpop.f32.mrf.mxu0
    %v2990 = vadd.f32 %v2946, %v2989
    %v2991 = vpop.f32.mrf.mxu0
    %v2992 = vadd.f32 %v2948, %v2991
    %2993 = vmatmul.bf16.gmra.mxu0 %v2311
    %v2994 = vpop.f32.mrf.mxu0
    %v2995 = vadd.f32 %v2951, %v2994
    %v2996 = vpop.f32.mrf.mxu0
    %v2997 = vadd.f32 %v2953, %v2996
    %2998 = vmatmul.bf16.gmra.mxu0 %v2312
    %v2999 = vpop.f32.mrf.mxu0
    %v3000 = vadd.f32 %v2956, %v2999
    %v3001 = vpop.f32.mrf.mxu0
    %v3002 = vadd.f32 %v2958, %v3001
    %3003 = vmatmul.bf16.gmra.mxu0 %v2313
    %v3004 = vpop.f32.mrf.mxu0
    %v3005 = vadd.f32 %v2961, %v3004
    %v3006 = vpop.f32.mrf.mxu0
    %v3007 = vadd.f32 %v2963, %v3006
    %3008 = vdwg.mxu0
    %3009 = vmatpush.bf16.msra.mxu0 %v1652
    %3010 = vmatpush.bf16.msra.mxu0 %v1650
    %3011 = vmatpush.bf16.msra.mxu0 %v1648
    %3012 = vmatpush.bf16.msra.mxu0 %v1646
    %3013 = vmatpush.bf16.msra.mxu0 %v1644
    %3014 = vmatpush.bf16.msra.mxu0 %v1642
    %3015 = vmatpush.bf16.msra.mxu0 %v1640
    %3016 = vmatpush.bf16.msra.mxu0 %v1638
    %3017 = vmatmul.bf16.gmra.mxu0 %v256
    %v3018 = vpop.f32.mrf.mxu0
    %v3019 = vadd.f32 0.0, %v3018
    %v3020 = vpop.f32.mrf.mxu0
    %v3021 = vadd.f32 0.0, %v3020
    %3022 = vmatmul.bf16.gmra.mxu0 %v257
    %v3023 = vpop.f32.mrf.mxu0
    %v3024 = vadd.f32 0.0, %v3023
    %v3025 = vpop.f32.mrf.mxu0
    %v3026 = vadd.f32 0.0, %v3025
    %3027 = vmatmul.bf16.gmra.mxu0 %v258
    %v3028 = vpop.f32.mrf.mxu0
    %v3029 = vadd.f32 0.0, %v3028
    %v3030 = vpop.f32.mrf.mxu0
    %v3031 = vadd.f32 0.0, %v3030
    %3032 = vmatmul.bf16.gmra.mxu0 %v259
    %v3033 = vpop.f32.mrf.mxu0
    %v3034 = vadd.f32 0.0, %v3033
    %v3035 = vpop.f32.mrf.mxu0
    %v3036 = vadd.f32 0.0, %v3035
    %3037 = vmatmul.bf16.gmra.mxu0 %v260
    %v3038 = vpop.f32.mrf.mxu0
    %v3039 = vadd.f32 0.0, %v3038
    %v3040 = vpop.f32.mrf.mxu0
    %v3041 = vadd.f32 0.0, %v3040
    %3042 = vmatmul.bf16.gmra.mxu0 %v261
    %v3043 = vpop.f32.mrf.mxu0
    %v3044 = vadd.f32 0.0, %v3043
    %v3045 = vpop.f32.mrf.mxu0
    %v3046 = vadd.f32 0.0, %v3045
    %3047 = vmatmul.bf16.gmra.mxu0 %v262
    %v3048 = vpop.f32.mrf.mxu0
    %v3049 = vadd.f32 0.0, %v3048
    %v3050 = vpop.f32.mrf.mxu0
    %v3051 = vadd.f32 0.0, %v3050
    %3052 = vdwg.mxu0
    %3053 = vmatpush.bf16.msra.mxu0 %v1668
    %3054 = vmatpush.bf16.msra.mxu0 %v1666
    %3055 = vmatpush.bf16.msra.mxu0 %v1664
    %3056 = vmatpush.bf16.msra.mxu0 %v1662
    %3057 = vmatpush.bf16.msra.mxu0 %v1660
    %3058 = vmatpush.bf16.msra.mxu0 %v1658
    %3059 = vmatpush.bf16.msra.mxu0 %v1656
    %3060 = vmatpush.bf16.msra.mxu0 %v1654
    %3061 = vmatmul.bf16.gmra.mxu0 %v298
    %v3062 = vpop.f32.mrf.mxu0
    %v3063 = vadd.f32 %v3019, %v3062
    %v3064 = vpop.f32.mrf.mxu0
    %v3065 = vadd.f32 %v3021, %v3064
    %3066 = vmatmul.bf16.gmra.mxu0 %v299
    %v3067 = vpop.f32.mrf.mxu0
    %v3068 = vadd.f32 %v3024, %v3067
    %v3069 = vpop.f32.mrf.mxu0
    %v3070 = vadd.f32 %v3026, %v3069
    %3071 = vmatmul.bf16.gmra.mxu0 %v300
    %v3072 = vpop.f32.mrf.mxu0
    %v3073 = vadd.f32 %v3029, %v3072
    %v3074 = vpop.f32.mrf.mxu0
    %v3075 = vadd.f32 %v3031, %v3074
    %3076 = vmatmul.bf16.gmra.mxu0 %v301
    %v3077 = vpop.f32.mrf.mxu0
    %v3078 = vadd.f32 %v3034, %v3077
    %v3079 = vpop.f32.mrf.mxu0
    %v3080 = vadd.f32 %v3036, %v3079
    %3081 = vmatmul.bf16.gmra.mxu0 %v302
    %v3082 = vpop.f32.mrf.mxu0
    %v3083 = vadd.f32 %v3039, %v3082
    %v3084 = vpop.f32.mrf.mxu0
    %v3085 = vadd.f32 %v3041, %v3084
    %3086 = vmatmul.bf16.gmra.mxu0 %v303
    %v3087 = vpop.f32.mrf.mxu0
    %v3088 = vadd.f32 %v3044, %v3087
    %v3089 = vpop.f32.mrf.mxu0
    %v3090 = vadd.f32 %v3046, %v3089
    %3091 = vmatmul.bf16.gmra.mxu0 %v304
    %v3092 = vpop.f32.mrf.mxu0
    %v3093 = vadd.f32 %v3049, %v3092
    %v3094 = vpop.f32.mrf.mxu0
    %v3095 = vadd.f32 %v3051, %v3094
    %3096 = vdwg.mxu0
    %3097 = vmatpush.bf16.msra.mxu0 %v1684
    %3098 = vmatpush.bf16.msra.mxu0 %v1682
    %3099 = vmatpush.bf16.msra.mxu0 %v1680
    %3100 = vmatpush.bf16.msra.mxu0 %v1678
    %3101 = vmatpush.bf16.msra.mxu0 %v1676
    %3102 = vmatpush.bf16.msra.mxu0 %v1674
    %3103 = vmatpush.bf16.msra.mxu0 %v1672
    %3104 = vmatpush.bf16.msra.mxu0 %v1670
    %3105 = vmatmul.bf16.gmra.mxu0 %v340
    %v3106 = vpop.f32.mrf.mxu0
    %v3107 = vadd.f32 %v3063, %v3106
    %v3108 = vpop.f32.mrf.mxu0
    %v3109 = vadd.f32 %v3065, %v3108
    %3110 = vmatmul.bf16.gmra.mxu0 %v341
    %v3111 = vpop.f32.mrf.mxu0
    %v3112 = vadd.f32 %v3068, %v3111
    %v3113 = vpop.f32.mrf.mxu0
    %v3114 = vadd.f32 %v3070, %v3113
    %3115 = vmatmul.bf16.gmra.mxu0 %v342
    %v3116 = vpop.f32.mrf.mxu0
    %v3117 = vadd.f32 %v3073, %v3116
    %v3118 = vpop.f32.mrf.mxu0
    %v3119 = vadd.f32 %v3075, %v3118
    %3120 = vmatmul.bf16.gmra.mxu0 %v343
    %v3121 = vpop.f32.mrf.mxu0
    %v3122 = vadd.f32 %v3078, %v3121
    %v3123 = vpop.f32.mrf.mxu0
    %v3124 = vadd.f32 %v3080, %v3123
    %3125 = vmatmul.bf16.gmra.mxu0 %v344
    %v3126 = vpop.f32.mrf.mxu0
    %v3127 = vadd.f32 %v3083, %v3126
    %v3128 = vpop.f32.mrf.mxu0
    %v3129 = vadd.f32 %v3085, %v3128
    %3130 = vmatmul.bf16.gmra.mxu0 %v345
    %v3131 = vpop.f32.mrf.mxu0
    %v3132 = vadd.f32 %v3088, %v3131
    %v3133 = vpop.f32.mrf.mxu0
    %v3134 = vadd.f32 %v3090, %v3133
    %3135 = vmatmul.bf16.gmra.mxu0 %v346
    %v3136 = vpop.f32.mrf.mxu0
    %v3137 = vadd.f32 %v3093, %v3136
    %v3138 = vpop.f32.mrf.mxu0
    %v3139 = vadd.f32 %v3095, %v3138
    %3140 = vdwg.mxu0
    %3141 = vmatpush.bf16.msra.mxu0 %v1700
    %3142 = vmatpush.bf16.msra.mxu0 %v1698
    %3143 = vmatpush.bf16.msra.mxu0 %v1696
    %3144 = vmatpush.bf16.msra.mxu0 %v1694
    %3145 = vmatpush.bf16.msra.mxu0 %v1692
    %3146 = vmatpush.bf16.msra.mxu0 %v1690
    %3147 = vmatpush.bf16.msra.mxu0 %v1688
    %3148 = vmatpush.bf16.msra.mxu0 %v1686
    %3149 = vmatmul.bf16.gmra.mxu0 %v382
    %v3150 = vpop.f32.mrf.mxu0
    %v3151 = vadd.f32 %v3107, %v3150
    %v3152 = vpop.f32.mrf.mxu0
    %v3153 = vadd.f32 %v3109, %v3152
    %3154 = vmatmul.bf16.gmra.mxu0 %v383
    %v3155 = vpop.f32.mrf.mxu0
    %v3156 = vadd.f32 %v3112, %v3155
    %v3157 = vpop.f32.mrf.mxu0
    %v3158 = vadd.f32 %v3114, %v3157
    %3159 = vmatmul.bf16.gmra.mxu0 %v384
    %v3160 = vpop.f32.mrf.mxu0
    %v3161 = vadd.f32 %v3117, %v3160
    %v3162 = vpop.f32.mrf.mxu0
    %v3163 = vadd.f32 %v3119, %v3162
    %3164 = vmatmul.bf16.gmra.mxu0 %v385
    %v3165 = vpop.f32.mrf.mxu0
    %v3166 = vadd.f32 %v3122, %v3165
    %v3167 = vpop.f32.mrf.mxu0
    %v3168 = vadd.f32 %v3124, %v3167
    %3169 = vmatmul.bf16.gmra.mxu0 %v386
    %v3170 = vpop.f32.mrf.mxu0
    %v3171 = vadd.f32 %v3127, %v3170
    %v3172 = vpop.f32.mrf.mxu0
    %v3173 = vadd.f32 %v3129, %v3172
    %3174 = vmatmul.bf16.gmra.mxu0 %v387
    %v3175 = vpop.f32.mrf.mxu0
    %v3176 = vadd.f32 %v3132, %v3175
    %v3177 = vpop.f32.mrf.mxu0
    %v3178 = vadd.f32 %v3134, %v3177
    %3179 = vmatmul.bf16.gmra.mxu0 %v388
    %v3180 = vpop.f32.mrf.mxu0
    %v3181 = vadd.f32 %v3137, %v3180
    %v3182 = vpop.f32.mrf.mxu0
    %v3183 = vadd.f32 %v3139, %v3182
    %3184 = vdwg.mxu0
    %3185 = vmatpush.bf16.msra.mxu0 %v1716
    %3186 = vmatpush.bf16.msra.mxu0 %v1714
    %3187 = vmatpush.bf16.msra.mxu0 %v1712
    %3188 = vmatpush.bf16.msra.mxu0 %v1710
    %3189 = vmatpush.bf16.msra.mxu0 %v1708
    %3190 = vmatpush.bf16.msra.mxu0 %v1706
    %3191 = vmatpush.bf16.msra.mxu0 %v1704
    %3192 = vmatpush.bf16.msra.mxu0 %v1702
    %3193 = vmatmul.bf16.gmra.mxu0 %v2307
    %v3194 = vpop.f32.mrf.mxu0
    %v3195 = vadd.f32 %v3151, %v3194
    %v3196 = vpop.f32.mrf.mxu0
    %v3197 = vadd.f32 %v3153, %v3196
    %3198 = vmatmul.bf16.gmra.mxu0 %v2308
    %v3199 = vpop.f32.mrf.mxu0
    %v3200 = vadd.f32 %v3156, %v3199
    %v3201 = vpop.f32.mrf.mxu0
    %v3202 = vadd.f32 %v3158, %v3201
    %3203 = vmatmul.bf16.gmra.mxu0 %v2309
    %v3204 = vpop.f32.mrf.mxu0
    %v3205 = vadd.f32 %v3161, %v3204
    %v3206 = vpop.f32.mrf.mxu0
    %v3207 = vadd.f32 %v3163, %v3206
    %3208 = vmatmul.bf16.gmra.mxu0 %v2310
    %v3209 = vpop.f32.mrf.mxu0
    %v3210 = vadd.f32 %v3166, %v3209
    %v3211 = vpop.f32.mrf.mxu0
    %v3212 = vadd.f32 %v3168, %v3211
    %3213 = vmatmul.bf16.gmra.mxu0 %v2311
    %v3214 = vpop.f32.mrf.mxu0
    %v3215 = vadd.f32 %v3171, %v3214
    %v3216 = vpop.f32.mrf.mxu0
    %v3217 = vadd.f32 %v3173, %v3216
    %3218 = vmatmul.bf16.gmra.mxu0 %v2312
    %v3219 = vpop.f32.mrf.mxu0
    %v3220 = vadd.f32 %v3176, %v3219
    %v3221 = vpop.f32.mrf.mxu0
    %v3222 = vadd.f32 %v3178, %v3221
    %3223 = vmatmul.bf16.gmra.mxu0 %v2313
    %v3224 = vpop.f32.mrf.mxu0
    %v3225 = vadd.f32 %v3181, %v3224
    %v3226 = vpop.f32.mrf.mxu0
    %v3227 = vadd.f32 %v3183, %v3226
    %3228 = vdwg.mxu0
    %v3229 = vmax.f32 %v2761, %v2975
    %v3230 = vmax.f32 %v2762, %v3195
    %v3231 = vmax.f32 %v2763, %v2977
    %v3232 = vmax.f32 %v2764, %v3197
    %v3233 = vmax.f32 %v2765, %v2980
    %v3234 = vmax.f32 %v2766, %v3200
    %v3235 = vmax.f32 %v2767, %v2982
    %v3236 = vmax.f32 %v2768, %v3202
    %v3237 = vmax.f32 %v2769, %v2985
    %v3238 = vmax.f32 %v2770, %v3205
    %v3239 = vmax.f32 %v2771, %v2987
    %v3240 = vmax.f32 %v2772, %v3207
    %v3241 = vmax.f32 %v2773, %v2990
    %v3242 = vmax.f32 %v2774, %v3210
    %v3243 = vmax.f32 %v2775, %v2992
    %v3244 = vmax.f32 %v2776, %v3212
    %v3245 = vmax.f32 %v2777, %v2995
    %v3246 = vmax.f32 %v2778, %v3215
    %v3247 = vmax.f32 %v2779, %v2997
    %v3248 = vmax.f32 %v2780, %v3217
    %v3249 = vmax.f32 %v2781, %v3000
    %v3250 = vmax.f32 %v2782, %v3220
    %v3251 = vmax.f32 %v2783, %v3002
    %v3252 = vmax.f32 %v2784, %v3222
    %v3253 = vmax.f32 %v2785, %v3005
    %v3254 = vmax.f32 %v2786, %v3225
    %v3255 = vmax.f32 %v2787, %v3007
    %v3256 = vmax.f32 %v2788, %v3227
    %v3258 = vperm.slane %v114, 0
    %v3259 = vperm.slane %v114, 1
    %v3262 = vadd.f32 %v3229, %v3258
    %v3263 = vadd.f32 %v3230, %v3259
    %v3264 = vadd.f32 %v3231, %v3258
    %v3265 = vadd.f32 %v3232, %v3259
    %v3266 = vadd.f32 %v3233, %v3258
    %v3267 = vadd.f32 %v3234, %v3259
    %v3268 = vadd.f32 %v3235, %v3258
    %v3269 = vadd.f32 %v3236, %v3259
    %v3270 = vadd.f32 %v3237, %v3258
    %v3271 = vadd.f32 %v3238, %v3259
    %v3272 = vadd.f32 %v3239, %v3258
    %v3273 = vadd.f32 %v3240, %v3259
    %v3274 = vadd.f32 %v3241, %v3258
    %v3275 = vadd.f32 %v3242, %v3259
    %v3276 = vadd.f32 %v3243, %v3258
    %v3277 = vadd.f32 %v3244, %v3259
    %v3278 = vadd.f32 %v3245, %v3258
    %v3279 = vadd.f32 %v3246, %v3259
    %v3280 = vadd.f32 %v3247, %v3258
    %v3281 = vadd.f32 %v3248, %v3259
    %v3282 = vadd.f32 %v3249, %v3258
    %v3283 = vadd.f32 %v3250, %v3259
    %v3284 = vadd.f32 %v3251, %v3258
    %v3285 = vadd.f32 %v3252, %v3259
    %v3286 = vadd.f32 %v3253, %v3258
    %v3287 = vadd.f32 %v3254, %v3259
    %v3288 = vadd.f32 %v3255, %v3258
    %v3289 = vadd.f32 %v3256, %v3259
    %v3290 = vmax.f32 %v3262, 0.0
    %v3291 = vmax.f32 %v3263, 0.0
    %v3292 = vmax.f32 %v3264, 0.0
    %v3293 = vmax.f32 %v3265, 0.0
    %v3294 = vmax.f32 %v3266, 0.0
    %v3295 = vmax.f32 %v3267, 0.0
    %v3296 = vmax.f32 %v3268, 0.0
    %v3297 = vmax.f32 %v3269, 0.0
    %v3298 = vmax.f32 %v3270, 0.0
    %v3299 = vmax.f32 %v3271, 0.0
    %v3300 = vmax.f32 %v3272, 0.0
    %v3301 = vmax.f32 %v3273, 0.0
    %v3302 = vmax.f32 %v3274, 0.0
    %v3303 = vmax.f32 %v3275, 0.0
    %v3304 = vmax.f32 %v3276, 0.0
    %v3305 = vmax.f32 %v3277, 0.0
    %v3306 = vmax.f32 %v3278, 0.0
    %v3307 = vmax.f32 %v3279, 0.0
    %v3308 = vmax.f32 %v3280, 0.0
    %v3309 = vmax.f32 %v3281, 0.0
    %v3310 = vmax.f32 %v3282, 0.0
    %v3311 = vmax.f32 %v3283, 0.0
    %v3312 = vmax.f32 %v3284, 0.0
    %v3313 = vmax.f32 %v3285, 0.0
    %v3314 = vmax.f32 %v3286, 0.0
    %v3315 = vmax.f32 %v3287, 0.0
    %v3316 = vmax.f32 %v3288, 0.0
    %v3317 = vmax.f32 %v3289, 0.0
    %v3318 = vpack.c.bf16 %v3291, %v3290
    %v3319 = vpack.c.bf16 %v3293, %v3292
    %v3320 = vpack.c.bf16 %v3295, %v3294
    %v3321 = vpack.c.bf16 %v3297, %v3296
    %v3322 = vpack.c.bf16 %v3299, %v3298
    %v3323 = vpack.c.bf16 %v3301, %v3300
    %v3324 = vpack.c.bf16 %v3303, %v3302
    %v3325 = vpack.c.bf16 %v3305, %v3304
    %v3326 = vpack.c.bf16 %v3307, %v3306
    %v3327 = vpack.c.bf16 %v3309, %v3308
    %v3328 = vpack.c.bf16 %v3311, %v3310
    %v3329 = vpack.c.bf16 %v3313, %v3312
    %v3330 = vpack.c.bf16 %v3315, %v3314
    %v3331 = vpack.c.bf16 %v3317, %v3316
    %v3332 = vld [vmem:[%s171 + $0x8] sm:$0xf]
    %v3333 = vld [vmem:[%s171 + $0x18] sm:$0xf]
    %v3334 = vld [vmem:[%s171 + $0x28] sm:$0xf]
    %v3335 = vld [vmem:[%s171 + $0x38] sm:$0xf]
    %v3336 = vld [vmem:[%s171 + $0x48] sm:$0xf]
    %v3337 = vld [vmem:[%s171 + $0x58] sm:$0xf]
    %v3338 = vld [vmem:[%s171 + $0x68] sm:$0xf]
    %v3339 = vld [vmem:[%s171 + $0x78] sm:$0xf]
    %v3340 = vld [vmem:[%s171 + $0x88] sm:$0xf]
    %v3341 = vld [vmem:[%s171 + $0x98] sm:$0xf]
    %v3342 = vld [vmem:[%s171 + $0xa8] sm:$0xf]
    %v3343 = vld [vmem:[%s171 + $0xb8] sm:$0xf]
    %v3344 = vld [vmem:[%s171 + $0xc8] sm:$0xf]
    %v3345 = vld [vmem:[%s171 + $0xd8] sm:$0xf]
    %v3360 = vunpack.c.l.b16 %v3332
    %v3361 = vunpack.c.l.b16 %v3333
    %v3362 = vunpack.c.l.b16 %v3334
    %v3363 = vunpack.c.l.b16 %v3335
    %v3364 = vunpack.c.l.b16 %v3336
    %v3365 = vunpack.c.l.b16 %v3337
    %v3366 = vunpack.c.l.b16 %v3338
    %v3367 = vunpack.c.l.b16 %v3339
    %v3368 = vunpack.c.l.b16 %v3340
    %v3369 = vunpack.c.l.b16 %v3341
    %v3370 = vunpack.c.l.b16 %v3342
    %v3371 = vunpack.c.l.b16 %v3343
    %v3372 = vunpack.c.l.b16 %v3344
    %v3373 = vunpack.c.l.b16 %v3345
    %v3374 = vpack.c.b16 %v3361, %v3360
    %v3375 = vpack.c.b16 %v3363, %v3362
    %v3376 = vpack.c.b16 %v3365, %v3364
    %v3377 = vpack.c.b16 %v3367, %v3366
    %v3378 = vpack.c.b16 %v3369, %v3368
    %v3379 = vpack.c.b16 %v3371, %v3370
    %v3380 = vpack.c.b16 %v3373, %v3372
    %3388 = vmatpush.bf16.msra.mxu0 %v730
    %3389 = vmatpush.bf16.msra.mxu0 %v728
    %3390 = vmatpush.bf16.msra.mxu0 %v726
    %3391 = vmatpush.bf16.msra.mxu0 %v724
    %3392 = vmatpush.bf16.msra.mxu0 %v722
    %3393 = vmatpush.bf16.msra.mxu0 %v720
    %3394 = vmatpush.bf16.msra.mxu0 %v718
    %3395 = vmatpush.bf16.msra.mxu0 %v716
    %3396 = vmatmul.bf16.gmra.mxu0 %v298
    %v3397 = vpop.f32.mrf.mxu0
    %v3398 = vadd.f32 0.0, %v3397
    %v3399 = vpop.f32.mrf.mxu0
    %v3400 = vadd.f32 0.0, %v3399
    %3401 = vmatmul.bf16.gmra.mxu0 %v299
    %v3402 = vpop.f32.mrf.mxu0
    %v3403 = vadd.f32 0.0, %v3402
    %v3404 = vpop.f32.mrf.mxu0
    %v3405 = vadd.f32 0.0, %v3404
    %3406 = vmatmul.bf16.gmra.mxu0 %v300
    %v3407 = vpop.f32.mrf.mxu0
    %v3408 = vadd.f32 0.0, %v3407
    %v3409 = vpop.f32.mrf.mxu0
    %v3410 = vadd.f32 0.0, %v3409
    %3411 = vmatmul.bf16.gmra.mxu0 %v301
    %v3412 = vpop.f32.mrf.mxu0
    %v3413 = vadd.f32 0.0, %v3412
    %v3414 = vpop.f32.mrf.mxu0
    %v3415 = vadd.f32 0.0, %v3414
    %3416 = vmatmul.bf16.gmra.mxu0 %v302
    %v3417 = vpop.f32.mrf.mxu0
    %v3418 = vadd.f32 0.0, %v3417
    %v3419 = vpop.f32.mrf.mxu0
    %v3420 = vadd.f32 0.0, %v3419
    %3421 = vmatmul.bf16.gmra.mxu0 %v303
    %v3422 = vpop.f32.mrf.mxu0
    %v3423 = vadd.f32 0.0, %v3422
    %v3424 = vpop.f32.mrf.mxu0
    %v3425 = vadd.f32 0.0, %v3424
    %3426 = vmatmul.bf16.gmra.mxu0 %v304
    %v3427 = vpop.f32.mrf.mxu0
    %v3428 = vadd.f32 0.0, %v3427
    %v3429 = vpop.f32.mrf.mxu0
    %v3430 = vadd.f32 0.0, %v3429
    %3431 = vdwg.mxu0
    %3432 = vmatpush.bf16.msra.mxu0 %v746
    %3433 = vmatpush.bf16.msra.mxu0 %v744
    %3434 = vmatpush.bf16.msra.mxu0 %v742
    %3435 = vmatpush.bf16.msra.mxu0 %v740
    %3436 = vmatpush.bf16.msra.mxu0 %v738
    %3437 = vmatpush.bf16.msra.mxu0 %v736
    %3438 = vmatpush.bf16.msra.mxu0 %v734
    %3439 = vmatpush.bf16.msra.mxu0 %v732
    %3440 = vmatmul.bf16.gmra.mxu0 %v340
    %v3441 = vpop.f32.mrf.mxu0
    %v3442 = vadd.f32 %v3398, %v3441
    %v3443 = vpop.f32.mrf.mxu0
    %v3444 = vadd.f32 %v3400, %v3443
    %3445 = vmatmul.bf16.gmra.mxu0 %v341
    %v3446 = vpop.f32.mrf.mxu0
    %v3447 = vadd.f32 %v3403, %v3446
    %v3448 = vpop.f32.mrf.mxu0
    %v3449 = vadd.f32 %v3405, %v3448
    %3450 = vmatmul.bf16.gmra.mxu0 %v342
    %v3451 = vpop.f32.mrf.mxu0
    %v3452 = vadd.f32 %v3408, %v3451
    %v3453 = vpop.f32.mrf.mxu0
    %v3454 = vadd.f32 %v3410, %v3453
    %3455 = vmatmul.bf16.gmra.mxu0 %v343
    %v3456 = vpop.f32.mrf.mxu0
    %v3457 = vadd.f32 %v3413, %v3456
    %v3458 = vpop.f32.mrf.mxu0
    %v3459 = vadd.f32 %v3415, %v3458
    %3460 = vmatmul.bf16.gmra.mxu0 %v344
    %v3461 = vpop.f32.mrf.mxu0
    %v3462 = vadd.f32 %v3418, %v3461
    %v3463 = vpop.f32.mrf.mxu0
    %v3464 = vadd.f32 %v3420, %v3463
    %3465 = vmatmul.bf16.gmra.mxu0 %v345
    %v3466 = vpop.f32.mrf.mxu0
    %v3467 = vadd.f32 %v3423, %v3466
    %v3468 = vpop.f32.mrf.mxu0
    %v3469 = vadd.f32 %v3425, %v3468
    %3470 = vmatmul.bf16.gmra.mxu0 %v346
    %v3471 = vpop.f32.mrf.mxu0
    %v3472 = vadd.f32 %v3428, %v3471
    %v3473 = vpop.f32.mrf.mxu0
    %v3474 = vadd.f32 %v3430, %v3473
    %3475 = vdwg.mxu0
    %3476 = vmatpush.bf16.msra.mxu0 %v762
    %3477 = vmatpush.bf16.msra.mxu0 %v760
    %3478 = vmatpush.bf16.msra.mxu0 %v758
    %3479 = vmatpush.bf16.msra.mxu0 %v756
    %3480 = vmatpush.bf16.msra.mxu0 %v754
    %3481 = vmatpush.bf16.msra.mxu0 %v752
    %3482 = vmatpush.bf16.msra.mxu0 %v750
    %3483 = vmatpush.bf16.msra.mxu0 %v748
    %3484 = vmatmul.bf16.gmra.mxu0 %v382
    %v3485 = vpop.f32.mrf.mxu0
    %v3486 = vadd.f32 %v3442, %v3485
    %v3487 = vpop.f32.mrf.mxu0
    %v3488 = vadd.f32 %v3444, %v3487
    %3489 = vmatmul.bf16.gmra.mxu0 %v383
    %v3490 = vpop.f32.mrf.mxu0
    %v3491 = vadd.f32 %v3447, %v3490
    %v3492 = vpop.f32.mrf.mxu0
    %v3493 = vadd.f32 %v3449, %v3492
    %3494 = vmatmul.bf16.gmra.mxu0 %v384
    %v3495 = vpop.f32.mrf.mxu0
    %v3496 = vadd.f32 %v3452, %v3495
    %v3497 = vpop.f32.mrf.mxu0
    %v3498 = vadd.f32 %v3454, %v3497
    %3499 = vmatmul.bf16.gmra.mxu0 %v385
    %v3500 = vpop.f32.mrf.mxu0
    %v3501 = vadd.f32 %v3457, %v3500
    %v3502 = vpop.f32.mrf.mxu0
    %v3503 = vadd.f32 %v3459, %v3502
    %3504 = vmatmul.bf16.gmra.mxu0 %v386
    %v3505 = vpop.f32.mrf.mxu0
    %v3506 = vadd.f32 %v3462, %v3505
    %v3507 = vpop.f32.mrf.mxu0
    %v3508 = vadd.f32 %v3464, %v3507
    %3509 = vmatmul.bf16.gmra.mxu0 %v387
    %v3510 = vpop.f32.mrf.mxu0
    %v3511 = vadd.f32 %v3467, %v3510
    %v3512 = vpop.f32.mrf.mxu0
    %v3513 = vadd.f32 %v3469, %v3512
    %3514 = vmatmul.bf16.gmra.mxu0 %v388
    %v3515 = vpop.f32.mrf.mxu0
    %v3516 = vadd.f32 %v3472, %v3515
    %v3517 = vpop.f32.mrf.mxu0
    %v3518 = vadd.f32 %v3474, %v3517
    %3519 = vdwg.mxu0
    %3520 = vmatpush.bf16.msra.mxu0 %v778
    %3521 = vmatpush.bf16.msra.mxu0 %v776
    %3522 = vmatpush.bf16.msra.mxu0 %v774
    %3523 = vmatpush.bf16.msra.mxu0 %v772
    %3524 = vmatpush.bf16.msra.mxu0 %v770
    %3525 = vmatpush.bf16.msra.mxu0 %v768
    %3526 = vmatpush.bf16.msra.mxu0 %v766
    %3527 = vmatpush.bf16.msra.mxu0 %v764
    %3528 = vmatmul.bf16.gmra.mxu0 %v2307
    %v3529 = vpop.f32.mrf.mxu0
    %v3530 = vadd.f32 %v3486, %v3529
    %v3531 = vpop.f32.mrf.mxu0
    %v3532 = vadd.f32 %v3488, %v3531
    %3533 = vmatmul.bf16.gmra.mxu0 %v2308
    %v3534 = vpop.f32.mrf.mxu0
    %v3535 = vadd.f32 %v3491, %v3534
    %v3536 = vpop.f32.mrf.mxu0
    %v3537 = vadd.f32 %v3493, %v3536
    %3538 = vmatmul.bf16.gmra.mxu0 %v2309
    %v3539 = vpop.f32.mrf.mxu0
    %v3540 = vadd.f32 %v3496, %v3539
    %v3541 = vpop.f32.mrf.mxu0
    %v3542 = vadd.f32 %v3498, %v3541
    %3543 = vmatmul.bf16.gmra.mxu0 %v2310
    %v3544 = vpop.f32.mrf.mxu0
    %v3545 = vadd.f32 %v3501, %v3544
    %v3546 = vpop.f32.mrf.mxu0
    %v3547 = vadd.f32 %v3503, %v3546
    %3548 = vmatmul.bf16.gmra.mxu0 %v2311
    %v3549 = vpop.f32.mrf.mxu0
    %v3550 = vadd.f32 %v3506, %v3549
    %v3551 = vpop.f32.mrf.mxu0
    %v3552 = vadd.f32 %v3508, %v3551
    %3553 = vmatmul.bf16.gmra.mxu0 %v2312
    %v3554 = vpop.f32.mrf.mxu0
    %v3555 = vadd.f32 %v3511, %v3554
    %v3556 = vpop.f32.mrf.mxu0
    %v3557 = vadd.f32 %v3513, %v3556
    %3558 = vmatmul.bf16.gmra.mxu0 %v2313
    %v3559 = vpop.f32.mrf.mxu0
    %v3560 = vadd.f32 %v3516, %v3559
    %v3561 = vpop.f32.mrf.mxu0
    %v3562 = vadd.f32 %v3518, %v3561
    %3563 = vdwg.mxu0
    %3564 = vmatpush.bf16.msra.mxu0 %v794
    %3565 = vmatpush.bf16.msra.mxu0 %v792
    %3566 = vmatpush.bf16.msra.mxu0 %v790
    %3567 = vmatpush.bf16.msra.mxu0 %v788
    %3568 = vmatpush.bf16.msra.mxu0 %v786
    %3569 = vmatpush.bf16.msra.mxu0 %v784
    %3570 = vmatpush.bf16.msra.mxu0 %v782
    %3571 = vmatpush.bf16.msra.mxu0 %v780
    %3572 = vmatmul.bf16.gmra.mxu0 %v3374
    %v3573 = vpop.f32.mrf.mxu0
    %v3574 = vadd.f32 %v3530, %v3573
    %v3575 = vpop.f32.mrf.mxu0
    %v3576 = vadd.f32 %v3532, %v3575
    %3577 = vmatmul.bf16.gmra.mxu0 %v3375
    %v3578 = vpop.f32.mrf.mxu0
    %v3579 = vadd.f32 %v3535, %v3578
    %v3580 = vpop.f32.mrf.mxu0
    %v3581 = vadd.f32 %v3537, %v3580
    %3582 = vmatmul.bf16.gmra.mxu0 %v3376
    %v3583 = vpop.f32.mrf.mxu0
    %v3584 = vadd.f32 %v3540, %v3583
    %v3585 = vpop.f32.mrf.mxu0
    %v3586 = vadd.f32 %v3542, %v3585
    %3587 = vmatmul.bf16.gmra.mxu0 %v3377
    %v3588 = vpop.f32.mrf.mxu0
    %v3589 = vadd.f32 %v3545, %v3588
    %v3590 = vpop.f32.mrf.mxu0
    %v3591 = vadd.f32 %v3547, %v3590
    %3592 = vmatmul.bf16.gmra.mxu0 %v3378
    %v3593 = vpop.f32.mrf.mxu0
    %v3594 = vadd.f32 %v3550, %v3593
    %v3595 = vpop.f32.mrf.mxu0
    %v3596 = vadd.f32 %v3552, %v3595
    %3597 = vmatmul.bf16.gmra.mxu0 %v3379
    %v3598 = vpop.f32.mrf.mxu0
    %v3599 = vadd.f32 %v3555, %v3598
    %v3600 = vpop.f32.mrf.mxu0
    %v3601 = vadd.f32 %v3557, %v3600
    %3602 = vmatmul.bf16.gmra.mxu0 %v3380
    %v3603 = vpop.f32.mrf.mxu0
    %v3604 = vadd.f32 %v3560, %v3603
    %v3605 = vpop.f32.mrf.mxu0
    %v3606 = vadd.f32 %v3562, %v3605
    %3607 = vdwg.mxu0
    %3608 = vmatpush.bf16.msra.mxu0 %v731
    %3609 = vmatpush.bf16.msra.mxu0 %v729
    %3610 = vmatpush.bf16.msra.mxu0 %v727
    %3611 = vmatpush.bf16.msra.mxu0 %v725
    %3612 = vmatpush.bf16.msra.mxu0 %v723
    %3613 = vmatpush.bf16.msra.mxu0 %v721
    %3614 = vmatpush.bf16.msra.mxu0 %v719
    %3615 = vmatpush.bf16.msra.mxu0 %v717
    %3616 = vmatmul.bf16.gmra.mxu0 %v298
    %v3617 = vpop.f32.mrf.mxu0
    %v3618 = vadd.f32 0.0, %v3617
    %v3619 = vpop.f32.mrf.mxu0
    %v3620 = vadd.f32 0.0, %v3619
    %3621 = vmatmul.bf16.gmra.mxu0 %v299
    %v3622 = vpop.f32.mrf.mxu0
    %v3623 = vadd.f32 0.0, %v3622
    %v3624 = vpop.f32.mrf.mxu0
    %v3625 = vadd.f32 0.0, %v3624
    %3626 = vmatmul.bf16.gmra.mxu0 %v300
    %v3627 = vpop.f32.mrf.mxu0
    %v3628 = vadd.f32 0.0, %v3627
    %v3629 = vpop.f32.mrf.mxu0
    %v3630 = vadd.f32 0.0, %v3629
    %3631 = vmatmul.bf16.gmra.mxu0 %v301
    %v3632 = vpop.f32.mrf.mxu0
    %v3633 = vadd.f32 0.0, %v3632
    %v3634 = vpop.f32.mrf.mxu0
    %v3635 = vadd.f32 0.0, %v3634
    %3636 = vmatmul.bf16.gmra.mxu0 %v302
    %v3637 = vpop.f32.mrf.mxu0
    %v3638 = vadd.f32 0.0, %v3637
    %v3639 = vpop.f32.mrf.mxu0
    %v3640 = vadd.f32 0.0, %v3639
    %3641 = vmatmul.bf16.gmra.mxu0 %v303
    %v3642 = vpop.f32.mrf.mxu0
    %v3643 = vadd.f32 0.0, %v3642
    %v3644 = vpop.f32.mrf.mxu0
    %v3645 = vadd.f32 0.0, %v3644
    %3646 = vmatmul.bf16.gmra.mxu0 %v304
    %v3647 = vpop.f32.mrf.mxu0
    %v3648 = vadd.f32 0.0, %v3647
    %v3649 = vpop.f32.mrf.mxu0
    %v3650 = vadd.f32 0.0, %v3649
    %3651 = vdwg.mxu0
    %3652 = vmatpush.bf16.msra.mxu0 %v747
    %3653 = vmatpush.bf16.msra.mxu0 %v745
    %3654 = vmatpush.bf16.msra.mxu0 %v743
    %3655 = vmatpush.bf16.msra.mxu0 %v741
    %3656 = vmatpush.bf16.msra.mxu0 %v739
    %3657 = vmatpush.bf16.msra.mxu0 %v737
    %3658 = vmatpush.bf16.msra.mxu0 %v735
    %3659 = vmatpush.bf16.msra.mxu0 %v733
    %3660 = vmatmul.bf16.gmra.mxu0 %v340
    %v3661 = vpop.f32.mrf.mxu0
    %v3662 = vadd.f32 %v3618, %v3661
    %v3663 = vpop.f32.mrf.mxu0
    %v3664 = vadd.f32 %v3620, %v3663
    %3665 = vmatmul.bf16.gmra.mxu0 %v341
    %v3666 = vpop.f32.mrf.mxu0
    %v3667 = vadd.f32 %v3623, %v3666
    %v3668 = vpop.f32.mrf.mxu0
    %v3669 = vadd.f32 %v3625, %v3668
    %3670 = vmatmul.bf16.gmra.mxu0 %v342
    %v3671 = vpop.f32.mrf.mxu0
    %v3672 = vadd.f32 %v3628, %v3671
    %v3673 = vpop.f32.mrf.mxu0
    %v3674 = vadd.f32 %v3630, %v3673
    %3675 = vmatmul.bf16.gmra.mxu0 %v343
    %v3676 = vpop.f32.mrf.mxu0
    %v3677 = vadd.f32 %v3633, %v3676
    %v3678 = vpop.f32.mrf.mxu0
    %v3679 = vadd.f32 %v3635, %v3678
    %3680 = vmatmul.bf16.gmra.mxu0 %v344
    %v3681 = vpop.f32.mrf.mxu0
    %v3682 = vadd.f32 %v3638, %v3681
    %v3683 = vpop.f32.mrf.mxu0
    %v3684 = vadd.f32 %v3640, %v3683
    %3685 = vmatmul.bf16.gmra.mxu0 %v345
    %v3686 = vpop.f32.mrf.mxu0
    %v3687 = vadd.f32 %v3643, %v3686
    %v3688 = vpop.f32.mrf.mxu0
    %v3689 = vadd.f32 %v3645, %v3688
    %3690 = vmatmul.bf16.gmra.mxu0 %v346
    %v3691 = vpop.f32.mrf.mxu0
    %v3692 = vadd.f32 %v3648, %v3691
    %v3693 = vpop.f32.mrf.mxu0
    %v3694 = vadd.f32 %v3650, %v3693
    %3695 = vdwg.mxu0
    %3696 = vmatpush.bf16.msra.mxu0 %v763
    %3697 = vmatpush.bf16.msra.mxu0 %v761
    %3698 = vmatpush.bf16.msra.mxu0 %v759
    %3699 = vmatpush.bf16.msra.mxu0 %v757
    %3700 = vmatpush.bf16.msra.mxu0 %v755
    %3701 = vmatpush.bf16.msra.mxu0 %v753
    %3702 = vmatpush.bf16.msra.mxu0 %v751
    %3703 = vmatpush.bf16.msra.mxu0 %v749
    %3704 = vmatmul.bf16.gmra.mxu0 %v382
    %v3705 = vpop.f32.mrf.mxu0
    %v3706 = vadd.f32 %v3662, %v3705
    %v3707 = vpop.f32.mrf.mxu0
    %v3708 = vadd.f32 %v3664, %v3707
    %3709 = vmatmul.bf16.gmra.mxu0 %v383
    %v3710 = vpop.f32.mrf.mxu0
    %v3711 = vadd.f32 %v3667, %v3710
    %v3712 = vpop.f32.mrf.mxu0
    %v3713 = vadd.f32 %v3669, %v3712
    %3714 = vmatmul.bf16.gmra.mxu0 %v384
    %v3715 = vpop.f32.mrf.mxu0
    %v3716 = vadd.f32 %v3672, %v3715
    %v3717 = vpop.f32.mrf.mxu0
    %v3718 = vadd.f32 %v3674, %v3717
    %3719 = vmatmul.bf16.gmra.mxu0 %v385
    %v3720 = vpop.f32.mrf.mxu0
    %v3721 = vadd.f32 %v3677, %v3720
    %v3722 = vpop.f32.mrf.mxu0
    %v3723 = vadd.f32 %v3679, %v3722
    %3724 = vmatmul.bf16.gmra.mxu0 %v386
    %v3725 = vpop.f32.mrf.mxu0
    %v3726 = vadd.f32 %v3682, %v3725
    %v3727 = vpop.f32.mrf.mxu0
    %v3728 = vadd.f32 %v3684, %v3727
    %3729 = vmatmul.bf16.gmra.mxu0 %v387
    %v3730 = vpop.f32.mrf.mxu0
    %v3731 = vadd.f32 %v3687, %v3730
    %v3732 = vpop.f32.mrf.mxu0
    %v3733 = vadd.f32 %v3689, %v3732
    %3734 = vmatmul.bf16.gmra.mxu0 %v388
    %v3735 = vpop.f32.mrf.mxu0
    %v3736 = vadd.f32 %v3692, %v3735
    %v3737 = vpop.f32.mrf.mxu0
    %v3738 = vadd.f32 %v3694, %v3737
    %3739 = vdwg.mxu0
    %3740 = vmatpush.bf16.msra.mxu0 %v779
    %3741 = vmatpush.bf16.msra.mxu0 %v777
    %3742 = vmatpush.bf16.msra.mxu0 %v775
    %3743 = vmatpush.bf16.msra.mxu0 %v773
    %3744 = vmatpush.bf16.msra.mxu0 %v771
    %3745 = vmatpush.bf16.msra.mxu0 %v769
    %3746 = vmatpush.bf16.msra.mxu0 %v767
    %3747 = vmatpush.bf16.msra.mxu0 %v765
    %3748 = vmatmul.bf16.gmra.mxu0 %v2307
    %v3749 = vpop.f32.mrf.mxu0
    %v3750 = vadd.f32 %v3706, %v3749
    %v3751 = vpop.f32.mrf.mxu0
    %v3752 = vadd.f32 %v3708, %v3751
    %3753 = vmatmul.bf16.gmra.mxu0 %v2308
    %v3754 = vpop.f32.mrf.mxu0
    %v3755 = vadd.f32 %v3711, %v3754
    %v3756 = vpop.f32.mrf.mxu0
    %v3757 = vadd.f32 %v3713, %v3756
    %3758 = vmatmul.bf16.gmra.mxu0 %v2309
    %v3759 = vpop.f32.mrf.mxu0
    %v3760 = vadd.f32 %v3716, %v3759
    %v3761 = vpop.f32.mrf.mxu0
    %v3762 = vadd.f32 %v3718, %v3761
    %3763 = vmatmul.bf16.gmra.mxu0 %v2310
    %v3764 = vpop.f32.mrf.mxu0
    %v3765 = vadd.f32 %v3721, %v3764
    %v3766 = vpop.f32.mrf.mxu0
    %v3767 = vadd.f32 %v3723, %v3766
    %3768 = vmatmul.bf16.gmra.mxu0 %v2311
    %v3769 = vpop.f32.mrf.mxu0
    %v3770 = vadd.f32 %v3726, %v3769
    %v3771 = vpop.f32.mrf.mxu0
    %v3772 = vadd.f32 %v3728, %v3771
    %3773 = vmatmul.bf16.gmra.mxu0 %v2312
    %v3774 = vpop.f32.mrf.mxu0
    %v3775 = vadd.f32 %v3731, %v3774
    %v3776 = vpop.f32.mrf.mxu0
    %v3777 = vadd.f32 %v3733, %v3776
    %3778 = vmatmul.bf16.gmra.mxu0 %v2313
    %v3779 = vpop.f32.mrf.mxu0
    %v3780 = vadd.f32 %v3736, %v3779
    %v3781 = vpop.f32.mrf.mxu0
    %v3782 = vadd.f32 %v3738, %v3781
    %3783 = vdwg.mxu0
    %3784 = vmatpush.bf16.msra.mxu0 %v795
    %3785 = vmatpush.bf16.msra.mxu0 %v793
    %3786 = vmatpush.bf16.msra.mxu0 %v791
    %3787 = vmatpush.bf16.msra.mxu0 %v789
    %3788 = vmatpush.bf16.msra.mxu0 %v787
    %3789 = vmatpush.bf16.msra.mxu0 %v785
    %3790 = vmatpush.bf16.msra.mxu0 %v783
    %3791 = vmatpush.bf16.msra.mxu0 %v781
    %3792 = vmatmul.bf16.gmra.mxu0 %v3374
    %v3793 = vpop.f32.mrf.mxu0
    %v3794 = vadd.f32 %v3750, %v3793
    %v3795 = vpop.f32.mrf.mxu0
    %v3796 = vadd.f32 %v3752, %v3795
    %3797 = vmatmul.bf16.gmra.mxu0 %v3375
    %v3798 = vpop.f32.mrf.mxu0
    %v3799 = vadd.f32 %v3755, %v3798
    %v3800 = vpop.f32.mrf.mxu0
    %v3801 = vadd.f32 %v3757, %v3800
    %3802 = vmatmul.bf16.gmra.mxu0 %v3376
    %v3803 = vpop.f32.mrf.mxu0
    %v3804 = vadd.f32 %v3760, %v3803
    %v3805 = vpop.f32.mrf.mxu0
    %v3806 = vadd.f32 %v3762, %v3805
    %3807 = vmatmul.bf16.gmra.mxu0 %v3377
    %v3808 = vpop.f32.mrf.mxu0
    %v3809 = vadd.f32 %v3765, %v3808
    %v3810 = vpop.f32.mrf.mxu0
    %v3811 = vadd.f32 %v3767, %v3810
    %3812 = vmatmul.bf16.gmra.mxu0 %v3378
    %v3813 = vpop.f32.mrf.mxu0
    %v3814 = vadd.f32 %v3770, %v3813
    %v3815 = vpop.f32.mrf.mxu0
    %v3816 = vadd.f32 %v3772, %v3815
    %3817 = vmatmul.bf16.gmra.mxu0 %v3379
    %v3818 = vpop.f32.mrf.mxu0
    %v3819 = vadd.f32 %v3775, %v3818
    %v3820 = vpop.f32.mrf.mxu0
    %v3821 = vadd.f32 %v3777, %v3820
    %3822 = vmatmul.bf16.gmra.mxu0 %v3380
    %v3823 = vpop.f32.mrf.mxu0
    %v3824 = vadd.f32 %v3780, %v3823
    %v3825 = vpop.f32.mrf.mxu0
    %v3826 = vadd.f32 %v3782, %v3825
    %3827 = vdwg.mxu0
    %3828 = vmatpush.bf16.msra.mxu0 %v1651
    %3829 = vmatpush.bf16.msra.mxu0 %v1649
    %3830 = vmatpush.bf16.msra.mxu0 %v1647
    %3831 = vmatpush.bf16.msra.mxu0 %v1645
    %3832 = vmatpush.bf16.msra.mxu0 %v1643
    %3833 = vmatpush.bf16.msra.mxu0 %v1641
    %3834 = vmatpush.bf16.msra.mxu0 %v1639
    %3835 = vmatpush.bf16.msra.mxu0 %v1637
    %3836 = vmatmul.bf16.gmra.mxu0 %v298
    %v3837 = vpop.f32.mrf.mxu0
    %v3838 = vadd.f32 0.0, %v3837
    %v3839 = vpop.f32.mrf.mxu0
    %v3840 = vadd.f32 0.0, %v3839
    %3841 = vmatmul.bf16.gmra.mxu0 %v299
    %v3842 = vpop.f32.mrf.mxu0
    %v3843 = vadd.f32 0.0, %v3842
    %v3844 = vpop.f32.mrf.mxu0
    %v3845 = vadd.f32 0.0, %v3844
    %3846 = vmatmul.bf16.gmra.mxu0 %v300
    %v3847 = vpop.f32.mrf.mxu0
    %v3848 = vadd.f32 0.0, %v3847
    %v3849 = vpop.f32.mrf.mxu0
    %v3850 = vadd.f32 0.0, %v3849
    %3851 = vmatmul.bf16.gmra.mxu0 %v301
    %v3852 = vpop.f32.mrf.mxu0
    %v3853 = vadd.f32 0.0, %v3852
    %v3854 = vpop.f32.mrf.mxu0
    %v3855 = vadd.f32 0.0, %v3854
    %3856 = vmatmul.bf16.gmra.mxu0 %v302
    %v3857 = vpop.f32.mrf.mxu0
    %v3858 = vadd.f32 0.0, %v3857
    %v3859 = vpop.f32.mrf.mxu0
    %v3860 = vadd.f32 0.0, %v3859
    %3861 = vmatmul.bf16.gmra.mxu0 %v303
    %v3862 = vpop.f32.mrf.mxu0
    %v3863 = vadd.f32 0.0, %v3862
    %v3864 = vpop.f32.mrf.mxu0
    %v3865 = vadd.f32 0.0, %v3864
    %3866 = vmatmul.bf16.gmra.mxu0 %v304
    %v3867 = vpop.f32.mrf.mxu0
    %v3868 = vadd.f32 0.0, %v3867
    %v3869 = vpop.f32.mrf.mxu0
    %v3870 = vadd.f32 0.0, %v3869
    %3871 = vdwg.mxu0
    %3872 = vmatpush.bf16.msra.mxu0 %v1667
    %3873 = vmatpush.bf16.msra.mxu0 %v1665
    %3874 = vmatpush.bf16.msra.mxu0 %v1663
    %3875 = vmatpush.bf16.msra.mxu0 %v1661
    %3876 = vmatpush.bf16.msra.mxu0 %v1659
    %3877 = vmatpush.bf16.msra.mxu0 %v1657
    %3878 = vmatpush.bf16.msra.mxu0 %v1655
    %3879 = vmatpush.bf16.msra.mxu0 %v1653
    %3880 = vmatmul.bf16.gmra.mxu0 %v340
    %v3881 = vpop.f32.mrf.mxu0
    %v3882 = vadd.f32 %v3838, %v3881
    %v3883 = vpop.f32.mrf.mxu0
    %v3884 = vadd.f32 %v3840, %v3883
    %3885 = vmatmul.bf16.gmra.mxu0 %v341
    %v3886 = vpop.f32.mrf.mxu0
    %v3887 = vadd.f32 %v3843, %v3886
    %v3888 = vpop.f32.mrf.mxu0
    %v3889 = vadd.f32 %v3845, %v3888
    %3890 = vmatmul.bf16.gmra.mxu0 %v342
    %v3891 = vpop.f32.mrf.mxu0
    %v3892 = vadd.f32 %v3848, %v3891
    %v3893 = vpop.f32.mrf.mxu0
    %v3894 = vadd.f32 %v3850, %v3893
    %3895 = vmatmul.bf16.gmra.mxu0 %v343
    %v3896 = vpop.f32.mrf.mxu0
    %v3897 = vadd.f32 %v3853, %v3896
    %v3898 = vpop.f32.mrf.mxu0
    %v3899 = vadd.f32 %v3855, %v3898
    %3900 = vmatmul.bf16.gmra.mxu0 %v344
    %v3901 = vpop.f32.mrf.mxu0
    %v3902 = vadd.f32 %v3858, %v3901
    %v3903 = vpop.f32.mrf.mxu0
    %v3904 = vadd.f32 %v3860, %v3903
    %3905 = vmatmul.bf16.gmra.mxu0 %v345
    %v3906 = vpop.f32.mrf.mxu0
    %v3907 = vadd.f32 %v3863, %v3906
    %v3908 = vpop.f32.mrf.mxu0
    %v3909 = vadd.f32 %v3865, %v3908
    %3910 = vmatmul.bf16.gmra.mxu0 %v346
    %v3911 = vpop.f32.mrf.mxu0
    %v3912 = vadd.f32 %v3868, %v3911
    %v3913 = vpop.f32.mrf.mxu0
    %v3914 = vadd.f32 %v3870, %v3913
    %3915 = vdwg.mxu0
    %3916 = vmatpush.bf16.msra.mxu0 %v1683
    %3917 = vmatpush.bf16.msra.mxu0 %v1681
    %3918 = vmatpush.bf16.msra.mxu0 %v1679
    %3919 = vmatpush.bf16.msra.mxu0 %v1677
    %3920 = vmatpush.bf16.msra.mxu0 %v1675
    %3921 = vmatpush.bf16.msra.mxu0 %v1673
    %3922 = vmatpush.bf16.msra.mxu0 %v1671
    %3923 = vmatpush.bf16.msra.mxu0 %v1669
    %3924 = vmatmul.bf16.gmra.mxu0 %v382
    %v3925 = vpop.f32.mrf.mxu0
    %v3926 = vadd.f32 %v3882, %v3925
    %v3927 = vpop.f32.mrf.mxu0
    %v3928 = vadd.f32 %v3884, %v3927
    %3929 = vmatmul.bf16.gmra.mxu0 %v383
    %v3930 = vpop.f32.mrf.mxu0
    %v3931 = vadd.f32 %v3887, %v3930
    %v3932 = vpop.f32.mrf.mxu0
    %v3933 = vadd.f32 %v3889, %v3932
    %3934 = vmatmul.bf16.gmra.mxu0 %v384
    %v3935 = vpop.f32.mrf.mxu0
    %v3936 = vadd.f32 %v3892, %v3935
    %v3937 = vpop.f32.mrf.mxu0
    %v3938 = vadd.f32 %v3894, %v3937
    %3939 = vmatmul.bf16.gmra.mxu0 %v385
    %v3940 = vpop.f32.mrf.mxu0
    %v3941 = vadd.f32 %v3897, %v3940
    %v3942 = vpop.f32.mrf.mxu0
    %v3943 = vadd.f32 %v3899, %v3942
    %3944 = vmatmul.bf16.gmra.mxu0 %v386
    %v3945 = vpop.f32.mrf.mxu0
    %v3946 = vadd.f32 %v3902, %v3945
    %v3947 = vpop.f32.mrf.mxu0
    %v3948 = vadd.f32 %v3904, %v3947
    %3949 = vmatmul.bf16.gmra.mxu0 %v387
    %v3950 = vpop.f32.mrf.mxu0
    %v3951 = vadd.f32 %v3907, %v3950
    %v3952 = vpop.f32.mrf.mxu0
    %v3953 = vadd.f32 %v3909, %v3952
    %3954 = vmatmul.bf16.gmra.mxu0 %v388
    %v3955 = vpop.f32.mrf.mxu0
    %v3956 = vadd.f32 %v3912, %v3955
    %v3957 = vpop.f32.mrf.mxu0
    %v3958 = vadd.f32 %v3914, %v3957
    %3959 = vdwg.mxu0
    %3960 = vmatpush.bf16.msra.mxu0 %v1699
    %3961 = vmatpush.bf16.msra.mxu0 %v1697
    %3962 = vmatpush.bf16.msra.mxu0 %v1695
    %3963 = vmatpush.bf16.msra.mxu0 %v1693
    %3964 = vmatpush.bf16.msra.mxu0 %v1691
    %3965 = vmatpush.bf16.msra.mxu0 %v1689
    %3966 = vmatpush.bf16.msra.mxu0 %v1687
    %3967 = vmatpush.bf16.msra.mxu0 %v1685
    %3968 = vmatmul.bf16.gmra.mxu0 %v2307
    %v3969 = vpop.f32.mrf.mxu0
    %v3970 = vadd.f32 %v3926, %v3969
    %v3971 = vpop.f32.mrf.mxu0
    %v3972 = vadd.f32 %v3928, %v3971
    %3973 = vmatmul.bf16.gmra.mxu0 %v2308
    %v3974 = vpop.f32.mrf.mxu0
    %v3975 = vadd.f32 %v3931, %v3974
    %v3976 = vpop.f32.mrf.mxu0
    %v3977 = vadd.f32 %v3933, %v3976
    %3978 = vmatmul.bf16.gmra.mxu0 %v2309
    %v3979 = vpop.f32.mrf.mxu0
    %v3980 = vadd.f32 %v3936, %v3979
    %v3981 = vpop.f32.mrf.mxu0
    %v3982 = vadd.f32 %v3938, %v3981
    %3983 = vmatmul.bf16.gmra.mxu0 %v2310
    %v3984 = vpop.f32.mrf.mxu0
    %v3985 = vadd.f32 %v3941, %v3984
    %v3986 = vpop.f32.mrf.mxu0
    %v3987 = vadd.f32 %v3943, %v3986
    %3988 = vmatmul.bf16.gmra.mxu0 %v2311
    %v3989 = vpop.f32.mrf.mxu0
    %v3990 = vadd.f32 %v3946, %v3989
    %v3991 = vpop.f32.mrf.mxu0
    %v3992 = vadd.f32 %v3948, %v3991
    %3993 = vmatmul.bf16.gmra.mxu0 %v2312
    %v3994 = vpop.f32.mrf.mxu0
    %v3995 = vadd.f32 %v3951, %v3994
    %v3996 = vpop.f32.mrf.mxu0
    %v3997 = vadd.f32 %v3953, %v3996
    %3998 = vmatmul.bf16.gmra.mxu0 %v2313
    %v3999 = vpop.f32.mrf.mxu0
    %v4000 = vadd.f32 %v3956, %v3999
    %v4001 = vpop.f32.mrf.mxu0
    %v4002 = vadd.f32 %v3958, %v4001
    %4003 = vdwg.mxu0
    %4004 = vmatpush.bf16.msra.mxu0 %v1715
    %4005 = vmatpush.bf16.msra.mxu0 %v1713
    %4006 = vmatpush.bf16.msra.mxu0 %v1711
    %4007 = vmatpush.bf16.msra.mxu0 %v1709
    %4008 = vmatpush.bf16.msra.mxu0 %v1707
    %4009 = vmatpush.bf16.msra.mxu0 %v1705
    %4010 = vmatpush.bf16.msra.mxu0 %v1703
    %4011 = vmatpush.bf16.msra.mxu0 %v1701
    %4012 = vmatmul.bf16.gmra.mxu0 %v3374
    %v4013 = vpop.f32.mrf.mxu0
    %v4014 = vadd.f32 %v3970, %v4013
    %v4015 = vpop.f32.mrf.mxu0
    %v4016 = vadd.f32 %v3972, %v4015
    %4017 = vmatmul.bf16.gmra.mxu0 %v3375
    %v4018 = vpop.f32.mrf.mxu0
    %v4019 = vadd.f32 %v3975, %v4018
    %v4020 = vpop.f32.mrf.mxu0
    %v4021 = vadd.f32 %v3977, %v4020
    %4022 = vmatmul.bf16.gmra.mxu0 %v3376
    %v4023 = vpop.f32.mrf.mxu0
    %v4024 = vadd.f32 %v3980, %v4023
    %v4025 = vpop.f32.mrf.mxu0
    %v4026 = vadd.f32 %v3982, %v4025
    %4027 = vmatmul.bf16.gmra.mxu0 %v3377
    %v4028 = vpop.f32.mrf.mxu0
    %v4029 = vadd.f32 %v3985, %v4028
    %v4030 = vpop.f32.mrf.mxu0
    %v4031 = vadd.f32 %v3987, %v4030
    %4032 = vmatmul.bf16.gmra.mxu0 %v3378
    %v4033 = vpop.f32.mrf.mxu0
    %v4034 = vadd.f32 %v3990, %v4033
    %v4035 = vpop.f32.mrf.mxu0
    %v4036 = vadd.f32 %v3992, %v4035
    %4037 = vmatmul.bf16.gmra.mxu0 %v3379
    %v4038 = vpop.f32.mrf.mxu0
    %v4039 = vadd.f32 %v3995, %v4038
    %v4040 = vpop.f32.mrf.mxu0
    %v4041 = vadd.f32 %v3997, %v4040
    %4042 = vmatmul.bf16.gmra.mxu0 %v3380
    %v4043 = vpop.f32.mrf.mxu0
    %v4044 = vadd.f32 %v4000, %v4043
    %v4045 = vpop.f32.mrf.mxu0
    %v4046 = vadd.f32 %v4002, %v4045
    %4047 = vdwg.mxu0
    %4048 = vmatpush.bf16.msra.mxu0 %v1652
    %4049 = vmatpush.bf16.msra.mxu0 %v1650
    %4050 = vmatpush.bf16.msra.mxu0 %v1648
    %4051 = vmatpush.bf16.msra.mxu0 %v1646
    %4052 = vmatpush.bf16.msra.mxu0 %v1644
    %4053 = vmatpush.bf16.msra.mxu0 %v1642
    %4054 = vmatpush.bf16.msra.mxu0 %v1640
    %4055 = vmatpush.bf16.msra.mxu0 %v1638
    %4056 = vmatmul.bf16.gmra.mxu0 %v298
    %v4057 = vpop.f32.mrf.mxu0
    %v4058 = vadd.f32 0.0, %v4057
    %v4059 = vpop.f32.mrf.mxu0
    %v4060 = vadd.f32 0.0, %v4059
    %4061 = vmatmul.bf16.gmra.mxu0 %v299
    %v4062 = vpop.f32.mrf.mxu0
    %v4063 = vadd.f32 0.0, %v4062
    %v4064 = vpop.f32.mrf.mxu0
    %v4065 = vadd.f32 0.0, %v4064
    %4066 = vmatmul.bf16.gmra.mxu0 %v300
    %v4067 = vpop.f32.mrf.mxu0
    %v4068 = vadd.f32 0.0, %v4067
    %v4069 = vpop.f32.mrf.mxu0
    %v4070 = vadd.f32 0.0, %v4069
    %4071 = vmatmul.bf16.gmra.mxu0 %v301
    %v4072 = vpop.f32.mrf.mxu0
    %v4073 = vadd.f32 0.0, %v4072
    %v4074 = vpop.f32.mrf.mxu0
    %v4075 = vadd.f32 0.0, %v4074
    %4076 = vmatmul.bf16.gmra.mxu0 %v302
    %v4077 = vpop.f32.mrf.mxu0
    %v4078 = vadd.f32 0.0, %v4077
    %v4079 = vpop.f32.mrf.mxu0
    %v4080 = vadd.f32 0.0, %v4079
    %4081 = vmatmul.bf16.gmra.mxu0 %v303
    %v4082 = vpop.f32.mrf.mxu0
    %v4083 = vadd.f32 0.0, %v4082
    %v4084 = vpop.f32.mrf.mxu0
    %v4085 = vadd.f32 0.0, %v4084
    %4086 = vmatmul.bf16.gmra.mxu0 %v304
    %v4087 = vpop.f32.mrf.mxu0
    %v4088 = vadd.f32 0.0, %v4087
    %v4089 = vpop.f32.mrf.mxu0
    %v4090 = vadd.f32 0.0, %v4089
    %4091 = vdwg.mxu0
    %4092 = vmatpush.bf16.msra.mxu0 %v1668
    %4093 = vmatpush.bf16.msra.mxu0 %v1666
    %4094 = vmatpush.bf16.msra.mxu0 %v1664
    %4095 = vmatpush.bf16.msra.mxu0 %v1662
    %4096 = vmatpush.bf16.msra.mxu0 %v1660
    %4097 = vmatpush.bf16.msra.mxu0 %v1658
    %4098 = vmatpush.bf16.msra.mxu0 %v1656
    %4099 = vmatpush.bf16.msra.mxu0 %v1654
    %4100 = vmatmul.bf16.gmra.mxu0 %v340
    %v4101 = vpop.f32.mrf.mxu0
    %v4102 = vadd.f32 %v4058, %v4101
    %v4103 = vpop.f32.mrf.mxu0
    %v4104 = vadd.f32 %v4060, %v4103
    %4105 = vmatmul.bf16.gmra.mxu0 %v341
    %v4106 = vpop.f32.mrf.mxu0
    %v4107 = vadd.f32 %v4063, %v4106
    %v4108 = vpop.f32.mrf.mxu0
    %v4109 = vadd.f32 %v4065, %v4108
    %4110 = vmatmul.bf16.gmra.mxu0 %v342
    %v4111 = vpop.f32.mrf.mxu0
    %v4112 = vadd.f32 %v4068, %v4111
    %v4113 = vpop.f32.mrf.mxu0
    %v4114 = vadd.f32 %v4070, %v4113
    %4115 = vmatmul.bf16.gmra.mxu0 %v343
    %v4116 = vpop.f32.mrf.mxu0
    %v4117 = vadd.f32 %v4073, %v4116
    %v4118 = vpop.f32.mrf.mxu0
    %v4119 = vadd.f32 %v4075, %v4118
    %4120 = vmatmul.bf16.gmra.mxu0 %v344
    %v4121 = vpop.f32.mrf.mxu0
    %v4122 = vadd.f32 %v4078, %v4121
    %v4123 = vpop.f32.mrf.mxu0
    %v4124 = vadd.f32 %v4080, %v4123
    %4125 = vmatmul.bf16.gmra.mxu0 %v345
    %v4126 = vpop.f32.mrf.mxu0
    %v4127 = vadd.f32 %v4083, %v4126
    %v4128 = vpop.f32.mrf.mxu0
    %v4129 = vadd.f32 %v4085, %v4128
    %4130 = vmatmul.bf16.gmra.mxu0 %v346
    %v4131 = vpop.f32.mrf.mxu0
    %v4132 = vadd.f32 %v4088, %v4131
    %v4133 = vpop.f32.mrf.mxu0
    %v4134 = vadd.f32 %v4090, %v4133
    %4135 = vdwg.mxu0
    %4136 = vmatpush.bf16.msra.mxu0 %v1684
    %4137 = vmatpush.bf16.msra.mxu0 %v1682
    %4138 = vmatpush.bf16.msra.mxu0 %v1680
    %4139 = vmatpush.bf16.msra.mxu0 %v1678
    %4140 = vmatpush.bf16.msra.mxu0 %v1676
    %4141 = vmatpush.bf16.msra.mxu0 %v1674
    %4142 = vmatpush.bf16.msra.mxu0 %v1672
    %4143 = vmatpush.bf16.msra.mxu0 %v1670
    %4144 = vmatmul.bf16.gmra.mxu0 %v382
    %v4145 = vpop.f32.mrf.mxu0
    %v4146 = vadd.f32 %v4102, %v4145
    %v4147 = vpop.f32.mrf.mxu0
    %v4148 = vadd.f32 %v4104, %v4147
    %4149 = vmatmul.bf16.gmra.mxu0 %v383
    %v4150 = vpop.f32.mrf.mxu0
    %v4151 = vadd.f32 %v4107, %v4150
    %v4152 = vpop.f32.mrf.mxu0
    %v4153 = vadd.f32 %v4109, %v4152
    %4154 = vmatmul.bf16.gmra.mxu0 %v384
    %v4155 = vpop.f32.mrf.mxu0
    %v4156 = vadd.f32 %v4112, %v4155
    %v4157 = vpop.f32.mrf.mxu0
    %v4158 = vadd.f32 %v4114, %v4157
    %4159 = vmatmul.bf16.gmra.mxu0 %v385
    %v4160 = vpop.f32.mrf.mxu0
    %v4161 = vadd.f32 %v4117, %v4160
    %v4162 = vpop.f32.mrf.mxu0
    %v4163 = vadd.f32 %v4119, %v4162
    %4164 = vmatmul.bf16.gmra.mxu0 %v386
    %v4165 = vpop.f32.mrf.mxu0
    %v4166 = vadd.f32 %v4122, %v4165
    %v4167 = vpop.f32.mrf.mxu0
    %v4168 = vadd.f32 %v4124, %v4167
    %4169 = vmatmul.bf16.gmra.mxu0 %v387
    %v4170 = vpop.f32.mrf.mxu0
    %v4171 = vadd.f32 %v4127, %v4170
    %v4172 = vpop.f32.mrf.mxu0
    %v4173 = vadd.f32 %v4129, %v4172
    %4174 = vmatmul.bf16.gmra.mxu0 %v388
    %v4175 = vpop.f32.mrf.mxu0
    %v4176 = vadd.f32 %v4132, %v4175
    %v4177 = vpop.f32.mrf.mxu0
    %v4178 = vadd.f32 %v4134, %v4177
    %4179 = vdwg.mxu0
    %4180 = vmatpush.bf16.msra.mxu0 %v1700
    %4181 = vmatpush.bf16.msra.mxu0 %v1698
    %4182 = vmatpush.bf16.msra.mxu0 %v1696
    %4183 = vmatpush.bf16.msra.mxu0 %v1694
    %4184 = vmatpush.bf16.msra.mxu0 %v1692
    %4185 = vmatpush.bf16.msra.mxu0 %v1690
    %4186 = vmatpush.bf16.msra.mxu0 %v1688
    %4187 = vmatpush.bf16.msra.mxu0 %v1686
    %4188 = vmatmul.bf16.gmra.mxu0 %v2307
    %v4189 = vpop.f32.mrf.mxu0
    %v4190 = vadd.f32 %v4146, %v4189
    %v4191 = vpop.f32.mrf.mxu0
    %v4192 = vadd.f32 %v4148, %v4191
    %4193 = vmatmul.bf16.gmra.mxu0 %v2308
    %v4194 = vpop.f32.mrf.mxu0
    %v4195 = vadd.f32 %v4151, %v4194
    %v4196 = vpop.f32.mrf.mxu0
    %v4197 = vadd.f32 %v4153, %v4196
    %4198 = vmatmul.bf16.gmra.mxu0 %v2309
    %v4199 = vpop.f32.mrf.mxu0
    %v4200 = vadd.f32 %v4156, %v4199
    %v4201 = vpop.f32.mrf.mxu0
    %v4202 = vadd.f32 %v4158, %v4201
    %4203 = vmatmul.bf16.gmra.mxu0 %v2310
    %v4204 = vpop.f32.mrf.mxu0
    %v4205 = vadd.f32 %v4161, %v4204
    %v4206 = vpop.f32.mrf.mxu0
    %v4207 = vadd.f32 %v4163, %v4206
    %4208 = vmatmul.bf16.gmra.mxu0 %v2311
    %v4209 = vpop.f32.mrf.mxu0
    %v4210 = vadd.f32 %v4166, %v4209
    %v4211 = vpop.f32.mrf.mxu0
    %v4212 = vadd.f32 %v4168, %v4211
    %4213 = vmatmul.bf16.gmra.mxu0 %v2312
    %v4214 = vpop.f32.mrf.mxu0
    %v4215 = vadd.f32 %v4171, %v4214
    %v4216 = vpop.f32.mrf.mxu0
    %v4217 = vadd.f32 %v4173, %v4216
    %4218 = vmatmul.bf16.gmra.mxu0 %v2313
    %v4219 = vpop.f32.mrf.mxu0
    %v4220 = vadd.f32 %v4176, %v4219
    %v4221 = vpop.f32.mrf.mxu0
    %v4222 = vadd.f32 %v4178, %v4221
    %4223 = vdwg.mxu0
    %4224 = vmatpush.bf16.msra.mxu0 %v1716
    %4225 = vmatpush.bf16.msra.mxu0 %v1714
    %4226 = vmatpush.bf16.msra.mxu0 %v1712
    %4227 = vmatpush.bf16.msra.mxu0 %v1710
    %4228 = vmatpush.bf16.msra.mxu0 %v1708
    %4229 = vmatpush.bf16.msra.mxu0 %v1706
    %4230 = vmatpush.bf16.msra.mxu0 %v1704
    %4231 = vmatpush.bf16.msra.mxu0 %v1702
    %4232 = vmatmul.bf16.gmra.mxu0 %v3374
    %v4233 = vpop.f32.mrf.mxu0
    %v4234 = vadd.f32 %v4190, %v4233
    %v4235 = vpop.f32.mrf.mxu0
    %v4236 = vadd.f32 %v4192, %v4235
    %4237 = vmatmul.bf16.gmra.mxu0 %v3375
    %v4238 = vpop.f32.mrf.mxu0
    %v4239 = vadd.f32 %v4195, %v4238
    %v4240 = vpop.f32.mrf.mxu0
    %v4241 = vadd.f32 %v4197, %v4240
    %4242 = vmatmul.bf16.gmra.mxu0 %v3376
    %v4243 = vpop.f32.mrf.mxu0
    %v4244 = vadd.f32 %v4200, %v4243
    %v4245 = vpop.f32.mrf.mxu0
    %v4246 = vadd.f32 %v4202, %v4245
    %4247 = vmatmul.bf16.gmra.mxu0 %v3377
    %v4248 = vpop.f32.mrf.mxu0
    %v4249 = vadd.f32 %v4205, %v4248
    %v4250 = vpop.f32.mrf.mxu0
    %v4251 = vadd.f32 %v4207, %v4250
    %4252 = vmatmul.bf16.gmra.mxu0 %v3378
    %v4253 = vpop.f32.mrf.mxu0
    %v4254 = vadd.f32 %v4210, %v4253
    %v4255 = vpop.f32.mrf.mxu0
    %v4256 = vadd.f32 %v4212, %v4255
    %4257 = vmatmul.bf16.gmra.mxu0 %v3379
    %v4258 = vpop.f32.mrf.mxu0
    %v4259 = vadd.f32 %v4215, %v4258
    %v4260 = vpop.f32.mrf.mxu0
    %v4261 = vadd.f32 %v4217, %v4260
    %4262 = vmatmul.bf16.gmra.mxu0 %v3380
    %v4263 = vpop.f32.mrf.mxu0
    %v4264 = vadd.f32 %v4220, %v4263
    %v4265 = vpop.f32.mrf.mxu0
    %v4266 = vadd.f32 %v4222, %v4265
    %4267 = vdwg.mxu0
    %v4268 = vmax.f32 %v3574, %v4014
    %v4269 = vmax.f32 %v3794, %v4234
    %v4270 = vmax.f32 %v3576, %v4016
    %v4271 = vmax.f32 %v3796, %v4236
    %v4272 = vmax.f32 %v3579, %v4019
    %v4273 = vmax.f32 %v3799, %v4239
    %v4274 = vmax.f32 %v3581, %v4021
    %v4275 = vmax.f32 %v3801, %v4241
    %v4276 = vmax.f32 %v3584, %v4024
    %v4277 = vmax.f32 %v3804, %v4244
    %v4278 = vmax.f32 %v3586, %v4026
    %v4279 = vmax.f32 %v3806, %v4246
    %v4280 = vmax.f32 %v3589, %v4029
    %v4281 = vmax.f32 %v3809, %v4249
    %v4282 = vmax.f32 %v3591, %v4031
    %v4283 = vmax.f32 %v3811, %v4251
    %v4284 = vmax.f32 %v3594, %v4034
    %v4285 = vmax.f32 %v3814, %v4254
    %v4286 = vmax.f32 %v3596, %v4036
    %v4287 = vmax.f32 %v3816, %v4256
    %v4288 = vmax.f32 %v3599, %v4039
    %v4289 = vmax.f32 %v3819, %v4259
    %v4290 = vmax.f32 %v3601, %v4041
    %v4291 = vmax.f32 %v3821, %v4261
    %v4292 = vmax.f32 %v3604, %v4044
    %v4293 = vmax.f32 %v3824, %v4264
    %v4294 = vmax.f32 %v3606, %v4046
    %v4295 = vmax.f32 %v3826, %v4266
    %v4296 = vld [vmem:[%s171 + $0xc] sm:$0xf]
    %v4297 = vld [vmem:[%s171 + $0x1c] sm:$0xf]
    %v4298 = vld [vmem:[%s171 + $0x2c] sm:$0xf]
    %v4299 = vld [vmem:[%s171 + $0x3c] sm:$0xf]
    %v4300 = vld [vmem:[%s171 + $0x4c] sm:$0xf]
    %v4301 = vld [vmem:[%s171 + $0x5c] sm:$0xf]
    %v4302 = vld [vmem:[%s171 + $0x6c] sm:$0xf]
    %v4303 = vld [vmem:[%s171 + $0x7c] sm:$0xf]
    %v4304 = vld [vmem:[%s171 + $0x8c] sm:$0xf]
    %v4305 = vld [vmem:[%s171 + $0x9c] sm:$0xf]
    %v4306 = vld [vmem:[%s171 + $0xac] sm:$0xf]
    %v4307 = vld [vmem:[%s171 + $0xbc] sm:$0xf]
    %v4308 = vld [vmem:[%s171 + $0xcc] sm:$0xf]
    %v4309 = vld [vmem:[%s171 + $0xdc] sm:$0xf]
    %v4324 = vunpack.c.l.b16 %v4296
    %v4325 = vunpack.c.l.b16 %v4297
    %v4326 = vunpack.c.l.b16 %v4298
    %v4327 = vunpack.c.l.b16 %v4299
    %v4328 = vunpack.c.l.b16 %v4300
    %v4329 = vunpack.c.l.b16 %v4301
    %v4330 = vunpack.c.l.b16 %v4302
    %v4331 = vunpack.c.l.b16 %v4303
    %v4332 = vunpack.c.l.b16 %v4304
    %v4333 = vunpack.c.l.b16 %v4305
    %v4334 = vunpack.c.l.b16 %v4306
    %v4335 = vunpack.c.l.b16 %v4307
    %v4336 = vunpack.c.l.b16 %v4308
    %v4337 = vunpack.c.l.b16 %v4309
    %v4338 = vpack.c.b16 %v4325, %v4324
    %v4339 = vpack.c.b16 %v4327, %v4326
    %v4340 = vpack.c.b16 %v4329, %v4328
    %v4341 = vpack.c.b16 %v4331, %v4330
    %v4342 = vpack.c.b16 %v4333, %v4332
    %v4343 = vpack.c.b16 %v4335, %v4334
    %v4344 = vpack.c.b16 %v4337, %v4336
    %4352 = vmatpush.bf16.msra.mxu0 %v730
    %4353 = vmatpush.bf16.msra.mxu0 %v728
    %4354 = vmatpush.bf16.msra.mxu0 %v726
    %4355 = vmatpush.bf16.msra.mxu0 %v724
    %4356 = vmatpush.bf16.msra.mxu0 %v722
    %4357 = vmatpush.bf16.msra.mxu0 %v720
    %4358 = vmatpush.bf16.msra.mxu0 %v718
    %4359 = vmatpush.bf16.msra.mxu0 %v716
    %4360 = vmatmul.bf16.gmra.mxu0 %v340
    %v4361 = vpop.f32.mrf.mxu0
    %v4362 = vadd.f32 0.0, %v4361
    %v4363 = vpop.f32.mrf.mxu0
    %v4364 = vadd.f32 0.0, %v4363
    %4365 = vmatmul.bf16.gmra.mxu0 %v341
    %v4366 = vpop.f32.mrf.mxu0
    %v4367 = vadd.f32 0.0, %v4366
    %v4368 = vpop.f32.mrf.mxu0
    %v4369 = vadd.f32 0.0, %v4368
    %4370 = vmatmul.bf16.gmra.mxu0 %v342
    %v4371 = vpop.f32.mrf.mxu0
    %v4372 = vadd.f32 0.0, %v4371
    %v4373 = vpop.f32.mrf.mxu0
    %v4374 = vadd.f32 0.0, %v4373
    %4375 = vmatmul.bf16.gmra.mxu0 %v343
    %v4376 = vpop.f32.mrf.mxu0
    %v4377 = vadd.f32 0.0, %v4376
    %v4378 = vpop.f32.mrf.mxu0
    %v4379 = vadd.f32 0.0, %v4378
    %4380 = vmatmul.bf16.gmra.mxu0 %v344
    %v4381 = vpop.f32.mrf.mxu0
    %v4382 = vadd.f32 0.0, %v4381
    %v4383 = vpop.f32.mrf.mxu0
    %v4384 = vadd.f32 0.0, %v4383
    %4385 = vmatmul.bf16.gmra.mxu0 %v345
    %v4386 = vpop.f32.mrf.mxu0
    %v4387 = vadd.f32 0.0, %v4386
    %v4388 = vpop.f32.mrf.mxu0
    %v4389 = vadd.f32 0.0, %v4388
    %4390 = vmatmul.bf16.gmra.mxu0 %v346
    %v4391 = vpop.f32.mrf.mxu0
    %v4392 = vadd.f32 0.0, %v4391
    %v4393 = vpop.f32.mrf.mxu0
    %v4394 = vadd.f32 0.0, %v4393
    %4395 = vdwg.mxu0
    %4396 = vmatpush.bf16.msra.mxu0 %v746
    %4397 = vmatpush.bf16.msra.mxu0 %v744
    %4398 = vmatpush.bf16.msra.mxu0 %v742
    %4399 = vmatpush.bf16.msra.mxu0 %v740
    %4400 = vmatpush.bf16.msra.mxu0 %v738
    %4401 = vmatpush.bf16.msra.mxu0 %v736
    %4402 = vmatpush.bf16.msra.mxu0 %v734
    %4403 = vmatpush.bf16.msra.mxu0 %v732
    %4404 = vmatmul.bf16.gmra.mxu0 %v382
    %v4405 = vpop.f32.mrf.mxu0
    %v4406 = vadd.f32 %v4362, %v4405
    %v4407 = vpop.f32.mrf.mxu0
    %v4408 = vadd.f32 %v4364, %v4407
    %4409 = vmatmul.bf16.gmra.mxu0 %v383
    %v4410 = vpop.f32.mrf.mxu0
    %v4411 = vadd.f32 %v4367, %v4410
    %v4412 = vpop.f32.mrf.mxu0
    %v4413 = vadd.f32 %v4369, %v4412
    %4414 = vmatmul.bf16.gmra.mxu0 %v384
    %v4415 = vpop.f32.mrf.mxu0
    %v4416 = vadd.f32 %v4372, %v4415
    %v4417 = vpop.f32.mrf.mxu0
    %v4418 = vadd.f32 %v4374, %v4417
    %4419 = vmatmul.bf16.gmra.mxu0 %v385
    %v4420 = vpop.f32.mrf.mxu0
    %v4421 = vadd.f32 %v4377, %v4420
    %v4422 = vpop.f32.mrf.mxu0
    %v4423 = vadd.f32 %v4379, %v4422
    %4424 = vmatmul.bf16.gmra.mxu0 %v386
    %v4425 = vpop.f32.mrf.mxu0
    %v4426 = vadd.f32 %v4382, %v4425
    %v4427 = vpop.f32.mrf.mxu0
    %v4428 = vadd.f32 %v4384, %v4427
    %4429 = vmatmul.bf16.gmra.mxu0 %v387
    %v4430 = vpop.f32.mrf.mxu0
    %v4431 = vadd.f32 %v4387, %v4430
    %v4432 = vpop.f32.mrf.mxu0
    %v4433 = vadd.f32 %v4389, %v4432
    %4434 = vmatmul.bf16.gmra.mxu0 %v388
    %v4435 = vpop.f32.mrf.mxu0
    %v4436 = vadd.f32 %v4392, %v4435
    %v4437 = vpop.f32.mrf.mxu0
    %v4438 = vadd.f32 %v4394, %v4437
    %4439 = vdwg.mxu0
    %4440 = vmatpush.bf16.msra.mxu0 %v762
    %4441 = vmatpush.bf16.msra.mxu0 %v760
    %4442 = vmatpush.bf16.msra.mxu0 %v758
    %4443 = vmatpush.bf16.msra.mxu0 %v756
    %4444 = vmatpush.bf16.msra.mxu0 %v754
    %4445 = vmatpush.bf16.msra.mxu0 %v752
    %4446 = vmatpush.bf16.msra.mxu0 %v750
    %4447 = vmatpush.bf16.msra.mxu0 %v748
    %4448 = vmatmul.bf16.gmra.mxu0 %v2307
    %v4449 = vpop.f32.mrf.mxu0
    %v4450 = vadd.f32 %v4406, %v4449
    %v4451 = vpop.f32.mrf.mxu0
    %v4452 = vadd.f32 %v4408, %v4451
    %4453 = vmatmul.bf16.gmra.mxu0 %v2308
    %v4454 = vpop.f32.mrf.mxu0
    %v4455 = vadd.f32 %v4411, %v4454
    %v4456 = vpop.f32.mrf.mxu0
    %v4457 = vadd.f32 %v4413, %v4456
    %4458 = vmatmul.bf16.gmra.mxu0 %v2309
    %v4459 = vpop.f32.mrf.mxu0
    %v4460 = vadd.f32 %v4416, %v4459
    %v4461 = vpop.f32.mrf.mxu0
    %v4462 = vadd.f32 %v4418, %v4461
    %4463 = vmatmul.bf16.gmra.mxu0 %v2310
    %v4464 = vpop.f32.mrf.mxu0
    %v4465 = vadd.f32 %v4421, %v4464
    %v4466 = vpop.f32.mrf.mxu0
    %v4467 = vadd.f32 %v4423, %v4466
    %4468 = vmatmul.bf16.gmra.mxu0 %v2311
    %v4469 = vpop.f32.mrf.mxu0
    %v4470 = vadd.f32 %v4426, %v4469
    %v4471 = vpop.f32.mrf.mxu0
    %v4472 = vadd.f32 %v4428, %v4471
    %4473 = vmatmul.bf16.gmra.mxu0 %v2312
    %v4474 = vpop.f32.mrf.mxu0
    %v4475 = vadd.f32 %v4431, %v4474
    %v4476 = vpop.f32.mrf.mxu0
    %v4477 = vadd.f32 %v4433, %v4476
    %4478 = vmatmul.bf16.gmra.mxu0 %v2313
    %v4479 = vpop.f32.mrf.mxu0
    %v4480 = vadd.f32 %v4436, %v4479
    %v4481 = vpop.f32.mrf.mxu0
    %v4482 = vadd.f32 %v4438, %v4481
    %4483 = vdwg.mxu0
    %4484 = vmatpush.bf16.msra.mxu0 %v778
    %4485 = vmatpush.bf16.msra.mxu0 %v776
    %4486 = vmatpush.bf16.msra.mxu0 %v774
    %4487 = vmatpush.bf16.msra.mxu0 %v772
    %4488 = vmatpush.bf16.msra.mxu0 %v770
    %4489 = vmatpush.bf16.msra.mxu0 %v768
    %4490 = vmatpush.bf16.msra.mxu0 %v766
    %4491 = vmatpush.bf16.msra.mxu0 %v764
    %4492 = vmatmul.bf16.gmra.mxu0 %v3374
    %v4493 = vpop.f32.mrf.mxu0
    %v4494 = vadd.f32 %v4450, %v4493
    %v4495 = vpop.f32.mrf.mxu0
    %v4496 = vadd.f32 %v4452, %v4495
    %4497 = vmatmul.bf16.gmra.mxu0 %v3375
    %v4498 = vpop.f32.mrf.mxu0
    %v4499 = vadd.f32 %v4455, %v4498
    %v4500 = vpop.f32.mrf.mxu0
    %v4501 = vadd.f32 %v4457, %v4500
    %4502 = vmatmul.bf16.gmra.mxu0 %v3376
    %v4503 = vpop.f32.mrf.mxu0
    %v4504 = vadd.f32 %v4460, %v4503
    %v4505 = vpop.f32.mrf.mxu0
    %v4506 = vadd.f32 %v4462, %v4505
    %4507 = vmatmul.bf16.gmra.mxu0 %v3377
    %v4508 = vpop.f32.mrf.mxu0
    %v4509 = vadd.f32 %v4465, %v4508
    %v4510 = vpop.f32.mrf.mxu0
    %v4511 = vadd.f32 %v4467, %v4510
    %4512 = vmatmul.bf16.gmra.mxu0 %v3378
    %v4513 = vpop.f32.mrf.mxu0
    %v4514 = vadd.f32 %v4470, %v4513
    %v4515 = vpop.f32.mrf.mxu0
    %v4516 = vadd.f32 %v4472, %v4515
    %4517 = vmatmul.bf16.gmra.mxu0 %v3379
    %v4518 = vpop.f32.mrf.mxu0
    %v4519 = vadd.f32 %v4475, %v4518
    %v4520 = vpop.f32.mrf.mxu0
    %v4521 = vadd.f32 %v4477, %v4520
    %4522 = vmatmul.bf16.gmra.mxu0 %v3380
    %v4523 = vpop.f32.mrf.mxu0
    %v4524 = vadd.f32 %v4480, %v4523
    %v4525 = vpop.f32.mrf.mxu0
    %v4526 = vadd.f32 %v4482, %v4525
    %4527 = vdwg.mxu0
    %4528 = vmatpush.bf16.msra.mxu0 %v794
    %4529 = vmatpush.bf16.msra.mxu0 %v792
    %4530 = vmatpush.bf16.msra.mxu0 %v790
    %4531 = vmatpush.bf16.msra.mxu0 %v788
    %4532 = vmatpush.bf16.msra.mxu0 %v786
    %4533 = vmatpush.bf16.msra.mxu0 %v784
    %4534 = vmatpush.bf16.msra.mxu0 %v782
    %4535 = vmatpush.bf16.msra.mxu0 %v780
    %4536 = vmatmul.bf16.gmra.mxu0 %v4338
    %v4537 = vpop.f32.mrf.mxu0
    %v4538 = vadd.f32 %v4494, %v4537
    %v4539 = vpop.f32.mrf.mxu0
    %v4540 = vadd.f32 %v4496, %v4539
    %4541 = vmatmul.bf16.gmra.mxu0 %v4339
    %v4542 = vpop.f32.mrf.mxu0
    %v4543 = vadd.f32 %v4499, %v4542
    %v4544 = vpop.f32.mrf.mxu0
    %v4545 = vadd.f32 %v4501, %v4544
    %4546 = vmatmul.bf16.gmra.mxu0 %v4340
    %v4547 = vpop.f32.mrf.mxu0
    %v4548 = vadd.f32 %v4504, %v4547
    %v4549 = vpop.f32.mrf.mxu0
    %v4550 = vadd.f32 %v4506, %v4549
    %4551 = vmatmul.bf16.gmra.mxu0 %v4341
    %v4552 = vpop.f32.mrf.mxu0
    %v4553 = vadd.f32 %v4509, %v4552
    %v4554 = vpop.f32.mrf.mxu0
    %v4555 = vadd.f32 %v4511, %v4554
    %4556 = vmatmul.bf16.gmra.mxu0 %v4342
    %v4557 = vpop.f32.mrf.mxu0
    %v4558 = vadd.f32 %v4514, %v4557
    %v4559 = vpop.f32.mrf.mxu0
    %v4560 = vadd.f32 %v4516, %v4559
    %4561 = vmatmul.bf16.gmra.mxu0 %v4343
    %v4562 = vpop.f32.mrf.mxu0
    %v4563 = vadd.f32 %v4519, %v4562
    %v4564 = vpop.f32.mrf.mxu0
    %v4565 = vadd.f32 %v4521, %v4564
    %4566 = vmatmul.bf16.gmra.mxu0 %v4344
    %v4567 = vpop.f32.mrf.mxu0
    %v4568 = vadd.f32 %v4524, %v4567
    %v4569 = vpop.f32.mrf.mxu0
    %v4570 = vadd.f32 %v4526, %v4569
    %4571 = vdwg.mxu0
    %4572 = vmatpush.bf16.msra.mxu0 %v731
    %4573 = vmatpush.bf16.msra.mxu0 %v729
    %4574 = vmatpush.bf16.msra.mxu0 %v727
    %4575 = vmatpush.bf16.msra.mxu0 %v725
    %4576 = vmatpush.bf16.msra.mxu0 %v723
    %4577 = vmatpush.bf16.msra.mxu0 %v721
    %4578 = vmatpush.bf16.msra.mxu0 %v719
    %4579 = vmatpush.bf16.msra.mxu0 %v717
    %4580 = vmatmul.bf16.gmra.mxu0 %v340
    %v4581 = vpop.f32.mrf.mxu0
    %v4582 = vadd.f32 0.0, %v4581
    %v4583 = vpop.f32.mrf.mxu0
    %v4584 = vadd.f32 0.0, %v4583
    %4585 = vmatmul.bf16.gmra.mxu0 %v341
    %v4586 = vpop.f32.mrf.mxu0
    %v4587 = vadd.f32 0.0, %v4586
    %v4588 = vpop.f32.mrf.mxu0
    %v4589 = vadd.f32 0.0, %v4588
    %4590 = vmatmul.bf16.gmra.mxu0 %v342
    %v4591 = vpop.f32.mrf.mxu0
    %v4592 = vadd.f32 0.0, %v4591
    %v4593 = vpop.f32.mrf.mxu0
    %v4594 = vadd.f32 0.0, %v4593
    %4595 = vmatmul.bf16.gmra.mxu0 %v343
    %v4596 = vpop.f32.mrf.mxu0
    %v4597 = vadd.f32 0.0, %v4596
    %v4598 = vpop.f32.mrf.mxu0
    %v4599 = vadd.f32 0.0, %v4598
    %4600 = vmatmul.bf16.gmra.mxu0 %v344
    %v4601 = vpop.f32.mrf.mxu0
    %v4602 = vadd.f32 0.0, %v4601
    %v4603 = vpop.f32.mrf.mxu0
    %v4604 = vadd.f32 0.0, %v4603
    %4605 = vmatmul.bf16.gmra.mxu0 %v345
    %v4606 = vpop.f32.mrf.mxu0
    %v4607 = vadd.f32 0.0, %v4606
    %v4608 = vpop.f32.mrf.mxu0
    %v4609 = vadd.f32 0.0, %v4608
    %4610 = vmatmul.bf16.gmra.mxu0 %v346
    %v4611 = vpop.f32.mrf.mxu0
    %v4612 = vadd.f32 0.0, %v4611
    %v4613 = vpop.f32.mrf.mxu0
    %v4614 = vadd.f32 0.0, %v4613
    %4615 = vdwg.mxu0
    %4616 = vmatpush.bf16.msra.mxu0 %v747
    %4617 = vmatpush.bf16.msra.mxu0 %v745
    %4618 = vmatpush.bf16.msra.mxu0 %v743
    %4619 = vmatpush.bf16.msra.mxu0 %v741
    %4620 = vmatpush.bf16.msra.mxu0 %v739
    %4621 = vmatpush.bf16.msra.mxu0 %v737
    %4622 = vmatpush.bf16.msra.mxu0 %v735
    %4623 = vmatpush.bf16.msra.mxu0 %v733
    %4624 = vmatmul.bf16.gmra.mxu0 %v382
    %v4625 = vpop.f32.mrf.mxu0
    %v4626 = vadd.f32 %v4582, %v4625
    %v4627 = vpop.f32.mrf.mxu0
    %v4628 = vadd.f32 %v4584, %v4627
    %4629 = vmatmul.bf16.gmra.mxu0 %v383
    %v4630 = vpop.f32.mrf.mxu0
    %v4631 = vadd.f32 %v4587, %v4630
    %v4632 = vpop.f32.mrf.mxu0
    %v4633 = vadd.f32 %v4589, %v4632
    %4634 = vmatmul.bf16.gmra.mxu0 %v384
    %v4635 = vpop.f32.mrf.mxu0
    %v4636 = vadd.f32 %v4592, %v4635
    %v4637 = vpop.f32.mrf.mxu0
    %v4638 = vadd.f32 %v4594, %v4637
    %4639 = vmatmul.bf16.gmra.mxu0 %v385
    %v4640 = vpop.f32.mrf.mxu0
    %v4641 = vadd.f32 %v4597, %v4640
    %v4642 = vpop.f32.mrf.mxu0
    %v4643 = vadd.f32 %v4599, %v4642
    %4644 = vmatmul.bf16.gmra.mxu0 %v386
    %v4645 = vpop.f32.mrf.mxu0
    %v4646 = vadd.f32 %v4602, %v4645
    %v4647 = vpop.f32.mrf.mxu0
    %v4648 = vadd.f32 %v4604, %v4647
    %4649 = vmatmul.bf16.gmra.mxu0 %v387
    %v4650 = vpop.f32.mrf.mxu0
    %v4651 = vadd.f32 %v4607, %v4650
    %v4652 = vpop.f32.mrf.mxu0
    %v4653 = vadd.f32 %v4609, %v4652
    %4654 = vmatmul.bf16.gmra.mxu0 %v388
    %v4655 = vpop.f32.mrf.mxu0
    %v4656 = vadd.f32 %v4612, %v4655
    %v4657 = vpop.f32.mrf.mxu0
    %v4658 = vadd.f32 %v4614, %v4657
    %4659 = vdwg.mxu0
    %4660 = vmatpush.bf16.msra.mxu0 %v763
    %4661 = vmatpush.bf16.msra.mxu0 %v761
    %4662 = vmatpush.bf16.msra.mxu0 %v759
    %4663 = vmatpush.bf16.msra.mxu0 %v757
    %4664 = vmatpush.bf16.msra.mxu0 %v755
    %4665 = vmatpush.bf16.msra.mxu0 %v753
    %4666 = vmatpush.bf16.msra.mxu0 %v751
    %4667 = vmatpush.bf16.msra.mxu0 %v749
    %4668 = vmatmul.bf16.gmra.mxu0 %v2307
    %v4669 = vpop.f32.mrf.mxu0
    %v4670 = vadd.f32 %v4626, %v4669
    %v4671 = vpop.f32.mrf.mxu0
    %v4672 = vadd.f32 %v4628, %v4671
    %4673 = vmatmul.bf16.gmra.mxu0 %v2308
    %v4674 = vpop.f32.mrf.mxu0
    %v4675 = vadd.f32 %v4631, %v4674
    %v4676 = vpop.f32.mrf.mxu0
    %v4677 = vadd.f32 %v4633, %v4676
    %4678 = vmatmul.bf16.gmra.mxu0 %v2309
    %v4679 = vpop.f32.mrf.mxu0
    %v4680 = vadd.f32 %v4636, %v4679
    %v4681 = vpop.f32.mrf.mxu0
    %v4682 = vadd.f32 %v4638, %v4681
    %4683 = vmatmul.bf16.gmra.mxu0 %v2310
    %v4684 = vpop.f32.mrf.mxu0
    %v4685 = vadd.f32 %v4641, %v4684
    %v4686 = vpop.f32.mrf.mxu0
    %v4687 = vadd.f32 %v4643, %v4686
    %4688 = vmatmul.bf16.gmra.mxu0 %v2311
    %v4689 = vpop.f32.mrf.mxu0
    %v4690 = vadd.f32 %v4646, %v4689
    %v4691 = vpop.f32.mrf.mxu0
    %v4692 = vadd.f32 %v4648, %v4691
    %4693 = vmatmul.bf16.gmra.mxu0 %v2312
    %v4694 = vpop.f32.mrf.mxu0
    %v4695 = vadd.f32 %v4651, %v4694
    %v4696 = vpop.f32.mrf.mxu0
    %v4697 = vadd.f32 %v4653, %v4696
    %4698 = vmatmul.bf16.gmra.mxu0 %v2313
    %v4699 = vpop.f32.mrf.mxu0
    %v4700 = vadd.f32 %v4656, %v4699
    %v4701 = vpop.f32.mrf.mxu0
    %v4702 = vadd.f32 %v4658, %v4701
    %4703 = vdwg.mxu0
    %4704 = vmatpush.bf16.msra.mxu0 %v779
    %4705 = vmatpush.bf16.msra.mxu0 %v777
    %4706 = vmatpush.bf16.msra.mxu0 %v775
    %4707 = vmatpush.bf16.msra.mxu0 %v773
    %4708 = vmatpush.bf16.msra.mxu0 %v771
    %4709 = vmatpush.bf16.msra.mxu0 %v769
    %4710 = vmatpush.bf16.msra.mxu0 %v767
    %4711 = vmatpush.bf16.msra.mxu0 %v765
    %4712 = vmatmul.bf16.gmra.mxu0 %v3374
    %v4713 = vpop.f32.mrf.mxu0
    %v4714 = vadd.f32 %v4670, %v4713
    %v4715 = vpop.f32.mrf.mxu0
    %v4716 = vadd.f32 %v4672, %v4715
    %4717 = vmatmul.bf16.gmra.mxu0 %v3375
    %v4718 = vpop.f32.mrf.mxu0
    %v4719 = vadd.f32 %v4675, %v4718
    %v4720 = vpop.f32.mrf.mxu0
    %v4721 = vadd.f32 %v4677, %v4720
    %4722 = vmatmul.bf16.gmra.mxu0 %v3376
    %v4723 = vpop.f32.mrf.mxu0
    %v4724 = vadd.f32 %v4680, %v4723
    %v4725 = vpop.f32.mrf.mxu0
    %v4726 = vadd.f32 %v4682, %v4725
    %4727 = vmatmul.bf16.gmra.mxu0 %v3377
    %v4728 = vpop.f32.mrf.mxu0
    %v4729 = vadd.f32 %v4685, %v4728
    %v4730 = vpop.f32.mrf.mxu0
    %v4731 = vadd.f32 %v4687, %v4730
    %4732 = vmatmul.bf16.gmra.mxu0 %v3378
    %v4733 = vpop.f32.mrf.mxu0
    %v4734 = vadd.f32 %v4690, %v4733
    %v4735 = vpop.f32.mrf.mxu0
    %v4736 = vadd.f32 %v4692, %v4735
    %4737 = vmatmul.bf16.gmra.mxu0 %v3379
    %v4738 = vpop.f32.mrf.mxu0
    %v4739 = vadd.f32 %v4695, %v4738
    %v4740 = vpop.f32.mrf.mxu0
    %v4741 = vadd.f32 %v4697, %v4740
    %4742 = vmatmul.bf16.gmra.mxu0 %v3380
    %v4743 = vpop.f32.mrf.mxu0
    %v4744 = vadd.f32 %v4700, %v4743
    %v4745 = vpop.f32.mrf.mxu0
    %v4746 = vadd.f32 %v4702, %v4745
    %4747 = vdwg.mxu0
    %4748 = vmatpush.bf16.msra.mxu0 %v795
    %4749 = vmatpush.bf16.msra.mxu0 %v793
    %4750 = vmatpush.bf16.msra.mxu0 %v791
    %4751 = vmatpush.bf16.msra.mxu0 %v789
    %4752 = vmatpush.bf16.msra.mxu0 %v787
    %4753 = vmatpush.bf16.msra.mxu0 %v785
    %4754 = vmatpush.bf16.msra.mxu0 %v783
    %4755 = vmatpush.bf16.msra.mxu0 %v781
    %4756 = vmatmul.bf16.gmra.mxu0 %v4338
    %v4757 = vpop.f32.mrf.mxu0
    %v4758 = vadd.f32 %v4714, %v4757
    %v4759 = vpop.f32.mrf.mxu0
    %v4760 = vadd.f32 %v4716, %v4759
    %4761 = vmatmul.bf16.gmra.mxu0 %v4339
    %v4762 = vpop.f32.mrf.mxu0
    %v4763 = vadd.f32 %v4719, %v4762
    %v4764 = vpop.f32.mrf.mxu0
    %v4765 = vadd.f32 %v4721, %v4764
    %4766 = vmatmul.bf16.gmra.mxu0 %v4340
    %v4767 = vpop.f32.mrf.mxu0
    %v4768 = vadd.f32 %v4724, %v4767
    %v4769 = vpop.f32.mrf.mxu0
    %v4770 = vadd.f32 %v4726, %v4769
    %4771 = vmatmul.bf16.gmra.mxu0 %v4341
    %v4772 = vpop.f32.mrf.mxu0
    %v4773 = vadd.f32 %v4729, %v4772
    %v4774 = vpop.f32.mrf.mxu0
    %v4775 = vadd.f32 %v4731, %v4774
    %4776 = vmatmul.bf16.gmra.mxu0 %v4342
    %v4777 = vpop.f32.mrf.mxu0
    %v4778 = vadd.f32 %v4734, %v4777
    %v4779 = vpop.f32.mrf.mxu0
    %v4780 = vadd.f32 %v4736, %v4779
    %4781 = vmatmul.bf16.gmra.mxu0 %v4343
    %v4782 = vpop.f32.mrf.mxu0
    %v4783 = vadd.f32 %v4739, %v4782
    %v4784 = vpop.f32.mrf.mxu0
    %v4785 = vadd.f32 %v4741, %v4784
    %4786 = vmatmul.bf16.gmra.mxu0 %v4344
    %v4787 = vpop.f32.mrf.mxu0
    %v4788 = vadd.f32 %v4744, %v4787
    %v4789 = vpop.f32.mrf.mxu0
    %v4790 = vadd.f32 %v4746, %v4789
    %4791 = vdwg.mxu0
    %v4792 = vmax.f32 %v4268, %v4538
    %v4793 = vmax.f32 %v4269, %v4758
    %v4794 = vmax.f32 %v4270, %v4540
    %v4795 = vmax.f32 %v4271, %v4760
    %v4796 = vmax.f32 %v4272, %v4543
    %v4797 = vmax.f32 %v4273, %v4763
    %v4798 = vmax.f32 %v4274, %v4545
    %v4799 = vmax.f32 %v4275, %v4765
    %v4800 = vmax.f32 %v4276, %v4548
    %v4801 = vmax.f32 %v4277, %v4768
    %v4802 = vmax.f32 %v4278, %v4550
    %v4803 = vmax.f32 %v4279, %v4770
    %v4804 = vmax.f32 %v4280, %v4553
    %v4805 = vmax.f32 %v4281, %v4773
    %v4806 = vmax.f32 %v4282, %v4555
    %v4807 = vmax.f32 %v4283, %v4775
    %v4808 = vmax.f32 %v4284, %v4558
    %v4809 = vmax.f32 %v4285, %v4778
    %v4810 = vmax.f32 %v4286, %v4560
    %v4811 = vmax.f32 %v4287, %v4780
    %v4812 = vmax.f32 %v4288, %v4563
    %v4813 = vmax.f32 %v4289, %v4783
    %v4814 = vmax.f32 %v4290, %v4565
    %v4815 = vmax.f32 %v4291, %v4785
    %v4816 = vmax.f32 %v4292, %v4568
    %v4817 = vmax.f32 %v4293, %v4788
    %v4818 = vmax.f32 %v4294, %v4570
    %v4819 = vmax.f32 %v4295, %v4790
    %4820 = vmatpush.bf16.msra.mxu0 %v1651
    %4821 = vmatpush.bf16.msra.mxu0 %v1649
    %4822 = vmatpush.bf16.msra.mxu0 %v1647
    %4823 = vmatpush.bf16.msra.mxu0 %v1645
    %4824 = vmatpush.bf16.msra.mxu0 %v1643
    %4825 = vmatpush.bf16.msra.mxu0 %v1641
    %4826 = vmatpush.bf16.msra.mxu0 %v1639
    %4827 = vmatpush.bf16.msra.mxu0 %v1637
    %4828 = vmatmul.bf16.gmra.mxu0 %v340
    %v4829 = vpop.f32.mrf.mxu0
    %v4830 = vadd.f32 0.0, %v4829
    %v4831 = vpop.f32.mrf.mxu0
    %v4832 = vadd.f32 0.0, %v4831
    %4833 = vmatmul.bf16.gmra.mxu0 %v341
    %v4834 = vpop.f32.mrf.mxu0
    %v4835 = vadd.f32 0.0, %v4834
    %v4836 = vpop.f32.mrf.mxu0
    %v4837 = vadd.f32 0.0, %v4836
    %4838 = vmatmul.bf16.gmra.mxu0 %v342
    %v4839 = vpop.f32.mrf.mxu0
    %v4840 = vadd.f32 0.0, %v4839
    %v4841 = vpop.f32.mrf.mxu0
    %v4842 = vadd.f32 0.0, %v4841
    %4843 = vmatmul.bf16.gmra.mxu0 %v343
    %v4844 = vpop.f32.mrf.mxu0
    %v4845 = vadd.f32 0.0, %v4844
    %v4846 = vpop.f32.mrf.mxu0
    %v4847 = vadd.f32 0.0, %v4846
    %4848 = vmatmul.bf16.gmra.mxu0 %v344
    %v4849 = vpop.f32.mrf.mxu0
    %v4850 = vadd.f32 0.0, %v4849
    %v4851 = vpop.f32.mrf.mxu0
    %v4852 = vadd.f32 0.0, %v4851
    %4853 = vmatmul.bf16.gmra.mxu0 %v345
    %v4854 = vpop.f32.mrf.mxu0
    %v4855 = vadd.f32 0.0, %v4854
    %v4856 = vpop.f32.mrf.mxu0
    %v4857 = vadd.f32 0.0, %v4856
    %4858 = vmatmul.bf16.gmra.mxu0 %v346
    %v4859 = vpop.f32.mrf.mxu0
    %v4860 = vadd.f32 0.0, %v4859
    %v4861 = vpop.f32.mrf.mxu0
    %v4862 = vadd.f32 0.0, %v4861
    %4863 = vdwg.mxu0
    %4864 = vmatpush.bf16.msra.mxu0 %v1667
    %4865 = vmatpush.bf16.msra.mxu0 %v1665
    %4866 = vmatpush.bf16.msra.mxu0 %v1663
    %4867 = vmatpush.bf16.msra.mxu0 %v1661
    %4868 = vmatpush.bf16.msra.mxu0 %v1659
    %4869 = vmatpush.bf16.msra.mxu0 %v1657
    %4870 = vmatpush.bf16.msra.mxu0 %v1655
    %4871 = vmatpush.bf16.msra.mxu0 %v1653
    %4872 = vmatmul.bf16.gmra.mxu0 %v382
    %v4873 = vpop.f32.mrf.mxu0
    %v4874 = vadd.f32 %v4830, %v4873
    %v4875 = vpop.f32.mrf.mxu0
    %v4876 = vadd.f32 %v4832, %v4875
    %4877 = vmatmul.bf16.gmra.mxu0 %v383
    %v4878 = vpop.f32.mrf.mxu0
    %v4879 = vadd.f32 %v4835, %v4878
    %v4880 = vpop.f32.mrf.mxu0
    %v4881 = vadd.f32 %v4837, %v4880
    %4882 = vmatmul.bf16.gmra.mxu0 %v384
    %v4883 = vpop.f32.mrf.mxu0
    %v4884 = vadd.f32 %v4840, %v4883
    %v4885 = vpop.f32.mrf.mxu0
    %v4886 = vadd.f32 %v4842, %v4885
    %4887 = vmatmul.bf16.gmra.mxu0 %v385
    %v4888 = vpop.f32.mrf.mxu0
    %v4889 = vadd.f32 %v4845, %v4888
    %v4890 = vpop.f32.mrf.mxu0
    %v4891 = vadd.f32 %v4847, %v4890
    %4892 = vmatmul.bf16.gmra.mxu0 %v386
    %v4893 = vpop.f32.mrf.mxu0
    %v4894 = vadd.f32 %v4850, %v4893
    %v4895 = vpop.f32.mrf.mxu0
    %v4896 = vadd.f32 %v4852, %v4895
    %4897 = vmatmul.bf16.gmra.mxu0 %v387
    %v4898 = vpop.f32.mrf.mxu0
    %v4899 = vadd.f32 %v4855, %v4898
    %v4900 = vpop.f32.mrf.mxu0
    %v4901 = vadd.f32 %v4857, %v4900
    %4902 = vmatmul.bf16.gmra.mxu0 %v388
    %v4903 = vpop.f32.mrf.mxu0
    %v4904 = vadd.f32 %v4860, %v4903
    %v4905 = vpop.f32.mrf.mxu0
    %v4906 = vadd.f32 %v4862, %v4905
    %4907 = vdwg.mxu0
    %4908 = vmatpush.bf16.msra.mxu0 %v1683
    %4909 = vmatpush.bf16.msra.mxu0 %v1681
    %4910 = vmatpush.bf16.msra.mxu0 %v1679
    %4911 = vmatpush.bf16.msra.mxu0 %v1677
    %4912 = vmatpush.bf16.msra.mxu0 %v1675
    %4913 = vmatpush.bf16.msra.mxu0 %v1673
    %4914 = vmatpush.bf16.msra.mxu0 %v1671
    %4915 = vmatpush.bf16.msra.mxu0 %v1669
    %4916 = vmatmul.bf16.gmra.mxu0 %v2307
    %v4917 = vpop.f32.mrf.mxu0
    %v4918 = vadd.f32 %v4874, %v4917
    %v4919 = vpop.f32.mrf.mxu0
    %v4920 = vadd.f32 %v4876, %v4919
    %4921 = vmatmul.bf16.gmra.mxu0 %v2308
    %v4922 = vpop.f32.mrf.mxu0
    %v4923 = vadd.f32 %v4879, %v4922
    %v4924 = vpop.f32.mrf.mxu0
    %v4925 = vadd.f32 %v4881, %v4924
    %4926 = vmatmul.bf16.gmra.mxu0 %v2309
    %v4927 = vpop.f32.mrf.mxu0
    %v4928 = vadd.f32 %v4884, %v4927
    %v4929 = vpop.f32.mrf.mxu0
    %v4930 = vadd.f32 %v4886, %v4929
    %4931 = vmatmul.bf16.gmra.mxu0 %v2310
    %v4932 = vpop.f32.mrf.mxu0
    %v4933 = vadd.f32 %v4889, %v4932
    %v4934 = vpop.f32.mrf.mxu0
    %v4935 = vadd.f32 %v4891, %v4934
    %4936 = vmatmul.bf16.gmra.mxu0 %v2311
    %v4937 = vpop.f32.mrf.mxu0
    %v4938 = vadd.f32 %v4894, %v4937
    %v4939 = vpop.f32.mrf.mxu0
    %v4940 = vadd.f32 %v4896, %v4939
    %4941 = vmatmul.bf16.gmra.mxu0 %v2312
    %v4942 = vpop.f32.mrf.mxu0
    %v4943 = vadd.f32 %v4899, %v4942
    %v4944 = vpop.f32.mrf.mxu0
    %v4945 = vadd.f32 %v4901, %v4944
    %4946 = vmatmul.bf16.gmra.mxu0 %v2313
    %v4947 = vpop.f32.mrf.mxu0
    %v4948 = vadd.f32 %v4904, %v4947
    %v4949 = vpop.f32.mrf.mxu0
    %v4950 = vadd.f32 %v4906, %v4949
    %4951 = vdwg.mxu0
    %4952 = vmatpush.bf16.msra.mxu0 %v1699
    %4953 = vmatpush.bf16.msra.mxu0 %v1697
    %4954 = vmatpush.bf16.msra.mxu0 %v1695
    %4955 = vmatpush.bf16.msra.mxu0 %v1693
    %4956 = vmatpush.bf16.msra.mxu0 %v1691
    %4957 = vmatpush.bf16.msra.mxu0 %v1689
    %4958 = vmatpush.bf16.msra.mxu0 %v1687
    %4959 = vmatpush.bf16.msra.mxu0 %v1685
    %4960 = vmatmul.bf16.gmra.mxu0 %v3374
    %v4961 = vpop.f32.mrf.mxu0
    %v4962 = vadd.f32 %v4918, %v4961
    %v4963 = vpop.f32.mrf.mxu0
    %v4964 = vadd.f32 %v4920, %v4963
    %4965 = vmatmul.bf16.gmra.mxu0 %v3375
    %v4966 = vpop.f32.mrf.mxu0
    %v4967 = vadd.f32 %v4923, %v4966
    %v4968 = vpop.f32.mrf.mxu0
    %v4969 = vadd.f32 %v4925, %v4968
    %4970 = vmatmul.bf16.gmra.mxu0 %v3376
    %v4971 = vpop.f32.mrf.mxu0
    %v4972 = vadd.f32 %v4928, %v4971
    %v4973 = vpop.f32.mrf.mxu0
    %v4974 = vadd.f32 %v4930, %v4973
    %4975 = vmatmul.bf16.gmra.mxu0 %v3377
    %v4976 = vpop.f32.mrf.mxu0
    %v4977 = vadd.f32 %v4933, %v4976
    %v4978 = vpop.f32.mrf.mxu0
    %v4979 = vadd.f32 %v4935, %v4978
    %4980 = vmatmul.bf16.gmra.mxu0 %v3378
    %v4981 = vpop.f32.mrf.mxu0
    %v4982 = vadd.f32 %v4938, %v4981
    %v4983 = vpop.f32.mrf.mxu0
    %v4984 = vadd.f32 %v4940, %v4983
    %4985 = vmatmul.bf16.gmra.mxu0 %v3379
    %v4986 = vpop.f32.mrf.mxu0
    %v4987 = vadd.f32 %v4943, %v4986
    %v4988 = vpop.f32.mrf.mxu0
    %v4989 = vadd.f32 %v4945, %v4988
    %4990 = vmatmul.bf16.gmra.mxu0 %v3380
    %v4991 = vpop.f32.mrf.mxu0
    %v4992 = vadd.f32 %v4948, %v4991
    %v4993 = vpop.f32.mrf.mxu0
    %v4994 = vadd.f32 %v4950, %v4993
    %4995 = vdwg.mxu0
    %4996 = vmatpush.bf16.msra.mxu0 %v1715
    %4997 = vmatpush.bf16.msra.mxu0 %v1713
    %4998 = vmatpush.bf16.msra.mxu0 %v1711
    %4999 = vmatpush.bf16.msra.mxu0 %v1709
    %5000 = vmatpush.bf16.msra.mxu0 %v1707
    %5001 = vmatpush.bf16.msra.mxu0 %v1705
    %5002 = vmatpush.bf16.msra.mxu0 %v1703
    %5003 = vmatpush.bf16.msra.mxu0 %v1701
    %5004 = vmatmul.bf16.gmra.mxu0 %v4338
    %v5005 = vpop.f32.mrf.mxu0
    %v5006 = vadd.f32 %v4962, %v5005
    %v5007 = vpop.f32.mrf.mxu0
    %v5008 = vadd.f32 %v4964, %v5007
    %5009 = vmatmul.bf16.gmra.mxu0 %v4339
    %v5010 = vpop.f32.mrf.mxu0
    %v5011 = vadd.f32 %v4967, %v5010
    %v5012 = vpop.f32.mrf.mxu0
    %v5013 = vadd.f32 %v4969, %v5012
    %5014 = vmatmul.bf16.gmra.mxu0 %v4340
    %v5015 = vpop.f32.mrf.mxu0
    %v5016 = vadd.f32 %v4972, %v5015
    %v5017 = vpop.f32.mrf.mxu0
    %v5018 = vadd.f32 %v4974, %v5017
    %5019 = vmatmul.bf16.gmra.mxu0 %v4341
    %v5020 = vpop.f32.mrf.mxu0
    %v5021 = vadd.f32 %v4977, %v5020
    %v5022 = vpop.f32.mrf.mxu0
    %v5023 = vadd.f32 %v4979, %v5022
    %5024 = vmatmul.bf16.gmra.mxu0 %v4342
    %v5025 = vpop.f32.mrf.mxu0
    %v5026 = vadd.f32 %v4982, %v5025
    %v5027 = vpop.f32.mrf.mxu0
    %v5028 = vadd.f32 %v4984, %v5027
    %5029 = vmatmul.bf16.gmra.mxu0 %v4343
    %v5030 = vpop.f32.mrf.mxu0
    %v5031 = vadd.f32 %v4987, %v5030
    %v5032 = vpop.f32.mrf.mxu0
    %v5033 = vadd.f32 %v4989, %v5032
    %5034 = vmatmul.bf16.gmra.mxu0 %v4344
    %v5035 = vpop.f32.mrf.mxu0
    %v5036 = vadd.f32 %v4992, %v5035
    %v5037 = vpop.f32.mrf.mxu0
    %v5038 = vadd.f32 %v4994, %v5037
    %5039 = vdwg.mxu0
    %5040 = vmatpush.bf16.msra.mxu0 %v1652
    %5041 = vmatpush.bf16.msra.mxu0 %v1650
    %5042 = vmatpush.bf16.msra.mxu0 %v1648
    %5043 = vmatpush.bf16.msra.mxu0 %v1646
    %5044 = vmatpush.bf16.msra.mxu0 %v1644
    %5045 = vmatpush.bf16.msra.mxu0 %v1642
    %5046 = vmatpush.bf16.msra.mxu0 %v1640
    %5047 = vmatpush.bf16.msra.mxu0 %v1638
    %5048 = vmatmul.bf16.gmra.mxu0 %v340
    %v5049 = vpop.f32.mrf.mxu0
    %v5050 = vadd.f32 0.0, %v5049
    %v5051 = vpop.f32.mrf.mxu0
    %v5052 = vadd.f32 0.0, %v5051
    %5053 = vmatmul.bf16.gmra.mxu0 %v341
    %v5054 = vpop.f32.mrf.mxu0
    %v5055 = vadd.f32 0.0, %v5054
    %v5056 = vpop.f32.mrf.mxu0
    %v5057 = vadd.f32 0.0, %v5056
    %5058 = vmatmul.bf16.gmra.mxu0 %v342
    %v5059 = vpop.f32.mrf.mxu0
    %v5060 = vadd.f32 0.0, %v5059
    %v5061 = vpop.f32.mrf.mxu0
    %v5062 = vadd.f32 0.0, %v5061
    %5063 = vmatmul.bf16.gmra.mxu0 %v343
    %v5064 = vpop.f32.mrf.mxu0
    %v5065 = vadd.f32 0.0, %v5064
    %v5066 = vpop.f32.mrf.mxu0
    %v5067 = vadd.f32 0.0, %v5066
    %5068 = vmatmul.bf16.gmra.mxu0 %v344
    %v5069 = vpop.f32.mrf.mxu0
    %v5070 = vadd.f32 0.0, %v5069
    %v5071 = vpop.f32.mrf.mxu0
    %v5072 = vadd.f32 0.0, %v5071
    %5073 = vmatmul.bf16.gmra.mxu0 %v345
    %v5074 = vpop.f32.mrf.mxu0
    %v5075 = vadd.f32 0.0, %v5074
    %v5076 = vpop.f32.mrf.mxu0
    %v5077 = vadd.f32 0.0, %v5076
    %5078 = vmatmul.bf16.gmra.mxu0 %v346
    %v5079 = vpop.f32.mrf.mxu0
    %v5080 = vadd.f32 0.0, %v5079
    %v5081 = vpop.f32.mrf.mxu0
    %v5082 = vadd.f32 0.0, %v5081
    %5083 = vdwg.mxu0
    %5084 = vmatpush.bf16.msra.mxu0 %v1668
    %5085 = vmatpush.bf16.msra.mxu0 %v1666
    %5086 = vmatpush.bf16.msra.mxu0 %v1664
    %5087 = vmatpush.bf16.msra.mxu0 %v1662
    %5088 = vmatpush.bf16.msra.mxu0 %v1660
    %5089 = vmatpush.bf16.msra.mxu0 %v1658
    %5090 = vmatpush.bf16.msra.mxu0 %v1656
    %5091 = vmatpush.bf16.msra.mxu0 %v1654
    %5092 = vmatmul.bf16.gmra.mxu0 %v382
    %v5093 = vpop.f32.mrf.mxu0
    %v5094 = vadd.f32 %v5050, %v5093
    %v5095 = vpop.f32.mrf.mxu0
    %v5096 = vadd.f32 %v5052, %v5095
    %5097 = vmatmul.bf16.gmra.mxu0 %v383
    %v5098 = vpop.f32.mrf.mxu0
    %v5099 = vadd.f32 %v5055, %v5098
    %v5100 = vpop.f32.mrf.mxu0
    %v5101 = vadd.f32 %v5057, %v5100
    %5102 = vmatmul.bf16.gmra.mxu0 %v384
    %v5103 = vpop.f32.mrf.mxu0
    %v5104 = vadd.f32 %v5060, %v5103
    %v5105 = vpop.f32.mrf.mxu0
    %v5106 = vadd.f32 %v5062, %v5105
    %5107 = vmatmul.bf16.gmra.mxu0 %v385
    %v5108 = vpop.f32.mrf.mxu0
    %v5109 = vadd.f32 %v5065, %v5108
    %v5110 = vpop.f32.mrf.mxu0
    %v5111 = vadd.f32 %v5067, %v5110
    %5112 = vmatmul.bf16.gmra.mxu0 %v386
    %v5113 = vpop.f32.mrf.mxu0
    %v5114 = vadd.f32 %v5070, %v5113
    %v5115 = vpop.f32.mrf.mxu0
    %v5116 = vadd.f32 %v5072, %v5115
    %5117 = vmatmul.bf16.gmra.mxu0 %v387
    %v5118 = vpop.f32.mrf.mxu0
    %v5119 = vadd.f32 %v5075, %v5118
    %v5120 = vpop.f32.mrf.mxu0
    %v5121 = vadd.f32 %v5077, %v5120
    %5122 = vmatmul.bf16.gmra.mxu0 %v388
    %v5123 = vpop.f32.mrf.mxu0
    %v5124 = vadd.f32 %v5080, %v5123
    %v5125 = vpop.f32.mrf.mxu0
    %v5126 = vadd.f32 %v5082, %v5125
    %5127 = vdwg.mxu0
    %5128 = vmatpush.bf16.msra.mxu0 %v1684
    %5129 = vmatpush.bf16.msra.mxu0 %v1682
    %5130 = vmatpush.bf16.msra.mxu0 %v1680
    %5131 = vmatpush.bf16.msra.mxu0 %v1678
    %5132 = vmatpush.bf16.msra.mxu0 %v1676
    %5133 = vmatpush.bf16.msra.mxu0 %v1674
    %5134 = vmatpush.bf16.msra.mxu0 %v1672
    %5135 = vmatpush.bf16.msra.mxu0 %v1670
    %5136 = vmatmul.bf16.gmra.mxu0 %v2307
    %v5137 = vpop.f32.mrf.mxu0
    %v5138 = vadd.f32 %v5094, %v5137
    %v5139 = vpop.f32.mrf.mxu0
    %v5140 = vadd.f32 %v5096, %v5139
    %5141 = vmatmul.bf16.gmra.mxu0 %v2308
    %v5142 = vpop.f32.mrf.mxu0
    %v5143 = vadd.f32 %v5099, %v5142
    %v5144 = vpop.f32.mrf.mxu0
    %v5145 = vadd.f32 %v5101, %v5144
    %5146 = vmatmul.bf16.gmra.mxu0 %v2309
    %v5147 = vpop.f32.mrf.mxu0
    %v5148 = vadd.f32 %v5104, %v5147
    %v5149 = vpop.f32.mrf.mxu0
    %v5150 = vadd.f32 %v5106, %v5149
    %5151 = vmatmul.bf16.gmra.mxu0 %v2310
    %v5152 = vpop.f32.mrf.mxu0
    %v5153 = vadd.f32 %v5109, %v5152
    %v5154 = vpop.f32.mrf.mxu0
    %v5155 = vadd.f32 %v5111, %v5154
    %5156 = vmatmul.bf16.gmra.mxu0 %v2311
    %v5157 = vpop.f32.mrf.mxu0
    %v5158 = vadd.f32 %v5114, %v5157
    %v5159 = vpop.f32.mrf.mxu0
    %v5160 = vadd.f32 %v5116, %v5159
    %5161 = vmatmul.bf16.gmra.mxu0 %v2312
    %v5162 = vpop.f32.mrf.mxu0
    %v5163 = vadd.f32 %v5119, %v5162
    %v5164 = vpop.f32.mrf.mxu0
    %v5165 = vadd.f32 %v5121, %v5164
    %5166 = vmatmul.bf16.gmra.mxu0 %v2313
    %v5167 = vpop.f32.mrf.mxu0
    %v5168 = vadd.f32 %v5124, %v5167
    %v5169 = vpop.f32.mrf.mxu0
    %v5170 = vadd.f32 %v5126, %v5169
    %5171 = vdwg.mxu0
    %5172 = vmatpush.bf16.msra.mxu0 %v1700
    %5173 = vmatpush.bf16.msra.mxu0 %v1698
    %5174 = vmatpush.bf16.msra.mxu0 %v1696
    %5175 = vmatpush.bf16.msra.mxu0 %v1694
    %5176 = vmatpush.bf16.msra.mxu0 %v1692
    %5177 = vmatpush.bf16.msra.mxu0 %v1690
    %5178 = vmatpush.bf16.msra.mxu0 %v1688
    %5179 = vmatpush.bf16.msra.mxu0 %v1686
    %5180 = vmatmul.bf16.gmra.mxu0 %v3374
    %v5181 = vpop.f32.mrf.mxu0
    %v5182 = vadd.f32 %v5138, %v5181
    %v5183 = vpop.f32.mrf.mxu0
    %v5184 = vadd.f32 %v5140, %v5183
    %5185 = vmatmul.bf16.gmra.mxu0 %v3375
    %v5186 = vpop.f32.mrf.mxu0
    %v5187 = vadd.f32 %v5143, %v5186
    %v5188 = vpop.f32.mrf.mxu0
    %v5189 = vadd.f32 %v5145, %v5188
    %5190 = vmatmul.bf16.gmra.mxu0 %v3376
    %v5191 = vpop.f32.mrf.mxu0
    %v5192 = vadd.f32 %v5148, %v5191
    %v5193 = vpop.f32.mrf.mxu0
    %v5194 = vadd.f32 %v5150, %v5193
    %5195 = vmatmul.bf16.gmra.mxu0 %v3377
    %v5196 = vpop.f32.mrf.mxu0
    %v5197 = vadd.f32 %v5153, %v5196
    %v5198 = vpop.f32.mrf.mxu0
    %v5199 = vadd.f32 %v5155, %v5198
    %5200 = vmatmul.bf16.gmra.mxu0 %v3378
    %v5201 = vpop.f32.mrf.mxu0
    %v5202 = vadd.f32 %v5158, %v5201
    %v5203 = vpop.f32.mrf.mxu0
    %v5204 = vadd.f32 %v5160, %v5203
    %5205 = vmatmul.bf16.gmra.mxu0 %v3379
    %v5206 = vpop.f32.mrf.mxu0
    %v5207 = vadd.f32 %v5163, %v5206
    %v5208 = vpop.f32.mrf.mxu0
    %v5209 = vadd.f32 %v5165, %v5208
    %5210 = vmatmul.bf16.gmra.mxu0 %v3380
    %v5211 = vpop.f32.mrf.mxu0
    %v5212 = vadd.f32 %v5168, %v5211
    %v5213 = vpop.f32.mrf.mxu0
    %v5214 = vadd.f32 %v5170, %v5213
    %5215 = vdwg.mxu0
    %5216 = vmatpush.bf16.msra.mxu0 %v1716
    %5217 = vmatpush.bf16.msra.mxu0 %v1714
    %5218 = vmatpush.bf16.msra.mxu0 %v1712
    %5219 = vmatpush.bf16.msra.mxu0 %v1710
    %5220 = vmatpush.bf16.msra.mxu0 %v1708
    %5221 = vmatpush.bf16.msra.mxu0 %v1706
    %5222 = vmatpush.bf16.msra.mxu0 %v1704
    %5223 = vmatpush.bf16.msra.mxu0 %v1702
    %5224 = vmatmul.bf16.gmra.mxu0 %v4338
    %v5225 = vpop.f32.mrf.mxu0
    %v5226 = vadd.f32 %v5182, %v5225
    %v5227 = vpop.f32.mrf.mxu0
    %v5228 = vadd.f32 %v5184, %v5227
    %5229 = vmatmul.bf16.gmra.mxu0 %v4339
    %v5230 = vpop.f32.mrf.mxu0
    %v5231 = vadd.f32 %v5187, %v5230
    %v5232 = vpop.f32.mrf.mxu0
    %v5233 = vadd.f32 %v5189, %v5232
    %5234 = vmatmul.bf16.gmra.mxu0 %v4340
    %v5235 = vpop.f32.mrf.mxu0
    %v5236 = vadd.f32 %v5192, %v5235
    %v5237 = vpop.f32.mrf.mxu0
    %v5238 = vadd.f32 %v5194, %v5237
    %5239 = vmatmul.bf16.gmra.mxu0 %v4341
    %v5240 = vpop.f32.mrf.mxu0
    %v5241 = vadd.f32 %v5197, %v5240
    %v5242 = vpop.f32.mrf.mxu0
    %v5243 = vadd.f32 %v5199, %v5242
    %5244 = vmatmul.bf16.gmra.mxu0 %v4342
    %v5245 = vpop.f32.mrf.mxu0
    %v5246 = vadd.f32 %v5202, %v5245
    %v5247 = vpop.f32.mrf.mxu0
    %v5248 = vadd.f32 %v5204, %v5247
    %5249 = vmatmul.bf16.gmra.mxu0 %v4343
    %v5250 = vpop.f32.mrf.mxu0
    %v5251 = vadd.f32 %v5207, %v5250
    %v5252 = vpop.f32.mrf.mxu0
    %v5253 = vadd.f32 %v5209, %v5252
    %5254 = vmatmul.bf16.gmra.mxu0 %v4344
    %v5255 = vpop.f32.mrf.mxu0
    %v5256 = vadd.f32 %v5212, %v5255
    %v5257 = vpop.f32.mrf.mxu0
    %v5258 = vadd.f32 %v5214, %v5257
    %5259 = vdwg.mxu0
    %v5260 = vmax.f32 %v4792, %v5006
    %v5261 = vmax.f32 %v4793, %v5226
    %v5262 = vmax.f32 %v4794, %v5008
    %v5263 = vmax.f32 %v4795, %v5228
    %v5264 = vmax.f32 %v4796, %v5011
    %v5265 = vmax.f32 %v4797, %v5231
    %v5266 = vmax.f32 %v4798, %v5013
    %v5267 = vmax.f32 %v4799, %v5233
    %v5268 = vmax.f32 %v4800, %v5016
    %v5269 = vmax.f32 %v4801, %v5236
    %v5270 = vmax.f32 %v4802, %v5018
    %v5271 = vmax.f32 %v4803, %v5238
    %v5272 = vmax.f32 %v4804, %v5021
    %v5273 = vmax.f32 %v4805, %v5241
    %v5274 = vmax.f32 %v4806, %v5023
    %v5275 = vmax.f32 %v4807, %v5243
    %v5276 = vmax.f32 %v4808, %v5026
    %v5277 = vmax.f32 %v4809, %v5246
    %v5278 = vmax.f32 %v4810, %v5028
    %v5279 = vmax.f32 %v4811, %v5248
    %v5280 = vmax.f32 %v4812, %v5031
    %v5281 = vmax.f32 %v4813, %v5251
    %v5282 = vmax.f32 %v4814, %v5033
    %v5283 = vmax.f32 %v4815, %v5253
    %v5284 = vmax.f32 %v4816, %v5036
    %v5285 = vmax.f32 %v4817, %v5256
    %v5286 = vmax.f32 %v4818, %v5038
    %v5287 = vmax.f32 %v4819, %v5258
    %v5288 = vadd.f32 %v5260, %v3258
    %v5289 = vadd.f32 %v5261, %v3259
    %v5290 = vadd.f32 %v5262, %v3258
    %v5291 = vadd.f32 %v5263, %v3259
    %v5292 = vadd.f32 %v5264, %v3258
    %v5293 = vadd.f32 %v5265, %v3259
    %v5294 = vadd.f32 %v5266, %v3258
    %v5295 = vadd.f32 %v5267, %v3259
    %v5296 = vadd.f32 %v5268, %v3258
    %v5297 = vadd.f32 %v5269, %v3259
    %v5298 = vadd.f32 %v5270, %v3258
    %v5299 = vadd.f32 %v5271, %v3259
    %v5300 = vadd.f32 %v5272, %v3258
    %v5301 = vadd.f32 %v5273, %v3259
    %v5302 = vadd.f32 %v5274, %v3258
    %v5303 = vadd.f32 %v5275, %v3259
    %v5304 = vadd.f32 %v5276, %v3258
    %v5305 = vadd.f32 %v5277, %v3259
    %v5306 = vadd.f32 %v5278, %v3258
    %v5307 = vadd.f32 %v5279, %v3259
    %v5308 = vadd.f32 %v5280, %v3258
    %v5309 = vadd.f32 %v5281, %v3259
    %v5310 = vadd.f32 %v5282, %v3258
    %v5311 = vadd.f32 %v5283, %v3259
    %v5312 = vadd.f32 %v5284, %v3258
    %v5313 = vadd.f32 %v5285, %v3259
    %v5314 = vadd.f32 %v5286, %v3258
    %v5315 = vadd.f32 %v5287, %v3259
    %v5316 = vmax.f32 %v5288, 0.0
    %v5317 = vmax.f32 %v5289, 0.0
    %v5318 = vmax.f32 %v5290, 0.0
    %v5319 = vmax.f32 %v5291, 0.0
    %v5320 = vmax.f32 %v5292, 0.0
    %v5321 = vmax.f32 %v5293, 0.0
    %v5322 = vmax.f32 %v5294, 0.0
    %v5323 = vmax.f32 %v5295, 0.0
    %v5324 = vmax.f32 %v5296, 0.0
    %v5325 = vmax.f32 %v5297, 0.0
    %v5326 = vmax.f32 %v5298, 0.0
    %v5327 = vmax.f32 %v5299, 0.0
    %v5328 = vmax.f32 %v5300, 0.0
    %v5329 = vmax.f32 %v5301, 0.0
    %v5330 = vmax.f32 %v5302, 0.0
    %v5331 = vmax.f32 %v5303, 0.0
    %v5332 = vmax.f32 %v5304, 0.0
    %v5333 = vmax.f32 %v5305, 0.0
    %v5334 = vmax.f32 %v5306, 0.0
    %v5335 = vmax.f32 %v5307, 0.0
    %v5336 = vmax.f32 %v5308, 0.0
    %v5337 = vmax.f32 %v5309, 0.0
    %v5338 = vmax.f32 %v5310, 0.0
    %v5339 = vmax.f32 %v5311, 0.0
    %v5340 = vmax.f32 %v5312, 0.0
    %v5341 = vmax.f32 %v5313, 0.0
    %v5342 = vmax.f32 %v5314, 0.0
    %v5343 = vmax.f32 %v5315, 0.0
    %v5344 = vpack.c.bf16 %v5317, %v5316
    %v5345 = vpack.c.bf16 %v5319, %v5318
    %v5346 = vpack.c.bf16 %v5321, %v5320
    %v5347 = vpack.c.bf16 %v5323, %v5322
    %v5348 = vpack.c.bf16 %v5325, %v5324
    %v5349 = vpack.c.bf16 %v5327, %v5326
    %v5350 = vpack.c.bf16 %v5329, %v5328
    %v5351 = vpack.c.bf16 %v5331, %v5330
    %v5352 = vpack.c.bf16 %v5333, %v5332
    %v5353 = vpack.c.bf16 %v5335, %v5334
    %v5354 = vpack.c.bf16 %v5337, %v5336
    %v5355 = vpack.c.bf16 %v5339, %v5338
    %v5356 = vpack.c.bf16 %v5341, %v5340
    %v5357 = vpack.c.bf16 %v5343, %v5342
    %v5358 = vld [vmem:[#allocation7] sm:$0x3]
    %v5369 = vunpack.c.l.b16 %v3318
    %v5370 = vunpack.c.h.b16 %v3318
    %v5371 = vunpack.c.l.b16 %v3319
    %v5372 = vunpack.c.h.b16 %v3319
    %v5373 = vunpack.c.l.b16 %v3320
    %v5374 = vunpack.c.h.b16 %v3320
    %v5375 = vunpack.c.l.b16 %v3321
    %v5376 = vunpack.c.h.b16 %v3321
    %v5377 = vunpack.c.l.b16 %v3322
    %v5378 = vunpack.c.h.b16 %v3322
    %v5379 = vunpack.c.l.b16 %v3323
    %v5380 = vunpack.c.h.b16 %v3323
    %v5381 = vunpack.c.l.b16 %v3324
    %v5382 = vunpack.c.h.b16 %v3324
    %v5383 = vunpack.c.l.b16 %v3325
    %v5384 = vunpack.c.h.b16 %v3325
    %v5385 = vunpack.c.l.b16 %v3326
    %v5386 = vunpack.c.h.b16 %v3326
    %v5387 = vunpack.c.l.b16 %v3327
    %v5388 = vunpack.c.h.b16 %v3327
    %v5389 = vpack.c.b16 %v5371, %v5369
    %v5390 = vpack.c.b16 %v5372, %v5370
    %v5391 = vpack.c.b16 %v5375, %v5373
    %v5392 = vpack.c.b16 %v5376, %v5374
    %v5393 = vpack.c.b16 %v5379, %v5377
    %v5394 = vpack.c.b16 %v5380, %v5378
    %v5395 = vpack.c.b16 %v5383, %v5381
    %v5396 = vpack.c.b16 %v5384, %v5382
    %v5397 = vpack.c.b16 %v5387, %v5385
    %v5398 = vpack.c.b16 %v5388, %v5386
    %v5419 = vunpack.c.l.b16 %v5344
    %v5420 = vunpack.c.h.b16 %v5344
    %v5421 = vunpack.c.l.b16 %v5345
    %v5422 = vunpack.c.h.b16 %v5345
    %v5423 = vunpack.c.l.b16 %v5346
    %v5424 = vunpack.c.h.b16 %v5346
    %v5425 = vunpack.c.l.b16 %v5347
    %v5426 = vunpack.c.h.b16 %v5347
    %v5427 = vunpack.c.l.b16 %v5348
    %v5428 = vunpack.c.h.b16 %v5348
    %v5429 = vunpack.c.l.b16 %v5349
    %v5430 = vunpack.c.h.b16 %v5349
    %v5431 = vunpack.c.l.b16 %v5350
    %v5432 = vunpack.c.h.b16 %v5350
    %v5433 = vunpack.c.l.b16 %v5351
    %v5434 = vunpack.c.h.b16 %v5351
    %v5435 = vunpack.c.l.b16 %v5352
    %v5436 = vunpack.c.h.b16 %v5352
    %v5437 = vunpack.c.l.b16 %v5353
    %v5438 = vunpack.c.h.b16 %v5353
    %v5439 = vpack.c.b16 %v5421, %v5419
    %v5440 = vpack.c.b16 %v5422, %v5420
    %v5441 = vpack.c.b16 %v5425, %v5423
    %v5442 = vpack.c.b16 %v5426, %v5424
    %v5443 = vpack.c.b16 %v5429, %v5427
    %v5444 = vpack.c.b16 %v5430, %v5428
    %v5445 = vpack.c.b16 %v5433, %v5431
    %v5446 = vpack.c.b16 %v5434, %v5432
    %v5447 = vpack.c.b16 %v5437, %v5435
    %v5448 = vpack.c.b16 %v5438, %v5436
    %v5461 = vunpack.c.l.b16 %v3328
    %v5462 = vunpack.c.h.b16 %v3328
    %v5463 = vunpack.c.l.b16 %v3329
    %v5464 = vunpack.c.h.b16 %v3329
    %v5465 = vpack.c.b16 %v5463, %v5461
    %v5466 = vpack.c.b16 %v5464, %v5462
    %v5471 = vunpack.c.l.b16 %v5354
    %v5472 = vunpack.c.h.b16 %v5354
    %v5473 = vunpack.c.l.b16 %v5355
    %v5474 = vunpack.c.h.b16 %v5355
    %v5475 = vpack.c.b16 %v5473, %v5471
    %v5476 = vpack.c.b16 %v5474, %v5472
    %v5481 = vunpack.c.l.b16 %v3330
    %v5482 = vunpack.c.h.b16 %v3330
    %v5483 = vunpack.c.l.b16 %v3331
    %v5484 = vunpack.c.h.b16 %v3331
    %v5485 = vpack.c.b16 %v5483, %v5481
    %v5486 = vpack.c.b16 %v5484, %v5482
    %v5489 = vld [vmem:[#allocation6] sm:$0xff]
    %v5490 = vld [vmem:[#allocation6 + $0x8] sm:$0xff]
    %v5491 = vld [vmem:[#allocation6 + $0x10] sm:$0xff]
    %v5492 = vld [vmem:[#allocation6 + $0x18] sm:$0xff]
    %v5493 = vld [vmem:[#allocation6 + $0x20] sm:$0xff]
    %v5494 = vld [vmem:[#allocation6 + $0x28] sm:$0xff]
    %v5495 = vld [vmem:[#allocation6 + $0x30] sm:$0xff]
    %v5496 = vld [vmem:[#allocation6 + $0x38] sm:$0xff]
    %v5497 = vld [vmem:[#allocation6 + $0x40] sm:$0xff]
    %v5498 = vld [vmem:[#allocation6 + $0x48] sm:$0xff]
    %v5499 = vld [vmem:[#allocation6 + $0x50] sm:$0xff]
    %v5500 = vld [vmem:[#allocation6 + $0x58] sm:$0xff]
    %v5501 = vld [vmem:[#allocation6 + $0x60] sm:$0xff]
    %v5502 = vld [vmem:[#allocation6 + $0x68] sm:$0xff]
    %v5503 = vld [vmem:[#allocation6 + $0x70] sm:$0xff]
    %v5504 = vld [vmem:[#allocation6 + $0x78] sm:$0xff]
    %v5505 = vld [vmem:[#allocation6 + $0x80] sm:$0xff]
    %v5506 = vld [vmem:[#allocation6 + $0x88] sm:$0xff]
    %v5507 = vld [vmem:[#allocation6 + $0x90] sm:$0xff]
    %v5508 = vld [vmem:[#allocation6 + $0x98] sm:$0xff]
    %v5509 = vld [vmem:[#allocation6 + $0xa0] sm:$0xff]
    %v5510 = vld [vmem:[#allocation6 + $0xa8] sm:$0xff]
    %v5511 = vld [vmem:[#allocation6 + $0xb0] sm:$0xff]
    %v5512 = vld [vmem:[#allocation6 + $0xb8] sm:$0xff]
    %v5513 = vld [vmem:[#allocation6 + $0xc0] sm:$0xff]
    %v5514 = vld [vmem:[#allocation6 + $0xc8] sm:$0xff]
    %v5515 = vld [vmem:[#allocation6 + $0xd0] sm:$0xff]
    %v5516 = vld [vmem:[#allocation6 + $0xd8] sm:$0xff]
    %v5517 = vld [vmem:[#allocation6 + $0xe0] sm:$0xff]
    %v5518 = vld [vmem:[#allocation6 + $0xe8] sm:$0xff]
    %v5519 = vld [vmem:[#allocation6 + $0xf0] sm:$0xff]
    %v5520 = vld [vmem:[#allocation6 + $0xf8] sm:$0xff]
    %v5521 = vld [vmem:[#allocation6 + $0x100] sm:$0xff]
    %v5522 = vld [vmem:[#allocation6 + $0x108] sm:$0xff]
    %v5523 = vld [vmem:[#allocation6 + $0x110] sm:$0xff]
    %v5524 = vld [vmem:[#allocation6 + $0x118] sm:$0xff]
    %v5525 = vld [vmem:[#allocation6 + $0x120] sm:$0xff]
    %v5526 = vld [vmem:[#allocation6 + $0x128] sm:$0xff]
    %v5527 = vld [vmem:[#allocation6 + $0x130] sm:$0xff]
    %v5528 = vld [vmem:[#allocation6 + $0x138] sm:$0xff]
    %v5529 = vld [vmem:[#allocation6 + $0x140] sm:$0xff]
    %v5530 = vld [vmem:[#allocation6 + $0x148] sm:$0xff]
    %v5531 = vld [vmem:[#allocation6 + $0x150] sm:$0xff]
    %v5532 = vld [vmem:[#allocation6 + $0x158] sm:$0xff]
    %v5533 = vld [vmem:[#allocation6 + $0x160] sm:$0xff]
    %v5534 = vld [vmem:[#allocation6 + $0x168] sm:$0xff]
    %v5535 = vld [vmem:[#allocation6 + $0x170] sm:$0xff]
    %v5536 = vld [vmem:[#allocation6 + $0x178] sm:$0xff]
    %v5537 = vld [vmem:[#allocation6 + $0x180] sm:$0xff]
    %v5538 = vld [vmem:[#allocation6 + $0x188] sm:$0xff]
    %v5539 = vld [vmem:[#allocation6 + $0x190] sm:$0xff]
    %v5540 = vld [vmem:[#allocation6 + $0x198] sm:$0xff]
    %v5541 = vld [vmem:[#allocation6 + $0x1a0] sm:$0xff]
    %v5542 = vld [vmem:[#allocation6 + $0x1a8] sm:$0xff]
    %v5543 = vld [vmem:[#allocation6 + $0x1b0] sm:$0xff]
    %v5544 = vld [vmem:[#allocation6 + $0x1b8] sm:$0xff]
    %v5545 = vld [vmem:[#allocation6 + $0x1c0] sm:$0xff]
    %v5546 = vld [vmem:[#allocation6 + $0x1c8] sm:$0xff]
    %v5547 = vld [vmem:[#allocation6 + $0x1d0] sm:$0xff]
    %v5548 = vld [vmem:[#allocation6 + $0x1d8] sm:$0xff]
    %v5549 = vld [vmem:[#allocation6 + $0x1e0] sm:$0xff]
    %v5550 = vld [vmem:[#allocation6 + $0x1e8] sm:$0xff]
    %v5551 = vld [vmem:[#allocation6 + $0x1f0] sm:$0xff]
    %v5552 = vld [vmem:[#allocation6 + $0x1f8] sm:$0xff]
    %v5553 = vld [vmem:[#allocation6 + $0x200] sm:$0xff]
    %v5554 = vld [vmem:[#allocation6 + $0x208] sm:$0xff]
    %v5555 = vld [vmem:[#allocation6 + $0x210] sm:$0xff]
    %v5556 = vld [vmem:[#allocation6 + $0x218] sm:$0xff]
    %v5557 = vld [vmem:[#allocation6 + $0x220] sm:$0xff]
    %v5558 = vld [vmem:[#allocation6 + $0x228] sm:$0xff]
    %v5559 = vld [vmem:[#allocation6 + $0x230] sm:$0xff]
    %v5560 = vld [vmem:[#allocation6 + $0x238] sm:$0xff]
    %v5561 = vld [vmem:[#allocation6 + $0x240] sm:$0xff]
    %v5562 = vld [vmem:[#allocation6 + $0x248] sm:$0xff]
    %v5563 = vld [vmem:[#allocation6 + $0x250] sm:$0xff]
    %v5564 = vld [vmem:[#allocation6 + $0x258] sm:$0xff]
    %v5565 = vld [vmem:[#allocation6 + $0x260] sm:$0xff]
    %v5566 = vld [vmem:[#allocation6 + $0x268] sm:$0xff]
    %v5567 = vld [vmem:[#allocation6 + $0x270] sm:$0xff]
    %v5568 = vld [vmem:[#allocation6 + $0x278] sm:$0xff]
    %v5569 = vld [vmem:[#allocation6 + $0x280] sm:$0xff]
    %v5570 = vld [vmem:[#allocation6 + $0x288] sm:$0xff]
    %v5571 = vld [vmem:[#allocation6 + $0x290] sm:$0xff]
    %v5572 = vld [vmem:[#allocation6 + $0x298] sm:$0xff]
    %v5573 = vld [vmem:[#allocation6 + $0x2a0] sm:$0xff]
    %v5574 = vld [vmem:[#allocation6 + $0x2a8] sm:$0xff]
    %v5575 = vld [vmem:[#allocation6 + $0x2b0] sm:$0xff]
    %v5576 = vld [vmem:[#allocation6 + $0x2b8] sm:$0xff]
    %v5577 = vld [vmem:[#allocation6 + $0x2c0] sm:$0xff]
    %v5578 = vld [vmem:[#allocation6 + $0x2c8] sm:$0xff]
    %v5579 = vld [vmem:[#allocation6 + $0x2d0] sm:$0xff]
    %v5580 = vld [vmem:[#allocation6 + $0x2d8] sm:$0xff]
    %v5581 = vld [vmem:[#allocation6 + $0x2e0] sm:$0xff]
    %v5582 = vld [vmem:[#allocation6 + $0x2e8] sm:$0xff]
    %v5583 = vld [vmem:[#allocation6 + $0x2f0] sm:$0xff]
    %v5584 = vld [vmem:[#allocation6 + $0x2f8] sm:$0xff]
    %v5585 = vld [vmem:[#allocation6 + $0x300] sm:$0xff]
    %v5586 = vld [vmem:[#allocation6 + $0x308] sm:$0xff]
    %v5587 = vld [vmem:[#allocation6 + $0x310] sm:$0xff]
    %v5588 = vld [vmem:[#allocation6 + $0x318] sm:$0xff]
    %v5589 = vld [vmem:[#allocation6 + $0x320] sm:$0xff]
    %v5590 = vld [vmem:[#allocation6 + $0x328] sm:$0xff]
    %v5591 = vld [vmem:[#allocation6 + $0x330] sm:$0xff]
    %v5592 = vld [vmem:[#allocation6 + $0x338] sm:$0xff]
    %v5593 = vld [vmem:[#allocation6 + $0x340] sm:$0xff]
    %v5594 = vld [vmem:[#allocation6 + $0x348] sm:$0xff]
    %v5595 = vld [vmem:[#allocation6 + $0x350] sm:$0xff]
    %v5596 = vld [vmem:[#allocation6 + $0x358] sm:$0xff]
    %v5597 = vld [vmem:[#allocation6 + $0x360] sm:$0xff]
    %v5598 = vld [vmem:[#allocation6 + $0x368] sm:$0xff]
    %v5599 = vld [vmem:[#allocation6 + $0x370] sm:$0xff]
    %v5600 = vld [vmem:[#allocation6 + $0x378] sm:$0xff]
    %v5601 = vld [vmem:[#allocation6 + $0x380] sm:$0xff]
    %v5602 = vld [vmem:[#allocation6 + $0x388] sm:$0xff]
    %v5603 = vld [vmem:[#allocation6 + $0x390] sm:$0xff]
    %v5604 = vld [vmem:[#allocation6 + $0x398] sm:$0xff]
    %v5605 = vld [vmem:[#allocation6 + $0x3a0] sm:$0xff]
    %v5606 = vld [vmem:[#allocation6 + $0x3a8] sm:$0xff]
    %v5607 = vld [vmem:[#allocation6 + $0x3b0] sm:$0xff]
    %v5608 = vld [vmem:[#allocation6 + $0x3b8] sm:$0xff]
    %v5609 = vld [vmem:[#allocation6 + $0x3c0] sm:$0xff]
    %v5610 = vld [vmem:[#allocation6 + $0x3c8] sm:$0xff]
    %v5611 = vld [vmem:[#allocation6 + $0x3d0] sm:$0xff]
    %v5612 = vld [vmem:[#allocation6 + $0x3d8] sm:$0xff]
    %v5613 = vld [vmem:[#allocation6 + $0x3e0] sm:$0xff]
    %v5614 = vld [vmem:[#allocation6 + $0x3e8] sm:$0xff]
    %v5615 = vld [vmem:[#allocation6 + $0x3f0] sm:$0xff]
    %v5616 = vld [vmem:[#allocation6 + $0x3f8] sm:$0xff]
    %v5617 = vld [vmem:[#allocation6 + $0x400] sm:$0xff]
    %v5618 = vld [vmem:[#allocation6 + $0x408] sm:$0xff]
    %v5619 = vld [vmem:[#allocation6 + $0x410] sm:$0xff]
    %v5620 = vld [vmem:[#allocation6 + $0x418] sm:$0xff]
    %v5621 = vld [vmem:[#allocation6 + $0x420] sm:$0xff]
    %v5622 = vld [vmem:[#allocation6 + $0x428] sm:$0xff]
    %v5623 = vld [vmem:[#allocation6 + $0x430] sm:$0xff]
    %v5624 = vld [vmem:[#allocation6 + $0x438] sm:$0xff]
    %v5625 = vld [vmem:[#allocation6 + $0x440] sm:$0xff]
    %v5626 = vld [vmem:[#allocation6 + $0x448] sm:$0xff]
    %v5627 = vld [vmem:[#allocation6 + $0x450] sm:$0xff]
    %v5628 = vld [vmem:[#allocation6 + $0x458] sm:$0xff]
    %v5629 = vld [vmem:[#allocation6 + $0x460] sm:$0xff]
    %v5630 = vld [vmem:[#allocation6 + $0x468] sm:$0xff]
    %v5631 = vld [vmem:[#allocation6 + $0x470] sm:$0xff]
    %v5632 = vld [vmem:[#allocation6 + $0x478] sm:$0xff]
    %v5633 = vld [vmem:[#allocation6 + $0x480] sm:$0xff]
    %v5634 = vld [vmem:[#allocation6 + $0x488] sm:$0xff]
    %v5635 = vld [vmem:[#allocation6 + $0x490] sm:$0xff]
    %v5636 = vld [vmem:[#allocation6 + $0x498] sm:$0xff]
    %v5637 = vld [vmem:[#allocation6 + $0x4a0] sm:$0xff]
    %v5638 = vld [vmem:[#allocation6 + $0x4a8] sm:$0xff]
    %v5639 = vld [vmem:[#allocation6 + $0x4b0] sm:$0xff]
    %v5640 = vld [vmem:[#allocation6 + $0x4b8] sm:$0xff]
    %v5641 = vld [vmem:[#allocation6 + $0x4c0] sm:$0xff]
    %v5642 = vld [vmem:[#allocation6 + $0x4c8] sm:$0xff]
    %v5643 = vld [vmem:[#allocation6 + $0x4d0] sm:$0xff]
    %v5644 = vld [vmem:[#allocation6 + $0x4d8] sm:$0xff]
    %v5645 = vld [vmem:[#allocation6 + $0x4e0] sm:$0xff]
    %v5646 = vld [vmem:[#allocation6 + $0x4e8] sm:$0xff]
    %v5647 = vld [vmem:[#allocation6 + $0x4f0] sm:$0xff]
    %v5648 = vld [vmem:[#allocation6 + $0x4f8] sm:$0xff]
    %v5809 = vunpack.c.l.b16 %v5489
    %v5810 = vunpack.c.h.b16 %v5489
    %v5811 = vunpack.c.l.b16 %v5490
    %v5812 = vunpack.c.h.b16 %v5490
    %v5813 = vunpack.c.l.b16 %v5491
    %v5814 = vunpack.c.h.b16 %v5491
    %v5815 = vunpack.c.l.b16 %v5492
    %v5816 = vunpack.c.h.b16 %v5492
    %v5817 = vunpack.c.l.b16 %v5493
    %v5818 = vunpack.c.h.b16 %v5493
    %v5819 = vunpack.c.l.b16 %v5494
    %v5820 = vunpack.c.h.b16 %v5494
    %v5821 = vunpack.c.l.b16 %v5495
    %v5822 = vunpack.c.h.b16 %v5495
    %v5823 = vunpack.c.l.b16 %v5496
    %v5824 = vunpack.c.h.b16 %v5496
    %v5825 = vunpack.c.l.b16 %v5497
    %v5826 = vunpack.c.h.b16 %v5497
    %v5827 = vunpack.c.l.b16 %v5498
    %v5828 = vunpack.c.h.b16 %v5498
    %v5829 = vunpack.c.l.b16 %v5499
    %v5830 = vunpack.c.h.b16 %v5499
    %v5831 = vunpack.c.l.b16 %v5500
    %v5832 = vunpack.c.h.b16 %v5500
    %v5833 = vunpack.c.l.b16 %v5501
    %v5834 = vunpack.c.h.b16 %v5501
    %v5835 = vunpack.c.l.b16 %v5502
    %v5836 = vunpack.c.h.b16 %v5502
    %v5837 = vunpack.c.l.b16 %v5503
    %v5838 = vunpack.c.h.b16 %v5503
    %v5839 = vunpack.c.l.b16 %v5504
    %v5840 = vunpack.c.h.b16 %v5504
    %v5841 = vunpack.c.l.b16 %v5505
    %v5842 = vunpack.c.h.b16 %v5505
    %v5843 = vunpack.c.l.b16 %v5506
    %v5844 = vunpack.c.h.b16 %v5506
    %v5845 = vunpack.c.l.b16 %v5507
    %v5846 = vunpack.c.h.b16 %v5507
    %v5847 = vunpack.c.l.b16 %v5508
    %v5848 = vunpack.c.h.b16 %v5508
    %v5849 = vunpack.c.l.b16 %v5509
    %v5850 = vunpack.c.h.b16 %v5509
    %v5851 = vunpack.c.l.b16 %v5510
    %v5852 = vunpack.c.h.b16 %v5510
    %v5853 = vunpack.c.l.b16 %v5511
    %v5854 = vunpack.c.h.b16 %v5511
    %v5855 = vunpack.c.l.b16 %v5512
    %v5856 = vunpack.c.h.b16 %v5512
    %v5857 = vunpack.c.l.b16 %v5513
    %v5858 = vunpack.c.h.b16 %v5513
    %v5859 = vunpack.c.l.b16 %v5514
    %v5860 = vunpack.c.h.b16 %v5514
    %v5861 = vunpack.c.l.b16 %v5515
    %v5862 = vunpack.c.h.b16 %v5515
    %v5863 = vunpack.c.l.b16 %v5516
    %v5864 = vunpack.c.h.b16 %v5516
    %v5865 = vunpack.c.l.b16 %v5517
    %v5866 = vunpack.c.h.b16 %v5517
    %v5867 = vunpack.c.l.b16 %v5518
    %v5868 = vunpack.c.h.b16 %v5518
    %v5869 = vunpack.c.l.b16 %v5519
    %v5870 = vunpack.c.h.b16 %v5519
    %v5871 = vunpack.c.l.b16 %v5520
    %v5872 = vunpack.c.h.b16 %v5520
    %v5873 = vunpack.c.l.b16 %v5521
    %v5874 = vunpack.c.h.b16 %v5521
    %v5875 = vunpack.c.l.b16 %v5522
    %v5876 = vunpack.c.h.b16 %v5522
    %v5877 = vunpack.c.l.b16 %v5523
    %v5878 = vunpack.c.h.b16 %v5523
    %v5879 = vunpack.c.l.b16 %v5524
    %v5880 = vunpack.c.h.b16 %v5524
    %v5881 = vunpack.c.l.b16 %v5525
    %v5882 = vunpack.c.h.b16 %v5525
    %v5883 = vunpack.c.l.b16 %v5526
    %v5884 = vunpack.c.h.b16 %v5526
    %v5885 = vunpack.c.l.b16 %v5527
    %v5886 = vunpack.c.h.b16 %v5527
    %v5887 = vunpack.c.l.b16 %v5528
    %v5888 = vunpack.c.h.b16 %v5528
    %v5889 = vunpack.c.l.b16 %v5529
    %v5890 = vunpack.c.h.b16 %v5529
    %v5891 = vunpack.c.l.b16 %v5530
    %v5892 = vunpack.c.h.b16 %v5530
    %v5893 = vunpack.c.l.b16 %v5531
    %v5894 = vunpack.c.h.b16 %v5531
    %v5895 = vunpack.c.l.b16 %v5532
    %v5896 = vunpack.c.h.b16 %v5532
    %v5897 = vunpack.c.l.b16 %v5533
    %v5898 = vunpack.c.h.b16 %v5533
    %v5899 = vunpack.c.l.b16 %v5534
    %v5900 = vunpack.c.h.b16 %v5534
    %v5901 = vunpack.c.l.b16 %v5535
    %v5902 = vunpack.c.h.b16 %v5535
    %v5903 = vunpack.c.l.b16 %v5536
    %v5904 = vunpack.c.h.b16 %v5536
    %v5905 = vunpack.c.l.b16 %v5537
    %v5906 = vunpack.c.h.b16 %v5537
    %v5907 = vunpack.c.l.b16 %v5538
    %v5908 = vunpack.c.h.b16 %v5538
    %v5909 = vunpack.c.l.b16 %v5539
    %v5910 = vunpack.c.h.b16 %v5539
    %v5911 = vunpack.c.l.b16 %v5540
    %v5912 = vunpack.c.h.b16 %v5540
    %v5913 = vunpack.c.l.b16 %v5541
    %v5914 = vunpack.c.h.b16 %v5541
    %v5915 = vunpack.c.l.b16 %v5542
    %v5916 = vunpack.c.h.b16 %v5542
    %v5917 = vunpack.c.l.b16 %v5543
    %v5918 = vunpack.c.h.b16 %v5543
    %v5919 = vunpack.c.l.b16 %v5544
    %v5920 = vunpack.c.h.b16 %v5544
    %v5921 = vunpack.c.l.b16 %v5545
    %v5922 = vunpack.c.h.b16 %v5545
    %v5923 = vunpack.c.l.b16 %v5546
    %v5924 = vunpack.c.h.b16 %v5546
    %v5925 = vunpack.c.l.b16 %v5547
    %v5926 = vunpack.c.h.b16 %v5547
    %v5927 = vunpack.c.l.b16 %v5548
    %v5928 = vunpack.c.h.b16 %v5548
    %v5929 = vunpack.c.l.b16 %v5549
    %v5930 = vunpack.c.h.b16 %v5549
    %v5931 = vunpack.c.l.b16 %v5550
    %v5932 = vunpack.c.h.b16 %v5550
    %v5933 = vunpack.c.l.b16 %v5551
    %v5934 = vunpack.c.h.b16 %v5551
    %v5935 = vunpack.c.l.b16 %v5552
    %v5936 = vunpack.c.h.b16 %v5552
    %v5937 = vunpack.c.l.b16 %v5553
    %v5938 = vunpack.c.h.b16 %v5553
    %v5939 = vunpack.c.l.b16 %v5554
    %v5940 = vunpack.c.h.b16 %v5554
    %v5941 = vunpack.c.l.b16 %v5555
    %v5942 = vunpack.c.h.b16 %v5555
    %v5943 = vunpack.c.l.b16 %v5556
    %v5944 = vunpack.c.h.b16 %v5556
    %v5945 = vunpack.c.l.b16 %v5557
    %v5946 = vunpack.c.h.b16 %v5557
    %v5947 = vunpack.c.l.b16 %v5558
    %v5948 = vunpack.c.h.b16 %v5558
    %v5949 = vunpack.c.l.b16 %v5559
    %v5950 = vunpack.c.h.b16 %v5559
    %v5951 = vunpack.c.l.b16 %v5560
    %v5952 = vunpack.c.h.b16 %v5560
    %v5953 = vunpack.c.l.b16 %v5561
    %v5954 = vunpack.c.h.b16 %v5561
    %v5955 = vunpack.c.l.b16 %v5562
    %v5956 = vunpack.c.h.b16 %v5562
    %v5957 = vunpack.c.l.b16 %v5563
    %v5958 = vunpack.c.h.b16 %v5563
    %v5959 = vunpack.c.l.b16 %v5564
    %v5960 = vunpack.c.h.b16 %v5564
    %v5961 = vunpack.c.l.b16 %v5565
    %v5962 = vunpack.c.h.b16 %v5565
    %v5963 = vunpack.c.l.b16 %v5566
    %v5964 = vunpack.c.h.b16 %v5566
    %v5965 = vunpack.c.l.b16 %v5567
    %v5966 = vunpack.c.h.b16 %v5567
    %v5967 = vunpack.c.l.b16 %v5568
    %v5968 = vunpack.c.h.b16 %v5568
    %v5969 = vunpack.c.l.b16 %v5569
    %v5970 = vunpack.c.h.b16 %v5569
    %v5971 = vunpack.c.l.b16 %v5570
    %v5972 = vunpack.c.h.b16 %v5570
    %v5973 = vunpack.c.l.b16 %v5571
    %v5974 = vunpack.c.h.b16 %v5571
    %v5975 = vunpack.c.l.b16 %v5572
    %v5976 = vunpack.c.h.b16 %v5572
    %v5977 = vunpack.c.l.b16 %v5573
    %v5978 = vunpack.c.h.b16 %v5573
    %v5979 = vunpack.c.l.b16 %v5574
    %v5980 = vunpack.c.h.b16 %v5574
    %v5981 = vunpack.c.l.b16 %v5575
    %v5982 = vunpack.c.h.b16 %v5575
    %v5983 = vunpack.c.l.b16 %v5576
    %v5984 = vunpack.c.h.b16 %v5576
    %v5985 = vunpack.c.l.b16 %v5577
    %v5986 = vunpack.c.h.b16 %v5577
    %v5987 = vunpack.c.l.b16 %v5578
    %v5988 = vunpack.c.h.b16 %v5578
    %v5989 = vunpack.c.l.b16 %v5579
    %v5990 = vunpack.c.h.b16 %v5579
    %v5991 = vunpack.c.l.b16 %v5580
    %v5992 = vunpack.c.h.b16 %v5580
    %v5993 = vunpack.c.l.b16 %v5581
    %v5994 = vunpack.c.h.b16 %v5581
    %v5995 = vunpack.c.l.b16 %v5582
    %v5996 = vunpack.c.h.b16 %v5582
    %v5997 = vunpack.c.l.b16 %v5583
    %v5998 = vunpack.c.h.b16 %v5583
    %v5999 = vunpack.c.l.b16 %v5584
    %v6000 = vunpack.c.h.b16 %v5584
    %v6001 = vunpack.c.l.b16 %v5585
    %v6002 = vunpack.c.h.b16 %v5585
    %v6003 = vunpack.c.l.b16 %v5586
    %v6004 = vunpack.c.h.b16 %v5586
    %v6005 = vunpack.c.l.b16 %v5587
    %v6006 = vunpack.c.h.b16 %v5587
    %v6007 = vunpack.c.l.b16 %v5588
    %v6008 = vunpack.c.h.b16 %v5588
    %v6009 = vunpack.c.l.b16 %v5589
    %v6010 = vunpack.c.h.b16 %v5589
    %v6011 = vunpack.c.l.b16 %v5590
    %v6012 = vunpack.c.h.b16 %v5590
    %v6013 = vunpack.c.l.b16 %v5591
    %v6014 = vunpack.c.h.b16 %v5591
    %v6015 = vunpack.c.l.b16 %v5592
    %v6016 = vunpack.c.h.b16 %v5592
    %v6017 = vunpack.c.l.b16 %v5593
    %v6018 = vunpack.c.h.b16 %v5593
    %v6019 = vunpack.c.l.b16 %v5594
    %v6020 = vunpack.c.h.b16 %v5594
    %v6021 = vunpack.c.l.b16 %v5595
    %v6022 = vunpack.c.h.b16 %v5595
    %v6023 = vunpack.c.l.b16 %v5596
    %v6024 = vunpack.c.h.b16 %v5596
    %v6025 = vunpack.c.l.b16 %v5597
    %v6026 = vunpack.c.h.b16 %v5597
    %v6027 = vunpack.c.l.b16 %v5598
    %v6028 = vunpack.c.h.b16 %v5598
    %v6029 = vunpack.c.l.b16 %v5599
    %v6030 = vunpack.c.h.b16 %v5599
    %v6031 = vunpack.c.l.b16 %v5600
    %v6032 = vunpack.c.h.b16 %v5600
    %v6033 = vunpack.c.l.b16 %v5601
    %v6034 = vunpack.c.h.b16 %v5601
    %v6035 = vunpack.c.l.b16 %v5602
    %v6036 = vunpack.c.h.b16 %v5602
    %v6037 = vunpack.c.l.b16 %v5603
    %v6038 = vunpack.c.h.b16 %v5603
    %v6039 = vunpack.c.l.b16 %v5604
    %v6040 = vunpack.c.h.b16 %v5604
    %v6041 = vunpack.c.l.b16 %v5605
    %v6042 = vunpack.c.h.b16 %v5605
    %v6043 = vunpack.c.l.b16 %v5606
    %v6044 = vunpack.c.h.b16 %v5606
    %v6045 = vunpack.c.l.b16 %v5607
    %v6046 = vunpack.c.h.b16 %v5607
    %v6047 = vunpack.c.l.b16 %v5608
    %v6048 = vunpack.c.h.b16 %v5608
    %v6049 = vunpack.c.l.b16 %v5609
    %v6050 = vunpack.c.h.b16 %v5609
    %v6051 = vunpack.c.l.b16 %v5610
    %v6052 = vunpack.c.h.b16 %v5610
    %v6053 = vunpack.c.l.b16 %v5611
    %v6054 = vunpack.c.h.b16 %v5611
    %v6055 = vunpack.c.l.b16 %v5612
    %v6056 = vunpack.c.h.b16 %v5612
    %v6057 = vunpack.c.l.b16 %v5613
    %v6058 = vunpack.c.h.b16 %v5613
    %v6059 = vunpack.c.l.b16 %v5614
    %v6060 = vunpack.c.h.b16 %v5614
    %v6061 = vunpack.c.l.b16 %v5615
    %v6062 = vunpack.c.h.b16 %v5615
    %v6063 = vunpack.c.l.b16 %v5616
    %v6064 = vunpack.c.h.b16 %v5616
    %v6065 = vunpack.c.l.b16 %v5617
    %v6066 = vunpack.c.h.b16 %v5617
    %v6067 = vunpack.c.l.b16 %v5618
    %v6068 = vunpack.c.h.b16 %v5618
    %v6069 = vunpack.c.l.b16 %v5619
    %v6070 = vunpack.c.h.b16 %v5619
    %v6071 = vunpack.c.l.b16 %v5620
    %v6072 = vunpack.c.h.b16 %v5620
    %v6073 = vunpack.c.l.b16 %v5621
    %v6074 = vunpack.c.h.b16 %v5621
    %v6075 = vunpack.c.l.b16 %v5622
    %v6076 = vunpack.c.h.b16 %v5622
    %v6077 = vunpack.c.l.b16 %v5623
    %v6078 = vunpack.c.h.b16 %v5623
    %v6079 = vunpack.c.l.b16 %v5624
    %v6080 = vunpack.c.h.b16 %v5624
    %v6081 = vunpack.c.l.b16 %v5625
    %v6082 = vunpack.c.h.b16 %v5625
    %v6083 = vunpack.c.l.b16 %v5626
    %v6084 = vunpack.c.h.b16 %v5626
    %v6085 = vunpack.c.l.b16 %v5627
    %v6086 = vunpack.c.h.b16 %v5627
    %v6087 = vunpack.c.l.b16 %v5628
    %v6088 = vunpack.c.h.b16 %v5628
    %v6089 = vunpack.c.l.b16 %v5629
    %v6090 = vunpack.c.h.b16 %v5629
    %v6091 = vunpack.c.l.b16 %v5630
    %v6092 = vunpack.c.h.b16 %v5630
    %v6093 = vunpack.c.l.b16 %v5631
    %v6094 = vunpack.c.h.b16 %v5631
    %v6095 = vunpack.c.l.b16 %v5632
    %v6096 = vunpack.c.h.b16 %v5632
    %v6097 = vunpack.c.l.b16 %v5633
    %v6098 = vunpack.c.h.b16 %v5633
    %v6099 = vunpack.c.l.b16 %v5634
    %v6100 = vunpack.c.h.b16 %v5634
    %v6101 = vunpack.c.l.b16 %v5635
    %v6102 = vunpack.c.h.b16 %v5635
    %v6103 = vunpack.c.l.b16 %v5636
    %v6104 = vunpack.c.h.b16 %v5636
    %v6105 = vunpack.c.l.b16 %v5637
    %v6106 = vunpack.c.h.b16 %v5637
    %v6107 = vunpack.c.l.b16 %v5638
    %v6108 = vunpack.c.h.b16 %v5638
    %v6109 = vunpack.c.l.b16 %v5639
    %v6110 = vunpack.c.h.b16 %v5639
    %v6111 = vunpack.c.l.b16 %v5640
    %v6112 = vunpack.c.h.b16 %v5640
    %v6113 = vunpack.c.l.b16 %v5641
    %v6114 = vunpack.c.h.b16 %v5641
    %v6115 = vunpack.c.l.b16 %v5642
    %v6116 = vunpack.c.h.b16 %v5642
    %v6117 = vunpack.c.l.b16 %v5643
    %v6118 = vunpack.c.h.b16 %v5643
    %v6119 = vunpack.c.l.b16 %v5644
    %v6120 = vunpack.c.h.b16 %v5644
    %v6121 = vunpack.c.l.b16 %v5645
    %v6122 = vunpack.c.h.b16 %v5645
    %v6123 = vunpack.c.l.b16 %v5646
    %v6124 = vunpack.c.h.b16 %v5646
    %v6125 = vunpack.c.l.b16 %v5647
    %v6126 = vunpack.c.h.b16 %v5647
    %v6127 = vunpack.c.l.b16 %v5648
    %v6128 = vunpack.c.h.b16 %v5648
    %v6129 = vpack.c.b16 %v5811, %v5809
    %v6130 = vpack.c.b16 %v5812, %v5810
    %v6131 = vpack.c.b16 %v5815, %v5813
    %v6132 = vpack.c.b16 %v5816, %v5814
    %v6133 = vpack.c.b16 %v5819, %v5817
    %v6134 = vpack.c.b16 %v5820, %v5818
    %v6135 = vpack.c.b16 %v5823, %v5821
    %v6136 = vpack.c.b16 %v5824, %v5822
    %v6137 = vpack.c.b16 %v5827, %v5825
    %v6138 = vpack.c.b16 %v5828, %v5826
    %v6139 = vpack.c.b16 %v5831, %v5829
    %v6140 = vpack.c.b16 %v5832, %v5830
    %v6141 = vpack.c.b16 %v5835, %v5833
    %v6142 = vpack.c.b16 %v5836, %v5834
    %v6143 = vpack.c.b16 %v5839, %v5837
    %v6144 = vpack.c.b16 %v5840, %v5838
    %v6145 = vpack.c.b16 %v5843, %v5841
    %v6146 = vpack.c.b16 %v5844, %v5842
    %v6147 = vpack.c.b16 %v5847, %v5845
    %v6148 = vpack.c.b16 %v5848, %v5846
    %v6149 = vpack.c.b16 %v5851, %v5849
    %v6150 = vpack.c.b16 %v5852, %v5850
    %v6151 = vpack.c.b16 %v5855, %v5853
    %v6152 = vpack.c.b16 %v5856, %v5854
    %v6153 = vpack.c.b16 %v5859, %v5857
    %v6154 = vpack.c.b16 %v5860, %v5858
    %v6155 = vpack.c.b16 %v5863, %v5861
    %v6156 = vpack.c.b16 %v5864, %v5862
    %v6157 = vpack.c.b16 %v5867, %v5865
    %v6158 = vpack.c.b16 %v5868, %v5866
    %v6159 = vpack.c.b16 %v5871, %v5869
    %v6160 = vpack.c.b16 %v5872, %v5870
    %v6161 = vpack.c.b16 %v5875, %v5873
    %v6162 = vpack.c.b16 %v5876, %v5874
    %v6163 = vpack.c.b16 %v5879, %v5877
    %v6164 = vpack.c.b16 %v5880, %v5878
    %v6165 = vpack.c.b16 %v5883, %v5881
    %v6166 = vpack.c.b16 %v5884, %v5882
    %v6167 = vpack.c.b16 %v5887, %v5885
    %v6168 = vpack.c.b16 %v5888, %v5886
    %v6169 = vpack.c.b16 %v5891, %v5889
    %v6170 = vpack.c.b16 %v5892, %v5890
    %v6171 = vpack.c.b16 %v5895, %v5893
    %v6172 = vpack.c.b16 %v5896, %v5894
    %v6173 = vpack.c.b16 %v5899, %v5897
    %v6174 = vpack.c.b16 %v5900, %v5898
    %v6175 = vpack.c.b16 %v5903, %v5901
    %v6176 = vpack.c.b16 %v5904, %v5902
    %v6177 = vpack.c.b16 %v5907, %v5905
    %v6178 = vpack.c.b16 %v5908, %v5906
    %v6179 = vpack.c.b16 %v5911, %v5909
    %v6180 = vpack.c.b16 %v5912, %v5910
    %v6181 = vpack.c.b16 %v5915, %v5913
    %v6182 = vpack.c.b16 %v5916, %v5914
    %v6183 = vpack.c.b16 %v5919, %v5917
    %v6184 = vpack.c.b16 %v5920, %v5918
    %v6185 = vpack.c.b16 %v5923, %v5921
    %v6186 = vpack.c.b16 %v5924, %v5922
    %v6187 = vpack.c.b16 %v5927, %v5925
    %v6188 = vpack.c.b16 %v5928, %v5926
    %v6189 = vpack.c.b16 %v5931, %v5929
    %v6190 = vpack.c.b16 %v5932, %v5930
    %v6191 = vpack.c.b16 %v5935, %v5933
    %v6192 = vpack.c.b16 %v5936, %v5934
    %v6193 = vpack.c.b16 %v5939, %v5937
    %v6194 = vpack.c.b16 %v5940, %v5938
    %v6195 = vpack.c.b16 %v5943, %v5941
    %v6196 = vpack.c.b16 %v5944, %v5942
    %v6197 = vpack.c.b16 %v5947, %v5945
    %v6198 = vpack.c.b16 %v5948, %v5946
    %v6199 = vpack.c.b16 %v5951, %v5949
    %v6200 = vpack.c.b16 %v5952, %v5950
    %v6201 = vpack.c.b16 %v5955, %v5953
    %v6202 = vpack.c.b16 %v5956, %v5954
    %v6203 = vpack.c.b16 %v5959, %v5957
    %v6204 = vpack.c.b16 %v5960, %v5958
    %v6205 = vpack.c.b16 %v5963, %v5961
    %v6206 = vpack.c.b16 %v5964, %v5962
    %v6207 = vpack.c.b16 %v5967, %v5965
    %v6208 = vpack.c.b16 %v5968, %v5966
    %v6209 = vpack.c.b16 %v5971, %v5969
    %v6210 = vpack.c.b16 %v5972, %v5970
    %v6211 = vpack.c.b16 %v5975, %v5973
    %v6212 = vpack.c.b16 %v5976, %v5974
    %v6213 = vpack.c.b16 %v5979, %v5977
    %v6214 = vpack.c.b16 %v5980, %v5978
    %v6215 = vpack.c.b16 %v5983, %v5981
    %v6216 = vpack.c.b16 %v5984, %v5982
    %v6217 = vpack.c.b16 %v5987, %v5985
    %v6218 = vpack.c.b16 %v5988, %v5986
    %v6219 = vpack.c.b16 %v5991, %v5989
    %v6220 = vpack.c.b16 %v5992, %v5990
    %v6221 = vpack.c.b16 %v5995, %v5993
    %v6222 = vpack.c.b16 %v5996, %v5994
    %v6223 = vpack.c.b16 %v5999, %v5997
    %v6224 = vpack.c.b16 %v6000, %v5998
    %v6225 = vpack.c.b16 %v6003, %v6001
    %v6226 = vpack.c.b16 %v6004, %v6002
    %v6227 = vpack.c.b16 %v6007, %v6005
    %v6228 = vpack.c.b16 %v6008, %v6006
    %v6229 = vpack.c.b16 %v6011, %v6009
    %v6230 = vpack.c.b16 %v6012, %v6010
    %v6231 = vpack.c.b16 %v6015, %v6013
    %v6232 = vpack.c.b16 %v6016, %v6014
    %v6233 = vpack.c.b16 %v6019, %v6017
    %v6234 = vpack.c.b16 %v6020, %v6018
    %v6235 = vpack.c.b16 %v6023, %v6021
    %v6236 = vpack.c.b16 %v6024, %v6022
    %v6237 = vpack.c.b16 %v6027, %v6025
    %v6238 = vpack.c.b16 %v6028, %v6026
    %v6239 = vpack.c.b16 %v6031, %v6029
    %v6240 = vpack.c.b16 %v6032, %v6030
    %v6241 = vpack.c.b16 %v6035, %v6033
    %v6242 = vpack.c.b16 %v6036, %v6034
    %v6243 = vpack.c.b16 %v6039, %v6037
    %v6244 = vpack.c.b16 %v6040, %v6038
    %v6245 = vpack.c.b16 %v6043, %v6041
    %v6246 = vpack.c.b16 %v6044, %v6042
    %v6247 = vpack.c.b16 %v6047, %v6045
    %v6248 = vpack.c.b16 %v6048, %v6046
    %v6249 = vpack.c.b16 %v6051, %v6049
    %v6250 = vpack.c.b16 %v6052, %v6050
    %v6251 = vpack.c.b16 %v6055, %v6053
    %v6252 = vpack.c.b16 %v6056, %v6054
    %v6253 = vpack.c.b16 %v6059, %v6057
    %v6254 = vpack.c.b16 %v6060, %v6058
    %v6255 = vpack.c.b16 %v6063, %v6061
    %v6256 = vpack.c.b16 %v6064, %v6062
    %v6257 = vpack.c.b16 %v6067, %v6065
    %v6258 = vpack.c.b16 %v6068, %v6066
    %v6259 = vpack.c.b16 %v6071, %v6069
    %v6260 = vpack.c.b16 %v6072, %v6070
    %v6261 = vpack.c.b16 %v6075, %v6073
    %v6262 = vpack.c.b16 %v6076, %v6074
    %v6263 = vpack.c.b16 %v6079, %v6077
    %v6264 = vpack.c.b16 %v6080, %v6078
    %v6265 = vpack.c.b16 %v6083, %v6081
    %v6266 = vpack.c.b16 %v6084, %v6082
    %v6267 = vpack.c.b16 %v6087, %v6085
    %v6268 = vpack.c.b16 %v6088, %v6086
    %v6269 = vpack.c.b16 %v6091, %v6089
    %v6270 = vpack.c.b16 %v6092, %v6090
    %v6271 = vpack.c.b16 %v6095, %v6093
    %v6272 = vpack.c.b16 %v6096, %v6094
    %v6273 = vpack.c.b16 %v6099, %v6097
    %v6274 = vpack.c.b16 %v6100, %v6098
    %v6275 = vpack.c.b16 %v6103, %v6101
    %v6276 = vpack.c.b16 %v6104, %v6102
    %v6277 = vpack.c.b16 %v6107, %v6105
    %v6278 = vpack.c.b16 %v6108, %v6106
    %v6279 = vpack.c.b16 %v6111, %v6109
    %v6280 = vpack.c.b16 %v6112, %v6110
    %v6281 = vpack.c.b16 %v6115, %v6113
    %v6282 = vpack.c.b16 %v6116, %v6114
    %v6283 = vpack.c.b16 %v6119, %v6117
    %v6284 = vpack.c.b16 %v6120, %v6118
    %v6285 = vpack.c.b16 %v6123, %v6121
    %v6286 = vpack.c.b16 %v6124, %v6122
    %v6287 = vpack.c.b16 %v6127, %v6125
    %v6288 = vpack.c.b16 %v6128, %v6126
    %6449 = vmatpush.bf16.msra.mxu0 %v6143
    %6450 = vmatpush.bf16.msra.mxu0 %v6141
    %6451 = vmatpush.bf16.msra.mxu0 %v6139
    %6452 = vmatpush.bf16.msra.mxu0 %v6137
    %6453 = vmatpush.bf16.msra.mxu0 %v6135
    %6454 = vmatpush.bf16.msra.mxu0 %v6133
    %6455 = vmatpush.bf16.msra.mxu0 %v6131
    %6456 = vmatpush.bf16.msra.mxu0 %v6129
    %6457 = vmatmul.bf16.gmra.mxu0 %v5389
    %v6458 = vpop.f32.mrf.mxu0
    %v6459 = vadd.f32 0.0, %v6458
    %v6460 = vpop.f32.mrf.mxu0
    %v6461 = vadd.f32 0.0, %v6460
    %6462 = vmatmul.bf16.gmra.mxu0 %v5391
    %v6463 = vpop.f32.mrf.mxu0
    %v6464 = vadd.f32 0.0, %v6463
    %v6465 = vpop.f32.mrf.mxu0
    %v6466 = vadd.f32 0.0, %v6465
    %6467 = vmatmul.bf16.gmra.mxu0 %v5393
    %v6468 = vpop.f32.mrf.mxu0
    %v6469 = vadd.f32 0.0, %v6468
    %v6470 = vpop.f32.mrf.mxu0
    %v6471 = vadd.f32 0.0, %v6470
    %6472 = vmatmul.bf16.gmra.mxu0 %v5395
    %v6473 = vpop.f32.mrf.mxu0
    %v6474 = vadd.f32 0.0, %v6473
    %v6475 = vpop.f32.mrf.mxu0
    %v6476 = vadd.f32 0.0, %v6475
    %6477 = vmatmul.bf16.gmra.mxu0 %v5397
    %v6478 = vpop.f32.mrf.mxu0
    %v6479 = vadd.f32 0.0, %v6478
    %v6480 = vpop.f32.mrf.mxu0
    %v6481 = vadd.f32 0.0, %v6480
    %6482 = vdwg.mxu0
    %6483 = vmatpush.bf16.msra.mxu0 %v6159
    %6484 = vmatpush.bf16.msra.mxu0 %v6157
    %6485 = vmatpush.bf16.msra.mxu0 %v6155
    %6486 = vmatpush.bf16.msra.mxu0 %v6153
    %6487 = vmatpush.bf16.msra.mxu0 %v6151
    %6488 = vmatpush.bf16.msra.mxu0 %v6149
    %6489 = vmatpush.bf16.msra.mxu0 %v6147
    %6490 = vmatpush.bf16.msra.mxu0 %v6145
    %6491 = vmatmul.bf16.gmra.mxu0 %v5390
    %v6492 = vpop.f32.mrf.mxu0
    %v6493 = vadd.f32 %v6459, %v6492
    %v6494 = vpop.f32.mrf.mxu0
    %v6495 = vadd.f32 %v6461, %v6494
    %6496 = vmatmul.bf16.gmra.mxu0 %v5392
    %v6497 = vpop.f32.mrf.mxu0
    %v6498 = vadd.f32 %v6464, %v6497
    %v6499 = vpop.f32.mrf.mxu0
    %v6500 = vadd.f32 %v6466, %v6499
    %6501 = vmatmul.bf16.gmra.mxu0 %v5394
    %v6502 = vpop.f32.mrf.mxu0
    %v6503 = vadd.f32 %v6469, %v6502
    %v6504 = vpop.f32.mrf.mxu0
    %v6505 = vadd.f32 %v6471, %v6504
    %6506 = vmatmul.bf16.gmra.mxu0 %v5396
    %v6507 = vpop.f32.mrf.mxu0
    %v6508 = vadd.f32 %v6474, %v6507
    %v6509 = vpop.f32.mrf.mxu0
    %v6510 = vadd.f32 %v6476, %v6509
    %6511 = vmatmul.bf16.gmra.mxu0 %v5398
    %v6512 = vpop.f32.mrf.mxu0
    %v6513 = vadd.f32 %v6479, %v6512
    %v6514 = vpop.f32.mrf.mxu0
    %v6515 = vadd.f32 %v6481, %v6514
    %6516 = vdwg.mxu0
    %6517 = vmatpush.bf16.msra.mxu0 %v6175
    %6518 = vmatpush.bf16.msra.mxu0 %v6173
    %6519 = vmatpush.bf16.msra.mxu0 %v6171
    %6520 = vmatpush.bf16.msra.mxu0 %v6169
    %6521 = vmatpush.bf16.msra.mxu0 %v6167
    %6522 = vmatpush.bf16.msra.mxu0 %v6165
    %6523 = vmatpush.bf16.msra.mxu0 %v6163
    %6524 = vmatpush.bf16.msra.mxu0 %v6161
    %6525 = vmatmul.bf16.gmra.mxu0 %v5439
    %v6526 = vpop.f32.mrf.mxu0
    %v6527 = vadd.f32 %v6493, %v6526
    %v6528 = vpop.f32.mrf.mxu0
    %v6529 = vadd.f32 %v6495, %v6528
    %6530 = vmatmul.bf16.gmra.mxu0 %v5441
    %v6531 = vpop.f32.mrf.mxu0
    %v6532 = vadd.f32 %v6498, %v6531
    %v6533 = vpop.f32.mrf.mxu0
    %v6534 = vadd.f32 %v6500, %v6533
    %6535 = vmatmul.bf16.gmra.mxu0 %v5443
    %v6536 = vpop.f32.mrf.mxu0
    %v6537 = vadd.f32 %v6503, %v6536
    %v6538 = vpop.f32.mrf.mxu0
    %v6539 = vadd.f32 %v6505, %v6538
    %6540 = vmatmul.bf16.gmra.mxu0 %v5445
    %v6541 = vpop.f32.mrf.mxu0
    %v6542 = vadd.f32 %v6508, %v6541
    %v6543 = vpop.f32.mrf.mxu0
    %v6544 = vadd.f32 %v6510, %v6543
    %6545 = vmatmul.bf16.gmra.mxu0 %v5447
    %v6546 = vpop.f32.mrf.mxu0
    %v6547 = vadd.f32 %v6513, %v6546
    %v6548 = vpop.f32.mrf.mxu0
    %v6549 = vadd.f32 %v6515, %v6548
    %6550 = vdwg.mxu0
    %6551 = vmatpush.bf16.msra.mxu0 %v6191
    %6552 = vmatpush.bf16.msra.mxu0 %v6189
    %6553 = vmatpush.bf16.msra.mxu0 %v6187
    %6554 = vmatpush.bf16.msra.mxu0 %v6185
    %6555 = vmatpush.bf16.msra.mxu0 %v6183
    %6556 = vmatpush.bf16.msra.mxu0 %v6181
    %6557 = vmatpush.bf16.msra.mxu0 %v6179
    %6558 = vmatpush.bf16.msra.mxu0 %v6177
    %6559 = vmatmul.bf16.gmra.mxu0 %v5440
    %v6560 = vpop.f32.mrf.mxu0
    %v6561 = vadd.f32 %v6527, %v6560
    %v6562 = vpop.f32.mrf.mxu0
    %v6563 = vadd.f32 %v6529, %v6562
    %6564 = vmatmul.bf16.gmra.mxu0 %v5442
    %v6565 = vpop.f32.mrf.mxu0
    %v6566 = vadd.f32 %v6532, %v6565
    %v6567 = vpop.f32.mrf.mxu0
    %v6568 = vadd.f32 %v6534, %v6567
    %6569 = vmatmul.bf16.gmra.mxu0 %v5444
    %v6570 = vpop.f32.mrf.mxu0
    %v6571 = vadd.f32 %v6537, %v6570
    %v6572 = vpop.f32.mrf.mxu0
    %v6573 = vadd.f32 %v6539, %v6572
    %6574 = vmatmul.bf16.gmra.mxu0 %v5446
    %v6575 = vpop.f32.mrf.mxu0
    %v6576 = vadd.f32 %v6542, %v6575
    %v6577 = vpop.f32.mrf.mxu0
    %v6578 = vadd.f32 %v6544, %v6577
    %6579 = vmatmul.bf16.gmra.mxu0 %v5448
    %v6580 = vpop.f32.mrf.mxu0
    %v6581 = vadd.f32 %v6547, %v6580
    %v6582 = vpop.f32.mrf.mxu0
    %v6583 = vadd.f32 %v6549, %v6582
    %6584 = vdwg.mxu0
    %6585 = vmatpush.bf16.msra.mxu0 %v6207
    %6586 = vmatpush.bf16.msra.mxu0 %v6205
    %6587 = vmatpush.bf16.msra.mxu0 %v6203
    %6588 = vmatpush.bf16.msra.mxu0 %v6201
    %6589 = vmatpush.bf16.msra.mxu0 %v6199
    %6590 = vmatpush.bf16.msra.mxu0 %v6197
    %6591 = vmatpush.bf16.msra.mxu0 %v6195
    %6592 = vmatpush.bf16.msra.mxu0 %v6193
    %6593 = vmatmul.bf16.gmra.mxu0 %v5391
    %v6594 = vpop.f32.mrf.mxu0
    %v6595 = vadd.f32 %v6561, %v6594
    %v6596 = vpop.f32.mrf.mxu0
    %v6597 = vadd.f32 %v6563, %v6596
    %6598 = vmatmul.bf16.gmra.mxu0 %v5393
    %v6599 = vpop.f32.mrf.mxu0
    %v6600 = vadd.f32 %v6566, %v6599
    %v6601 = vpop.f32.mrf.mxu0
    %v6602 = vadd.f32 %v6568, %v6601
    %6603 = vmatmul.bf16.gmra.mxu0 %v5395
    %v6604 = vpop.f32.mrf.mxu0
    %v6605 = vadd.f32 %v6571, %v6604
    %v6606 = vpop.f32.mrf.mxu0
    %v6607 = vadd.f32 %v6573, %v6606
    %6608 = vmatmul.bf16.gmra.mxu0 %v5397
    %v6609 = vpop.f32.mrf.mxu0
    %v6610 = vadd.f32 %v6576, %v6609
    %v6611 = vpop.f32.mrf.mxu0
    %v6612 = vadd.f32 %v6578, %v6611
    %6613 = vmatmul.bf16.gmra.mxu0 %v5465
    %v6614 = vpop.f32.mrf.mxu0
    %v6615 = vadd.f32 %v6581, %v6614
    %v6616 = vpop.f32.mrf.mxu0
    %v6617 = vadd.f32 %v6583, %v6616
    %6618 = vdwg.mxu0
    %6619 = vmatpush.bf16.msra.mxu0 %v6223
    %6620 = vmatpush.bf16.msra.mxu0 %v6221
    %6621 = vmatpush.bf16.msra.mxu0 %v6219
    %6622 = vmatpush.bf16.msra.mxu0 %v6217
    %6623 = vmatpush.bf16.msra.mxu0 %v6215
    %6624 = vmatpush.bf16.msra.mxu0 %v6213
    %6625 = vmatpush.bf16.msra.mxu0 %v6211
    %6626 = vmatpush.bf16.msra.mxu0 %v6209
    %6627 = vmatmul.bf16.gmra.mxu0 %v5392
    %v6628 = vpop.f32.mrf.mxu0
    %v6629 = vadd.f32 %v6595, %v6628
    %v6630 = vpop.f32.mrf.mxu0
    %v6631 = vadd.f32 %v6597, %v6630
    %6632 = vmatmul.bf16.gmra.mxu0 %v5394
    %v6633 = vpop.f32.mrf.mxu0
    %v6634 = vadd.f32 %v6600, %v6633
    %v6635 = vpop.f32.mrf.mxu0
    %v6636 = vadd.f32 %v6602, %v6635
    %6637 = vmatmul.bf16.gmra.mxu0 %v5396
    %v6638 = vpop.f32.mrf.mxu0
    %v6639 = vadd.f32 %v6605, %v6638
    %v6640 = vpop.f32.mrf.mxu0
    %v6641 = vadd.f32 %v6607, %v6640
    %6642 = vmatmul.bf16.gmra.mxu0 %v5398
    %v6643 = vpop.f32.mrf.mxu0
    %v6644 = vadd.f32 %v6610, %v6643
    %v6645 = vpop.f32.mrf.mxu0
    %v6646 = vadd.f32 %v6612, %v6645
    %6647 = vmatmul.bf16.gmra.mxu0 %v5466
    %v6648 = vpop.f32.mrf.mxu0
    %v6649 = vadd.f32 %v6615, %v6648
    %v6650 = vpop.f32.mrf.mxu0
    %v6651 = vadd.f32 %v6617, %v6650
    %6652 = vdwg.mxu0
    %6653 = vmatpush.bf16.msra.mxu0 %v6239
    %6654 = vmatpush.bf16.msra.mxu0 %v6237
    %6655 = vmatpush.bf16.msra.mxu0 %v6235
    %6656 = vmatpush.bf16.msra.mxu0 %v6233
    %6657 = vmatpush.bf16.msra.mxu0 %v6231
    %6658 = vmatpush.bf16.msra.mxu0 %v6229
    %6659 = vmatpush.bf16.msra.mxu0 %v6227
    %6660 = vmatpush.bf16.msra.mxu0 %v6225
    %6661 = vmatmul.bf16.gmra.mxu0 %v5441
    %v6662 = vpop.f32.mrf.mxu0
    %v6663 = vadd.f32 %v6629, %v6662
    %v6664 = vpop.f32.mrf.mxu0
    %v6665 = vadd.f32 %v6631, %v6664
    %6666 = vmatmul.bf16.gmra.mxu0 %v5443
    %v6667 = vpop.f32.mrf.mxu0
    %v6668 = vadd.f32 %v6634, %v6667
    %v6669 = vpop.f32.mrf.mxu0
    %v6670 = vadd.f32 %v6636, %v6669
    %6671 = vmatmul.bf16.gmra.mxu0 %v5445
    %v6672 = vpop.f32.mrf.mxu0
    %v6673 = vadd.f32 %v6639, %v6672
    %v6674 = vpop.f32.mrf.mxu0
    %v6675 = vadd.f32 %v6641, %v6674
    %6676 = vmatmul.bf16.gmra.mxu0 %v5447
    %v6677 = vpop.f32.mrf.mxu0
    %v6678 = vadd.f32 %v6644, %v6677
    %v6679 = vpop.f32.mrf.mxu0
    %v6680 = vadd.f32 %v6646, %v6679
    %6681 = vmatmul.bf16.gmra.mxu0 %v5475
    %v6682 = vpop.f32.mrf.mxu0
    %v6683 = vadd.f32 %v6649, %v6682
    %v6684 = vpop.f32.mrf.mxu0
    %v6685 = vadd.f32 %v6651, %v6684
    %6686 = vdwg.mxu0
    %6687 = vmatpush.bf16.msra.mxu0 %v6255
    %6688 = vmatpush.bf16.msra.mxu0 %v6253
    %6689 = vmatpush.bf16.msra.mxu0 %v6251
    %6690 = vmatpush.bf16.msra.mxu0 %v6249
    %6691 = vmatpush.bf16.msra.mxu0 %v6247
    %6692 = vmatpush.bf16.msra.mxu0 %v6245
    %6693 = vmatpush.bf16.msra.mxu0 %v6243
    %6694 = vmatpush.bf16.msra.mxu0 %v6241
    %6695 = vmatmul.bf16.gmra.mxu0 %v5442
    %v6696 = vpop.f32.mrf.mxu0
    %v6697 = vadd.f32 %v6663, %v6696
    %v6698 = vpop.f32.mrf.mxu0
    %v6699 = vadd.f32 %v6665, %v6698
    %6700 = vmatmul.bf16.gmra.mxu0 %v5444
    %v6701 = vpop.f32.mrf.mxu0
    %v6702 = vadd.f32 %v6668, %v6701
    %v6703 = vpop.f32.mrf.mxu0
    %v6704 = vadd.f32 %v6670, %v6703
    %6705 = vmatmul.bf16.gmra.mxu0 %v5446
    %v6706 = vpop.f32.mrf.mxu0
    %v6707 = vadd.f32 %v6673, %v6706
    %v6708 = vpop.f32.mrf.mxu0
    %v6709 = vadd.f32 %v6675, %v6708
    %6710 = vmatmul.bf16.gmra.mxu0 %v5448
    %v6711 = vpop.f32.mrf.mxu0
    %v6712 = vadd.f32 %v6678, %v6711
    %v6713 = vpop.f32.mrf.mxu0
    %v6714 = vadd.f32 %v6680, %v6713
    %6715 = vmatmul.bf16.gmra.mxu0 %v5476
    %v6716 = vpop.f32.mrf.mxu0
    %v6717 = vadd.f32 %v6683, %v6716
    %v6718 = vpop.f32.mrf.mxu0
    %v6719 = vadd.f32 %v6685, %v6718
    %6720 = vdwg.mxu0
    %6721 = vmatpush.bf16.msra.mxu0 %v6271
    %6722 = vmatpush.bf16.msra.mxu0 %v6269
    %6723 = vmatpush.bf16.msra.mxu0 %v6267
    %6724 = vmatpush.bf16.msra.mxu0 %v6265
    %6725 = vmatpush.bf16.msra.mxu0 %v6263
    %6726 = vmatpush.bf16.msra.mxu0 %v6261
    %6727 = vmatpush.bf16.msra.mxu0 %v6259
    %6728 = vmatpush.bf16.msra.mxu0 %v6257
    %6729 = vmatmul.bf16.gmra.mxu0 %v5393
    %v6730 = vpop.f32.mrf.mxu0
    %v6731 = vadd.f32 %v6697, %v6730
    %v6732 = vpop.f32.mrf.mxu0
    %v6733 = vadd.f32 %v6699, %v6732
    %6734 = vmatmul.bf16.gmra.mxu0 %v5395
    %v6735 = vpop.f32.mrf.mxu0
    %v6736 = vadd.f32 %v6702, %v6735
    %v6737 = vpop.f32.mrf.mxu0
    %v6738 = vadd.f32 %v6704, %v6737
    %6739 = vmatmul.bf16.gmra.mxu0 %v5397
    %v6740 = vpop.f32.mrf.mxu0
    %v6741 = vadd.f32 %v6707, %v6740
    %v6742 = vpop.f32.mrf.mxu0
    %v6743 = vadd.f32 %v6709, %v6742
    %6744 = vmatmul.bf16.gmra.mxu0 %v5465
    %v6745 = vpop.f32.mrf.mxu0
    %v6746 = vadd.f32 %v6712, %v6745
    %v6747 = vpop.f32.mrf.mxu0
    %v6748 = vadd.f32 %v6714, %v6747
    %6749 = vmatmul.bf16.gmra.mxu0 %v5485
    %v6750 = vpop.f32.mrf.mxu0
    %v6751 = vadd.f32 %v6717, %v6750
    %v6752 = vpop.f32.mrf.mxu0
    %v6753 = vadd.f32 %v6719, %v6752
    %6754 = vdwg.mxu0
    %6755 = vmatpush.bf16.msra.mxu0 %v6287
    %6756 = vmatpush.bf16.msra.mxu0 %v6285
    %6757 = vmatpush.bf16.msra.mxu0 %v6283
    %6758 = vmatpush.bf16.msra.mxu0 %v6281
    %6759 = vmatpush.bf16.msra.mxu0 %v6279
    %6760 = vmatpush.bf16.msra.mxu0 %v6277
    %6761 = vmatpush.bf16.msra.mxu0 %v6275
    %6762 = vmatpush.bf16.msra.mxu0 %v6273
    %6763 = vmatmul.bf16.gmra.mxu0 %v5394
    %v6764 = vpop.f32.mrf.mxu0
    %v6765 = vadd.f32 %v6731, %v6764
    %v6766 = vpop.f32.mrf.mxu0
    %v6767 = vadd.f32 %v6733, %v6766
    %6768 = vmatmul.bf16.gmra.mxu0 %v5396
    %v6769 = vpop.f32.mrf.mxu0
    %v6770 = vadd.f32 %v6736, %v6769
    %v6771 = vpop.f32.mrf.mxu0
    %v6772 = vadd.f32 %v6738, %v6771
    %6773 = vmatmul.bf16.gmra.mxu0 %v5398
    %v6774 = vpop.f32.mrf.mxu0
    %v6775 = vadd.f32 %v6741, %v6774
    %v6776 = vpop.f32.mrf.mxu0
    %v6777 = vadd.f32 %v6743, %v6776
    %6778 = vmatmul.bf16.gmra.mxu0 %v5466
    %v6779 = vpop.f32.mrf.mxu0
    %v6780 = vadd.f32 %v6746, %v6779
    %v6781 = vpop.f32.mrf.mxu0
    %v6782 = vadd.f32 %v6748, %v6781
    %6783 = vmatmul.bf16.gmra.mxu0 %v5486
    %v6784 = vpop.f32.mrf.mxu0
    %v6785 = vadd.f32 %v6751, %v6784
    %v6786 = vpop.f32.mrf.mxu0
    %v6787 = vadd.f32 %v6753, %v6786
    %6788 = vdwg.mxu0
    %6789 = vmatpush.bf16.msra.mxu0 %v6144
    %6790 = vmatpush.bf16.msra.mxu0 %v6142
    %6791 = vmatpush.bf16.msra.mxu0 %v6140
    %6792 = vmatpush.bf16.msra.mxu0 %v6138
    %6793 = vmatpush.bf16.msra.mxu0 %v6136
    %6794 = vmatpush.bf16.msra.mxu0 %v6134
    %6795 = vmatpush.bf16.msra.mxu0 %v6132
    %6796 = vmatpush.bf16.msra.mxu0 %v6130
    %6797 = vmatmul.bf16.gmra.mxu0 %v5389
    %v6798 = vpop.f32.mrf.mxu0
    %v6799 = vadd.f32 0.0, %v6798
    %v6800 = vpop.f32.mrf.mxu0
    %v6801 = vadd.f32 0.0, %v6800
    %6802 = vmatmul.bf16.gmra.mxu0 %v5391
    %v6803 = vpop.f32.mrf.mxu0
    %v6804 = vadd.f32 0.0, %v6803
    %v6805 = vpop.f32.mrf.mxu0
    %v6806 = vadd.f32 0.0, %v6805
    %6807 = vmatmul.bf16.gmra.mxu0 %v5393
    %v6808 = vpop.f32.mrf.mxu0
    %v6809 = vadd.f32 0.0, %v6808
    %v6810 = vpop.f32.mrf.mxu0
    %v6811 = vadd.f32 0.0, %v6810
    %6812 = vmatmul.bf16.gmra.mxu0 %v5395
    %v6813 = vpop.f32.mrf.mxu0
    %v6814 = vadd.f32 0.0, %v6813
    %v6815 = vpop.f32.mrf.mxu0
    %v6816 = vadd.f32 0.0, %v6815
    %6817 = vmatmul.bf16.gmra.mxu0 %v5397
    %v6818 = vpop.f32.mrf.mxu0
    %v6819 = vadd.f32 0.0, %v6818
    %v6820 = vpop.f32.mrf.mxu0
    %v6821 = vadd.f32 0.0, %v6820
    %6822 = vdwg.mxu0
    %6823 = vmatpush.bf16.msra.mxu0 %v6160
    %6824 = vmatpush.bf16.msra.mxu0 %v6158
    %6825 = vmatpush.bf16.msra.mxu0 %v6156
    %6826 = vmatpush.bf16.msra.mxu0 %v6154
    %6827 = vmatpush.bf16.msra.mxu0 %v6152
    %6828 = vmatpush.bf16.msra.mxu0 %v6150
    %6829 = vmatpush.bf16.msra.mxu0 %v6148
    %6830 = vmatpush.bf16.msra.mxu0 %v6146
    %6831 = vmatmul.bf16.gmra.mxu0 %v5390
    %v6832 = vpop.f32.mrf.mxu0
    %v6833 = vadd.f32 %v6799, %v6832
    %v6834 = vpop.f32.mrf.mxu0
    %v6835 = vadd.f32 %v6801, %v6834
    %6836 = vmatmul.bf16.gmra.mxu0 %v5392
    %v6837 = vpop.f32.mrf.mxu0
    %v6838 = vadd.f32 %v6804, %v6837
    %v6839 = vpop.f32.mrf.mxu0
    %v6840 = vadd.f32 %v6806, %v6839
    %6841 = vmatmul.bf16.gmra.mxu0 %v5394
    %v6842 = vpop.f32.mrf.mxu0
    %v6843 = vadd.f32 %v6809, %v6842
    %v6844 = vpop.f32.mrf.mxu0
    %v6845 = vadd.f32 %v6811, %v6844
    %6846 = vmatmul.bf16.gmra.mxu0 %v5396
    %v6847 = vpop.f32.mrf.mxu0
    %v6848 = vadd.f32 %v6814, %v6847
    %v6849 = vpop.f32.mrf.mxu0
    %v6850 = vadd.f32 %v6816, %v6849
    %6851 = vmatmul.bf16.gmra.mxu0 %v5398
    %v6852 = vpop.f32.mrf.mxu0
    %v6853 = vadd.f32 %v6819, %v6852
    %v6854 = vpop.f32.mrf.mxu0
    %v6855 = vadd.f32 %v6821, %v6854
    %6856 = vdwg.mxu0
    %6857 = vmatpush.bf16.msra.mxu0 %v6176
    %6858 = vmatpush.bf16.msra.mxu0 %v6174
    %6859 = vmatpush.bf16.msra.mxu0 %v6172
    %6860 = vmatpush.bf16.msra.mxu0 %v6170
    %6861 = vmatpush.bf16.msra.mxu0 %v6168
    %6862 = vmatpush.bf16.msra.mxu0 %v6166
    %6863 = vmatpush.bf16.msra.mxu0 %v6164
    %6864 = vmatpush.bf16.msra.mxu0 %v6162
    %6865 = vmatmul.bf16.gmra.mxu0 %v5439
    %v6866 = vpop.f32.mrf.mxu0
    %v6867 = vadd.f32 %v6833, %v6866
    %v6868 = vpop.f32.mrf.mxu0
    %v6869 = vadd.f32 %v6835, %v6868
    %6870 = vmatmul.bf16.gmra.mxu0 %v5441
    %v6871 = vpop.f32.mrf.mxu0
    %v6872 = vadd.f32 %v6838, %v6871
    %v6873 = vpop.f32.mrf.mxu0
    %v6874 = vadd.f32 %v6840, %v6873
    %6875 = vmatmul.bf16.gmra.mxu0 %v5443
    %v6876 = vpop.f32.mrf.mxu0
    %v6877 = vadd.f32 %v6843, %v6876
    %v6878 = vpop.f32.mrf.mxu0
    %v6879 = vadd.f32 %v6845, %v6878
    %6880 = vmatmul.bf16.gmra.mxu0 %v5445
    %v6881 = vpop.f32.mrf.mxu0
    %v6882 = vadd.f32 %v6848, %v6881
    %v6883 = vpop.f32.mrf.mxu0
    %v6884 = vadd.f32 %v6850, %v6883
    %6885 = vmatmul.bf16.gmra.mxu0 %v5447
    %v6886 = vpop.f32.mrf.mxu0
    %v6887 = vadd.f32 %v6853, %v6886
    %v6888 = vpop.f32.mrf.mxu0
    %v6889 = vadd.f32 %v6855, %v6888
    %6890 = vdwg.mxu0
    %6891 = vmatpush.bf16.msra.mxu0 %v6192
    %6892 = vmatpush.bf16.msra.mxu0 %v6190
    %6893 = vmatpush.bf16.msra.mxu0 %v6188
    %6894 = vmatpush.bf16.msra.mxu0 %v6186
    %6895 = vmatpush.bf16.msra.mxu0 %v6184
    %6896 = vmatpush.bf16.msra.mxu0 %v6182
    %6897 = vmatpush.bf16.msra.mxu0 %v6180
    %6898 = vmatpush.bf16.msra.mxu0 %v6178
    %6899 = vmatmul.bf16.gmra.mxu0 %v5440
    %v6900 = vpop.f32.mrf.mxu0
    %v6901 = vadd.f32 %v6867, %v6900
    %v6902 = vpop.f32.mrf.mxu0
    %v6903 = vadd.f32 %v6869, %v6902
    %6904 = vmatmul.bf16.gmra.mxu0 %v5442
    %v6905 = vpop.f32.mrf.mxu0
    %v6906 = vadd.f32 %v6872, %v6905
    %v6907 = vpop.f32.mrf.mxu0
    %v6908 = vadd.f32 %v6874, %v6907
    %6909 = vmatmul.bf16.gmra.mxu0 %v5444
    %v6910 = vpop.f32.mrf.mxu0
    %v6911 = vadd.f32 %v6877, %v6910
    %v6912 = vpop.f32.mrf.mxu0
    %v6913 = vadd.f32 %v6879, %v6912
    %6914 = vmatmul.bf16.gmra.mxu0 %v5446
    %v6915 = vpop.f32.mrf.mxu0
    %v6916 = vadd.f32 %v6882, %v6915
    %v6917 = vpop.f32.mrf.mxu0
    %v6918 = vadd.f32 %v6884, %v6917
    %6919 = vmatmul.bf16.gmra.mxu0 %v5448
    %v6920 = vpop.f32.mrf.mxu0
    %v6921 = vadd.f32 %v6887, %v6920
    %v6922 = vpop.f32.mrf.mxu0
    %v6923 = vadd.f32 %v6889, %v6922
    %6924 = vdwg.mxu0
    %6925 = vmatpush.bf16.msra.mxu0 %v6208
    %6926 = vmatpush.bf16.msra.mxu0 %v6206
    %6927 = vmatpush.bf16.msra.mxu0 %v6204
    %6928 = vmatpush.bf16.msra.mxu0 %v6202
    %6929 = vmatpush.bf16.msra.mxu0 %v6200
    %6930 = vmatpush.bf16.msra.mxu0 %v6198
    %6931 = vmatpush.bf16.msra.mxu0 %v6196
    %6932 = vmatpush.bf16.msra.mxu0 %v6194
    %6933 = vmatmul.bf16.gmra.mxu0 %v5391
    %v6934 = vpop.f32.mrf.mxu0
    %v6935 = vadd.f32 %v6901, %v6934
    %v6936 = vpop.f32.mrf.mxu0
    %v6937 = vadd.f32 %v6903, %v6936
    %6938 = vmatmul.bf16.gmra.mxu0 %v5393
    %v6939 = vpop.f32.mrf.mxu0
    %v6940 = vadd.f32 %v6906, %v6939
    %v6941 = vpop.f32.mrf.mxu0
    %v6942 = vadd.f32 %v6908, %v6941
    %6943 = vmatmul.bf16.gmra.mxu0 %v5395
    %v6944 = vpop.f32.mrf.mxu0
    %v6945 = vadd.f32 %v6911, %v6944
    %v6946 = vpop.f32.mrf.mxu0
    %v6947 = vadd.f32 %v6913, %v6946
    %6948 = vmatmul.bf16.gmra.mxu0 %v5397
    %v6949 = vpop.f32.mrf.mxu0
    %v6950 = vadd.f32 %v6916, %v6949
    %v6951 = vpop.f32.mrf.mxu0
    %v6952 = vadd.f32 %v6918, %v6951
    %6953 = vmatmul.bf16.gmra.mxu0 %v5465
    %v6954 = vpop.f32.mrf.mxu0
    %v6955 = vadd.f32 %v6921, %v6954
    %v6956 = vpop.f32.mrf.mxu0
    %v6957 = vadd.f32 %v6923, %v6956
    %6958 = vdwg.mxu0
    %6959 = vmatpush.bf16.msra.mxu0 %v6224
    %6960 = vmatpush.bf16.msra.mxu0 %v6222
    %6961 = vmatpush.bf16.msra.mxu0 %v6220
    %6962 = vmatpush.bf16.msra.mxu0 %v6218
    %6963 = vmatpush.bf16.msra.mxu0 %v6216
    %6964 = vmatpush.bf16.msra.mxu0 %v6214
    %6965 = vmatpush.bf16.msra.mxu0 %v6212
    %6966 = vmatpush.bf16.msra.mxu0 %v6210
    %6967 = vmatmul.bf16.gmra.mxu0 %v5392
    %v6968 = vpop.f32.mrf.mxu0
    %v6969 = vadd.f32 %v6935, %v6968
    %v6970 = vpop.f32.mrf.mxu0
    %v6971 = vadd.f32 %v6937, %v6970
    %6972 = vmatmul.bf16.gmra.mxu0 %v5394
    %v6973 = vpop.f32.mrf.mxu0
    %v6974 = vadd.f32 %v6940, %v6973
    %v6975 = vpop.f32.mrf.mxu0
    %v6976 = vadd.f32 %v6942, %v6975
    %6977 = vmatmul.bf16.gmra.mxu0 %v5396
    %v6978 = vpop.f32.mrf.mxu0
    %v6979 = vadd.f32 %v6945, %v6978
    %v6980 = vpop.f32.mrf.mxu0
    %v6981 = vadd.f32 %v6947, %v6980
    %6982 = vmatmul.bf16.gmra.mxu0 %v5398
    %v6983 = vpop.f32.mrf.mxu0
    %v6984 = vadd.f32 %v6950, %v6983
    %v6985 = vpop.f32.mrf.mxu0
    %v6986 = vadd.f32 %v6952, %v6985
    %6987 = vmatmul.bf16.gmra.mxu0 %v5466
    %v6988 = vpop.f32.mrf.mxu0
    %v6989 = vadd.f32 %v6955, %v6988
    %v6990 = vpop.f32.mrf.mxu0
    %v6991 = vadd.f32 %v6957, %v6990
    %6992 = vdwg.mxu0
    %6993 = vmatpush.bf16.msra.mxu0 %v6240
    %6994 = vmatpush.bf16.msra.mxu0 %v6238
    %6995 = vmatpush.bf16.msra.mxu0 %v6236
    %6996 = vmatpush.bf16.msra.mxu0 %v6234
    %6997 = vmatpush.bf16.msra.mxu0 %v6232
    %6998 = vmatpush.bf16.msra.mxu0 %v6230
    %6999 = vmatpush.bf16.msra.mxu0 %v6228
    %7000 = vmatpush.bf16.msra.mxu0 %v6226
    %7001 = vmatmul.bf16.gmra.mxu0 %v5441
    %v7002 = vpop.f32.mrf.mxu0
    %v7003 = vadd.f32 %v6969, %v7002
    %v7004 = vpop.f32.mrf.mxu0
    %v7005 = vadd.f32 %v6971, %v7004
    %7006 = vmatmul.bf16.gmra.mxu0 %v5443
    %v7007 = vpop.f32.mrf.mxu0
    %v7008 = vadd.f32 %v6974, %v7007
    %v7009 = vpop.f32.mrf.mxu0
    %v7010 = vadd.f32 %v6976, %v7009
    %7011 = vmatmul.bf16.gmra.mxu0 %v5445
    %v7012 = vpop.f32.mrf.mxu0
    %v7013 = vadd.f32 %v6979, %v7012
    %v7014 = vpop.f32.mrf.mxu0
    %v7015 = vadd.f32 %v6981, %v7014
    %7016 = vmatmul.bf16.gmra.mxu0 %v5447
    %v7017 = vpop.f32.mrf.mxu0
    %v7018 = vadd.f32 %v6984, %v7017
    %v7019 = vpop.f32.mrf.mxu0
    %v7020 = vadd.f32 %v6986, %v7019
    %7021 = vmatmul.bf16.gmra.mxu0 %v5475
    %v7022 = vpop.f32.mrf.mxu0
    %v7023 = vadd.f32 %v6989, %v7022
    %v7024 = vpop.f32.mrf.mxu0
    %v7025 = vadd.f32 %v6991, %v7024
    %7026 = vdwg.mxu0
    %7027 = vmatpush.bf16.msra.mxu0 %v6256
    %7028 = vmatpush.bf16.msra.mxu0 %v6254
    %7029 = vmatpush.bf16.msra.mxu0 %v6252
    %7030 = vmatpush.bf16.msra.mxu0 %v6250
    %7031 = vmatpush.bf16.msra.mxu0 %v6248
    %7032 = vmatpush.bf16.msra.mxu0 %v6246
    %7033 = vmatpush.bf16.msra.mxu0 %v6244
    %7034 = vmatpush.bf16.msra.mxu0 %v6242
    %7035 = vmatmul.bf16.gmra.mxu0 %v5442
    %v7036 = vpop.f32.mrf.mxu0
    %v7037 = vadd.f32 %v7003, %v7036
    %v7038 = vpop.f32.mrf.mxu0
    %v7039 = vadd.f32 %v7005, %v7038
    %7040 = vmatmul.bf16.gmra.mxu0 %v5444
    %v7041 = vpop.f32.mrf.mxu0
    %v7042 = vadd.f32 %v7008, %v7041
    %v7043 = vpop.f32.mrf.mxu0
    %v7044 = vadd.f32 %v7010, %v7043
    %7045 = vmatmul.bf16.gmra.mxu0 %v5446
    %v7046 = vpop.f32.mrf.mxu0
    %v7047 = vadd.f32 %v7013, %v7046
    %v7048 = vpop.f32.mrf.mxu0
    %v7049 = vadd.f32 %v7015, %v7048
    %7050 = vmatmul.bf16.gmra.mxu0 %v5448
    %v7051 = vpop.f32.mrf.mxu0
    %v7052 = vadd.f32 %v7018, %v7051
    %v7053 = vpop.f32.mrf.mxu0
    %v7054 = vadd.f32 %v7020, %v7053
    %7055 = vmatmul.bf16.gmra.mxu0 %v5476
    %v7056 = vpop.f32.mrf.mxu0
    %v7057 = vadd.f32 %v7023, %v7056
    %v7058 = vpop.f32.mrf.mxu0
    %v7059 = vadd.f32 %v7025, %v7058
    %7060 = vdwg.mxu0
    %7061 = vmatpush.bf16.msra.mxu0 %v6272
    %7062 = vmatpush.bf16.msra.mxu0 %v6270
    %7063 = vmatpush.bf16.msra.mxu0 %v6268
    %7064 = vmatpush.bf16.msra.mxu0 %v6266
    %7065 = vmatpush.bf16.msra.mxu0 %v6264
    %7066 = vmatpush.bf16.msra.mxu0 %v6262
    %7067 = vmatpush.bf16.msra.mxu0 %v6260
    %7068 = vmatpush.bf16.msra.mxu0 %v6258
    %7069 = vmatmul.bf16.gmra.mxu0 %v5393
    %v7070 = vpop.f32.mrf.mxu0
    %v7071 = vadd.f32 %v7037, %v7070
    %v7072 = vpop.f32.mrf.mxu0
    %v7073 = vadd.f32 %v7039, %v7072
    %7074 = vmatmul.bf16.gmra.mxu0 %v5395
    %v7075 = vpop.f32.mrf.mxu0
    %v7076 = vadd.f32 %v7042, %v7075
    %v7077 = vpop.f32.mrf.mxu0
    %v7078 = vadd.f32 %v7044, %v7077
    %7079 = vmatmul.bf16.gmra.mxu0 %v5397
    %v7080 = vpop.f32.mrf.mxu0
    %v7081 = vadd.f32 %v7047, %v7080
    %v7082 = vpop.f32.mrf.mxu0
    %v7083 = vadd.f32 %v7049, %v7082
    %7084 = vmatmul.bf16.gmra.mxu0 %v5465
    %v7085 = vpop.f32.mrf.mxu0
    %v7086 = vadd.f32 %v7052, %v7085
    %v7087 = vpop.f32.mrf.mxu0
    %v7088 = vadd.f32 %v7054, %v7087
    %7089 = vmatmul.bf16.gmra.mxu0 %v5485
    %v7090 = vpop.f32.mrf.mxu0
    %v7091 = vadd.f32 %v7057, %v7090
    %v7092 = vpop.f32.mrf.mxu0
    %v7093 = vadd.f32 %v7059, %v7092
    %7094 = vdwg.mxu0
    %7095 = vmatpush.bf16.msra.mxu0 %v6288
    %7096 = vmatpush.bf16.msra.mxu0 %v6286
    %7097 = vmatpush.bf16.msra.mxu0 %v6284
    %7098 = vmatpush.bf16.msra.mxu0 %v6282
    %7099 = vmatpush.bf16.msra.mxu0 %v6280
    %7100 = vmatpush.bf16.msra.mxu0 %v6278
    %7101 = vmatpush.bf16.msra.mxu0 %v6276
    %7102 = vmatpush.bf16.msra.mxu0 %v6274
    %7103 = vmatmul.bf16.gmra.mxu0 %v5394
    %v7104 = vpop.f32.mrf.mxu0
    %v7105 = vadd.f32 %v7071, %v7104
    %v7106 = vpop.f32.mrf.mxu0
    %v7107 = vadd.f32 %v7073, %v7106
    %7108 = vmatmul.bf16.gmra.mxu0 %v5396
    %v7109 = vpop.f32.mrf.mxu0
    %v7110 = vadd.f32 %v7076, %v7109
    %v7111 = vpop.f32.mrf.mxu0
    %v7112 = vadd.f32 %v7078, %v7111
    %7113 = vmatmul.bf16.gmra.mxu0 %v5398
    %v7114 = vpop.f32.mrf.mxu0
    %v7115 = vadd.f32 %v7081, %v7114
    %v7116 = vpop.f32.mrf.mxu0
    %v7117 = vadd.f32 %v7083, %v7116
    %7118 = vmatmul.bf16.gmra.mxu0 %v5466
    %v7119 = vpop.f32.mrf.mxu0
    %v7120 = vadd.f32 %v7086, %v7119
    %v7121 = vpop.f32.mrf.mxu0
    %v7122 = vadd.f32 %v7088, %v7121
    %7123 = vmatmul.bf16.gmra.mxu0 %v5486
    %v7124 = vpop.f32.mrf.mxu0
    %v7125 = vadd.f32 %v7091, %v7124
    %v7126 = vpop.f32.mrf.mxu0
    %v7127 = vadd.f32 %v7093, %v7126
    %7128 = vdwg.mxu0
    %s7129 = scalar_lea.vmem [#allocation6], 1280
    %v7130 = vld [vmem:[%s7129] sm:$0xff]
    %v7131 = vld [vmem:[%s7129 + $0x8] sm:$0xff]
    %v7132 = vld [vmem:[%s7129 + $0x10] sm:$0xff]
    %v7133 = vld [vmem:[%s7129 + $0x18] sm:$0xff]
    %v7134 = vld [vmem:[%s7129 + $0x20] sm:$0xff]
    %v7135 = vld [vmem:[%s7129 + $0x28] sm:$0xff]
    %v7136 = vld [vmem:[%s7129 + $0x30] sm:$0xff]
    %v7137 = vld [vmem:[%s7129 + $0x38] sm:$0xff]
    %v7138 = vld [vmem:[%s7129 + $0x40] sm:$0xff]
    %v7139 = vld [vmem:[%s7129 + $0x48] sm:$0xff]
    %v7140 = vld [vmem:[%s7129 + $0x50] sm:$0xff]
    %v7141 = vld [vmem:[%s7129 + $0x58] sm:$0xff]
    %v7142 = vld [vmem:[%s7129 + $0x60] sm:$0xff]
    %v7143 = vld [vmem:[%s7129 + $0x68] sm:$0xff]
    %v7144 = vld [vmem:[%s7129 + $0x70] sm:$0xff]
    %v7145 = vld [vmem:[%s7129 + $0x78] sm:$0xff]
    %v7146 = vld [vmem:[%s7129 + $0x80] sm:$0xff]
    %v7147 = vld [vmem:[%s7129 + $0x88] sm:$0xff]
    %v7148 = vld [vmem:[%s7129 + $0x90] sm:$0xff]
    %v7149 = vld [vmem:[%s7129 + $0x98] sm:$0xff]
    %v7150 = vld [vmem:[%s7129 + $0xa0] sm:$0xff]
    %v7151 = vld [vmem:[%s7129 + $0xa8] sm:$0xff]
    %v7152 = vld [vmem:[%s7129 + $0xb0] sm:$0xff]
    %v7153 = vld [vmem:[%s7129 + $0xb8] sm:$0xff]
    %v7154 = vld [vmem:[%s7129 + $0xc0] sm:$0xff]
    %v7155 = vld [vmem:[%s7129 + $0xc8] sm:$0xff]
    %v7156 = vld [vmem:[%s7129 + $0xd0] sm:$0xff]
    %v7157 = vld [vmem:[%s7129 + $0xd8] sm:$0xff]
    %v7158 = vld [vmem:[%s7129 + $0xe0] sm:$0xff]
    %v7159 = vld [vmem:[%s7129 + $0xe8] sm:$0xff]
    %v7160 = vld [vmem:[%s7129 + $0xf0] sm:$0xff]
    %v7161 = vld [vmem:[%s7129 + $0xf8] sm:$0xff]
    %v7162 = vld [vmem:[%s7129 + $0x100] sm:$0xff]
    %v7163 = vld [vmem:[%s7129 + $0x108] sm:$0xff]
    %v7164 = vld [vmem:[%s7129 + $0x110] sm:$0xff]
    %v7165 = vld [vmem:[%s7129 + $0x118] sm:$0xff]
    %v7166 = vld [vmem:[%s7129 + $0x120] sm:$0xff]
    %v7167 = vld [vmem:[%s7129 + $0x128] sm:$0xff]
    %v7168 = vld [vmem:[%s7129 + $0x130] sm:$0xff]
    %v7169 = vld [vmem:[%s7129 + $0x138] sm:$0xff]
    %v7170 = vld [vmem:[%s7129 + $0x140] sm:$0xff]
    %v7171 = vld [vmem:[%s7129 + $0x148] sm:$0xff]
    %v7172 = vld [vmem:[%s7129 + $0x150] sm:$0xff]
    %v7173 = vld [vmem:[%s7129 + $0x158] sm:$0xff]
    %v7174 = vld [vmem:[%s7129 + $0x160] sm:$0xff]
    %v7175 = vld [vmem:[%s7129 + $0x168] sm:$0xff]
    %v7176 = vld [vmem:[%s7129 + $0x170] sm:$0xff]
    %v7177 = vld [vmem:[%s7129 + $0x178] sm:$0xff]
    %v7178 = vld [vmem:[%s7129 + $0x180] sm:$0xff]
    %v7179 = vld [vmem:[%s7129 + $0x188] sm:$0xff]
    %v7180 = vld [vmem:[%s7129 + $0x190] sm:$0xff]
    %v7181 = vld [vmem:[%s7129 + $0x198] sm:$0xff]
    %v7182 = vld [vmem:[%s7129 + $0x1a0] sm:$0xff]
    %v7183 = vld [vmem:[%s7129 + $0x1a8] sm:$0xff]
    %v7184 = vld [vmem:[%s7129 + $0x1b0] sm:$0xff]
    %v7185 = vld [vmem:[%s7129 + $0x1b8] sm:$0xff]
    %v7186 = vld [vmem:[%s7129 + $0x1c0] sm:$0xff]
    %v7187 = vld [vmem:[%s7129 + $0x1c8] sm:$0xff]
    %v7188 = vld [vmem:[%s7129 + $0x1d0] sm:$0xff]
    %v7189 = vld [vmem:[%s7129 + $0x1d8] sm:$0xff]
    %v7190 = vld [vmem:[%s7129 + $0x1e0] sm:$0xff]
    %v7191 = vld [vmem:[%s7129 + $0x1e8] sm:$0xff]
    %v7192 = vld [vmem:[%s7129 + $0x1f0] sm:$0xff]
    %v7193 = vld [vmem:[%s7129 + $0x1f8] sm:$0xff]
    %v7194 = vld [vmem:[%s7129 + $0x200] sm:$0xff]
    %v7195 = vld [vmem:[%s7129 + $0x208] sm:$0xff]
    %v7196 = vld [vmem:[%s7129 + $0x210] sm:$0xff]
    %v7197 = vld [vmem:[%s7129 + $0x218] sm:$0xff]
    %v7198 = vld [vmem:[%s7129 + $0x220] sm:$0xff]
    %v7199 = vld [vmem:[%s7129 + $0x228] sm:$0xff]
    %v7200 = vld [vmem:[%s7129 + $0x230] sm:$0xff]
    %v7201 = vld [vmem:[%s7129 + $0x238] sm:$0xff]
    %v7202 = vld [vmem:[%s7129 + $0x240] sm:$0xff]
    %v7203 = vld [vmem:[%s7129 + $0x248] sm:$0xff]
    %v7204 = vld [vmem:[%s7129 + $0x250] sm:$0xff]
    %v7205 = vld [vmem:[%s7129 + $0x258] sm:$0xff]
    %v7206 = vld [vmem:[%s7129 + $0x260] sm:$0xff]
    %v7207 = vld [vmem:[%s7129 + $0x268] sm:$0xff]
    %v7208 = vld [vmem:[%s7129 + $0x270] sm:$0xff]
    %v7209 = vld [vmem:[%s7129 + $0x278] sm:$0xff]
    %v7210 = vld [vmem:[%s7129 + $0x280] sm:$0xff]
    %v7211 = vld [vmem:[%s7129 + $0x288] sm:$0xff]
    %v7212 = vld [vmem:[%s7129 + $0x290] sm:$0xff]
    %v7213 = vld [vmem:[%s7129 + $0x298] sm:$0xff]
    %v7214 = vld [vmem:[%s7129 + $0x2a0] sm:$0xff]
    %v7215 = vld [vmem:[%s7129 + $0x2a8] sm:$0xff]
    %v7216 = vld [vmem:[%s7129 + $0x2b0] sm:$0xff]
    %v7217 = vld [vmem:[%s7129 + $0x2b8] sm:$0xff]
    %v7218 = vld [vmem:[%s7129 + $0x2c0] sm:$0xff]
    %v7219 = vld [vmem:[%s7129 + $0x2c8] sm:$0xff]
    %v7220 = vld [vmem:[%s7129 + $0x2d0] sm:$0xff]
    %v7221 = vld [vmem:[%s7129 + $0x2d8] sm:$0xff]
    %v7222 = vld [vmem:[%s7129 + $0x2e0] sm:$0xff]
    %v7223 = vld [vmem:[%s7129 + $0x2e8] sm:$0xff]
    %v7224 = vld [vmem:[%s7129 + $0x2f0] sm:$0xff]
    %v7225 = vld [vmem:[%s7129 + $0x2f8] sm:$0xff]
    %v7226 = vld [vmem:[%s7129 + $0x300] sm:$0xff]
    %v7227 = vld [vmem:[%s7129 + $0x308] sm:$0xff]
    %v7228 = vld [vmem:[%s7129 + $0x310] sm:$0xff]
    %v7229 = vld [vmem:[%s7129 + $0x318] sm:$0xff]
    %v7230 = vld [vmem:[%s7129 + $0x320] sm:$0xff]
    %v7231 = vld [vmem:[%s7129 + $0x328] sm:$0xff]
    %v7232 = vld [vmem:[%s7129 + $0x330] sm:$0xff]
    %v7233 = vld [vmem:[%s7129 + $0x338] sm:$0xff]
    %v7234 = vld [vmem:[%s7129 + $0x340] sm:$0xff]
    %v7235 = vld [vmem:[%s7129 + $0x348] sm:$0xff]
    %v7236 = vld [vmem:[%s7129 + $0x350] sm:$0xff]
    %v7237 = vld [vmem:[%s7129 + $0x358] sm:$0xff]
    %v7238 = vld [vmem:[%s7129 + $0x360] sm:$0xff]
    %v7239 = vld [vmem:[%s7129 + $0x368] sm:$0xff]
    %v7240 = vld [vmem:[%s7129 + $0x370] sm:$0xff]
    %v7241 = vld [vmem:[%s7129 + $0x378] sm:$0xff]
    %v7242 = vld [vmem:[%s7129 + $0x380] sm:$0xff]
    %v7243 = vld [vmem:[%s7129 + $0x388] sm:$0xff]
    %v7244 = vld [vmem:[%s7129 + $0x390] sm:$0xff]
    %v7245 = vld [vmem:[%s7129 + $0x398] sm:$0xff]
    %v7246 = vld [vmem:[%s7129 + $0x3a0] sm:$0xff]
    %v7247 = vld [vmem:[%s7129 + $0x3a8] sm:$0xff]
    %v7248 = vld [vmem:[%s7129 + $0x3b0] sm:$0xff]
    %v7249 = vld [vmem:[%s7129 + $0x3b8] sm:$0xff]
    %v7250 = vld [vmem:[%s7129 + $0x3c0] sm:$0xff]
    %v7251 = vld [vmem:[%s7129 + $0x3c8] sm:$0xff]
    %v7252 = vld [vmem:[%s7129 + $0x3d0] sm:$0xff]
    %v7253 = vld [vmem:[%s7129 + $0x3d8] sm:$0xff]
    %v7254 = vld [vmem:[%s7129 + $0x3e0] sm:$0xff]
    %v7255 = vld [vmem:[%s7129 + $0x3e8] sm:$0xff]
    %v7256 = vld [vmem:[%s7129 + $0x3f0] sm:$0xff]
    %v7257 = vld [vmem:[%s7129 + $0x3f8] sm:$0xff]
    %v7258 = vld [vmem:[%s7129 + $0x400] sm:$0xff]
    %v7259 = vld [vmem:[%s7129 + $0x408] sm:$0xff]
    %v7260 = vld [vmem:[%s7129 + $0x410] sm:$0xff]
    %v7261 = vld [vmem:[%s7129 + $0x418] sm:$0xff]
    %v7262 = vld [vmem:[%s7129 + $0x420] sm:$0xff]
    %v7263 = vld [vmem:[%s7129 + $0x428] sm:$0xff]
    %v7264 = vld [vmem:[%s7129 + $0x430] sm:$0xff]
    %v7265 = vld [vmem:[%s7129 + $0x438] sm:$0xff]
    %v7266 = vld [vmem:[%s7129 + $0x440] sm:$0xff]
    %v7267 = vld [vmem:[%s7129 + $0x448] sm:$0xff]
    %v7268 = vld [vmem:[%s7129 + $0x450] sm:$0xff]
    %v7269 = vld [vmem:[%s7129 + $0x458] sm:$0xff]
    %v7270 = vld [vmem:[%s7129 + $0x460] sm:$0xff]
    %v7271 = vld [vmem:[%s7129 + $0x468] sm:$0xff]
    %v7272 = vld [vmem:[%s7129 + $0x470] sm:$0xff]
    %v7273 = vld [vmem:[%s7129 + $0x478] sm:$0xff]
    %v7274 = vld [vmem:[%s7129 + $0x480] sm:$0xff]
    %v7275 = vld [vmem:[%s7129 + $0x488] sm:$0xff]
    %v7276 = vld [vmem:[%s7129 + $0x490] sm:$0xff]
    %v7277 = vld [vmem:[%s7129 + $0x498] sm:$0xff]
    %v7278 = vld [vmem:[%s7129 + $0x4a0] sm:$0xff]
    %v7279 = vld [vmem:[%s7129 + $0x4a8] sm:$0xff]
    %v7280 = vld [vmem:[%s7129 + $0x4b0] sm:$0xff]
    %v7281 = vld [vmem:[%s7129 + $0x4b8] sm:$0xff]
    %v7282 = vld [vmem:[%s7129 + $0x4c0] sm:$0xff]
    %v7283 = vld [vmem:[%s7129 + $0x4c8] sm:$0xff]
    %v7284 = vld [vmem:[%s7129 + $0x4d0] sm:$0xff]
    %v7285 = vld [vmem:[%s7129 + $0x4d8] sm:$0xff]
    %v7286 = vld [vmem:[%s7129 + $0x4e0] sm:$0xff]
    %v7287 = vld [vmem:[%s7129 + $0x4e8] sm:$0xff]
    %v7288 = vld [vmem:[%s7129 + $0x4f0] sm:$0xff]
    %v7289 = vld [vmem:[%s7129 + $0x4f8] sm:$0xff]
    %v7450 = vunpack.c.l.b16 %v7130
    %v7451 = vunpack.c.h.b16 %v7130
    %v7452 = vunpack.c.l.b16 %v7131
    %v7453 = vunpack.c.h.b16 %v7131
    %v7454 = vunpack.c.l.b16 %v7132
    %v7455 = vunpack.c.h.b16 %v7132
    %v7456 = vunpack.c.l.b16 %v7133
    %v7457 = vunpack.c.h.b16 %v7133
    %v7458 = vunpack.c.l.b16 %v7134
    %v7459 = vunpack.c.h.b16 %v7134
    %v7460 = vunpack.c.l.b16 %v7135
    %v7461 = vunpack.c.h.b16 %v7135
    %v7462 = vunpack.c.l.b16 %v7136
    %v7463 = vunpack.c.h.b16 %v7136
    %v7464 = vunpack.c.l.b16 %v7137
    %v7465 = vunpack.c.h.b16 %v7137
    %v7466 = vunpack.c.l.b16 %v7138
    %v7467 = vunpack.c.h.b16 %v7138
    %v7468 = vunpack.c.l.b16 %v7139
    %v7469 = vunpack.c.h.b16 %v7139
    %v7470 = vunpack.c.l.b16 %v7140
    %v7471 = vunpack.c.h.b16 %v7140
    %v7472 = vunpack.c.l.b16 %v7141
    %v7473 = vunpack.c.h.b16 %v7141
    %v7474 = vunpack.c.l.b16 %v7142
    %v7475 = vunpack.c.h.b16 %v7142
    %v7476 = vunpack.c.l.b16 %v7143
    %v7477 = vunpack.c.h.b16 %v7143
    %v7478 = vunpack.c.l.b16 %v7144
    %v7479 = vunpack.c.h.b16 %v7144
    %v7480 = vunpack.c.l.b16 %v7145
    %v7481 = vunpack.c.h.b16 %v7145
    %v7482 = vunpack.c.l.b16 %v7146
    %v7483 = vunpack.c.h.b16 %v7146
    %v7484 = vunpack.c.l.b16 %v7147
    %v7485 = vunpack.c.h.b16 %v7147
    %v7486 = vunpack.c.l.b16 %v7148
    %v7487 = vunpack.c.h.b16 %v7148
    %v7488 = vunpack.c.l.b16 %v7149
    %v7489 = vunpack.c.h.b16 %v7149
    %v7490 = vunpack.c.l.b16 %v7150
    %v7491 = vunpack.c.h.b16 %v7150
    %v7492 = vunpack.c.l.b16 %v7151
    %v7493 = vunpack.c.h.b16 %v7151
    %v7494 = vunpack.c.l.b16 %v7152
    %v7495 = vunpack.c.h.b16 %v7152
    %v7496 = vunpack.c.l.b16 %v7153
    %v7497 = vunpack.c.h.b16 %v7153
    %v7498 = vunpack.c.l.b16 %v7154
    %v7499 = vunpack.c.h.b16 %v7154
    %v7500 = vunpack.c.l.b16 %v7155
    %v7501 = vunpack.c.h.b16 %v7155
    %v7502 = vunpack.c.l.b16 %v7156
    %v7503 = vunpack.c.h.b16 %v7156
    %v7504 = vunpack.c.l.b16 %v7157
    %v7505 = vunpack.c.h.b16 %v7157
    %v7506 = vunpack.c.l.b16 %v7158
    %v7507 = vunpack.c.h.b16 %v7158
    %v7508 = vunpack.c.l.b16 %v7159
    %v7509 = vunpack.c.h.b16 %v7159
    %v7510 = vunpack.c.l.b16 %v7160
    %v7511 = vunpack.c.h.b16 %v7160
    %v7512 = vunpack.c.l.b16 %v7161
    %v7513 = vunpack.c.h.b16 %v7161
    %v7514 = vunpack.c.l.b16 %v7162
    %v7515 = vunpack.c.h.b16 %v7162
    %v7516 = vunpack.c.l.b16 %v7163
    %v7517 = vunpack.c.h.b16 %v7163
    %v7518 = vunpack.c.l.b16 %v7164
    %v7519 = vunpack.c.h.b16 %v7164
    %v7520 = vunpack.c.l.b16 %v7165
    %v7521 = vunpack.c.h.b16 %v7165
    %v7522 = vunpack.c.l.b16 %v7166
    %v7523 = vunpack.c.h.b16 %v7166
    %v7524 = vunpack.c.l.b16 %v7167
    %v7525 = vunpack.c.h.b16 %v7167
    %v7526 = vunpack.c.l.b16 %v7168
    %v7527 = vunpack.c.h.b16 %v7168
    %v7528 = vunpack.c.l.b16 %v7169
    %v7529 = vunpack.c.h.b16 %v7169
    %v7530 = vunpack.c.l.b16 %v7170
    %v7531 = vunpack.c.h.b16 %v7170
    %v7532 = vunpack.c.l.b16 %v7171
    %v7533 = vunpack.c.h.b16 %v7171
    %v7534 = vunpack.c.l.b16 %v7172
    %v7535 = vunpack.c.h.b16 %v7172
    %v7536 = vunpack.c.l.b16 %v7173
    %v7537 = vunpack.c.h.b16 %v7173
    %v7538 = vunpack.c.l.b16 %v7174
    %v7539 = vunpack.c.h.b16 %v7174
    %v7540 = vunpack.c.l.b16 %v7175
    %v7541 = vunpack.c.h.b16 %v7175
    %v7542 = vunpack.c.l.b16 %v7176
    %v7543 = vunpack.c.h.b16 %v7176
    %v7544 = vunpack.c.l.b16 %v7177
    %v7545 = vunpack.c.h.b16 %v7177
    %v7546 = vunpack.c.l.b16 %v7178
    %v7547 = vunpack.c.h.b16 %v7178
    %v7548 = vunpack.c.l.b16 %v7179
    %v7549 = vunpack.c.h.b16 %v7179
    %v7550 = vunpack.c.l.b16 %v7180
    %v7551 = vunpack.c.h.b16 %v7180
    %v7552 = vunpack.c.l.b16 %v7181
    %v7553 = vunpack.c.h.b16 %v7181
    %v7554 = vunpack.c.l.b16 %v7182
    %v7555 = vunpack.c.h.b16 %v7182
    %v7556 = vunpack.c.l.b16 %v7183
    %v7557 = vunpack.c.h.b16 %v7183
    %v7558 = vunpack.c.l.b16 %v7184
    %v7559 = vunpack.c.h.b16 %v7184
    %v7560 = vunpack.c.l.b16 %v7185
    %v7561 = vunpack.c.h.b16 %v7185
    %v7562 = vunpack.c.l.b16 %v7186
    %v7563 = vunpack.c.h.b16 %v7186
    %v7564 = vunpack.c.l.b16 %v7187
    %v7565 = vunpack.c.h.b16 %v7187
    %v7566 = vunpack.c.l.b16 %v7188
    %v7567 = vunpack.c.h.b16 %v7188
    %v7568 = vunpack.c.l.b16 %v7189
    %v7569 = vunpack.c.h.b16 %v7189
    %v7570 = vunpack.c.l.b16 %v7190
    %v7571 = vunpack.c.h.b16 %v7190
    %v7572 = vunpack.c.l.b16 %v7191
    %v7573 = vunpack.c.h.b16 %v7191
    %v7574 = vunpack.c.l.b16 %v7192
    %v7575 = vunpack.c.h.b16 %v7192
    %v7576 = vunpack.c.l.b16 %v7193
    %v7577 = vunpack.c.h.b16 %v7193
    %v7578 = vunpack.c.l.b16 %v7194
    %v7579 = vunpack.c.h.b16 %v7194
    %v7580 = vunpack.c.l.b16 %v7195
    %v7581 = vunpack.c.h.b16 %v7195
    %v7582 = vunpack.c.l.b16 %v7196
    %v7583 = vunpack.c.h.b16 %v7196
    %v7584 = vunpack.c.l.b16 %v7197
    %v7585 = vunpack.c.h.b16 %v7197
    %v7586 = vunpack.c.l.b16 %v7198
    %v7587 = vunpack.c.h.b16 %v7198
    %v7588 = vunpack.c.l.b16 %v7199
    %v7589 = vunpack.c.h.b16 %v7199
    %v7590 = vunpack.c.l.b16 %v7200
    %v7591 = vunpack.c.h.b16 %v7200
    %v7592 = vunpack.c.l.b16 %v7201
    %v7593 = vunpack.c.h.b16 %v7201
    %v7594 = vunpack.c.l.b16 %v7202
    %v7595 = vunpack.c.h.b16 %v7202
    %v7596 = vunpack.c.l.b16 %v7203
    %v7597 = vunpack.c.h.b16 %v7203
    %v7598 = vunpack.c.l.b16 %v7204
    %v7599 = vunpack.c.h.b16 %v7204
    %v7600 = vunpack.c.l.b16 %v7205
    %v7601 = vunpack.c.h.b16 %v7205
    %v7602 = vunpack.c.l.b16 %v7206
    %v7603 = vunpack.c.h.b16 %v7206
    %v7604 = vunpack.c.l.b16 %v7207
    %v7605 = vunpack.c.h.b16 %v7207
    %v7606 = vunpack.c.l.b16 %v7208
    %v7607 = vunpack.c.h.b16 %v7208
    %v7608 = vunpack.c.l.b16 %v7209
    %v7609 = vunpack.c.h.b16 %v7209
    %v7610 = vunpack.c.l.b16 %v7210
    %v7611 = vunpack.c.h.b16 %v7210
    %v7612 = vunpack.c.l.b16 %v7211
    %v7613 = vunpack.c.h.b16 %v7211
    %v7614 = vunpack.c.l.b16 %v7212
    %v7615 = vunpack.c.h.b16 %v7212
    %v7616 = vunpack.c.l.b16 %v7213
    %v7617 = vunpack.c.h.b16 %v7213
    %v7618 = vunpack.c.l.b16 %v7214
    %v7619 = vunpack.c.h.b16 %v7214
    %v7620 = vunpack.c.l.b16 %v7215
    %v7621 = vunpack.c.h.b16 %v7215
    %v7622 = vunpack.c.l.b16 %v7216
    %v7623 = vunpack.c.h.b16 %v7216
    %v7624 = vunpack.c.l.b16 %v7217
    %v7625 = vunpack.c.h.b16 %v7217
    %v7626 = vunpack.c.l.b16 %v7218
    %v7627 = vunpack.c.h.b16 %v7218
    %v7628 = vunpack.c.l.b16 %v7219
    %v7629 = vunpack.c.h.b16 %v7219
    %v7630 = vunpack.c.l.b16 %v7220
    %v7631 = vunpack.c.h.b16 %v7220
    %v7632 = vunpack.c.l.b16 %v7221
    %v7633 = vunpack.c.h.b16 %v7221
    %v7634 = vunpack.c.l.b16 %v7222
    %v7635 = vunpack.c.h.b16 %v7222
    %v7636 = vunpack.c.l.b16 %v7223
    %v7637 = vunpack.c.h.b16 %v7223
    %v7638 = vunpack.c.l.b16 %v7224
    %v7639 = vunpack.c.h.b16 %v7224
    %v7640 = vunpack.c.l.b16 %v7225
    %v7641 = vunpack.c.h.b16 %v7225
    %v7642 = vunpack.c.l.b16 %v7226
    %v7643 = vunpack.c.h.b16 %v7226
    %v7644 = vunpack.c.l.b16 %v7227
    %v7645 = vunpack.c.h.b16 %v7227
    %v7646 = vunpack.c.l.b16 %v7228
    %v7647 = vunpack.c.h.b16 %v7228
    %v7648 = vunpack.c.l.b16 %v7229
    %v7649 = vunpack.c.h.b16 %v7229
    %v7650 = vunpack.c.l.b16 %v7230
    %v7651 = vunpack.c.h.b16 %v7230
    %v7652 = vunpack.c.l.b16 %v7231
    %v7653 = vunpack.c.h.b16 %v7231
    %v7654 = vunpack.c.l.b16 %v7232
    %v7655 = vunpack.c.h.b16 %v7232
    %v7656 = vunpack.c.l.b16 %v7233
    %v7657 = vunpack.c.h.b16 %v7233
    %v7658 = vunpack.c.l.b16 %v7234
    %v7659 = vunpack.c.h.b16 %v7234
    %v7660 = vunpack.c.l.b16 %v7235
    %v7661 = vunpack.c.h.b16 %v7235
    %v7662 = vunpack.c.l.b16 %v7236
    %v7663 = vunpack.c.h.b16 %v7236
    %v7664 = vunpack.c.l.b16 %v7237
    %v7665 = vunpack.c.h.b16 %v7237
    %v7666 = vunpack.c.l.b16 %v7238
    %v7667 = vunpack.c.h.b16 %v7238
    %v7668 = vunpack.c.l.b16 %v7239
    %v7669 = vunpack.c.h.b16 %v7239
    %v7670 = vunpack.c.l.b16 %v7240
    %v7671 = vunpack.c.h.b16 %v7240
    %v7672 = vunpack.c.l.b16 %v7241
    %v7673 = vunpack.c.h.b16 %v7241
    %v7674 = vunpack.c.l.b16 %v7242
    %v7675 = vunpack.c.h.b16 %v7242
    %v7676 = vunpack.c.l.b16 %v7243
    %v7677 = vunpack.c.h.b16 %v7243
    %v7678 = vunpack.c.l.b16 %v7244
    %v7679 = vunpack.c.h.b16 %v7244
    %v7680 = vunpack.c.l.b16 %v7245
    %v7681 = vunpack.c.h.b16 %v7245
    %v7682 = vunpack.c.l.b16 %v7246
    %v7683 = vunpack.c.h.b16 %v7246
    %v7684 = vunpack.c.l.b16 %v7247
    %v7685 = vunpack.c.h.b16 %v7247
    %v7686 = vunpack.c.l.b16 %v7248
    %v7687 = vunpack.c.h.b16 %v7248
    %v7688 = vunpack.c.l.b16 %v7249
    %v7689 = vunpack.c.h.b16 %v7249
    %v7690 = vunpack.c.l.b16 %v7250
    %v7691 = vunpack.c.h.b16 %v7250
    %v7692 = vunpack.c.l.b16 %v7251
    %v7693 = vunpack.c.h.b16 %v7251
    %v7694 = vunpack.c.l.b16 %v7252
    %v7695 = vunpack.c.h.b16 %v7252
    %v7696 = vunpack.c.l.b16 %v7253
    %v7697 = vunpack.c.h.b16 %v7253
    %v7698 = vunpack.c.l.b16 %v7254
    %v7699 = vunpack.c.h.b16 %v7254
    %v7700 = vunpack.c.l.b16 %v7255
    %v7701 = vunpack.c.h.b16 %v7255
    %v7702 = vunpack.c.l.b16 %v7256
    %v7703 = vunpack.c.h.b16 %v7256
    %v7704 = vunpack.c.l.b16 %v7257
    %v7705 = vunpack.c.h.b16 %v7257
    %v7706 = vunpack.c.l.b16 %v7258
    %v7707 = vunpack.c.h.b16 %v7258
    %v7708 = vunpack.c.l.b16 %v7259
    %v7709 = vunpack.c.h.b16 %v7259
    %v7710 = vunpack.c.l.b16 %v7260
    %v7711 = vunpack.c.h.b16 %v7260
    %v7712 = vunpack.c.l.b16 %v7261
    %v7713 = vunpack.c.h.b16 %v7261
    %v7714 = vunpack.c.l.b16 %v7262
    %v7715 = vunpack.c.h.b16 %v7262
    %v7716 = vunpack.c.l.b16 %v7263
    %v7717 = vunpack.c.h.b16 %v7263
    %v7718 = vunpack.c.l.b16 %v7264
    %v7719 = vunpack.c.h.b16 %v7264
    %v7720 = vunpack.c.l.b16 %v7265
    %v7721 = vunpack.c.h.b16 %v7265
    %v7722 = vunpack.c.l.b16 %v7266
    %v7723 = vunpack.c.h.b16 %v7266
    %v7724 = vunpack.c.l.b16 %v7267
    %v7725 = vunpack.c.h.b16 %v7267
    %v7726 = vunpack.c.l.b16 %v7268
    %v7727 = vunpack.c.h.b16 %v7268
    %v7728 = vunpack.c.l.b16 %v7269
    %v7729 = vunpack.c.h.b16 %v7269
    %v7730 = vunpack.c.l.b16 %v7270
    %v7731 = vunpack.c.h.b16 %v7270
    %v7732 = vunpack.c.l.b16 %v7271
    %v7733 = vunpack.c.h.b16 %v7271
    %v7734 = vunpack.c.l.b16 %v7272
    %v7735 = vunpack.c.h.b16 %v7272
    %v7736 = vunpack.c.l.b16 %v7273
    %v7737 = vunpack.c.h.b16 %v7273
    %v7738 = vunpack.c.l.b16 %v7274
    %v7739 = vunpack.c.h.b16 %v7274
    %v7740 = vunpack.c.l.b16 %v7275
    %v7741 = vunpack.c.h.b16 %v7275
    %v7742 = vunpack.c.l.b16 %v7276
    %v7743 = vunpack.c.h.b16 %v7276
    %v7744 = vunpack.c.l.b16 %v7277
    %v7745 = vunpack.c.h.b16 %v7277
    %v7746 = vunpack.c.l.b16 %v7278
    %v7747 = vunpack.c.h.b16 %v7278
    %v7748 = vunpack.c.l.b16 %v7279
    %v7749 = vunpack.c.h.b16 %v7279
    %v7750 = vunpack.c.l.b16 %v7280
    %v7751 = vunpack.c.h.b16 %v7280
    %v7752 = vunpack.c.l.b16 %v7281
    %v7753 = vunpack.c.h.b16 %v7281
    %v7754 = vunpack.c.l.b16 %v7282
    %v7755 = vunpack.c.h.b16 %v7282
    %v7756 = vunpack.c.l.b16 %v7283
    %v7757 = vunpack.c.h.b16 %v7283
    %v7758 = vunpack.c.l.b16 %v7284
    %v7759 = vunpack.c.h.b16 %v7284
    %v7760 = vunpack.c.l.b16 %v7285
    %v7761 = vunpack.c.h.b16 %v7285
    %v7762 = vunpack.c.l.b16 %v7286
    %v7763 = vunpack.c.h.b16 %v7286
    %v7764 = vunpack.c.l.b16 %v7287
    %v7765 = vunpack.c.h.b16 %v7287
    %v7766 = vunpack.c.l.b16 %v7288
    %v7767 = vunpack.c.h.b16 %v7288
    %v7768 = vunpack.c.l.b16 %v7289
    %v7769 = vunpack.c.h.b16 %v7289
    %v7770 = vpack.c.b16 %v7452, %v7450
    %v7771 = vpack.c.b16 %v7453, %v7451
    %v7772 = vpack.c.b16 %v7456, %v7454
    %v7773 = vpack.c.b16 %v7457, %v7455
    %v7774 = vpack.c.b16 %v7460, %v7458
    %v7775 = vpack.c.b16 %v7461, %v7459
    %v7776 = vpack.c.b16 %v7464, %v7462
    %v7777 = vpack.c.b16 %v7465, %v7463
    %v7778 = vpack.c.b16 %v7468, %v7466
    %v7779 = vpack.c.b16 %v7469, %v7467
    %v7780 = vpack.c.b16 %v7472, %v7470
    %v7781 = vpack.c.b16 %v7473, %v7471
    %v7782 = vpack.c.b16 %v7476, %v7474
    %v7783 = vpack.c.b16 %v7477, %v7475
    %v7784 = vpack.c.b16 %v7480, %v7478
    %v7785 = vpack.c.b16 %v7481, %v7479
    %v7786 = vpack.c.b16 %v7484, %v7482
    %v7787 = vpack.c.b16 %v7485, %v7483
    %v7788 = vpack.c.b16 %v7488, %v7486
    %v7789 = vpack.c.b16 %v7489, %v7487
    %v7790 = vpack.c.b16 %v7492, %v7490
    %v7791 = vpack.c.b16 %v7493, %v7491
    %v7792 = vpack.c.b16 %v7496, %v7494
    %v7793 = vpack.c.b16 %v7497, %v7495
    %v7794 = vpack.c.b16 %v7500, %v7498
    %v7795 = vpack.c.b16 %v7501, %v7499
    %v7796 = vpack.c.b16 %v7504, %v7502
    %v7797 = vpack.c.b16 %v7505, %v7503
    %v7798 = vpack.c.b16 %v7508, %v7506
    %v7799 = vpack.c.b16 %v7509, %v7507
    %v7800 = vpack.c.b16 %v7512, %v7510
    %v7801 = vpack.c.b16 %v7513, %v7511
    %v7802 = vpack.c.b16 %v7516, %v7514
    %v7803 = vpack.c.b16 %v7517, %v7515
    %v7804 = vpack.c.b16 %v7520, %v7518
    %v7805 = vpack.c.b16 %v7521, %v7519
    %v7806 = vpack.c.b16 %v7524, %v7522
    %v7807 = vpack.c.b16 %v7525, %v7523
    %v7808 = vpack.c.b16 %v7528, %v7526
    %v7809 = vpack.c.b16 %v7529, %v7527
    %v7810 = vpack.c.b16 %v7532, %v7530
    %v7811 = vpack.c.b16 %v7533, %v7531
    %v7812 = vpack.c.b16 %v7536, %v7534
    %v7813 = vpack.c.b16 %v7537, %v7535
    %v7814 = vpack.c.b16 %v7540, %v7538
    %v7815 = vpack.c.b16 %v7541, %v7539
    %v7816 = vpack.c.b16 %v7544, %v7542
    %v7817 = vpack.c.b16 %v7545, %v7543
    %v7818 = vpack.c.b16 %v7548, %v7546
    %v7819 = vpack.c.b16 %v7549, %v7547
    %v7820 = vpack.c.b16 %v7552, %v7550
    %v7821 = vpack.c.b16 %v7553, %v7551
    %v7822 = vpack.c.b16 %v7556, %v7554
    %v7823 = vpack.c.b16 %v7557, %v7555
    %v7824 = vpack.c.b16 %v7560, %v7558
    %v7825 = vpack.c.b16 %v7561, %v7559
    %v7826 = vpack.c.b16 %v7564, %v7562
    %v7827 = vpack.c.b16 %v7565, %v7563
    %v7828 = vpack.c.b16 %v7568, %v7566
    %v7829 = vpack.c.b16 %v7569, %v7567
    %v7830 = vpack.c.b16 %v7572, %v7570
    %v7831 = vpack.c.b16 %v7573, %v7571
    %v7832 = vpack.c.b16 %v7576, %v7574
    %v7833 = vpack.c.b16 %v7577, %v7575
    %v7834 = vpack.c.b16 %v7580, %v7578
    %v7835 = vpack.c.b16 %v7581, %v7579
    %v7836 = vpack.c.b16 %v7584, %v7582
    %v7837 = vpack.c.b16 %v7585, %v7583
    %v7838 = vpack.c.b16 %v7588, %v7586
    %v7839 = vpack.c.b16 %v7589, %v7587
    %v7840 = vpack.c.b16 %v7592, %v7590
    %v7841 = vpack.c.b16 %v7593, %v7591
    %v7842 = vpack.c.b16 %v7596, %v7594
    %v7843 = vpack.c.b16 %v7597, %v7595
    %v7844 = vpack.c.b16 %v7600, %v7598
    %v7845 = vpack.c.b16 %v7601, %v7599
    %v7846 = vpack.c.b16 %v7604, %v7602
    %v7847 = vpack.c.b16 %v7605, %v7603
    %v7848 = vpack.c.b16 %v7608, %v7606
    %v7849 = vpack.c.b16 %v7609, %v7607
    %v7850 = vpack.c.b16 %v7612, %v7610
    %v7851 = vpack.c.b16 %v7613, %v7611
    %v7852 = vpack.c.b16 %v7616, %v7614
    %v7853 = vpack.c.b16 %v7617, %v7615
    %v7854 = vpack.c.b16 %v7620, %v7618
    %v7855 = vpack.c.b16 %v7621, %v7619
    %v7856 = vpack.c.b16 %v7624, %v7622
    %v7857 = vpack.c.b16 %v7625, %v7623
    %v7858 = vpack.c.b16 %v7628, %v7626
    %v7859 = vpack.c.b16 %v7629, %v7627
    %v7860 = vpack.c.b16 %v7632, %v7630
    %v7861 = vpack.c.b16 %v7633, %v7631
    %v7862 = vpack.c.b16 %v7636, %v7634
    %v7863 = vpack.c.b16 %v7637, %v7635
    %v7864 = vpack.c.b16 %v7640, %v7638
    %v7865 = vpack.c.b16 %v7641, %v7639
    %v7866 = vpack.c.b16 %v7644, %v7642
    %v7867 = vpack.c.b16 %v7645, %v7643
    %v7868 = vpack.c.b16 %v7648, %v7646
    %v7869 = vpack.c.b16 %v7649, %v7647
    %v7870 = vpack.c.b16 %v7652, %v7650
    %v7871 = vpack.c.b16 %v7653, %v7651
    %v7872 = vpack.c.b16 %v7656, %v7654
    %v7873 = vpack.c.b16 %v7657, %v7655
    %v7874 = vpack.c.b16 %v7660, %v7658
    %v7875 = vpack.c.b16 %v7661, %v7659
    %v7876 = vpack.c.b16 %v7664, %v7662
    %v7877 = vpack.c.b16 %v7665, %v7663
    %v7878 = vpack.c.b16 %v7668, %v7666
    %v7879 = vpack.c.b16 %v7669, %v7667
    %v7880 = vpack.c.b16 %v7672, %v7670
    %v7881 = vpack.c.b16 %v7673, %v7671
    %v7882 = vpack.c.b16 %v7676, %v7674
    %v7883 = vpack.c.b16 %v7677, %v7675
    %v7884 = vpack.c.b16 %v7680, %v7678
    %v7885 = vpack.c.b16 %v7681, %v7679
    %v7886 = vpack.c.b16 %v7684, %v7682
    %v7887 = vpack.c.b16 %v7685, %v7683
    %v7888 = vpack.c.b16 %v7688, %v7686
    %v7889 = vpack.c.b16 %v7689, %v7687
    %v7890 = vpack.c.b16 %v7692, %v7690
    %v7891 = vpack.c.b16 %v7693, %v7691
    %v7892 = vpack.c.b16 %v7696, %v7694
    %v7893 = vpack.c.b16 %v7697, %v7695
    %v7894 = vpack.c.b16 %v7700, %v7698
    %v7895 = vpack.c.b16 %v7701, %v7699
    %v7896 = vpack.c.b16 %v7704, %v7702
    %v7897 = vpack.c.b16 %v7705, %v7703
    %v7898 = vpack.c.b16 %v7708, %v7706
    %v7899 = vpack.c.b16 %v7709, %v7707
    %v7900 = vpack.c.b16 %v7712, %v7710
    %v7901 = vpack.c.b16 %v7713, %v7711
    %v7902 = vpack.c.b16 %v7716, %v7714
    %v7903 = vpack.c.b16 %v7717, %v7715
    %v7904 = vpack.c.b16 %v7720, %v7718
    %v7905 = vpack.c.b16 %v7721, %v7719
    %v7906 = vpack.c.b16 %v7724, %v7722
    %v7907 = vpack.c.b16 %v7725, %v7723
    %v7908 = vpack.c.b16 %v7728, %v7726
    %v7909 = vpack.c.b16 %v7729, %v7727
    %v7910 = vpack.c.b16 %v7732, %v7730
    %v7911 = vpack.c.b16 %v7733, %v7731
    %v7912 = vpack.c.b16 %v7736, %v7734
    %v7913 = vpack.c.b16 %v7737, %v7735
    %v7914 = vpack.c.b16 %v7740, %v7738
    %v7915 = vpack.c.b16 %v7741, %v7739
    %v7916 = vpack.c.b16 %v7744, %v7742
    %v7917 = vpack.c.b16 %v7745, %v7743
    %v7918 = vpack.c.b16 %v7748, %v7746
    %v7919 = vpack.c.b16 %v7749, %v7747
    %v7920 = vpack.c.b16 %v7752, %v7750
    %v7921 = vpack.c.b16 %v7753, %v7751
    %v7922 = vpack.c.b16 %v7756, %v7754
    %v7923 = vpack.c.b16 %v7757, %v7755
    %v7924 = vpack.c.b16 %v7760, %v7758
    %v7925 = vpack.c.b16 %v7761, %v7759
    %v7926 = vpack.c.b16 %v7764, %v7762
    %v7927 = vpack.c.b16 %v7765, %v7763
    %v7928 = vpack.c.b16 %v7768, %v7766
    %v7929 = vpack.c.b16 %v7769, %v7767
    %8090 = vmatpush.bf16.msra.mxu0 %v7784
    %8091 = vmatpush.bf16.msra.mxu0 %v7782
    %8092 = vmatpush.bf16.msra.mxu0 %v7780
    %8093 = vmatpush.bf16.msra.mxu0 %v7778
    %8094 = vmatpush.bf16.msra.mxu0 %v7776
    %8095 = vmatpush.bf16.msra.mxu0 %v7774
    %8096 = vmatpush.bf16.msra.mxu0 %v7772
    %8097 = vmatpush.bf16.msra.mxu0 %v7770
    %8098 = vmatmul.bf16.gmra.mxu0 %v5389
    %v8099 = vpop.f32.mrf.mxu0
    %v8100 = vadd.f32 0.0, %v8099
    %v8101 = vpop.f32.mrf.mxu0
    %v8102 = vadd.f32 0.0, %v8101
    %8103 = vmatmul.bf16.gmra.mxu0 %v5391
    %v8104 = vpop.f32.mrf.mxu0
    %v8105 = vadd.f32 0.0, %v8104
    %v8106 = vpop.f32.mrf.mxu0
    %v8107 = vadd.f32 0.0, %v8106
    %8108 = vmatmul.bf16.gmra.mxu0 %v5393
    %v8109 = vpop.f32.mrf.mxu0
    %v8110 = vadd.f32 0.0, %v8109
    %v8111 = vpop.f32.mrf.mxu0
    %v8112 = vadd.f32 0.0, %v8111
    %8113 = vmatmul.bf16.gmra.mxu0 %v5395
    %v8114 = vpop.f32.mrf.mxu0
    %v8115 = vadd.f32 0.0, %v8114
    %v8116 = vpop.f32.mrf.mxu0
    %v8117 = vadd.f32 0.0, %v8116
    %8118 = vmatmul.bf16.gmra.mxu0 %v5397
    %v8119 = vpop.f32.mrf.mxu0
    %v8120 = vadd.f32 0.0, %v8119
    %v8121 = vpop.f32.mrf.mxu0
    %v8122 = vadd.f32 0.0, %v8121
    %8123 = vdwg.mxu0
    %8124 = vmatpush.bf16.msra.mxu0 %v7800
    %8125 = vmatpush.bf16.msra.mxu0 %v7798
    %8126 = vmatpush.bf16.msra.mxu0 %v7796
    %8127 = vmatpush.bf16.msra.mxu0 %v7794
    %8128 = vmatpush.bf16.msra.mxu0 %v7792
    %8129 = vmatpush.bf16.msra.mxu0 %v7790
    %8130 = vmatpush.bf16.msra.mxu0 %v7788
    %8131 = vmatpush.bf16.msra.mxu0 %v7786
    %8132 = vmatmul.bf16.gmra.mxu0 %v5390
    %v8133 = vpop.f32.mrf.mxu0
    %v8134 = vadd.f32 %v8100, %v8133
    %v8135 = vpop.f32.mrf.mxu0
    %v8136 = vadd.f32 %v8102, %v8135
    %8137 = vmatmul.bf16.gmra.mxu0 %v5392
    %v8138 = vpop.f32.mrf.mxu0
    %v8139 = vadd.f32 %v8105, %v8138
    %v8140 = vpop.f32.mrf.mxu0
    %v8141 = vadd.f32 %v8107, %v8140
    %8142 = vmatmul.bf16.gmra.mxu0 %v5394
    %v8143 = vpop.f32.mrf.mxu0
    %v8144 = vadd.f32 %v8110, %v8143
    %v8145 = vpop.f32.mrf.mxu0
    %v8146 = vadd.f32 %v8112, %v8145
    %8147 = vmatmul.bf16.gmra.mxu0 %v5396
    %v8148 = vpop.f32.mrf.mxu0
    %v8149 = vadd.f32 %v8115, %v8148
    %v8150 = vpop.f32.mrf.mxu0
    %v8151 = vadd.f32 %v8117, %v8150
    %8152 = vmatmul.bf16.gmra.mxu0 %v5398
    %v8153 = vpop.f32.mrf.mxu0
    %v8154 = vadd.f32 %v8120, %v8153
    %v8155 = vpop.f32.mrf.mxu0
    %v8156 = vadd.f32 %v8122, %v8155
    %8157 = vdwg.mxu0
    %8158 = vmatpush.bf16.msra.mxu0 %v7816
    %8159 = vmatpush.bf16.msra.mxu0 %v7814
    %8160 = vmatpush.bf16.msra.mxu0 %v7812
    %8161 = vmatpush.bf16.msra.mxu0 %v7810
    %8162 = vmatpush.bf16.msra.mxu0 %v7808
    %8163 = vmatpush.bf16.msra.mxu0 %v7806
    %8164 = vmatpush.bf16.msra.mxu0 %v7804
    %8165 = vmatpush.bf16.msra.mxu0 %v7802
    %8166 = vmatmul.bf16.gmra.mxu0 %v5439
    %v8167 = vpop.f32.mrf.mxu0
    %v8168 = vadd.f32 %v8134, %v8167
    %v8169 = vpop.f32.mrf.mxu0
    %v8170 = vadd.f32 %v8136, %v8169
    %8171 = vmatmul.bf16.gmra.mxu0 %v5441
    %v8172 = vpop.f32.mrf.mxu0
    %v8173 = vadd.f32 %v8139, %v8172
    %v8174 = vpop.f32.mrf.mxu0
    %v8175 = vadd.f32 %v8141, %v8174
    %8176 = vmatmul.bf16.gmra.mxu0 %v5443
    %v8177 = vpop.f32.mrf.mxu0
    %v8178 = vadd.f32 %v8144, %v8177
    %v8179 = vpop.f32.mrf.mxu0
    %v8180 = vadd.f32 %v8146, %v8179
    %8181 = vmatmul.bf16.gmra.mxu0 %v5445
    %v8182 = vpop.f32.mrf.mxu0
    %v8183 = vadd.f32 %v8149, %v8182
    %v8184 = vpop.f32.mrf.mxu0
    %v8185 = vadd.f32 %v8151, %v8184
    %8186 = vmatmul.bf16.gmra.mxu0 %v5447
    %v8187 = vpop.f32.mrf.mxu0
    %v8188 = vadd.f32 %v8154, %v8187
    %v8189 = vpop.f32.mrf.mxu0
    %v8190 = vadd.f32 %v8156, %v8189
    %8191 = vdwg.mxu0
    %8192 = vmatpush.bf16.msra.mxu0 %v7832
    %8193 = vmatpush.bf16.msra.mxu0 %v7830
    %8194 = vmatpush.bf16.msra.mxu0 %v7828
    %8195 = vmatpush.bf16.msra.mxu0 %v7826
    %8196 = vmatpush.bf16.msra.mxu0 %v7824
    %8197 = vmatpush.bf16.msra.mxu0 %v7822
    %8198 = vmatpush.bf16.msra.mxu0 %v7820
    %8199 = vmatpush.bf16.msra.mxu0 %v7818
    %8200 = vmatmul.bf16.gmra.mxu0 %v5440
    %v8201 = vpop.f32.mrf.mxu0
    %v8202 = vadd.f32 %v8168, %v8201
    %v8203 = vpop.f32.mrf.mxu0
    %v8204 = vadd.f32 %v8170, %v8203
    %8205 = vmatmul.bf16.gmra.mxu0 %v5442
    %v8206 = vpop.f32.mrf.mxu0
    %v8207 = vadd.f32 %v8173, %v8206
    %v8208 = vpop.f32.mrf.mxu0
    %v8209 = vadd.f32 %v8175, %v8208
    %8210 = vmatmul.bf16.gmra.mxu0 %v5444
    %v8211 = vpop.f32.mrf.mxu0
    %v8212 = vadd.f32 %v8178, %v8211
    %v8213 = vpop.f32.mrf.mxu0
    %v8214 = vadd.f32 %v8180, %v8213
    %8215 = vmatmul.bf16.gmra.mxu0 %v5446
    %v8216 = vpop.f32.mrf.mxu0
    %v8217 = vadd.f32 %v8183, %v8216
    %v8218 = vpop.f32.mrf.mxu0
    %v8219 = vadd.f32 %v8185, %v8218
    %8220 = vmatmul.bf16.gmra.mxu0 %v5448
    %v8221 = vpop.f32.mrf.mxu0
    %v8222 = vadd.f32 %v8188, %v8221
    %v8223 = vpop.f32.mrf.mxu0
    %v8224 = vadd.f32 %v8190, %v8223
    %8225 = vdwg.mxu0
    %8226 = vmatpush.bf16.msra.mxu0 %v7848
    %8227 = vmatpush.bf16.msra.mxu0 %v7846
    %8228 = vmatpush.bf16.msra.mxu0 %v7844
    %8229 = vmatpush.bf16.msra.mxu0 %v7842
    %8230 = vmatpush.bf16.msra.mxu0 %v7840
    %8231 = vmatpush.bf16.msra.mxu0 %v7838
    %8232 = vmatpush.bf16.msra.mxu0 %v7836
    %8233 = vmatpush.bf16.msra.mxu0 %v7834
    %8234 = vmatmul.bf16.gmra.mxu0 %v5391
    %v8235 = vpop.f32.mrf.mxu0
    %v8236 = vadd.f32 %v8202, %v8235
    %v8237 = vpop.f32.mrf.mxu0
    %v8238 = vadd.f32 %v8204, %v8237
    %8239 = vmatmul.bf16.gmra.mxu0 %v5393
    %v8240 = vpop.f32.mrf.mxu0
    %v8241 = vadd.f32 %v8207, %v8240
    %v8242 = vpop.f32.mrf.mxu0
    %v8243 = vadd.f32 %v8209, %v8242
    %8244 = vmatmul.bf16.gmra.mxu0 %v5395
    %v8245 = vpop.f32.mrf.mxu0
    %v8246 = vadd.f32 %v8212, %v8245
    %v8247 = vpop.f32.mrf.mxu0
    %v8248 = vadd.f32 %v8214, %v8247
    %8249 = vmatmul.bf16.gmra.mxu0 %v5397
    %v8250 = vpop.f32.mrf.mxu0
    %v8251 = vadd.f32 %v8217, %v8250
    %v8252 = vpop.f32.mrf.mxu0
    %v8253 = vadd.f32 %v8219, %v8252
    %8254 = vmatmul.bf16.gmra.mxu0 %v5465
    %v8255 = vpop.f32.mrf.mxu0
    %v8256 = vadd.f32 %v8222, %v8255
    %v8257 = vpop.f32.mrf.mxu0
    %v8258 = vadd.f32 %v8224, %v8257
    %8259 = vdwg.mxu0
    %8260 = vmatpush.bf16.msra.mxu0 %v7864
    %8261 = vmatpush.bf16.msra.mxu0 %v7862
    %8262 = vmatpush.bf16.msra.mxu0 %v7860
    %8263 = vmatpush.bf16.msra.mxu0 %v7858
    %8264 = vmatpush.bf16.msra.mxu0 %v7856
    %8265 = vmatpush.bf16.msra.mxu0 %v7854
    %8266 = vmatpush.bf16.msra.mxu0 %v7852
    %8267 = vmatpush.bf16.msra.mxu0 %v7850
    %8268 = vmatmul.bf16.gmra.mxu0 %v5392
    %v8269 = vpop.f32.mrf.mxu0
    %v8270 = vadd.f32 %v8236, %v8269
    %v8271 = vpop.f32.mrf.mxu0
    %v8272 = vadd.f32 %v8238, %v8271
    %8273 = vmatmul.bf16.gmra.mxu0 %v5394
    %v8274 = vpop.f32.mrf.mxu0
    %v8275 = vadd.f32 %v8241, %v8274
    %v8276 = vpop.f32.mrf.mxu0
    %v8277 = vadd.f32 %v8243, %v8276
    %8278 = vmatmul.bf16.gmra.mxu0 %v5396
    %v8279 = vpop.f32.mrf.mxu0
    %v8280 = vadd.f32 %v8246, %v8279
    %v8281 = vpop.f32.mrf.mxu0
    %v8282 = vadd.f32 %v8248, %v8281
    %8283 = vmatmul.bf16.gmra.mxu0 %v5398
    %v8284 = vpop.f32.mrf.mxu0
    %v8285 = vadd.f32 %v8251, %v8284
    %v8286 = vpop.f32.mrf.mxu0
    %v8287 = vadd.f32 %v8253, %v8286
    %8288 = vmatmul.bf16.gmra.mxu0 %v5466
    %v8289 = vpop.f32.mrf.mxu0
    %v8290 = vadd.f32 %v8256, %v8289
    %v8291 = vpop.f32.mrf.mxu0
    %v8292 = vadd.f32 %v8258, %v8291
    %8293 = vdwg.mxu0
    %8294 = vmatpush.bf16.msra.mxu0 %v7880
    %8295 = vmatpush.bf16.msra.mxu0 %v7878
    %8296 = vmatpush.bf16.msra.mxu0 %v7876
    %8297 = vmatpush.bf16.msra.mxu0 %v7874
    %8298 = vmatpush.bf16.msra.mxu0 %v7872
    %8299 = vmatpush.bf16.msra.mxu0 %v7870
    %8300 = vmatpush.bf16.msra.mxu0 %v7868
    %8301 = vmatpush.bf16.msra.mxu0 %v7866
    %8302 = vmatmul.bf16.gmra.mxu0 %v5441
    %v8303 = vpop.f32.mrf.mxu0
    %v8304 = vadd.f32 %v8270, %v8303
    %v8305 = vpop.f32.mrf.mxu0
    %v8306 = vadd.f32 %v8272, %v8305
    %8307 = vmatmul.bf16.gmra.mxu0 %v5443
    %v8308 = vpop.f32.mrf.mxu0
    %v8309 = vadd.f32 %v8275, %v8308
    %v8310 = vpop.f32.mrf.mxu0
    %v8311 = vadd.f32 %v8277, %v8310
    %8312 = vmatmul.bf16.gmra.mxu0 %v5445
    %v8313 = vpop.f32.mrf.mxu0
    %v8314 = vadd.f32 %v8280, %v8313
    %v8315 = vpop.f32.mrf.mxu0
    %v8316 = vadd.f32 %v8282, %v8315
    %8317 = vmatmul.bf16.gmra.mxu0 %v5447
    %v8318 = vpop.f32.mrf.mxu0
    %v8319 = vadd.f32 %v8285, %v8318
    %v8320 = vpop.f32.mrf.mxu0
    %v8321 = vadd.f32 %v8287, %v8320
    %8322 = vmatmul.bf16.gmra.mxu0 %v5475
    %v8323 = vpop.f32.mrf.mxu0
    %v8324 = vadd.f32 %v8290, %v8323
    %v8325 = vpop.f32.mrf.mxu0
    %v8326 = vadd.f32 %v8292, %v8325
    %8327 = vdwg.mxu0
    %8328 = vmatpush.bf16.msra.mxu0 %v7896
    %8329 = vmatpush.bf16.msra.mxu0 %v7894
    %8330 = vmatpush.bf16.msra.mxu0 %v7892
    %8331 = vmatpush.bf16.msra.mxu0 %v7890
    %8332 = vmatpush.bf16.msra.mxu0 %v7888
    %8333 = vmatpush.bf16.msra.mxu0 %v7886
    %8334 = vmatpush.bf16.msra.mxu0 %v7884
    %8335 = vmatpush.bf16.msra.mxu0 %v7882
    %8336 = vmatmul.bf16.gmra.mxu0 %v5442
    %v8337 = vpop.f32.mrf.mxu0
    %v8338 = vadd.f32 %v8304, %v8337
    %v8339 = vpop.f32.mrf.mxu0
    %v8340 = vadd.f32 %v8306, %v8339
    %8341 = vmatmul.bf16.gmra.mxu0 %v5444
    %v8342 = vpop.f32.mrf.mxu0
    %v8343 = vadd.f32 %v8309, %v8342
    %v8344 = vpop.f32.mrf.mxu0
    %v8345 = vadd.f32 %v8311, %v8344
    %8346 = vmatmul.bf16.gmra.mxu0 %v5446
    %v8347 = vpop.f32.mrf.mxu0
    %v8348 = vadd.f32 %v8314, %v8347
    %v8349 = vpop.f32.mrf.mxu0
    %v8350 = vadd.f32 %v8316, %v8349
    %8351 = vmatmul.bf16.gmra.mxu0 %v5448
    %v8352 = vpop.f32.mrf.mxu0
    %v8353 = vadd.f32 %v8319, %v8352
    %v8354 = vpop.f32.mrf.mxu0
    %v8355 = vadd.f32 %v8321, %v8354
    %8356 = vmatmul.bf16.gmra.mxu0 %v5476
    %v8357 = vpop.f32.mrf.mxu0
    %v8358 = vadd.f32 %v8324, %v8357
    %v8359 = vpop.f32.mrf.mxu0
    %v8360 = vadd.f32 %v8326, %v8359
    %8361 = vdwg.mxu0
    %8362 = vmatpush.bf16.msra.mxu0 %v7912
    %8363 = vmatpush.bf16.msra.mxu0 %v7910
    %8364 = vmatpush.bf16.msra.mxu0 %v7908
    %8365 = vmatpush.bf16.msra.mxu0 %v7906
    %8366 = vmatpush.bf16.msra.mxu0 %v7904
    %8367 = vmatpush.bf16.msra.mxu0 %v7902
    %8368 = vmatpush.bf16.msra.mxu0 %v7900
    %8369 = vmatpush.bf16.msra.mxu0 %v7898
    %8370 = vmatmul.bf16.gmra.mxu0 %v5393
    %v8371 = vpop.f32.mrf.mxu0
    %v8372 = vadd.f32 %v8338, %v8371
    %v8373 = vpop.f32.mrf.mxu0
    %v8374 = vadd.f32 %v8340, %v8373
    %8375 = vmatmul.bf16.gmra.mxu0 %v5395
    %v8376 = vpop.f32.mrf.mxu0
    %v8377 = vadd.f32 %v8343, %v8376
    %v8378 = vpop.f32.mrf.mxu0
    %v8379 = vadd.f32 %v8345, %v8378
    %8380 = vmatmul.bf16.gmra.mxu0 %v5397
    %v8381 = vpop.f32.mrf.mxu0
    %v8382 = vadd.f32 %v8348, %v8381
    %v8383 = vpop.f32.mrf.mxu0
    %v8384 = vadd.f32 %v8350, %v8383
    %8385 = vmatmul.bf16.gmra.mxu0 %v5465
    %v8386 = vpop.f32.mrf.mxu0
    %v8387 = vadd.f32 %v8353, %v8386
    %v8388 = vpop.f32.mrf.mxu0
    %v8389 = vadd.f32 %v8355, %v8388
    %8390 = vmatmul.bf16.gmra.mxu0 %v5485
    %v8391 = vpop.f32.mrf.mxu0
    %v8392 = vadd.f32 %v8358, %v8391
    %v8393 = vpop.f32.mrf.mxu0
    %v8394 = vadd.f32 %v8360, %v8393
    %8395 = vdwg.mxu0
    %8396 = vmatpush.bf16.msra.mxu0 %v7928
    %8397 = vmatpush.bf16.msra.mxu0 %v7926
    %8398 = vmatpush.bf16.msra.mxu0 %v7924
    %8399 = vmatpush.bf16.msra.mxu0 %v7922
    %8400 = vmatpush.bf16.msra.mxu0 %v7920
    %8401 = vmatpush.bf16.msra.mxu0 %v7918
    %8402 = vmatpush.bf16.msra.mxu0 %v7916
    %8403 = vmatpush.bf16.msra.mxu0 %v7914
    %8404 = vmatmul.bf16.gmra.mxu0 %v5394
    %v8405 = vpop.f32.mrf.mxu0
    %v8406 = vadd.f32 %v8372, %v8405
    %v8407 = vpop.f32.mrf.mxu0
    %v8408 = vadd.f32 %v8374, %v8407
    %8409 = vmatmul.bf16.gmra.mxu0 %v5396
    %v8410 = vpop.f32.mrf.mxu0
    %v8411 = vadd.f32 %v8377, %v8410
    %v8412 = vpop.f32.mrf.mxu0
    %v8413 = vadd.f32 %v8379, %v8412
    %8414 = vmatmul.bf16.gmra.mxu0 %v5398
    %v8415 = vpop.f32.mrf.mxu0
    %v8416 = vadd.f32 %v8382, %v8415
    %v8417 = vpop.f32.mrf.mxu0
    %v8418 = vadd.f32 %v8384, %v8417
    %8419 = vmatmul.bf16.gmra.mxu0 %v5466
    %v8420 = vpop.f32.mrf.mxu0
    %v8421 = vadd.f32 %v8387, %v8420
    %v8422 = vpop.f32.mrf.mxu0
    %v8423 = vadd.f32 %v8389, %v8422
    %8424 = vmatmul.bf16.gmra.mxu0 %v5486
    %v8425 = vpop.f32.mrf.mxu0
    %v8426 = vadd.f32 %v8392, %v8425
    %v8427 = vpop.f32.mrf.mxu0
    %v8428 = vadd.f32 %v8394, %v8427
    %8429 = vdwg.mxu0
    %8430 = vmatpush.bf16.msra.mxu0 %v7785
    %8431 = vmatpush.bf16.msra.mxu0 %v7783
    %8432 = vmatpush.bf16.msra.mxu0 %v7781
    %8433 = vmatpush.bf16.msra.mxu0 %v7779
    %8434 = vmatpush.bf16.msra.mxu0 %v7777
    %8435 = vmatpush.bf16.msra.mxu0 %v7775
    %8436 = vmatpush.bf16.msra.mxu0 %v7773
    %8437 = vmatpush.bf16.msra.mxu0 %v7771
    %8438 = vmatmul.bf16.gmra.mxu0 %v5389
    %v8439 = vpop.f32.mrf.mxu0
    %v8440 = vadd.f32 0.0, %v8439
    %v8441 = vpop.f32.mrf.mxu0
    %v8442 = vadd.f32 0.0, %v8441
    %8443 = vmatmul.bf16.gmra.mxu0 %v5391
    %v8444 = vpop.f32.mrf.mxu0
    %v8445 = vadd.f32 0.0, %v8444
    %v8446 = vpop.f32.mrf.mxu0
    %v8447 = vadd.f32 0.0, %v8446
    %8448 = vmatmul.bf16.gmra.mxu0 %v5393
    %v8449 = vpop.f32.mrf.mxu0
    %v8450 = vadd.f32 0.0, %v8449
    %v8451 = vpop.f32.mrf.mxu0
    %v8452 = vadd.f32 0.0, %v8451
    %8453 = vmatmul.bf16.gmra.mxu0 %v5395
    %v8454 = vpop.f32.mrf.mxu0
    %v8455 = vadd.f32 0.0, %v8454
    %v8456 = vpop.f32.mrf.mxu0
    %v8457 = vadd.f32 0.0, %v8456
    %8458 = vmatmul.bf16.gmra.mxu0 %v5397
    %v8459 = vpop.f32.mrf.mxu0
    %v8460 = vadd.f32 0.0, %v8459
    %v8461 = vpop.f32.mrf.mxu0
    %v8462 = vadd.f32 0.0, %v8461
    %8463 = vdwg.mxu0
    %8464 = vmatpush.bf16.msra.mxu0 %v7801
    %8465 = vmatpush.bf16.msra.mxu0 %v7799
    %8466 = vmatpush.bf16.msra.mxu0 %v7797
    %8467 = vmatpush.bf16.msra.mxu0 %v7795
    %8468 = vmatpush.bf16.msra.mxu0 %v7793
    %8469 = vmatpush.bf16.msra.mxu0 %v7791
    %8470 = vmatpush.bf16.msra.mxu0 %v7789
    %8471 = vmatpush.bf16.msra.mxu0 %v7787
    %8472 = vmatmul.bf16.gmra.mxu0 %v5390
    %v8473 = vpop.f32.mrf.mxu0
    %v8474 = vadd.f32 %v8440, %v8473
    %v8475 = vpop.f32.mrf.mxu0
    %v8476 = vadd.f32 %v8442, %v8475
    %8477 = vmatmul.bf16.gmra.mxu0 %v5392
    %v8478 = vpop.f32.mrf.mxu0
    %v8479 = vadd.f32 %v8445, %v8478
    %v8480 = vpop.f32.mrf.mxu0
    %v8481 = vadd.f32 %v8447, %v8480
    %8482 = vmatmul.bf16.gmra.mxu0 %v5394
    %v8483 = vpop.f32.mrf.mxu0
    %v8484 = vadd.f32 %v8450, %v8483
    %v8485 = vpop.f32.mrf.mxu0
    %v8486 = vadd.f32 %v8452, %v8485
    %8487 = vmatmul.bf16.gmra.mxu0 %v5396
    %v8488 = vpop.f32.mrf.mxu0
    %v8489 = vadd.f32 %v8455, %v8488
    %v8490 = vpop.f32.mrf.mxu0
    %v8491 = vadd.f32 %v8457, %v8490
    %8492 = vmatmul.bf16.gmra.mxu0 %v5398
    %v8493 = vpop.f32.mrf.mxu0
    %v8494 = vadd.f32 %v8460, %v8493
    %v8495 = vpop.f32.mrf.mxu0
    %v8496 = vadd.f32 %v8462, %v8495
    %8497 = vdwg.mxu0
    %8498 = vmatpush.bf16.msra.mxu0 %v7817
    %8499 = vmatpush.bf16.msra.mxu0 %v7815
    %8500 = vmatpush.bf16.msra.mxu0 %v7813
    %8501 = vmatpush.bf16.msra.mxu0 %v7811
    %8502 = vmatpush.bf16.msra.mxu0 %v7809
    %8503 = vmatpush.bf16.msra.mxu0 %v7807
    %8504 = vmatpush.bf16.msra.mxu0 %v7805
    %8505 = vmatpush.bf16.msra.mxu0 %v7803
    %8506 = vmatmul.bf16.gmra.mxu0 %v5439
    %v8507 = vpop.f32.mrf.mxu0
    %v8508 = vadd.f32 %v8474, %v8507
    %v8509 = vpop.f32.mrf.mxu0
    %v8510 = vadd.f32 %v8476, %v8509
    %8511 = vmatmul.bf16.gmra.mxu0 %v5441
    %v8512 = vpop.f32.mrf.mxu0
    %v8513 = vadd.f32 %v8479, %v8512
    %v8514 = vpop.f32.mrf.mxu0
    %v8515 = vadd.f32 %v8481, %v8514
    %8516 = vmatmul.bf16.gmra.mxu0 %v5443
    %v8517 = vpop.f32.mrf.mxu0
    %v8518 = vadd.f32 %v8484, %v8517
    %v8519 = vpop.f32.mrf.mxu0
    %v8520 = vadd.f32 %v8486, %v8519
    %8521 = vmatmul.bf16.gmra.mxu0 %v5445
    %v8522 = vpop.f32.mrf.mxu0
    %v8523 = vadd.f32 %v8489, %v8522
    %v8524 = vpop.f32.mrf.mxu0
    %v8525 = vadd.f32 %v8491, %v8524
    %8526 = vmatmul.bf16.gmra.mxu0 %v5447
    %v8527 = vpop.f32.mrf.mxu0
    %v8528 = vadd.f32 %v8494, %v8527
    %v8529 = vpop.f32.mrf.mxu0
    %v8530 = vadd.f32 %v8496, %v8529
    %8531 = vdwg.mxu0
    %8532 = vmatpush.bf16.msra.mxu0 %v7833
    %8533 = vmatpush.bf16.msra.mxu0 %v7831
    %8534 = vmatpush.bf16.msra.mxu0 %v7829
    %8535 = vmatpush.bf16.msra.mxu0 %v7827
    %8536 = vmatpush.bf16.msra.mxu0 %v7825
    %8537 = vmatpush.bf16.msra.mxu0 %v7823
    %8538 = vmatpush.bf16.msra.mxu0 %v7821
    %8539 = vmatpush.bf16.msra.mxu0 %v7819
    %8540 = vmatmul.bf16.gmra.mxu0 %v5440
    %v8541 = vpop.f32.mrf.mxu0
    %v8542 = vadd.f32 %v8508, %v8541
    %v8543 = vpop.f32.mrf.mxu0
    %v8544 = vadd.f32 %v8510, %v8543
    %8545 = vmatmul.bf16.gmra.mxu0 %v5442
    %v8546 = vpop.f32.mrf.mxu0
    %v8547 = vadd.f32 %v8513, %v8546
    %v8548 = vpop.f32.mrf.mxu0
    %v8549 = vadd.f32 %v8515, %v8548
    %8550 = vmatmul.bf16.gmra.mxu0 %v5444
    %v8551 = vpop.f32.mrf.mxu0
    %v8552 = vadd.f32 %v8518, %v8551
    %v8553 = vpop.f32.mrf.mxu0
    %v8554 = vadd.f32 %v8520, %v8553
    %8555 = vmatmul.bf16.gmra.mxu0 %v5446
    %v8556 = vpop.f32.mrf.mxu0
    %v8557 = vadd.f32 %v8523, %v8556
    %v8558 = vpop.f32.mrf.mxu0
    %v8559 = vadd.f32 %v8525, %v8558
    %8560 = vmatmul.bf16.gmra.mxu0 %v5448
    %v8561 = vpop.f32.mrf.mxu0
    %v8562 = vadd.f32 %v8528, %v8561
    %v8563 = vpop.f32.mrf.mxu0
    %v8564 = vadd.f32 %v8530, %v8563
    %8565 = vdwg.mxu0
    %8566 = vmatpush.bf16.msra.mxu0 %v7849
    %8567 = vmatpush.bf16.msra.mxu0 %v7847
    %8568 = vmatpush.bf16.msra.mxu0 %v7845
    %8569 = vmatpush.bf16.msra.mxu0 %v7843
    %8570 = vmatpush.bf16.msra.mxu0 %v7841
    %8571 = vmatpush.bf16.msra.mxu0 %v7839
    %8572 = vmatpush.bf16.msra.mxu0 %v7837
    %8573 = vmatpush.bf16.msra.mxu0 %v7835
    %8574 = vmatmul.bf16.gmra.mxu0 %v5391
    %v8575 = vpop.f32.mrf.mxu0
    %v8576 = vadd.f32 %v8542, %v8575
    %v8577 = vpop.f32.mrf.mxu0
    %v8578 = vadd.f32 %v8544, %v8577
    %8579 = vmatmul.bf16.gmra.mxu0 %v5393
    %v8580 = vpop.f32.mrf.mxu0
    %v8581 = vadd.f32 %v8547, %v8580
    %v8582 = vpop.f32.mrf.mxu0
    %v8583 = vadd.f32 %v8549, %v8582
    %8584 = vmatmul.bf16.gmra.mxu0 %v5395
    %v8585 = vpop.f32.mrf.mxu0
    %v8586 = vadd.f32 %v8552, %v8585
    %v8587 = vpop.f32.mrf.mxu0
    %v8588 = vadd.f32 %v8554, %v8587
    %8589 = vmatmul.bf16.gmra.mxu0 %v5397
    %v8590 = vpop.f32.mrf.mxu0
    %v8591 = vadd.f32 %v8557, %v8590
    %v8592 = vpop.f32.mrf.mxu0
    %v8593 = vadd.f32 %v8559, %v8592
    %8594 = vmatmul.bf16.gmra.mxu0 %v5465
    %v8595 = vpop.f32.mrf.mxu0
    %v8596 = vadd.f32 %v8562, %v8595
    %v8597 = vpop.f32.mrf.mxu0
    %v8598 = vadd.f32 %v8564, %v8597
    %8599 = vdwg.mxu0
    %8600 = vmatpush.bf16.msra.mxu0 %v7865
    %8601 = vmatpush.bf16.msra.mxu0 %v7863
    %8602 = vmatpush.bf16.msra.mxu0 %v7861
    %8603 = vmatpush.bf16.msra.mxu0 %v7859
    %8604 = vmatpush.bf16.msra.mxu0 %v7857
    %8605 = vmatpush.bf16.msra.mxu0 %v7855
    %8606 = vmatpush.bf16.msra.mxu0 %v7853
    %8607 = vmatpush.bf16.msra.mxu0 %v7851
    %8608 = vmatmul.bf16.gmra.mxu0 %v5392
    %v8609 = vpop.f32.mrf.mxu0
    %v8610 = vadd.f32 %v8576, %v8609
    %v8611 = vpop.f32.mrf.mxu0
    %v8612 = vadd.f32 %v8578, %v8611
    %8613 = vmatmul.bf16.gmra.mxu0 %v5394
    %v8614 = vpop.f32.mrf.mxu0
    %v8615 = vadd.f32 %v8581, %v8614
    %v8616 = vpop.f32.mrf.mxu0
    %v8617 = vadd.f32 %v8583, %v8616
    %8618 = vmatmul.bf16.gmra.mxu0 %v5396
    %v8619 = vpop.f32.mrf.mxu0
    %v8620 = vadd.f32 %v8586, %v8619
    %v8621 = vpop.f32.mrf.mxu0
    %v8622 = vadd.f32 %v8588, %v8621
    %8623 = vmatmul.bf16.gmra.mxu0 %v5398
    %v8624 = vpop.f32.mrf.mxu0
    %v8625 = vadd.f32 %v8591, %v8624
    %v8626 = vpop.f32.mrf.mxu0
    %v8627 = vadd.f32 %v8593, %v8626
    %8628 = vmatmul.bf16.gmra.mxu0 %v5466
    %v8629 = vpop.f32.mrf.mxu0
    %v8630 = vadd.f32 %v8596, %v8629
    %v8631 = vpop.f32.mrf.mxu0
    %v8632 = vadd.f32 %v8598, %v8631
    %8633 = vdwg.mxu0
    %8634 = vmatpush.bf16.msra.mxu0 %v7881
    %8635 = vmatpush.bf16.msra.mxu0 %v7879
    %8636 = vmatpush.bf16.msra.mxu0 %v7877
    %8637 = vmatpush.bf16.msra.mxu0 %v7875
    %8638 = vmatpush.bf16.msra.mxu0 %v7873
    %8639 = vmatpush.bf16.msra.mxu0 %v7871
    %8640 = vmatpush.bf16.msra.mxu0 %v7869
    %8641 = vmatpush.bf16.msra.mxu0 %v7867
    %8642 = vmatmul.bf16.gmra.mxu0 %v5441
    %v8643 = vpop.f32.mrf.mxu0
    %v8644 = vadd.f32 %v8610, %v8643
    %v8645 = vpop.f32.mrf.mxu0
    %v8646 = vadd.f32 %v8612, %v8645
    %8647 = vmatmul.bf16.gmra.mxu0 %v5443
    %v8648 = vpop.f32.mrf.mxu0
    %v8649 = vadd.f32 %v8615, %v8648
    %v8650 = vpop.f32.mrf.mxu0
    %v8651 = vadd.f32 %v8617, %v8650
    %8652 = vmatmul.bf16.gmra.mxu0 %v5445
    %v8653 = vpop.f32.mrf.mxu0
    %v8654 = vadd.f32 %v8620, %v8653
    %v8655 = vpop.f32.mrf.mxu0
    %v8656 = vadd.f32 %v8622, %v8655
    %8657 = vmatmul.bf16.gmra.mxu0 %v5447
    %v8658 = vpop.f32.mrf.mxu0
    %v8659 = vadd.f32 %v8625, %v8658
    %v8660 = vpop.f32.mrf.mxu0
    %v8661 = vadd.f32 %v8627, %v8660
    %8662 = vmatmul.bf16.gmra.mxu0 %v5475
    %v8663 = vpop.f32.mrf.mxu0
    %v8664 = vadd.f32 %v8630, %v8663
    %v8665 = vpop.f32.mrf.mxu0
    %v8666 = vadd.f32 %v8632, %v8665
    %8667 = vdwg.mxu0
    %8668 = vmatpush.bf16.msra.mxu0 %v7897
    %8669 = vmatpush.bf16.msra.mxu0 %v7895
    %8670 = vmatpush.bf16.msra.mxu0 %v7893
    %8671 = vmatpush.bf16.msra.mxu0 %v7891
    %8672 = vmatpush.bf16.msra.mxu0 %v7889
    %8673 = vmatpush.bf16.msra.mxu0 %v7887
    %8674 = vmatpush.bf16.msra.mxu0 %v7885
    %8675 = vmatpush.bf16.msra.mxu0 %v7883
    %8676 = vmatmul.bf16.gmra.mxu0 %v5442
    %v8677 = vpop.f32.mrf.mxu0
    %v8678 = vadd.f32 %v8644, %v8677
    %v8679 = vpop.f32.mrf.mxu0
    %v8680 = vadd.f32 %v8646, %v8679
    %8681 = vmatmul.bf16.gmra.mxu0 %v5444
    %v8682 = vpop.f32.mrf.mxu0
    %v8683 = vadd.f32 %v8649, %v8682
    %v8684 = vpop.f32.mrf.mxu0
    %v8685 = vadd.f32 %v8651, %v8684
    %8686 = vmatmul.bf16.gmra.mxu0 %v5446
    %v8687 = vpop.f32.mrf.mxu0
    %v8688 = vadd.f32 %v8654, %v8687
    %v8689 = vpop.f32.mrf.mxu0
    %v8690 = vadd.f32 %v8656, %v8689
    %8691 = vmatmul.bf16.gmra.mxu0 %v5448
    %v8692 = vpop.f32.mrf.mxu0
    %v8693 = vadd.f32 %v8659, %v8692
    %v8694 = vpop.f32.mrf.mxu0
    %v8695 = vadd.f32 %v8661, %v8694
    %8696 = vmatmul.bf16.gmra.mxu0 %v5476
    %v8697 = vpop.f32.mrf.mxu0
    %v8698 = vadd.f32 %v8664, %v8697
    %v8699 = vpop.f32.mrf.mxu0
    %v8700 = vadd.f32 %v8666, %v8699
    %8701 = vdwg.mxu0
    %8702 = vmatpush.bf16.msra.mxu0 %v7913
    %8703 = vmatpush.bf16.msra.mxu0 %v7911
    %8704 = vmatpush.bf16.msra.mxu0 %v7909
    %8705 = vmatpush.bf16.msra.mxu0 %v7907
    %8706 = vmatpush.bf16.msra.mxu0 %v7905
    %8707 = vmatpush.bf16.msra.mxu0 %v7903
    %8708 = vmatpush.bf16.msra.mxu0 %v7901
    %8709 = vmatpush.bf16.msra.mxu0 %v7899
    %8710 = vmatmul.bf16.gmra.mxu0 %v5393
    %v8711 = vpop.f32.mrf.mxu0
    %v8712 = vadd.f32 %v8678, %v8711
    %v8713 = vpop.f32.mrf.mxu0
    %v8714 = vadd.f32 %v8680, %v8713
    %8715 = vmatmul.bf16.gmra.mxu0 %v5395
    %v8716 = vpop.f32.mrf.mxu0
    %v8717 = vadd.f32 %v8683, %v8716
    %v8718 = vpop.f32.mrf.mxu0
    %v8719 = vadd.f32 %v8685, %v8718
    %8720 = vmatmul.bf16.gmra.mxu0 %v5397
    %v8721 = vpop.f32.mrf.mxu0
    %v8722 = vadd.f32 %v8688, %v8721
    %v8723 = vpop.f32.mrf.mxu0
    %v8724 = vadd.f32 %v8690, %v8723
    %8725 = vmatmul.bf16.gmra.mxu0 %v5465
    %v8726 = vpop.f32.mrf.mxu0
    %v8727 = vadd.f32 %v8693, %v8726
    %v8728 = vpop.f32.mrf.mxu0
    %v8729 = vadd.f32 %v8695, %v8728
    %8730 = vmatmul.bf16.gmra.mxu0 %v5485
    %v8731 = vpop.f32.mrf.mxu0
    %v8732 = vadd.f32 %v8698, %v8731
    %v8733 = vpop.f32.mrf.mxu0
    %v8734 = vadd.f32 %v8700, %v8733
    %8735 = vdwg.mxu0
    %8736 = vmatpush.bf16.msra.mxu0 %v7929
    %8737 = vmatpush.bf16.msra.mxu0 %v7927
    %8738 = vmatpush.bf16.msra.mxu0 %v7925
    %8739 = vmatpush.bf16.msra.mxu0 %v7923
    %8740 = vmatpush.bf16.msra.mxu0 %v7921
    %8741 = vmatpush.bf16.msra.mxu0 %v7919
    %8742 = vmatpush.bf16.msra.mxu0 %v7917
    %8743 = vmatpush.bf16.msra.mxu0 %v7915
    %8744 = vmatmul.bf16.gmra.mxu0 %v5394
    %v8745 = vpop.f32.mrf.mxu0
    %v8746 = vadd.f32 %v8712, %v8745
    %v8747 = vpop.f32.mrf.mxu0
    %v8748 = vadd.f32 %v8714, %v8747
    %8749 = vmatmul.bf16.gmra.mxu0 %v5396
    %v8750 = vpop.f32.mrf.mxu0
    %v8751 = vadd.f32 %v8717, %v8750
    %v8752 = vpop.f32.mrf.mxu0
    %v8753 = vadd.f32 %v8719, %v8752
    %8754 = vmatmul.bf16.gmra.mxu0 %v5398
    %v8755 = vpop.f32.mrf.mxu0
    %v8756 = vadd.f32 %v8722, %v8755
    %v8757 = vpop.f32.mrf.mxu0
    %v8758 = vadd.f32 %v8724, %v8757
    %8759 = vmatmul.bf16.gmra.mxu0 %v5466
    %v8760 = vpop.f32.mrf.mxu0
    %v8761 = vadd.f32 %v8727, %v8760
    %v8762 = vpop.f32.mrf.mxu0
    %v8763 = vadd.f32 %v8729, %v8762
    %8764 = vmatmul.bf16.gmra.mxu0 %v5486
    %v8765 = vpop.f32.mrf.mxu0
    %v8766 = vadd.f32 %v8732, %v8765
    %v8767 = vpop.f32.mrf.mxu0
    %v8768 = vadd.f32 %v8734, %v8767
    %8769 = vdwg.mxu0
    %v8770 = vmax.f32 %v6765, %v8406
    %v8771 = vmax.f32 %v7105, %v8746
    %v8772 = vmax.f32 %v6767, %v8408
    %v8773 = vmax.f32 %v7107, %v8748
    %v8774 = vmax.f32 %v6770, %v8411
    %v8775 = vmax.f32 %v7110, %v8751
    %v8776 = vmax.f32 %v6772, %v8413
    %v8777 = vmax.f32 %v7112, %v8753
    %v8778 = vmax.f32 %v6775, %v8416
    %v8779 = vmax.f32 %v7115, %v8756
    %v8780 = vmax.f32 %v6777, %v8418
    %v8781 = vmax.f32 %v7117, %v8758
    %v8782 = vmax.f32 %v6780, %v8421
    %v8783 = vmax.f32 %v7120, %v8761
    %v8784 = vmax.f32 %v6782, %v8423
    %v8785 = vmax.f32 %v7122, %v8763
    %v8786 = vmax.f32 %v6785, %v8426
    %v8787 = vmax.f32 %v7125, %v8766
    %v8788 = vmax.f32 %v6787, %v8428
    %v8789 = vmax.f32 %v7127, %v8768
    %v8792 = vunpack.c.l.b16 %v5356
    %v8793 = vunpack.c.h.b16 %v5356
    %v8794 = vunpack.c.l.b16 %v5357
    %v8795 = vunpack.c.h.b16 %v5357
    %v8796 = vpack.c.b16 %v8794, %v8792
    %v8797 = vpack.c.b16 %v8795, %v8793
    %8800 = vmatpush.bf16.msra.mxu0 %v6143
    %8801 = vmatpush.bf16.msra.mxu0 %v6141
    %8802 = vmatpush.bf16.msra.mxu0 %v6139
    %8803 = vmatpush.bf16.msra.mxu0 %v6137
    %8804 = vmatpush.bf16.msra.mxu0 %v6135
    %8805 = vmatpush.bf16.msra.mxu0 %v6133
    %8806 = vmatpush.bf16.msra.mxu0 %v6131
    %8807 = vmatpush.bf16.msra.mxu0 %v6129
    %8808 = vmatmul.bf16.gmra.mxu0 %v5439
    %v8809 = vpop.f32.mrf.mxu0
    %v8810 = vadd.f32 0.0, %v8809
    %v8811 = vpop.f32.mrf.mxu0
    %v8812 = vadd.f32 0.0, %v8811
    %8813 = vmatmul.bf16.gmra.mxu0 %v5441
    %v8814 = vpop.f32.mrf.mxu0
    %v8815 = vadd.f32 0.0, %v8814
    %v8816 = vpop.f32.mrf.mxu0
    %v8817 = vadd.f32 0.0, %v8816
    %8818 = vmatmul.bf16.gmra.mxu0 %v5443
    %v8819 = vpop.f32.mrf.mxu0
    %v8820 = vadd.f32 0.0, %v8819
    %v8821 = vpop.f32.mrf.mxu0
    %v8822 = vadd.f32 0.0, %v8821
    %8823 = vmatmul.bf16.gmra.mxu0 %v5445
    %v8824 = vpop.f32.mrf.mxu0
    %v8825 = vadd.f32 0.0, %v8824
    %v8826 = vpop.f32.mrf.mxu0
    %v8827 = vadd.f32 0.0, %v8826
    %8828 = vmatmul.bf16.gmra.mxu0 %v5447
    %v8829 = vpop.f32.mrf.mxu0
    %v8830 = vadd.f32 0.0, %v8829
    %v8831 = vpop.f32.mrf.mxu0
    %v8832 = vadd.f32 0.0, %v8831
    %8833 = vdwg.mxu0
    %8834 = vmatpush.bf16.msra.mxu0 %v6159
    %8835 = vmatpush.bf16.msra.mxu0 %v6157
    %8836 = vmatpush.bf16.msra.mxu0 %v6155
    %8837 = vmatpush.bf16.msra.mxu0 %v6153
    %8838 = vmatpush.bf16.msra.mxu0 %v6151
    %8839 = vmatpush.bf16.msra.mxu0 %v6149
    %8840 = vmatpush.bf16.msra.mxu0 %v6147
    %8841 = vmatpush.bf16.msra.mxu0 %v6145
    %8842 = vmatmul.bf16.gmra.mxu0 %v5440
    %v8843 = vpop.f32.mrf.mxu0
    %v8844 = vadd.f32 %v8810, %v8843
    %v8845 = vpop.f32.mrf.mxu0
    %v8846 = vadd.f32 %v8812, %v8845
    %8847 = vmatmul.bf16.gmra.mxu0 %v5442
    %v8848 = vpop.f32.mrf.mxu0
    %v8849 = vadd.f32 %v8815, %v8848
    %v8850 = vpop.f32.mrf.mxu0
    %v8851 = vadd.f32 %v8817, %v8850
    %8852 = vmatmul.bf16.gmra.mxu0 %v5444
    %v8853 = vpop.f32.mrf.mxu0
    %v8854 = vadd.f32 %v8820, %v8853
    %v8855 = vpop.f32.mrf.mxu0
    %v8856 = vadd.f32 %v8822, %v8855
    %8857 = vmatmul.bf16.gmra.mxu0 %v5446
    %v8858 = vpop.f32.mrf.mxu0
    %v8859 = vadd.f32 %v8825, %v8858
    %v8860 = vpop.f32.mrf.mxu0
    %v8861 = vadd.f32 %v8827, %v8860
    %8862 = vmatmul.bf16.gmra.mxu0 %v5448
    %v8863 = vpop.f32.mrf.mxu0
    %v8864 = vadd.f32 %v8830, %v8863
    %v8865 = vpop.f32.mrf.mxu0
    %v8866 = vadd.f32 %v8832, %v8865
    %8867 = vdwg.mxu0
    %8868 = vmatpush.bf16.msra.mxu0 %v6175
    %8869 = vmatpush.bf16.msra.mxu0 %v6173
    %8870 = vmatpush.bf16.msra.mxu0 %v6171
    %8871 = vmatpush.bf16.msra.mxu0 %v6169
    %8872 = vmatpush.bf16.msra.mxu0 %v6167
    %8873 = vmatpush.bf16.msra.mxu0 %v6165
    %8874 = vmatpush.bf16.msra.mxu0 %v6163
    %8875 = vmatpush.bf16.msra.mxu0 %v6161
    %8876 = vmatmul.bf16.gmra.mxu0 %v5391
    %v8877 = vpop.f32.mrf.mxu0
    %v8878 = vadd.f32 %v8844, %v8877
    %v8879 = vpop.f32.mrf.mxu0
    %v8880 = vadd.f32 %v8846, %v8879
    %8881 = vmatmul.bf16.gmra.mxu0 %v5393
    %v8882 = vpop.f32.mrf.mxu0
    %v8883 = vadd.f32 %v8849, %v8882
    %v8884 = vpop.f32.mrf.mxu0
    %v8885 = vadd.f32 %v8851, %v8884
    %8886 = vmatmul.bf16.gmra.mxu0 %v5395
    %v8887 = vpop.f32.mrf.mxu0
    %v8888 = vadd.f32 %v8854, %v8887
    %v8889 = vpop.f32.mrf.mxu0
    %v8890 = vadd.f32 %v8856, %v8889
    %8891 = vmatmul.bf16.gmra.mxu0 %v5397
    %v8892 = vpop.f32.mrf.mxu0
    %v8893 = vadd.f32 %v8859, %v8892
    %v8894 = vpop.f32.mrf.mxu0
    %v8895 = vadd.f32 %v8861, %v8894
    %8896 = vmatmul.bf16.gmra.mxu0 %v5465
    %v8897 = vpop.f32.mrf.mxu0
    %v8898 = vadd.f32 %v8864, %v8897
    %v8899 = vpop.f32.mrf.mxu0
    %v8900 = vadd.f32 %v8866, %v8899
    %8901 = vdwg.mxu0
    %8902 = vmatpush.bf16.msra.mxu0 %v6191
    %8903 = vmatpush.bf16.msra.mxu0 %v6189
    %8904 = vmatpush.bf16.msra.mxu0 %v6187
    %8905 = vmatpush.bf16.msra.mxu0 %v6185
    %8906 = vmatpush.bf16.msra.mxu0 %v6183
    %8907 = vmatpush.bf16.msra.mxu0 %v6181
    %8908 = vmatpush.bf16.msra.mxu0 %v6179
    %8909 = vmatpush.bf16.msra.mxu0 %v6177
    %8910 = vmatmul.bf16.gmra.mxu0 %v5392
    %v8911 = vpop.f32.mrf.mxu0
    %v8912 = vadd.f32 %v8878, %v8911
    %v8913 = vpop.f32.mrf.mxu0
    %v8914 = vadd.f32 %v8880, %v8913
    %8915 = vmatmul.bf16.gmra.mxu0 %v5394
    %v8916 = vpop.f32.mrf.mxu0
    %v8917 = vadd.f32 %v8883, %v8916
    %v8918 = vpop.f32.mrf.mxu0
    %v8919 = vadd.f32 %v8885, %v8918
    %8920 = vmatmul.bf16.gmra.mxu0 %v5396
    %v8921 = vpop.f32.mrf.mxu0
    %v8922 = vadd.f32 %v8888, %v8921
    %v8923 = vpop.f32.mrf.mxu0
    %v8924 = vadd.f32 %v8890, %v8923
    %8925 = vmatmul.bf16.gmra.mxu0 %v5398
    %v8926 = vpop.f32.mrf.mxu0
    %v8927 = vadd.f32 %v8893, %v8926
    %v8928 = vpop.f32.mrf.mxu0
    %v8929 = vadd.f32 %v8895, %v8928
    %8930 = vmatmul.bf16.gmra.mxu0 %v5466
    %v8931 = vpop.f32.mrf.mxu0
    %v8932 = vadd.f32 %v8898, %v8931
    %v8933 = vpop.f32.mrf.mxu0
    %v8934 = vadd.f32 %v8900, %v8933
    %8935 = vdwg.mxu0
    %8936 = vmatpush.bf16.msra.mxu0 %v6207
    %8937 = vmatpush.bf16.msra.mxu0 %v6205
    %8938 = vmatpush.bf16.msra.mxu0 %v6203
    %8939 = vmatpush.bf16.msra.mxu0 %v6201
    %8940 = vmatpush.bf16.msra.mxu0 %v6199
    %8941 = vmatpush.bf16.msra.mxu0 %v6197
    %8942 = vmatpush.bf16.msra.mxu0 %v6195
    %8943 = vmatpush.bf16.msra.mxu0 %v6193
    %8944 = vmatmul.bf16.gmra.mxu0 %v5441
    %v8945 = vpop.f32.mrf.mxu0
    %v8946 = vadd.f32 %v8912, %v8945
    %v8947 = vpop.f32.mrf.mxu0
    %v8948 = vadd.f32 %v8914, %v8947
    %8949 = vmatmul.bf16.gmra.mxu0 %v5443
    %v8950 = vpop.f32.mrf.mxu0
    %v8951 = vadd.f32 %v8917, %v8950
    %v8952 = vpop.f32.mrf.mxu0
    %v8953 = vadd.f32 %v8919, %v8952
    %8954 = vmatmul.bf16.gmra.mxu0 %v5445
    %v8955 = vpop.f32.mrf.mxu0
    %v8956 = vadd.f32 %v8922, %v8955
    %v8957 = vpop.f32.mrf.mxu0
    %v8958 = vadd.f32 %v8924, %v8957
    %8959 = vmatmul.bf16.gmra.mxu0 %v5447
    %v8960 = vpop.f32.mrf.mxu0
    %v8961 = vadd.f32 %v8927, %v8960
    %v8962 = vpop.f32.mrf.mxu0
    %v8963 = vadd.f32 %v8929, %v8962
    %8964 = vmatmul.bf16.gmra.mxu0 %v5475
    %v8965 = vpop.f32.mrf.mxu0
    %v8966 = vadd.f32 %v8932, %v8965
    %v8967 = vpop.f32.mrf.mxu0
    %v8968 = vadd.f32 %v8934, %v8967
    %8969 = vdwg.mxu0
    %8970 = vmatpush.bf16.msra.mxu0 %v6223
    %8971 = vmatpush.bf16.msra.mxu0 %v6221
    %8972 = vmatpush.bf16.msra.mxu0 %v6219
    %8973 = vmatpush.bf16.msra.mxu0 %v6217
    %8974 = vmatpush.bf16.msra.mxu0 %v6215
    %8975 = vmatpush.bf16.msra.mxu0 %v6213
    %8976 = vmatpush.bf16.msra.mxu0 %v6211
    %8977 = vmatpush.bf16.msra.mxu0 %v6209
    %8978 = vmatmul.bf16.gmra.mxu0 %v5442
    %v8979 = vpop.f32.mrf.mxu0
    %v8980 = vadd.f32 %v8946, %v8979
    %v8981 = vpop.f32.mrf.mxu0
    %v8982 = vadd.f32 %v8948, %v8981
    %8983 = vmatmul.bf16.gmra.mxu0 %v5444
    %v8984 = vpop.f32.mrf.mxu0
    %v8985 = vadd.f32 %v8951, %v8984
    %v8986 = vpop.f32.mrf.mxu0
    %v8987 = vadd.f32 %v8953, %v8986
    %8988 = vmatmul.bf16.gmra.mxu0 %v5446
    %v8989 = vpop.f32.mrf.mxu0
    %v8990 = vadd.f32 %v8956, %v8989
    %v8991 = vpop.f32.mrf.mxu0
    %v8992 = vadd.f32 %v8958, %v8991
    %8993 = vmatmul.bf16.gmra.mxu0 %v5448
    %v8994 = vpop.f32.mrf.mxu0
    %v8995 = vadd.f32 %v8961, %v8994
    %v8996 = vpop.f32.mrf.mxu0
    %v8997 = vadd.f32 %v8963, %v8996
    %8998 = vmatmul.bf16.gmra.mxu0 %v5476
    %v8999 = vpop.f32.mrf.mxu0
    %v9000 = vadd.f32 %v8966, %v8999
    %v9001 = vpop.f32.mrf.mxu0
    %v9002 = vadd.f32 %v8968, %v9001
    %9003 = vdwg.mxu0
    %9004 = vmatpush.bf16.msra.mxu0 %v6239
    %9005 = vmatpush.bf16.msra.mxu0 %v6237
    %9006 = vmatpush.bf16.msra.mxu0 %v6235
    %9007 = vmatpush.bf16.msra.mxu0 %v6233
    %9008 = vmatpush.bf16.msra.mxu0 %v6231
    %9009 = vmatpush.bf16.msra.mxu0 %v6229
    %9010 = vmatpush.bf16.msra.mxu0 %v6227
    %9011 = vmatpush.bf16.msra.mxu0 %v6225
    %9012 = vmatmul.bf16.gmra.mxu0 %v5393
    %v9013 = vpop.f32.mrf.mxu0
    %v9014 = vadd.f32 %v8980, %v9013
    %v9015 = vpop.f32.mrf.mxu0
    %v9016 = vadd.f32 %v8982, %v9015
    %9017 = vmatmul.bf16.gmra.mxu0 %v5395
    %v9018 = vpop.f32.mrf.mxu0
    %v9019 = vadd.f32 %v8985, %v9018
    %v9020 = vpop.f32.mrf.mxu0
    %v9021 = vadd.f32 %v8987, %v9020
    %9022 = vmatmul.bf16.gmra.mxu0 %v5397
    %v9023 = vpop.f32.mrf.mxu0
    %v9024 = vadd.f32 %v8990, %v9023
    %v9025 = vpop.f32.mrf.mxu0
    %v9026 = vadd.f32 %v8992, %v9025
    %9027 = vmatmul.bf16.gmra.mxu0 %v5465
    %v9028 = vpop.f32.mrf.mxu0
    %v9029 = vadd.f32 %v8995, %v9028
    %v9030 = vpop.f32.mrf.mxu0
    %v9031 = vadd.f32 %v8997, %v9030
    %9032 = vmatmul.bf16.gmra.mxu0 %v5485
    %v9033 = vpop.f32.mrf.mxu0
    %v9034 = vadd.f32 %v9000, %v9033
    %v9035 = vpop.f32.mrf.mxu0
    %v9036 = vadd.f32 %v9002, %v9035
    %9037 = vdwg.mxu0
    %9038 = vmatpush.bf16.msra.mxu0 %v6255
    %9039 = vmatpush.bf16.msra.mxu0 %v6253
    %9040 = vmatpush.bf16.msra.mxu0 %v6251
    %9041 = vmatpush.bf16.msra.mxu0 %v6249
    %9042 = vmatpush.bf16.msra.mxu0 %v6247
    %9043 = vmatpush.bf16.msra.mxu0 %v6245
    %9044 = vmatpush.bf16.msra.mxu0 %v6243
    %9045 = vmatpush.bf16.msra.mxu0 %v6241
    %9046 = vmatmul.bf16.gmra.mxu0 %v5394
    %v9047 = vpop.f32.mrf.mxu0
    %v9048 = vadd.f32 %v9014, %v9047
    %v9049 = vpop.f32.mrf.mxu0
    %v9050 = vadd.f32 %v9016, %v9049
    %9051 = vmatmul.bf16.gmra.mxu0 %v5396
    %v9052 = vpop.f32.mrf.mxu0
    %v9053 = vadd.f32 %v9019, %v9052
    %v9054 = vpop.f32.mrf.mxu0
    %v9055 = vadd.f32 %v9021, %v9054
    %9056 = vmatmul.bf16.gmra.mxu0 %v5398
    %v9057 = vpop.f32.mrf.mxu0
    %v9058 = vadd.f32 %v9024, %v9057
    %v9059 = vpop.f32.mrf.mxu0
    %v9060 = vadd.f32 %v9026, %v9059
    %9061 = vmatmul.bf16.gmra.mxu0 %v5466
    %v9062 = vpop.f32.mrf.mxu0
    %v9063 = vadd.f32 %v9029, %v9062
    %v9064 = vpop.f32.mrf.mxu0
    %v9065 = vadd.f32 %v9031, %v9064
    %9066 = vmatmul.bf16.gmra.mxu0 %v5486
    %v9067 = vpop.f32.mrf.mxu0
    %v9068 = vadd.f32 %v9034, %v9067
    %v9069 = vpop.f32.mrf.mxu0
    %v9070 = vadd.f32 %v9036, %v9069
    %9071 = vdwg.mxu0
    %9072 = vmatpush.bf16.msra.mxu0 %v6271
    %9073 = vmatpush.bf16.msra.mxu0 %v6269
    %9074 = vmatpush.bf16.msra.mxu0 %v6267
    %9075 = vmatpush.bf16.msra.mxu0 %v6265
    %9076 = vmatpush.bf16.msra.mxu0 %v6263
    %9077 = vmatpush.bf16.msra.mxu0 %v6261
    %9078 = vmatpush.bf16.msra.mxu0 %v6259
    %9079 = vmatpush.bf16.msra.mxu0 %v6257
    %9080 = vmatmul.bf16.gmra.mxu0 %v5443
    %v9081 = vpop.f32.mrf.mxu0
    %v9082 = vadd.f32 %v9048, %v9081
    %v9083 = vpop.f32.mrf.mxu0
    %v9084 = vadd.f32 %v9050, %v9083
    %9085 = vmatmul.bf16.gmra.mxu0 %v5445
    %v9086 = vpop.f32.mrf.mxu0
    %v9087 = vadd.f32 %v9053, %v9086
    %v9088 = vpop.f32.mrf.mxu0
    %v9089 = vadd.f32 %v9055, %v9088
    %9090 = vmatmul.bf16.gmra.mxu0 %v5447
    %v9091 = vpop.f32.mrf.mxu0
    %v9092 = vadd.f32 %v9058, %v9091
    %v9093 = vpop.f32.mrf.mxu0
    %v9094 = vadd.f32 %v9060, %v9093
    %9095 = vmatmul.bf16.gmra.mxu0 %v5475
    %v9096 = vpop.f32.mrf.mxu0
    %v9097 = vadd.f32 %v9063, %v9096
    %v9098 = vpop.f32.mrf.mxu0
    %v9099 = vadd.f32 %v9065, %v9098
    %9100 = vmatmul.bf16.gmra.mxu0 %v8796
    %v9101 = vpop.f32.mrf.mxu0
    %v9102 = vadd.f32 %v9068, %v9101
    %v9103 = vpop.f32.mrf.mxu0
    %v9104 = vadd.f32 %v9070, %v9103
    %9105 = vdwg.mxu0
    %9106 = vmatpush.bf16.msra.mxu0 %v6287
    %9107 = vmatpush.bf16.msra.mxu0 %v6285
    %9108 = vmatpush.bf16.msra.mxu0 %v6283
    %9109 = vmatpush.bf16.msra.mxu0 %v6281
    %9110 = vmatpush.bf16.msra.mxu0 %v6279
    %9111 = vmatpush.bf16.msra.mxu0 %v6277
    %9112 = vmatpush.bf16.msra.mxu0 %v6275
    %9113 = vmatpush.bf16.msra.mxu0 %v6273
    %9114 = vmatmul.bf16.gmra.mxu0 %v5444
    %v9115 = vpop.f32.mrf.mxu0
    %v9116 = vadd.f32 %v9082, %v9115
    %v9117 = vpop.f32.mrf.mxu0
    %v9118 = vadd.f32 %v9084, %v9117
    %9119 = vmatmul.bf16.gmra.mxu0 %v5446
    %v9120 = vpop.f32.mrf.mxu0
    %v9121 = vadd.f32 %v9087, %v9120
    %v9122 = vpop.f32.mrf.mxu0
    %v9123 = vadd.f32 %v9089, %v9122
    %9124 = vmatmul.bf16.gmra.mxu0 %v5448
    %v9125 = vpop.f32.mrf.mxu0
    %v9126 = vadd.f32 %v9092, %v9125
    %v9127 = vpop.f32.mrf.mxu0
    %v9128 = vadd.f32 %v9094, %v9127
    %9129 = vmatmul.bf16.gmra.mxu0 %v5476
    %v9130 = vpop.f32.mrf.mxu0
    %v9131 = vadd.f32 %v9097, %v9130
    %v9132 = vpop.f32.mrf.mxu0
    %v9133 = vadd.f32 %v9099, %v9132
    %9134 = vmatmul.bf16.gmra.mxu0 %v8797
    %v9135 = vpop.f32.mrf.mxu0
    %v9136 = vadd.f32 %v9102, %v9135
    %v9137 = vpop.f32.mrf.mxu0
    %v9138 = vadd.f32 %v9104, %v9137
    %9139 = vdwg.mxu0
    %9140 = vmatpush.bf16.msra.mxu0 %v6144
    %9141 = vmatpush.bf16.msra.mxu0 %v6142
    %9142 = vmatpush.bf16.msra.mxu0 %v6140
    %9143 = vmatpush.bf16.msra.mxu0 %v6138
    %9144 = vmatpush.bf16.msra.mxu0 %v6136
    %9145 = vmatpush.bf16.msra.mxu0 %v6134
    %9146 = vmatpush.bf16.msra.mxu0 %v6132
    %9147 = vmatpush.bf16.msra.mxu0 %v6130
    %9148 = vmatmul.bf16.gmra.mxu0 %v5439
    %v9149 = vpop.f32.mrf.mxu0
    %v9150 = vadd.f32 0.0, %v9149
    %v9151 = vpop.f32.mrf.mxu0
    %v9152 = vadd.f32 0.0, %v9151
    %9153 = vmatmul.bf16.gmra.mxu0 %v5441
    %v9154 = vpop.f32.mrf.mxu0
    %v9155 = vadd.f32 0.0, %v9154
    %v9156 = vpop.f32.mrf.mxu0
    %v9157 = vadd.f32 0.0, %v9156
    %9158 = vmatmul.bf16.gmra.mxu0 %v5443
    %v9159 = vpop.f32.mrf.mxu0
    %v9160 = vadd.f32 0.0, %v9159
    %v9161 = vpop.f32.mrf.mxu0
    %v9162 = vadd.f32 0.0, %v9161
    %9163 = vmatmul.bf16.gmra.mxu0 %v5445
    %v9164 = vpop.f32.mrf.mxu0
    %v9165 = vadd.f32 0.0, %v9164
    %v9166 = vpop.f32.mrf.mxu0
    %v9167 = vadd.f32 0.0, %v9166
    %9168 = vmatmul.bf16.gmra.mxu0 %v5447
    %v9169 = vpop.f32.mrf.mxu0
    %v9170 = vadd.f32 0.0, %v9169
    %v9171 = vpop.f32.mrf.mxu0
    %v9172 = vadd.f32 0.0, %v9171
    %9173 = vdwg.mxu0
    %9174 = vmatpush.bf16.msra.mxu0 %v6160
    %9175 = vmatpush.bf16.msra.mxu0 %v6158
    %9176 = vmatpush.bf16.msra.mxu0 %v6156
    %9177 = vmatpush.bf16.msra.mxu0 %v6154
    %9178 = vmatpush.bf16.msra.mxu0 %v6152
    %9179 = vmatpush.bf16.msra.mxu0 %v6150
    %9180 = vmatpush.bf16.msra.mxu0 %v6148
    %9181 = vmatpush.bf16.msra.mxu0 %v6146
    %9182 = vmatmul.bf16.gmra.mxu0 %v5440
    %v9183 = vpop.f32.mrf.mxu0
    %v9184 = vadd.f32 %v9150, %v9183
    %v9185 = vpop.f32.mrf.mxu0
    %v9186 = vadd.f32 %v9152, %v9185
    %9187 = vmatmul.bf16.gmra.mxu0 %v5442
    %v9188 = vpop.f32.mrf.mxu0
    %v9189 = vadd.f32 %v9155, %v9188
    %v9190 = vpop.f32.mrf.mxu0
    %v9191 = vadd.f32 %v9157, %v9190
    %9192 = vmatmul.bf16.gmra.mxu0 %v5444
    %v9193 = vpop.f32.mrf.mxu0
    %v9194 = vadd.f32 %v9160, %v9193
    %v9195 = vpop.f32.mrf.mxu0
    %v9196 = vadd.f32 %v9162, %v9195
    %9197 = vmatmul.bf16.gmra.mxu0 %v5446
    %v9198 = vpop.f32.mrf.mxu0
    %v9199 = vadd.f32 %v9165, %v9198
    %v9200 = vpop.f32.mrf.mxu0
    %v9201 = vadd.f32 %v9167, %v9200
    %9202 = vmatmul.bf16.gmra.mxu0 %v5448
    %v9203 = vpop.f32.mrf.mxu0
    %v9204 = vadd.f32 %v9170, %v9203
    %v9205 = vpop.f32.mrf.mxu0
    %v9206 = vadd.f32 %v9172, %v9205
    %9207 = vdwg.mxu0
    %9208 = vmatpush.bf16.msra.mxu0 %v6176
    %9209 = vmatpush.bf16.msra.mxu0 %v6174
    %9210 = vmatpush.bf16.msra.mxu0 %v6172
    %9211 = vmatpush.bf16.msra.mxu0 %v6170
    %9212 = vmatpush.bf16.msra.mxu0 %v6168
    %9213 = vmatpush.bf16.msra.mxu0 %v6166
    %9214 = vmatpush.bf16.msra.mxu0 %v6164
    %9215 = vmatpush.bf16.msra.mxu0 %v6162
    %9216 = vmatmul.bf16.gmra.mxu0 %v5391
    %v9217 = vpop.f32.mrf.mxu0
    %v9218 = vadd.f32 %v9184, %v9217
    %v9219 = vpop.f32.mrf.mxu0
    %v9220 = vadd.f32 %v9186, %v9219
    %9221 = vmatmul.bf16.gmra.mxu0 %v5393
    %v9222 = vpop.f32.mrf.mxu0
    %v9223 = vadd.f32 %v9189, %v9222
    %v9224 = vpop.f32.mrf.mxu0
    %v9225 = vadd.f32 %v9191, %v9224
    %9226 = vmatmul.bf16.gmra.mxu0 %v5395
    %v9227 = vpop.f32.mrf.mxu0
    %v9228 = vadd.f32 %v9194, %v9227
    %v9229 = vpop.f32.mrf.mxu0
    %v9230 = vadd.f32 %v9196, %v9229
    %9231 = vmatmul.bf16.gmra.mxu0 %v5397
    %v9232 = vpop.f32.mrf.mxu0
    %v9233 = vadd.f32 %v9199, %v9232
    %v9234 = vpop.f32.mrf.mxu0
    %v9235 = vadd.f32 %v9201, %v9234
    %9236 = vmatmul.bf16.gmra.mxu0 %v5465
    %v9237 = vpop.f32.mrf.mxu0
    %v9238 = vadd.f32 %v9204, %v9237
    %v9239 = vpop.f32.mrf.mxu0
    %v9240 = vadd.f32 %v9206, %v9239
    %9241 = vdwg.mxu0
    %9242 = vmatpush.bf16.msra.mxu0 %v6192
    %9243 = vmatpush.bf16.msra.mxu0 %v6190
    %9244 = vmatpush.bf16.msra.mxu0 %v6188
    %9245 = vmatpush.bf16.msra.mxu0 %v6186
    %9246 = vmatpush.bf16.msra.mxu0 %v6184
    %9247 = vmatpush.bf16.msra.mxu0 %v6182
    %9248 = vmatpush.bf16.msra.mxu0 %v6180
    %9249 = vmatpush.bf16.msra.mxu0 %v6178
    %9250 = vmatmul.bf16.gmra.mxu0 %v5392
    %v9251 = vpop.f32.mrf.mxu0
    %v9252 = vadd.f32 %v9218, %v9251
    %v9253 = vpop.f32.mrf.mxu0
    %v9254 = vadd.f32 %v9220, %v9253
    %9255 = vmatmul.bf16.gmra.mxu0 %v5394
    %v9256 = vpop.f32.mrf.mxu0
    %v9257 = vadd.f32 %v9223, %v9256
    %v9258 = vpop.f32.mrf.mxu0
    %v9259 = vadd.f32 %v9225, %v9258
    %9260 = vmatmul.bf16.gmra.mxu0 %v5396
    %v9261 = vpop.f32.mrf.mxu0
    %v9262 = vadd.f32 %v9228, %v9261
    %v9263 = vpop.f32.mrf.mxu0
    %v9264 = vadd.f32 %v9230, %v9263
    %9265 = vmatmul.bf16.gmra.mxu0 %v5398
    %v9266 = vpop.f32.mrf.mxu0
    %v9267 = vadd.f32 %v9233, %v9266
    %v9268 = vpop.f32.mrf.mxu0
    %v9269 = vadd.f32 %v9235, %v9268
    %9270 = vmatmul.bf16.gmra.mxu0 %v5466
    %v9271 = vpop.f32.mrf.mxu0
    %v9272 = vadd.f32 %v9238, %v9271
    %v9273 = vpop.f32.mrf.mxu0
    %v9274 = vadd.f32 %v9240, %v9273
    %9275 = vdwg.mxu0
    %9276 = vmatpush.bf16.msra.mxu0 %v6208
    %9277 = vmatpush.bf16.msra.mxu0 %v6206
    %9278 = vmatpush.bf16.msra.mxu0 %v6204
    %9279 = vmatpush.bf16.msra.mxu0 %v6202
    %9280 = vmatpush.bf16.msra.mxu0 %v6200
    %9281 = vmatpush.bf16.msra.mxu0 %v6198
    %9282 = vmatpush.bf16.msra.mxu0 %v6196
    %9283 = vmatpush.bf16.msra.mxu0 %v6194
    %9284 = vmatmul.bf16.gmra.mxu0 %v5441
    %v9285 = vpop.f32.mrf.mxu0
    %v9286 = vadd.f32 %v9252, %v9285
    %v9287 = vpop.f32.mrf.mxu0
    %v9288 = vadd.f32 %v9254, %v9287
    %9289 = vmatmul.bf16.gmra.mxu0 %v5443
    %v9290 = vpop.f32.mrf.mxu0
    %v9291 = vadd.f32 %v9257, %v9290
    %v9292 = vpop.f32.mrf.mxu0
    %v9293 = vadd.f32 %v9259, %v9292
    %9294 = vmatmul.bf16.gmra.mxu0 %v5445
    %v9295 = vpop.f32.mrf.mxu0
    %v9296 = vadd.f32 %v9262, %v9295
    %v9297 = vpop.f32.mrf.mxu0
    %v9298 = vadd.f32 %v9264, %v9297
    %9299 = vmatmul.bf16.gmra.mxu0 %v5447
    %v9300 = vpop.f32.mrf.mxu0
    %v9301 = vadd.f32 %v9267, %v9300
    %v9302 = vpop.f32.mrf.mxu0
    %v9303 = vadd.f32 %v9269, %v9302
    %9304 = vmatmul.bf16.gmra.mxu0 %v5475
    %v9305 = vpop.f32.mrf.mxu0
    %v9306 = vadd.f32 %v9272, %v9305
    %v9307 = vpop.f32.mrf.mxu0
    %v9308 = vadd.f32 %v9274, %v9307
    %9309 = vdwg.mxu0
    %9310 = vmatpush.bf16.msra.mxu0 %v6224
    %9311 = vmatpush.bf16.msra.mxu0 %v6222
    %9312 = vmatpush.bf16.msra.mxu0 %v6220
    %9313 = vmatpush.bf16.msra.mxu0 %v6218
    %9314 = vmatpush.bf16.msra.mxu0 %v6216
    %9315 = vmatpush.bf16.msra.mxu0 %v6214
    %9316 = vmatpush.bf16.msra.mxu0 %v6212
    %9317 = vmatpush.bf16.msra.mxu0 %v6210
    %9318 = vmatmul.bf16.gmra.mxu0 %v5442
    %v9319 = vpop.f32.mrf.mxu0
    %v9320 = vadd.f32 %v9286, %v9319
    %v9321 = vpop.f32.mrf.mxu0
    %v9322 = vadd.f32 %v9288, %v9321
    %9323 = vmatmul.bf16.gmra.mxu0 %v5444
    %v9324 = vpop.f32.mrf.mxu0
    %v9325 = vadd.f32 %v9291, %v9324
    %v9326 = vpop.f32.mrf.mxu0
    %v9327 = vadd.f32 %v9293, %v9326
    %9328 = vmatmul.bf16.gmra.mxu0 %v5446
    %v9329 = vpop.f32.mrf.mxu0
    %v9330 = vadd.f32 %v9296, %v9329
    %v9331 = vpop.f32.mrf.mxu0
    %v9332 = vadd.f32 %v9298, %v9331
    %9333 = vmatmul.bf16.gmra.mxu0 %v5448
    %v9334 = vpop.f32.mrf.mxu0
    %v9335 = vadd.f32 %v9301, %v9334
    %v9336 = vpop.f32.mrf.mxu0
    %v9337 = vadd.f32 %v9303, %v9336
    %9338 = vmatmul.bf16.gmra.mxu0 %v5476
    %v9339 = vpop.f32.mrf.mxu0
    %v9340 = vadd.f32 %v9306, %v9339
    %v9341 = vpop.f32.mrf.mxu0
    %v9342 = vadd.f32 %v9308, %v9341
    %9343 = vdwg.mxu0
    %9344 = vmatpush.bf16.msra.mxu0 %v6240
    %9345 = vmatpush.bf16.msra.mxu0 %v6238
    %9346 = vmatpush.bf16.msra.mxu0 %v6236
    %9347 = vmatpush.bf16.msra.mxu0 %v6234
    %9348 = vmatpush.bf16.msra.mxu0 %v6232
    %9349 = vmatpush.bf16.msra.mxu0 %v6230
    %9350 = vmatpush.bf16.msra.mxu0 %v6228
    %9351 = vmatpush.bf16.msra.mxu0 %v6226
    %9352 = vmatmul.bf16.gmra.mxu0 %v5393
    %v9353 = vpop.f32.mrf.mxu0
    %v9354 = vadd.f32 %v9320, %v9353
    %v9355 = vpop.f32.mrf.mxu0
    %v9356 = vadd.f32 %v9322, %v9355
    %9357 = vmatmul.bf16.gmra.mxu0 %v5395
    %v9358 = vpop.f32.mrf.mxu0
    %v9359 = vadd.f32 %v9325, %v9358
    %v9360 = vpop.f32.mrf.mxu0
    %v9361 = vadd.f32 %v9327, %v9360
    %9362 = vmatmul.bf16.gmra.mxu0 %v5397
    %v9363 = vpop.f32.mrf.mxu0
    %v9364 = vadd.f32 %v9330, %v9363
    %v9365 = vpop.f32.mrf.mxu0
    %v9366 = vadd.f32 %v9332, %v9365
    %9367 = vmatmul.bf16.gmra.mxu0 %v5465
    %v9368 = vpop.f32.mrf.mxu0
    %v9369 = vadd.f32 %v9335, %v9368
    %v9370 = vpop.f32.mrf.mxu0
    %v9371 = vadd.f32 %v9337, %v9370
    %9372 = vmatmul.bf16.gmra.mxu0 %v5485
    %v9373 = vpop.f32.mrf.mxu0
    %v9374 = vadd.f32 %v9340, %v9373
    %v9375 = vpop.f32.mrf.mxu0
    %v9376 = vadd.f32 %v9342, %v9375
    %9377 = vdwg.mxu0
    %9378 = vmatpush.bf16.msra.mxu0 %v6256
    %9379 = vmatpush.bf16.msra.mxu0 %v6254
    %9380 = vmatpush.bf16.msra.mxu0 %v6252
    %9381 = vmatpush.bf16.msra.mxu0 %v6250
    %9382 = vmatpush.bf16.msra.mxu0 %v6248
    %9383 = vmatpush.bf16.msra.mxu0 %v6246
    %9384 = vmatpush.bf16.msra.mxu0 %v6244
    %9385 = vmatpush.bf16.msra.mxu0 %v6242
    %9386 = vmatmul.bf16.gmra.mxu0 %v5394
    %v9387 = vpop.f32.mrf.mxu0
    %v9388 = vadd.f32 %v9354, %v9387
    %v9389 = vpop.f32.mrf.mxu0
    %v9390 = vadd.f32 %v9356, %v9389
    %9391 = vmatmul.bf16.gmra.mxu0 %v5396
    %v9392 = vpop.f32.mrf.mxu0
    %v9393 = vadd.f32 %v9359, %v9392
    %v9394 = vpop.f32.mrf.mxu0
    %v9395 = vadd.f32 %v9361, %v9394
    %9396 = vmatmul.bf16.gmra.mxu0 %v5398
    %v9397 = vpop.f32.mrf.mxu0
    %v9398 = vadd.f32 %v9364, %v9397
    %v9399 = vpop.f32.mrf.mxu0
    %v9400 = vadd.f32 %v9366, %v9399
    %9401 = vmatmul.bf16.gmra.mxu0 %v5466
    %v9402 = vpop.f32.mrf.mxu0
    %v9403 = vadd.f32 %v9369, %v9402
    %v9404 = vpop.f32.mrf.mxu0
    %v9405 = vadd.f32 %v9371, %v9404
    %9406 = vmatmul.bf16.gmra.mxu0 %v5486
    %v9407 = vpop.f32.mrf.mxu0
    %v9408 = vadd.f32 %v9374, %v9407
    %v9409 = vpop.f32.mrf.mxu0
    %v9410 = vadd.f32 %v9376, %v9409
    %9411 = vdwg.mxu0
    %9412 = vmatpush.bf16.msra.mxu0 %v6272
    %9413 = vmatpush.bf16.msra.mxu0 %v6270
    %9414 = vmatpush.bf16.msra.mxu0 %v6268
    %9415 = vmatpush.bf16.msra.mxu0 %v6266
    %9416 = vmatpush.bf16.msra.mxu0 %v6264
    %9417 = vmatpush.bf16.msra.mxu0 %v6262
    %9418 = vmatpush.bf16.msra.mxu0 %v6260
    %9419 = vmatpush.bf16.msra.mxu0 %v6258
    %9420 = vmatmul.bf16.gmra.mxu0 %v5443
    %v9421 = vpop.f32.mrf.mxu0
    %v9422 = vadd.f32 %v9388, %v9421
    %v9423 = vpop.f32.mrf.mxu0
    %v9424 = vadd.f32 %v9390, %v9423
    %9425 = vmatmul.bf16.gmra.mxu0 %v5445
    %v9426 = vpop.f32.mrf.mxu0
    %v9427 = vadd.f32 %v9393, %v9426
    %v9428 = vpop.f32.mrf.mxu0
    %v9429 = vadd.f32 %v9395, %v9428
    %9430 = vmatmul.bf16.gmra.mxu0 %v5447
    %v9431 = vpop.f32.mrf.mxu0
    %v9432 = vadd.f32 %v9398, %v9431
    %v9433 = vpop.f32.mrf.mxu0
    %v9434 = vadd.f32 %v9400, %v9433
    %9435 = vmatmul.bf16.gmra.mxu0 %v5475
    %v9436 = vpop.f32.mrf.mxu0
    %v9437 = vadd.f32 %v9403, %v9436
    %v9438 = vpop.f32.mrf.mxu0
    %v9439 = vadd.f32 %v9405, %v9438
    %9440 = vmatmul.bf16.gmra.mxu0 %v8796
    %v9441 = vpop.f32.mrf.mxu0
    %v9442 = vadd.f32 %v9408, %v9441
    %v9443 = vpop.f32.mrf.mxu0
    %v9444 = vadd.f32 %v9410, %v9443
    %9445 = vdwg.mxu0
    %9446 = vmatpush.bf16.msra.mxu0 %v6288
    %9447 = vmatpush.bf16.msra.mxu0 %v6286
    %9448 = vmatpush.bf16.msra.mxu0 %v6284
    %9449 = vmatpush.bf16.msra.mxu0 %v6282
    %9450 = vmatpush.bf16.msra.mxu0 %v6280
    %9451 = vmatpush.bf16.msra.mxu0 %v6278
    %9452 = vmatpush.bf16.msra.mxu0 %v6276
    %9453 = vmatpush.bf16.msra.mxu0 %v6274
    %9454 = vmatmul.bf16.gmra.mxu0 %v5444
    %v9455 = vpop.f32.mrf.mxu0
    %v9456 = vadd.f32 %v9422, %v9455
    %v9457 = vpop.f32.mrf.mxu0
    %v9458 = vadd.f32 %v9424, %v9457
    %9459 = vmatmul.bf16.gmra.mxu0 %v5446
    %v9460 = vpop.f32.mrf.mxu0
    %v9461 = vadd.f32 %v9427, %v9460
    %v9462 = vpop.f32.mrf.mxu0
    %v9463 = vadd.f32 %v9429, %v9462
    %9464 = vmatmul.bf16.gmra.mxu0 %v5448
    %v9465 = vpop.f32.mrf.mxu0
    %v9466 = vadd.f32 %v9432, %v9465
    %v9467 = vpop.f32.mrf.mxu0
    %v9468 = vadd.f32 %v9434, %v9467
    %9469 = vmatmul.bf16.gmra.mxu0 %v5476
    %v9470 = vpop.f32.mrf.mxu0
    %v9471 = vadd.f32 %v9437, %v9470
    %v9472 = vpop.f32.mrf.mxu0
    %v9473 = vadd.f32 %v9439, %v9472
    %9474 = vmatmul.bf16.gmra.mxu0 %v8797
    %v9475 = vpop.f32.mrf.mxu0
    %v9476 = vadd.f32 %v9442, %v9475
    %v9477 = vpop.f32.mrf.mxu0
    %v9478 = vadd.f32 %v9444, %v9477
    %9479 = vdwg.mxu0
    %v9480 = vmax.f32 %v8770, %v9116
    %v9481 = vmax.f32 %v8771, %v9456
    %v9482 = vmax.f32 %v8772, %v9118
    %v9483 = vmax.f32 %v8773, %v9458
    %v9484 = vmax.f32 %v8774, %v9121
    %v9485 = vmax.f32 %v8775, %v9461
    %v9486 = vmax.f32 %v8776, %v9123
    %v9487 = vmax.f32 %v8777, %v9463
    %v9488 = vmax.f32 %v8778, %v9126
    %v9489 = vmax.f32 %v8779, %v9466
    %v9490 = vmax.f32 %v8780, %v9128
    %v9491 = vmax.f32 %v8781, %v9468
    %v9492 = vmax.f32 %v8782, %v9131
    %v9493 = vmax.f32 %v8783, %v9471
    %v9494 = vmax.f32 %v8784, %v9133
    %v9495 = vmax.f32 %v8785, %v9473
    %v9496 = vmax.f32 %v8786, %v9136
    %v9497 = vmax.f32 %v8787, %v9476
    %v9498 = vmax.f32 %v8788, %v9138
    %v9499 = vmax.f32 %v8789, %v9478
    %9500 = vmatpush.bf16.msra.mxu0 %v7784
    %9501 = vmatpush.bf16.msra.mxu0 %v7782
    %9502 = vmatpush.bf16.msra.mxu0 %v7780
    %9503 = vmatpush.bf16.msra.mxu0 %v7778
    %9504 = vmatpush.bf16.msra.mxu0 %v7776
    %9505 = vmatpush.bf16.msra.mxu0 %v7774
    %9506 = vmatpush.bf16.msra.mxu0 %v7772
    %9507 = vmatpush.bf16.msra.mxu0 %v7770
    %9508 = vmatmul.bf16.gmra.mxu0 %v5439
    %v9509 = vpop.f32.mrf.mxu0
    %v9510 = vadd.f32 0.0, %v9509
    %v9511 = vpop.f32.mrf.mxu0
    %v9512 = vadd.f32 0.0, %v9511
    %9513 = vmatmul.bf16.gmra.mxu0 %v5441
    %v9514 = vpop.f32.mrf.mxu0
    %v9515 = vadd.f32 0.0, %v9514
    %v9516 = vpop.f32.mrf.mxu0
    %v9517 = vadd.f32 0.0, %v9516
    %9518 = vmatmul.bf16.gmra.mxu0 %v5443
    %v9519 = vpop.f32.mrf.mxu0
    %v9520 = vadd.f32 0.0, %v9519
    %v9521 = vpop.f32.mrf.mxu0
    %v9522 = vadd.f32 0.0, %v9521
    %9523 = vmatmul.bf16.gmra.mxu0 %v5445
    %v9524 = vpop.f32.mrf.mxu0
    %v9525 = vadd.f32 0.0, %v9524
    %v9526 = vpop.f32.mrf.mxu0
    %v9527 = vadd.f32 0.0, %v9526
    %9528 = vmatmul.bf16.gmra.mxu0 %v5447
    %v9529 = vpop.f32.mrf.mxu0
    %v9530 = vadd.f32 0.0, %v9529
    %v9531 = vpop.f32.mrf.mxu0
    %v9532 = vadd.f32 0.0, %v9531
    %9533 = vdwg.mxu0
    %9534 = vmatpush.bf16.msra.mxu0 %v7800
    %9535 = vmatpush.bf16.msra.mxu0 %v7798
    %9536 = vmatpush.bf16.msra.mxu0 %v7796
    %9537 = vmatpush.bf16.msra.mxu0 %v7794
    %9538 = vmatpush.bf16.msra.mxu0 %v7792
    %9539 = vmatpush.bf16.msra.mxu0 %v7790
    %9540 = vmatpush.bf16.msra.mxu0 %v7788
    %9541 = vmatpush.bf16.msra.mxu0 %v7786
    %9542 = vmatmul.bf16.gmra.mxu0 %v5440
    %v9543 = vpop.f32.mrf.mxu0
    %v9544 = vadd.f32 %v9510, %v9543
    %v9545 = vpop.f32.mrf.mxu0
    %v9546 = vadd.f32 %v9512, %v9545
    %9547 = vmatmul.bf16.gmra.mxu0 %v5442
    %v9548 = vpop.f32.mrf.mxu0
    %v9549 = vadd.f32 %v9515, %v9548
    %v9550 = vpop.f32.mrf.mxu0
    %v9551 = vadd.f32 %v9517, %v9550
    %9552 = vmatmul.bf16.gmra.mxu0 %v5444
    %v9553 = vpop.f32.mrf.mxu0
    %v9554 = vadd.f32 %v9520, %v9553
    %v9555 = vpop.f32.mrf.mxu0
    %v9556 = vadd.f32 %v9522, %v9555
    %9557 = vmatmul.bf16.gmra.mxu0 %v5446
    %v9558 = vpop.f32.mrf.mxu0
    %v9559 = vadd.f32 %v9525, %v9558
    %v9560 = vpop.f32.mrf.mxu0
    %v9561 = vadd.f32 %v9527, %v9560
    %9562 = vmatmul.bf16.gmra.mxu0 %v5448
    %v9563 = vpop.f32.mrf.mxu0
    %v9564 = vadd.f32 %v9530, %v9563
    %v9565 = vpop.f32.mrf.mxu0
    %v9566 = vadd.f32 %v9532, %v9565
    %9567 = vdwg.mxu0
    %9568 = vmatpush.bf16.msra.mxu0 %v7816
    %9569 = vmatpush.bf16.msra.mxu0 %v7814
    %9570 = vmatpush.bf16.msra.mxu0 %v7812
    %9571 = vmatpush.bf16.msra.mxu0 %v7810
    %9572 = vmatpush.bf16.msra.mxu0 %v7808
    %9573 = vmatpush.bf16.msra.mxu0 %v7806
    %9574 = vmatpush.bf16.msra.mxu0 %v7804
    %9575 = vmatpush.bf16.msra.mxu0 %v7802
    %9576 = vmatmul.bf16.gmra.mxu0 %v5391
    %v9577 = vpop.f32.mrf.mxu0
    %v9578 = vadd.f32 %v9544, %v9577
    %v9579 = vpop.f32.mrf.mxu0
    %v9580 = vadd.f32 %v9546, %v9579
    %9581 = vmatmul.bf16.gmra.mxu0 %v5393
    %v9582 = vpop.f32.mrf.mxu0
    %v9583 = vadd.f32 %v9549, %v9582
    %v9584 = vpop.f32.mrf.mxu0
    %v9585 = vadd.f32 %v9551, %v9584
    %9586 = vmatmul.bf16.gmra.mxu0 %v5395
    %v9587 = vpop.f32.mrf.mxu0
    %v9588 = vadd.f32 %v9554, %v9587
    %v9589 = vpop.f32.mrf.mxu0
    %v9590 = vadd.f32 %v9556, %v9589
    %9591 = vmatmul.bf16.gmra.mxu0 %v5397
    %v9592 = vpop.f32.mrf.mxu0
    %v9593 = vadd.f32 %v9559, %v9592
    %v9594 = vpop.f32.mrf.mxu0
    %v9595 = vadd.f32 %v9561, %v9594
    %9596 = vmatmul.bf16.gmra.mxu0 %v5465
    %v9597 = vpop.f32.mrf.mxu0
    %v9598 = vadd.f32 %v9564, %v9597
    %v9599 = vpop.f32.mrf.mxu0
    %v9600 = vadd.f32 %v9566, %v9599
    %9601 = vdwg.mxu0
    %9602 = vmatpush.bf16.msra.mxu0 %v7832
    %9603 = vmatpush.bf16.msra.mxu0 %v7830
    %9604 = vmatpush.bf16.msra.mxu0 %v7828
    %9605 = vmatpush.bf16.msra.mxu0 %v7826
    %9606 = vmatpush.bf16.msra.mxu0 %v7824
    %9607 = vmatpush.bf16.msra.mxu0 %v7822
    %9608 = vmatpush.bf16.msra.mxu0 %v7820
    %9609 = vmatpush.bf16.msra.mxu0 %v7818
    %9610 = vmatmul.bf16.gmra.mxu0 %v5392
    %v9611 = vpop.f32.mrf.mxu0
    %v9612 = vadd.f32 %v9578, %v9611
    %v9613 = vpop.f32.mrf.mxu0
    %v9614 = vadd.f32 %v9580, %v9613
    %9615 = vmatmul.bf16.gmra.mxu0 %v5394
    %v9616 = vpop.f32.mrf.mxu0
    %v9617 = vadd.f32 %v9583, %v9616
    %v9618 = vpop.f32.mrf.mxu0
    %v9619 = vadd.f32 %v9585, %v9618
    %9620 = vmatmul.bf16.gmra.mxu0 %v5396
    %v9621 = vpop.f32.mrf.mxu0
    %v9622 = vadd.f32 %v9588, %v9621
    %v9623 = vpop.f32.mrf.mxu0
    %v9624 = vadd.f32 %v9590, %v9623
    %9625 = vmatmul.bf16.gmra.mxu0 %v5398
    %v9626 = vpop.f32.mrf.mxu0
    %v9627 = vadd.f32 %v9593, %v9626
    %v9628 = vpop.f32.mrf.mxu0
    %v9629 = vadd.f32 %v9595, %v9628
    %9630 = vmatmul.bf16.gmra.mxu0 %v5466
    %v9631 = vpop.f32.mrf.mxu0
    %v9632 = vadd.f32 %v9598, %v9631
    %v9633 = vpop.f32.mrf.mxu0
    %v9634 = vadd.f32 %v9600, %v9633
    %9635 = vdwg.mxu0
    %9636 = vmatpush.bf16.msra.mxu0 %v7848
    %9637 = vmatpush.bf16.msra.mxu0 %v7846
    %9638 = vmatpush.bf16.msra.mxu0 %v7844
    %9639 = vmatpush.bf16.msra.mxu0 %v7842
    %9640 = vmatpush.bf16.msra.mxu0 %v7840
    %9641 = vmatpush.bf16.msra.mxu0 %v7838
    %9642 = vmatpush.bf16.msra.mxu0 %v7836
    %9643 = vmatpush.bf16.msra.mxu0 %v7834
    %9644 = vmatmul.bf16.gmra.mxu0 %v5441
    %v9645 = vpop.f32.mrf.mxu0
    %v9646 = vadd.f32 %v9612, %v9645
    %v9647 = vpop.f32.mrf.mxu0
    %v9648 = vadd.f32 %v9614, %v9647
    %9649 = vmatmul.bf16.gmra.mxu0 %v5443
    %v9650 = vpop.f32.mrf.mxu0
    %v9651 = vadd.f32 %v9617, %v9650
    %v9652 = vpop.f32.mrf.mxu0
    %v9653 = vadd.f32 %v9619, %v9652
    %9654 = vmatmul.bf16.gmra.mxu0 %v5445
    %v9655 = vpop.f32.mrf.mxu0
    %v9656 = vadd.f32 %v9622, %v9655
    %v9657 = vpop.f32.mrf.mxu0
    %v9658 = vadd.f32 %v9624, %v9657
    %9659 = vmatmul.bf16.gmra.mxu0 %v5447
    %v9660 = vpop.f32.mrf.mxu0
    %v9661 = vadd.f32 %v9627, %v9660
    %v9662 = vpop.f32.mrf.mxu0
    %v9663 = vadd.f32 %v9629, %v9662
    %9664 = vmatmul.bf16.gmra.mxu0 %v5475
    %v9665 = vpop.f32.mrf.mxu0
    %v9666 = vadd.f32 %v9632, %v9665
    %v9667 = vpop.f32.mrf.mxu0
    %v9668 = vadd.f32 %v9634, %v9667
    %9669 = vdwg.mxu0
    %9670 = vmatpush.bf16.msra.mxu0 %v7864
    %9671 = vmatpush.bf16.msra.mxu0 %v7862
    %9672 = vmatpush.bf16.msra.mxu0 %v7860
    %9673 = vmatpush.bf16.msra.mxu0 %v7858
    %9674 = vmatpush.bf16.msra.mxu0 %v7856
    %9675 = vmatpush.bf16.msra.mxu0 %v7854
    %9676 = vmatpush.bf16.msra.mxu0 %v7852
    %9677 = vmatpush.bf16.msra.mxu0 %v7850
    %9678 = vmatmul.bf16.gmra.mxu0 %v5442
    %v9679 = vpop.f32.mrf.mxu0
    %v9680 = vadd.f32 %v9646, %v9679
    %v9681 = vpop.f32.mrf.mxu0
    %v9682 = vadd.f32 %v9648, %v9681
    %9683 = vmatmul.bf16.gmra.mxu0 %v5444
    %v9684 = vpop.f32.mrf.mxu0
    %v9685 = vadd.f32 %v9651, %v9684
    %v9686 = vpop.f32.mrf.mxu0
    %v9687 = vadd.f32 %v9653, %v9686
    %9688 = vmatmul.bf16.gmra.mxu0 %v5446
    %v9689 = vpop.f32.mrf.mxu0
    %v9690 = vadd.f32 %v9656, %v9689
    %v9691 = vpop.f32.mrf.mxu0
    %v9692 = vadd.f32 %v9658, %v9691
    %9693 = vmatmul.bf16.gmra.mxu0 %v5448
    %v9694 = vpop.f32.mrf.mxu0
    %v9695 = vadd.f32 %v9661, %v9694
    %v9696 = vpop.f32.mrf.mxu0
    %v9697 = vadd.f32 %v9663, %v9696
    %9698 = vmatmul.bf16.gmra.mxu0 %v5476
    %v9699 = vpop.f32.mrf.mxu0
    %v9700 = vadd.f32 %v9666, %v9699
    %v9701 = vpop.f32.mrf.mxu0
    %v9702 = vadd.f32 %v9668, %v9701
    %9703 = vdwg.mxu0
    %9704 = vmatpush.bf16.msra.mxu0 %v7880
    %9705 = vmatpush.bf16.msra.mxu0 %v7878
    %9706 = vmatpush.bf16.msra.mxu0 %v7876
    %9707 = vmatpush.bf16.msra.mxu0 %v7874
    %9708 = vmatpush.bf16.msra.mxu0 %v7872
    %9709 = vmatpush.bf16.msra.mxu0 %v7870
    %9710 = vmatpush.bf16.msra.mxu0 %v7868
    %9711 = vmatpush.bf16.msra.mxu0 %v7866
    %9712 = vmatmul.bf16.gmra.mxu0 %v5393
    %v9713 = vpop.f32.mrf.mxu0
    %v9714 = vadd.f32 %v9680, %v9713
    %v9715 = vpop.f32.mrf.mxu0
    %v9716 = vadd.f32 %v9682, %v9715
    %9717 = vmatmul.bf16.gmra.mxu0 %v5395
    %v9718 = vpop.f32.mrf.mxu0
    %v9719 = vadd.f32 %v9685, %v9718
    %v9720 = vpop.f32.mrf.mxu0
    %v9721 = vadd.f32 %v9687, %v9720
    %9722 = vmatmul.bf16.gmra.mxu0 %v5397
    %v9723 = vpop.f32.mrf.mxu0
    %v9724 = vadd.f32 %v9690, %v9723
    %v9725 = vpop.f32.mrf.mxu0
    %v9726 = vadd.f32 %v9692, %v9725
    %9727 = vmatmul.bf16.gmra.mxu0 %v5465
    %v9728 = vpop.f32.mrf.mxu0
    %v9729 = vadd.f32 %v9695, %v9728
    %v9730 = vpop.f32.mrf.mxu0
    %v9731 = vadd.f32 %v9697, %v9730
    %9732 = vmatmul.bf16.gmra.mxu0 %v5485
    %v9733 = vpop.f32.mrf.mxu0
    %v9734 = vadd.f32 %v9700, %v9733
    %v9735 = vpop.f32.mrf.mxu0
    %v9736 = vadd.f32 %v9702, %v9735
    %9737 = vdwg.mxu0
    %9738 = vmatpush.bf16.msra.mxu0 %v7896
    %9739 = vmatpush.bf16.msra.mxu0 %v7894
    %9740 = vmatpush.bf16.msra.mxu0 %v7892
    %9741 = vmatpush.bf16.msra.mxu0 %v7890
    %9742 = vmatpush.bf16.msra.mxu0 %v7888
    %9743 = vmatpush.bf16.msra.mxu0 %v7886
    %9744 = vmatpush.bf16.msra.mxu0 %v7884
    %9745 = vmatpush.bf16.msra.mxu0 %v7882
    %9746 = vmatmul.bf16.gmra.mxu0 %v5394
    %v9747 = vpop.f32.mrf.mxu0
    %v9748 = vadd.f32 %v9714, %v9747
    %v9749 = vpop.f32.mrf.mxu0
    %v9750 = vadd.f32 %v9716, %v9749
    %9751 = vmatmul.bf16.gmra.mxu0 %v5396
    %v9752 = vpop.f32.mrf.mxu0
    %v9753 = vadd.f32 %v9719, %v9752
    %v9754 = vpop.f32.mrf.mxu0
    %v9755 = vadd.f32 %v9721, %v9754
    %9756 = vmatmul.bf16.gmra.mxu0 %v5398
    %v9757 = vpop.f32.mrf.mxu0
    %v9758 = vadd.f32 %v9724, %v9757
    %v9759 = vpop.f32.mrf.mxu0
    %v9760 = vadd.f32 %v9726, %v9759
    %9761 = vmatmul.bf16.gmra.mxu0 %v5466
    %v9762 = vpop.f32.mrf.mxu0
    %v9763 = vadd.f32 %v9729, %v9762
    %v9764 = vpop.f32.mrf.mxu0
    %v9765 = vadd.f32 %v9731, %v9764
    %9766 = vmatmul.bf16.gmra.mxu0 %v5486
    %v9767 = vpop.f32.mrf.mxu0
    %v9768 = vadd.f32 %v9734, %v9767
    %v9769 = vpop.f32.mrf.mxu0
    %v9770 = vadd.f32 %v9736, %v9769
    %9771 = vdwg.mxu0
    %9772 = vmatpush.bf16.msra.mxu0 %v7912
    %9773 = vmatpush.bf16.msra.mxu0 %v7910
    %9774 = vmatpush.bf16.msra.mxu0 %v7908
    %9775 = vmatpush.bf16.msra.mxu0 %v7906
    %9776 = vmatpush.bf16.msra.mxu0 %v7904
    %9777 = vmatpush.bf16.msra.mxu0 %v7902
    %9778 = vmatpush.bf16.msra.mxu0 %v7900
    %9779 = vmatpush.bf16.msra.mxu0 %v7898
    %9780 = vmatmul.bf16.gmra.mxu0 %v5443
    %v9781 = vpop.f32.mrf.mxu0
    %v9782 = vadd.f32 %v9748, %v9781
    %v9783 = vpop.f32.mrf.mxu0
    %v9784 = vadd.f32 %v9750, %v9783
    %9785 = vmatmul.bf16.gmra.mxu0 %v5445
    %v9786 = vpop.f32.mrf.mxu0
    %v9787 = vadd.f32 %v9753, %v9786
    %v9788 = vpop.f32.mrf.mxu0
    %v9789 = vadd.f32 %v9755, %v9788
    %9790 = vmatmul.bf16.gmra.mxu0 %v5447
    %v9791 = vpop.f32.mrf.mxu0
    %v9792 = vadd.f32 %v9758, %v9791
    %v9793 = vpop.f32.mrf.mxu0
    %v9794 = vadd.f32 %v9760, %v9793
    %9795 = vmatmul.bf16.gmra.mxu0 %v5475
    %v9796 = vpop.f32.mrf.mxu0
    %v9797 = vadd.f32 %v9763, %v9796
    %v9798 = vpop.f32.mrf.mxu0
    %v9799 = vadd.f32 %v9765, %v9798
    %9800 = vmatmul.bf16.gmra.mxu0 %v8796
    %v9801 = vpop.f32.mrf.mxu0
    %v9802 = vadd.f32 %v9768, %v9801
    %v9803 = vpop.f32.mrf.mxu0
    %v9804 = vadd.f32 %v9770, %v9803
    %9805 = vdwg.mxu0
    %9806 = vmatpush.bf16.msra.mxu0 %v7928
    %9807 = vmatpush.bf16.msra.mxu0 %v7926
    %9808 = vmatpush.bf16.msra.mxu0 %v7924
    %9809 = vmatpush.bf16.msra.mxu0 %v7922
    %9810 = vmatpush.bf16.msra.mxu0 %v7920
    %9811 = vmatpush.bf16.msra.mxu0 %v7918
    %9812 = vmatpush.bf16.msra.mxu0 %v7916
    %9813 = vmatpush.bf16.msra.mxu0 %v7914
    %9814 = vmatmul.bf16.gmra.mxu0 %v5444
    %v9815 = vpop.f32.mrf.mxu0
    %v9816 = vadd.f32 %v9782, %v9815
    %v9817 = vpop.f32.mrf.mxu0
    %v9818 = vadd.f32 %v9784, %v9817
    %9819 = vmatmul.bf16.gmra.mxu0 %v5446
    %v9820 = vpop.f32.mrf.mxu0
    %v9821 = vadd.f32 %v9787, %v9820
    %v9822 = vpop.f32.mrf.mxu0
    %v9823 = vadd.f32 %v9789, %v9822
    %9824 = vmatmul.bf16.gmra.mxu0 %v5448
    %v9825 = vpop.f32.mrf.mxu0
    %v9826 = vadd.f32 %v9792, %v9825
    %v9827 = vpop.f32.mrf.mxu0
    %v9828 = vadd.f32 %v9794, %v9827
    %9829 = vmatmul.bf16.gmra.mxu0 %v5476
    %v9830 = vpop.f32.mrf.mxu0
    %v9831 = vadd.f32 %v9797, %v9830
    %v9832 = vpop.f32.mrf.mxu0
    %v9833 = vadd.f32 %v9799, %v9832
    %9834 = vmatmul.bf16.gmra.mxu0 %v8797
    %v9835 = vpop.f32.mrf.mxu0
    %v9836 = vadd.f32 %v9802, %v9835
    %v9837 = vpop.f32.mrf.mxu0
    %v9838 = vadd.f32 %v9804, %v9837
    %9839 = vdwg.mxu0
    %9840 = vmatpush.bf16.msra.mxu0 %v7785
    %9841 = vmatpush.bf16.msra.mxu0 %v7783
    %9842 = vmatpush.bf16.msra.mxu0 %v7781
    %9843 = vmatpush.bf16.msra.mxu0 %v7779
    %9844 = vmatpush.bf16.msra.mxu0 %v7777
    %9845 = vmatpush.bf16.msra.mxu0 %v7775
    %9846 = vmatpush.bf16.msra.mxu0 %v7773
    %9847 = vmatpush.bf16.msra.mxu0 %v7771
    %9848 = vmatmul.bf16.gmra.mxu0 %v5439
    %v9849 = vpop.f32.mrf.mxu0
    %v9850 = vadd.f32 0.0, %v9849
    %v9851 = vpop.f32.mrf.mxu0
    %v9852 = vadd.f32 0.0, %v9851
    %9853 = vmatmul.bf16.gmra.mxu0 %v5441
    %v9854 = vpop.f32.mrf.mxu0
    %v9855 = vadd.f32 0.0, %v9854
    %v9856 = vpop.f32.mrf.mxu0
    %v9857 = vadd.f32 0.0, %v9856
    %9858 = vmatmul.bf16.gmra.mxu0 %v5443
    %v9859 = vpop.f32.mrf.mxu0
    %v9860 = vadd.f32 0.0, %v9859
    %v9861 = vpop.f32.mrf.mxu0
    %v9862 = vadd.f32 0.0, %v9861
    %9863 = vmatmul.bf16.gmra.mxu0 %v5445
    %v9864 = vpop.f32.mrf.mxu0
    %v9865 = vadd.f32 0.0, %v9864
    %v9866 = vpop.f32.mrf.mxu0
    %v9867 = vadd.f32 0.0, %v9866
    %9868 = vmatmul.bf16.gmra.mxu0 %v5447
    %v9869 = vpop.f32.mrf.mxu0
    %v9870 = vadd.f32 0.0, %v9869
    %v9871 = vpop.f32.mrf.mxu0
    %v9872 = vadd.f32 0.0, %v9871
    %9873 = vdwg.mxu0
    %9874 = vmatpush.bf16.msra.mxu0 %v7801
    %9875 = vmatpush.bf16.msra.mxu0 %v7799
    %9876 = vmatpush.bf16.msra.mxu0 %v7797
    %9877 = vmatpush.bf16.msra.mxu0 %v7795
    %9878 = vmatpush.bf16.msra.mxu0 %v7793
    %9879 = vmatpush.bf16.msra.mxu0 %v7791
    %9880 = vmatpush.bf16.msra.mxu0 %v7789
    %9881 = vmatpush.bf16.msra.mxu0 %v7787
    %9882 = vmatmul.bf16.gmra.mxu0 %v5440
    %v9883 = vpop.f32.mrf.mxu0
    %v9884 = vadd.f32 %v9850, %v9883
    %v9885 = vpop.f32.mrf.mxu0
    %v9886 = vadd.f32 %v9852, %v9885
    %9887 = vmatmul.bf16.gmra.mxu0 %v5442
    %v9888 = vpop.f32.mrf.mxu0
    %v9889 = vadd.f32 %v9855, %v9888
    %v9890 = vpop.f32.mrf.mxu0
    %v9891 = vadd.f32 %v9857, %v9890
    %9892 = vmatmul.bf16.gmra.mxu0 %v5444
    %v9893 = vpop.f32.mrf.mxu0
    %v9894 = vadd.f32 %v9860, %v9893
    %v9895 = vpop.f32.mrf.mxu0
    %v9896 = vadd.f32 %v9862, %v9895
    %9897 = vmatmul.bf16.gmra.mxu0 %v5446
    %v9898 = vpop.f32.mrf.mxu0
    %v9899 = vadd.f32 %v9865, %v9898
    %v9900 = vpop.f32.mrf.mxu0
    %v9901 = vadd.f32 %v9867, %v9900
    %9902 = vmatmul.bf16.gmra.mxu0 %v5448
    %v9903 = vpop.f32.mrf.mxu0
    %v9904 = vadd.f32 %v9870, %v9903
    %v9905 = vpop.f32.mrf.mxu0
    %v9906 = vadd.f32 %v9872, %v9905
    %9907 = vdwg.mxu0
    %9908 = vmatpush.bf16.msra.mxu0 %v7817
    %9909 = vmatpush.bf16.msra.mxu0 %v7815
    %9910 = vmatpush.bf16.msra.mxu0 %v7813
    %9911 = vmatpush.bf16.msra.mxu0 %v7811
    %9912 = vmatpush.bf16.msra.mxu0 %v7809
    %9913 = vmatpush.bf16.msra.mxu0 %v7807
    %9914 = vmatpush.bf16.msra.mxu0 %v7805
    %9915 = vmatpush.bf16.msra.mxu0 %v7803
    %9916 = vmatmul.bf16.gmra.mxu0 %v5391
    %v9917 = vpop.f32.mrf.mxu0
    %v9918 = vadd.f32 %v9884, %v9917
    %v9919 = vpop.f32.mrf.mxu0
    %v9920 = vadd.f32 %v9886, %v9919
    %9921 = vmatmul.bf16.gmra.mxu0 %v5393
    %v9922 = vpop.f32.mrf.mxu0
    %v9923 = vadd.f32 %v9889, %v9922
    %v9924 = vpop.f32.mrf.mxu0
    %v9925 = vadd.f32 %v9891, %v9924
    %9926 = vmatmul.bf16.gmra.mxu0 %v5395
    %v9927 = vpop.f32.mrf.mxu0
    %v9928 = vadd.f32 %v9894, %v9927
    %v9929 = vpop.f32.mrf.mxu0
    %v9930 = vadd.f32 %v9896, %v9929
    %9931 = vmatmul.bf16.gmra.mxu0 %v5397
    %v9932 = vpop.f32.mrf.mxu0
    %v9933 = vadd.f32 %v9899, %v9932
    %v9934 = vpop.f32.mrf.mxu0
    %v9935 = vadd.f32 %v9901, %v9934
    %9936 = vmatmul.bf16.gmra.mxu0 %v5465
    %v9937 = vpop.f32.mrf.mxu0
    %v9938 = vadd.f32 %v9904, %v9937
    %v9939 = vpop.f32.mrf.mxu0
    %v9940 = vadd.f32 %v9906, %v9939
    %9941 = vdwg.mxu0
    %9942 = vmatpush.bf16.msra.mxu0 %v7833
    %9943 = vmatpush.bf16.msra.mxu0 %v7831
    %9944 = vmatpush.bf16.msra.mxu0 %v7829
    %9945 = vmatpush.bf16.msra.mxu0 %v7827
    %9946 = vmatpush.bf16.msra.mxu0 %v7825
    %9947 = vmatpush.bf16.msra.mxu0 %v7823
    %9948 = vmatpush.bf16.msra.mxu0 %v7821
    %9949 = vmatpush.bf16.msra.mxu0 %v7819
    %9950 = vmatmul.bf16.gmra.mxu0 %v5392
    %v9951 = vpop.f32.mrf.mxu0
    %v9952 = vadd.f32 %v9918, %v9951
    %v9953 = vpop.f32.mrf.mxu0
    %v9954 = vadd.f32 %v9920, %v9953
    %9955 = vmatmul.bf16.gmra.mxu0 %v5394
    %v9956 = vpop.f32.mrf.mxu0
    %v9957 = vadd.f32 %v9923, %v9956
    %v9958 = vpop.f32.mrf.mxu0
    %v9959 = vadd.f32 %v9925, %v9958
    %9960 = vmatmul.bf16.gmra.mxu0 %v5396
    %v9961 = vpop.f32.mrf.mxu0
    %v9962 = vadd.f32 %v9928, %v9961
    %v9963 = vpop.f32.mrf.mxu0
    %v9964 = vadd.f32 %v9930, %v9963
    %9965 = vmatmul.bf16.gmra.mxu0 %v5398
    %v9966 = vpop.f32.mrf.mxu0
    %v9967 = vadd.f32 %v9933, %v9966
    %v9968 = vpop.f32.mrf.mxu0
    %v9969 = vadd.f32 %v9935, %v9968
    %9970 = vmatmul.bf16.gmra.mxu0 %v5466
    %v9971 = vpop.f32.mrf.mxu0
    %v9972 = vadd.f32 %v9938, %v9971
    %v9973 = vpop.f32.mrf.mxu0
    %v9974 = vadd.f32 %v9940, %v9973
    %9975 = vdwg.mxu0
    %9976 = vmatpush.bf16.msra.mxu0 %v7849
    %9977 = vmatpush.bf16.msra.mxu0 %v7847
    %9978 = vmatpush.bf16.msra.mxu0 %v7845
    %9979 = vmatpush.bf16.msra.mxu0 %v7843
    %9980 = vmatpush.bf16.msra.mxu0 %v7841
    %9981 = vmatpush.bf16.msra.mxu0 %v7839
    %9982 = vmatpush.bf16.msra.mxu0 %v7837
    %9983 = vmatpush.bf16.msra.mxu0 %v7835
    %9984 = vmatmul.bf16.gmra.mxu0 %v5441
    %v9985 = vpop.f32.mrf.mxu0
    %v9986 = vadd.f32 %v9952, %v9985
    %v9987 = vpop.f32.mrf.mxu0
    %v9988 = vadd.f32 %v9954, %v9987
    %9989 = vmatmul.bf16.gmra.mxu0 %v5443
    %v9990 = vpop.f32.mrf.mxu0
    %v9991 = vadd.f32 %v9957, %v9990
    %v9992 = vpop.f32.mrf.mxu0
    %v9993 = vadd.f32 %v9959, %v9992
    %9994 = vmatmul.bf16.gmra.mxu0 %v5445
    %v9995 = vpop.f32.mrf.mxu0
    %v9996 = vadd.f32 %v9962, %v9995
    %v9997 = vpop.f32.mrf.mxu0
    %v9998 = vadd.f32 %v9964, %v9997
    %9999 = vmatmul.bf16.gmra.mxu0 %v5447
    %v10000 = vpop.f32.mrf.mxu0
    %v10001 = vadd.f32 %v9967, %v10000
    %v10002 = vpop.f32.mrf.mxu0
    %v10003 = vadd.f32 %v9969, %v10002
    %10004 = vmatmul.bf16.gmra.mxu0 %v5475
    %v10005 = vpop.f32.mrf.mxu0
    %v10006 = vadd.f32 %v9972, %v10005
    %v10007 = vpop.f32.mrf.mxu0
    %v10008 = vadd.f32 %v9974, %v10007
    %10009 = vdwg.mxu0
    %10010 = vmatpush.bf16.msra.mxu0 %v7865
    %10011 = vmatpush.bf16.msra.mxu0 %v7863
    %10012 = vmatpush.bf16.msra.mxu0 %v7861
    %10013 = vmatpush.bf16.msra.mxu0 %v7859
    %10014 = vmatpush.bf16.msra.mxu0 %v7857
    %10015 = vmatpush.bf16.msra.mxu0 %v7855
    %10016 = vmatpush.bf16.msra.mxu0 %v7853
    %10017 = vmatpush.bf16.msra.mxu0 %v7851
    %10018 = vmatmul.bf16.gmra.mxu0 %v5442
    %v10019 = vpop.f32.mrf.mxu0
    %v10020 = vadd.f32 %v9986, %v10019
    %v10021 = vpop.f32.mrf.mxu0
    %v10022 = vadd.f32 %v9988, %v10021
    %10023 = vmatmul.bf16.gmra.mxu0 %v5444
    %v10024 = vpop.f32.mrf.mxu0
    %v10025 = vadd.f32 %v9991, %v10024
    %v10026 = vpop.f32.mrf.mxu0
    %v10027 = vadd.f32 %v9993, %v10026
    %10028 = vmatmul.bf16.gmra.mxu0 %v5446
    %v10029 = vpop.f32.mrf.mxu0
    %v10030 = vadd.f32 %v9996, %v10029
    %v10031 = vpop.f32.mrf.mxu0
    %v10032 = vadd.f32 %v9998, %v10031
    %10033 = vmatmul.bf16.gmra.mxu0 %v5448
    %v10034 = vpop.f32.mrf.mxu0
    %v10035 = vadd.f32 %v10001, %v10034
    %v10036 = vpop.f32.mrf.mxu0
    %v10037 = vadd.f32 %v10003, %v10036
    %10038 = vmatmul.bf16.gmra.mxu0 %v5476
    %v10039 = vpop.f32.mrf.mxu0
    %v10040 = vadd.f32 %v10006, %v10039
    %v10041 = vpop.f32.mrf.mxu0
    %v10042 = vadd.f32 %v10008, %v10041
    %10043 = vdwg.mxu0
    %10044 = vmatpush.bf16.msra.mxu0 %v7881
    %10045 = vmatpush.bf16.msra.mxu0 %v7879
    %10046 = vmatpush.bf16.msra.mxu0 %v7877
    %10047 = vmatpush.bf16.msra.mxu0 %v7875
    %10048 = vmatpush.bf16.msra.mxu0 %v7873
    %10049 = vmatpush.bf16.msra.mxu0 %v7871
    %10050 = vmatpush.bf16.msra.mxu0 %v7869
    %10051 = vmatpush.bf16.msra.mxu0 %v7867
    %10052 = vmatmul.bf16.gmra.mxu0 %v5393
    %v10053 = vpop.f32.mrf.mxu0
    %v10054 = vadd.f32 %v10020, %v10053
    %v10055 = vpop.f32.mrf.mxu0
    %v10056 = vadd.f32 %v10022, %v10055
    %10057 = vmatmul.bf16.gmra.mxu0 %v5395
    %v10058 = vpop.f32.mrf.mxu0
    %v10059 = vadd.f32 %v10025, %v10058
    %v10060 = vpop.f32.mrf.mxu0
    %v10061 = vadd.f32 %v10027, %v10060
    %10062 = vmatmul.bf16.gmra.mxu0 %v5397
    %v10063 = vpop.f32.mrf.mxu0
    %v10064 = vadd.f32 %v10030, %v10063
    %v10065 = vpop.f32.mrf.mxu0
    %v10066 = vadd.f32 %v10032, %v10065
    %10067 = vmatmul.bf16.gmra.mxu0 %v5465
    %v10068 = vpop.f32.mrf.mxu0
    %v10069 = vadd.f32 %v10035, %v10068
    %v10070 = vpop.f32.mrf.mxu0
    %v10071 = vadd.f32 %v10037, %v10070
    %10072 = vmatmul.bf16.gmra.mxu0 %v5485
    %v10073 = vpop.f32.mrf.mxu0
    %v10074 = vadd.f32 %v10040, %v10073
    %v10075 = vpop.f32.mrf.mxu0
    %v10076 = vadd.f32 %v10042, %v10075
    %10077 = vdwg.mxu0
    %10078 = vmatpush.bf16.msra.mxu0 %v7897
    %10079 = vmatpush.bf16.msra.mxu0 %v7895
    %10080 = vmatpush.bf16.msra.mxu0 %v7893
    %10081 = vmatpush.bf16.msra.mxu0 %v7891
    %10082 = vmatpush.bf16.msra.mxu0 %v7889
    %10083 = vmatpush.bf16.msra.mxu0 %v7887
    %10084 = vmatpush.bf16.msra.mxu0 %v7885
    %10085 = vmatpush.bf16.msra.mxu0 %v7883
    %10086 = vmatmul.bf16.gmra.mxu0 %v5394
    %v10087 = vpop.f32.mrf.mxu0
    %v10088 = vadd.f32 %v10054, %v10087
    %v10089 = vpop.f32.mrf.mxu0
    %v10090 = vadd.f32 %v10056, %v10089
    %10091 = vmatmul.bf16.gmra.mxu0 %v5396
    %v10092 = vpop.f32.mrf.mxu0
    %v10093 = vadd.f32 %v10059, %v10092
    %v10094 = vpop.f32.mrf.mxu0
    %v10095 = vadd.f32 %v10061, %v10094
    %10096 = vmatmul.bf16.gmra.mxu0 %v5398
    %v10097 = vpop.f32.mrf.mxu0
    %v10098 = vadd.f32 %v10064, %v10097
    %v10099 = vpop.f32.mrf.mxu0
    %v10100 = vadd.f32 %v10066, %v10099
    %10101 = vmatmul.bf16.gmra.mxu0 %v5466
    %v10102 = vpop.f32.mrf.mxu0
    %v10103 = vadd.f32 %v10069, %v10102
    %v10104 = vpop.f32.mrf.mxu0
    %v10105 = vadd.f32 %v10071, %v10104
    %10106 = vmatmul.bf16.gmra.mxu0 %v5486
    %v10107 = vpop.f32.mrf.mxu0
    %v10108 = vadd.f32 %v10074, %v10107
    %v10109 = vpop.f32.mrf.mxu0
    %v10110 = vadd.f32 %v10076, %v10109
    %10111 = vdwg.mxu0
    %10112 = vmatpush.bf16.msra.mxu0 %v7913
    %10113 = vmatpush.bf16.msra.mxu0 %v7911
    %10114 = vmatpush.bf16.msra.mxu0 %v7909
    %10115 = vmatpush.bf16.msra.mxu0 %v7907
    %10116 = vmatpush.bf16.msra.mxu0 %v7905
    %10117 = vmatpush.bf16.msra.mxu0 %v7903
    %10118 = vmatpush.bf16.msra.mxu0 %v7901
    %10119 = vmatpush.bf16.msra.mxu0 %v7899
    %10120 = vmatmul.bf16.gmra.mxu0 %v5443
    %v10121 = vpop.f32.mrf.mxu0
    %v10122 = vadd.f32 %v10088, %v10121
    %v10123 = vpop.f32.mrf.mxu0
    %v10124 = vadd.f32 %v10090, %v10123
    %10125 = vmatmul.bf16.gmra.mxu0 %v5445
    %v10126 = vpop.f32.mrf.mxu0
    %v10127 = vadd.f32 %v10093, %v10126
    %v10128 = vpop.f32.mrf.mxu0
    %v10129 = vadd.f32 %v10095, %v10128
    %10130 = vmatmul.bf16.gmra.mxu0 %v5447
    %v10131 = vpop.f32.mrf.mxu0
    %v10132 = vadd.f32 %v10098, %v10131
    %v10133 = vpop.f32.mrf.mxu0
    %v10134 = vadd.f32 %v10100, %v10133
    %10135 = vmatmul.bf16.gmra.mxu0 %v5475
    %v10136 = vpop.f32.mrf.mxu0
    %v10137 = vadd.f32 %v10103, %v10136
    %v10138 = vpop.f32.mrf.mxu0
    %v10139 = vadd.f32 %v10105, %v10138
    %10140 = vmatmul.bf16.gmra.mxu0 %v8796
    %v10141 = vpop.f32.mrf.mxu0
    %v10142 = vadd.f32 %v10108, %v10141
    %v10143 = vpop.f32.mrf.mxu0
    %v10144 = vadd.f32 %v10110, %v10143
    %10145 = vdwg.mxu0
    %10146 = vmatpush.bf16.msra.mxu0 %v7929
    %10147 = vmatpush.bf16.msra.mxu0 %v7927
    %10148 = vmatpush.bf16.msra.mxu0 %v7925
    %10149 = vmatpush.bf16.msra.mxu0 %v7923
    %10150 = vmatpush.bf16.msra.mxu0 %v7921
    %10151 = vmatpush.bf16.msra.mxu0 %v7919
    %10152 = vmatpush.bf16.msra.mxu0 %v7917
    %10153 = vmatpush.bf16.msra.mxu0 %v7915
    %10154 = vmatmul.bf16.gmra.mxu0 %v5444
    %v10155 = vpop.f32.mrf.mxu0
    %v10156 = vadd.f32 %v10122, %v10155
    %v10157 = vpop.f32.mrf.mxu0
    %v10158 = vadd.f32 %v10124, %v10157
    %10159 = vmatmul.bf16.gmra.mxu0 %v5446
    %v10160 = vpop.f32.mrf.mxu0
    %v10161 = vadd.f32 %v10127, %v10160
    %v10162 = vpop.f32.mrf.mxu0
    %v10163 = vadd.f32 %v10129, %v10162
    %10164 = vmatmul.bf16.gmra.mxu0 %v5448
    %v10165 = vpop.f32.mrf.mxu0
    %v10166 = vadd.f32 %v10132, %v10165
    %v10167 = vpop.f32.mrf.mxu0
    %v10168 = vadd.f32 %v10134, %v10167
    %10169 = vmatmul.bf16.gmra.mxu0 %v5476
    %v10170 = vpop.f32.mrf.mxu0
    %v10171 = vadd.f32 %v10137, %v10170
    %v10172 = vpop.f32.mrf.mxu0
    %v10173 = vadd.f32 %v10139, %v10172
    %10174 = vmatmul.bf16.gmra.mxu0 %v8797
    %v10175 = vpop.f32.mrf.mxu0
    %v10176 = vadd.f32 %v10142, %v10175
    %v10177 = vpop.f32.mrf.mxu0
    %v10178 = vadd.f32 %v10144, %v10177
    %10179 = vdwg.mxu0
    %v10180 = vmax.f32 %v9480, %v9816
    %v10181 = vmax.f32 %v9481, %v10156
    %v10182 = vmax.f32 %v9482, %v9818
    %v10183 = vmax.f32 %v9483, %v10158
    %v10184 = vmax.f32 %v9484, %v9821
    %v10185 = vmax.f32 %v9485, %v10161
    %v10186 = vmax.f32 %v9486, %v9823
    %v10187 = vmax.f32 %v9487, %v10163
    %v10188 = vmax.f32 %v9488, %v9826
    %v10189 = vmax.f32 %v9489, %v10166
    %v10190 = vmax.f32 %v9490, %v9828
    %v10191 = vmax.f32 %v9491, %v10168
    %v10192 = vmax.f32 %v9492, %v9831
    %v10193 = vmax.f32 %v9493, %v10171
    %v10194 = vmax.f32 %v9494, %v9833
    %v10195 = vmax.f32 %v9495, %v10173
    %v10196 = vmax.f32 %v9496, %v9836
    %v10197 = vmax.f32 %v9497, %v10176
    %v10198 = vmax.f32 %v9498, %v9838
    %v10199 = vmax.f32 %v9499, %v10178
    %v10201 = vperm.slane %v5358, 0
    %v10202 = vperm.slane %v5358, 1
    %v10205 = vadd.f32 %v10180, %v10201
    %v10206 = vadd.f32 %v10181, %v10202
    %v10207 = vadd.f32 %v10182, %v10201
    %v10208 = vadd.f32 %v10183, %v10202
    %v10209 = vadd.f32 %v10184, %v10201
    %v10210 = vadd.f32 %v10185, %v10202
    %v10211 = vadd.f32 %v10186, %v10201
    %v10212 = vadd.f32 %v10187, %v10202
    %v10213 = vadd.f32 %v10188, %v10201
    %v10214 = vadd.f32 %v10189, %v10202
    %v10215 = vadd.f32 %v10190, %v10201
    %v10216 = vadd.f32 %v10191, %v10202
    %v10217 = vadd.f32 %v10192, %v10201
    %v10218 = vadd.f32 %v10193, %v10202
    %v10219 = vadd.f32 %v10194, %v10201
    %v10220 = vadd.f32 %v10195, %v10202
    %v10221 = vadd.f32 %v10196, %v10201
    %v10222 = vadd.f32 %v10197, %v10202
    %v10223 = vadd.f32 %v10198, %v10201
    %v10224 = vadd.f32 %v10199, %v10202
    %v10225 = vmax.f32 %v10205, 0.0
    %v10226 = vmax.f32 %v10206, 0.0
    %v10227 = vmax.f32 %v10207, 0.0
    %v10228 = vmax.f32 %v10208, 0.0
    %v10229 = vmax.f32 %v10209, 0.0
    %v10230 = vmax.f32 %v10210, 0.0
    %v10231 = vmax.f32 %v10211, 0.0
    %v10232 = vmax.f32 %v10212, 0.0
    %v10233 = vmax.f32 %v10213, 0.0
    %v10234 = vmax.f32 %v10214, 0.0
    %v10235 = vmax.f32 %v10215, 0.0
    %v10236 = vmax.f32 %v10216, 0.0
    %v10237 = vmax.f32 %v10217, 0.0
    %v10238 = vmax.f32 %v10218, 0.0
    %v10239 = vmax.f32 %v10219, 0.0
    %v10240 = vmax.f32 %v10220, 0.0
    %v10241 = vmax.f32 %v10221, 0.0
    %v10242 = vmax.f32 %v10222, 0.0
    %v10243 = vmax.f32 %v10223, 0.0
    %v10244 = vmax.f32 %v10224, 0.0
    %v10245 = vpack.c.bf16 %v10226, %v10225
    %v10246 = vpack.c.bf16 %v10228, %v10227
    %v10247 = vpack.c.bf16 %v10230, %v10229
    %v10248 = vpack.c.bf16 %v10232, %v10231
    %v10249 = vpack.c.bf16 %v10234, %v10233
    %v10250 = vpack.c.bf16 %v10236, %v10235
    %v10251 = vpack.c.bf16 %v10238, %v10237
    %v10252 = vpack.c.bf16 %v10240, %v10239
    %v10253 = vpack.c.bf16 %v10242, %v10241
    %v10254 = vpack.c.bf16 %v10244, %v10243
    %v10255 = vld [vmem:[#allocation9] sm:$0xf]
    %v10256 = vld [vmem:[#allocation9 + $0x4] sm:$0xf]
    %v10257 = vld [vmem:[#allocation9 + $0x8] sm:$0xf]
    %v10258 = vld [vmem:[#allocation9 + $0xc] sm:$0xf]
    %v10259 = vld [vmem:[#allocation9 + $0x10] sm:$0xf]
    %v10260 = vld [vmem:[#allocation9 + $0x14] sm:$0xf]
    %v10261 = vld [vmem:[#allocation9 + $0x18] sm:$0xf]
    %v10262 = vld [vmem:[#allocation9 + $0x1c] sm:$0xf]
    %v10263 = vld [vmem:[#allocation9 + $0x20] sm:$0xf]
    %v10264 = vld [vmem:[#allocation9 + $0x24] sm:$0xf]
    %v10265 = vld [vmem:[#allocation9 + $0x28] sm:$0xf]
    %v10266 = vld [vmem:[#allocation9 + $0x2c] sm:$0xf]
    %v10267 = vld [vmem:[#allocation9 + $0x30] sm:$0xf]
    %v10268 = vld [vmem:[#allocation9 + $0x34] sm:$0xf]
    %v10269 = vld [vmem:[#allocation9 + $0x38] sm:$0xf]
    %v10270 = vld [vmem:[#allocation9 + $0x3c] sm:$0xf]
    %v10271 = vld [vmem:[#allocation9 + $0x40] sm:$0xf]
    %v10272 = vld [vmem:[#allocation9 + $0x44] sm:$0xf]
    %v10273 = vld [vmem:[#allocation9 + $0x48] sm:$0xf]
    %v10274 = vld [vmem:[#allocation9 + $0x4c] sm:$0xf]
    %v10275 = vld [vmem:[#allocation9 + $0x50] sm:$0xf]
    %v10276 = vld [vmem:[#allocation9 + $0x54] sm:$0xf]
    %v10277 = vld [vmem:[#allocation9 + $0x58] sm:$0xf]
    %v10278 = vld [vmem:[#allocation9 + $0x5c] sm:$0xf]
    %v10279 = vld [vmem:[#allocation9 + $0x60] sm:$0xf]
    %v10280 = vld [vmem:[#allocation9 + $0x64] sm:$0xf]
    %v10281 = vld [vmem:[#allocation9 + $0x68] sm:$0xf]
    %v10282 = vld [vmem:[#allocation9 + $0x6c] sm:$0xf]
    %v10283 = vld [vmem:[#allocation9 + $0x70] sm:$0xf]
    %v10284 = vld [vmem:[#allocation9 + $0x74] sm:$0xf]
    %v10285 = vld [vmem:[#allocation9 + $0x78] sm:$0xf]
    %v10286 = vld [vmem:[#allocation9 + $0x7c] sm:$0xf]
    %s10287 = scalar_lea.vmem [#allocation9], 128
    %v10288 = vld [vmem:[%s10287] sm:$0xf]
    %v10289 = vld [vmem:[%s10287 + $0x4] sm:$0xf]
    %v10290 = vld [vmem:[%s10287 + $0x8] sm:$0xf]
    %v10291 = vld [vmem:[%s10287 + $0xc] sm:$0xf]
    %v10292 = vld [vmem:[%s10287 + $0x10] sm:$0xf]
    %v10293 = vld [vmem:[%s10287 + $0x14] sm:$0xf]
    %v10294 = vld [vmem:[%s10287 + $0x18] sm:$0xf]
    %v10295 = vld [vmem:[%s10287 + $0x1c] sm:$0xf]
    %v10296 = vld [vmem:[%s10287 + $0x20] sm:$0xf]
    %v10297 = vld [vmem:[%s10287 + $0x24] sm:$0xf]
    %v10298 = vld [vmem:[%s10287 + $0x28] sm:$0xf]
    %v10299 = vld [vmem:[%s10287 + $0x2c] sm:$0xf]
    %v10300 = vld [vmem:[%s10287 + $0x30] sm:$0xf]
    %v10301 = vld [vmem:[%s10287 + $0x34] sm:$0xf]
    %v10302 = vld [vmem:[%s10287 + $0x38] sm:$0xf]
    %v10303 = vld [vmem:[%s10287 + $0x3c] sm:$0xf]
    %v10304 = vld [vmem:[%s10287 + $0x40] sm:$0xf]
    %v10305 = vld [vmem:[%s10287 + $0x44] sm:$0xf]
    %v10306 = vld [vmem:[%s10287 + $0x48] sm:$0xf]
    %v10307 = vld [vmem:[%s10287 + $0x4c] sm:$0xf]
    %v10308 = vld [vmem:[%s10287 + $0x50] sm:$0xf]
    %v10309 = vld [vmem:[%s10287 + $0x54] sm:$0xf]
    %v10310 = vld [vmem:[%s10287 + $0x58] sm:$0xf]
    %v10311 = vld [vmem:[%s10287 + $0x5c] sm:$0xf]
    %v10312 = vld [vmem:[%s10287 + $0x60] sm:$0xf]
    %v10313 = vld [vmem:[%s10287 + $0x64] sm:$0xf]
    %v10314 = vld [vmem:[%s10287 + $0x68] sm:$0xf]
    %v10315 = vld [vmem:[%s10287 + $0x6c] sm:$0xf]
    %v10316 = vld [vmem:[%s10287 + $0x70] sm:$0xf]
    %v10317 = vld [vmem:[%s10287 + $0x74] sm:$0xf]
    %v10318 = vld [vmem:[%s10287 + $0x78] sm:$0xf]
    %v10319 = vld [vmem:[%s10287 + $0x7c] sm:$0xf]
    %v10322 = vunpack.c.l.b16 %v10247
    %v10323 = vunpack.c.h.b16 %v10247
    %v10324 = vunpack.c.l.b16 %v10248
    %v10325 = vunpack.c.h.b16 %v10248
    %v10326 = vpack.c.b16 %v10324, %v10322
    %v10327 = vpack.c.b16 %v10325, %v10323
    %v10362 = vunpack.c.l.b16 %v10288
    %v10363 = vunpack.c.l.b16 %v10289
    %v10364 = vunpack.c.l.b16 %v10290
    %v10365 = vunpack.c.l.b16 %v10291
    %v10366 = vunpack.c.l.b16 %v10292
    %v10367 = vunpack.c.l.b16 %v10293
    %v10368 = vunpack.c.l.b16 %v10294
    %v10369 = vunpack.c.l.b16 %v10295
    %v10370 = vunpack.c.l.b16 %v10296
    %v10371 = vunpack.c.l.b16 %v10297
    %v10372 = vunpack.c.l.b16 %v10298
    %v10373 = vunpack.c.l.b16 %v10299
    %v10374 = vunpack.c.l.b16 %v10300
    %v10375 = vunpack.c.l.b16 %v10301
    %v10376 = vunpack.c.l.b16 %v10302
    %v10377 = vunpack.c.l.b16 %v10303
    %v10378 = vunpack.c.l.b16 %v10304
    %v10379 = vunpack.c.l.b16 %v10305
    %v10380 = vunpack.c.l.b16 %v10306
    %v10381 = vunpack.c.l.b16 %v10307
    %v10382 = vunpack.c.l.b16 %v10308
    %v10383 = vunpack.c.l.b16 %v10309
    %v10384 = vunpack.c.l.b16 %v10310
    %v10385 = vunpack.c.l.b16 %v10311
    %v10386 = vunpack.c.l.b16 %v10312
    %v10387 = vunpack.c.l.b16 %v10313
    %v10388 = vunpack.c.l.b16 %v10314
    %v10389 = vunpack.c.l.b16 %v10315
    %v10390 = vunpack.c.l.b16 %v10316
    %v10391 = vunpack.c.l.b16 %v10317
    %v10392 = vunpack.c.l.b16 %v10318
    %v10393 = vunpack.c.l.b16 %v10319
    %v10394 = vpack.c.b16 %v10363, %v10362
    %v10395 = vpack.c.b16 %v10365, %v10364
    %v10396 = vpack.c.b16 %v10367, %v10366
    %v10397 = vpack.c.b16 %v10369, %v10368
    %v10398 = vpack.c.b16 %v10371, %v10370
    %v10399 = vpack.c.b16 %v10373, %v10372
    %v10400 = vpack.c.b16 %v10375, %v10374
    %v10401 = vpack.c.b16 %v10377, %v10376
    %v10402 = vpack.c.b16 %v10379, %v10378
    %v10403 = vpack.c.b16 %v10381, %v10380
    %v10404 = vpack.c.b16 %v10383, %v10382
    %v10405 = vpack.c.b16 %v10385, %v10384
    %v10406 = vpack.c.b16 %v10387, %v10386
    %v10407 = vpack.c.b16 %v10389, %v10388
    %v10408 = vpack.c.b16 %v10391, %v10390
    %v10409 = vpack.c.b16 %v10393, %v10392
    %10426 = vmatpush.bf16.msra.mxu0 %v10401
    %10427 = vmatpush.bf16.msra.mxu0 %v10400
    %10428 = vmatpush.bf16.msra.mxu0 %v10399
    %10429 = vmatpush.bf16.msra.mxu0 %v10398
    %10430 = vmatpush.bf16.msra.mxu0 %v10397
    %10431 = vmatpush.bf16.msra.mxu0 %v10396
    %10432 = vmatpush.bf16.msra.mxu0 %v10395
    %10433 = vmatpush.bf16.msra.mxu0 %v10394
    %10434 = vmatmul.bf16.gmra.mxu0 %v10326
    %v10435 = vpop.f32.mrf.mxu0
    %v10436 = vadd.f32 0.0, %v10435
    %v10437 = vpop.f32.mrf.mxu0
    %v10438 = vadd.f32 0.0, %v10437
    %10439 = vdwg.mxu0
    %10440 = vmatpush.bf16.msra.mxu0 %v10409
    %10441 = vmatpush.bf16.msra.mxu0 %v10408
    %10442 = vmatpush.bf16.msra.mxu0 %v10407
    %10443 = vmatpush.bf16.msra.mxu0 %v10406
    %10444 = vmatpush.bf16.msra.mxu0 %v10405
    %10445 = vmatpush.bf16.msra.mxu0 %v10404
    %10446 = vmatpush.bf16.msra.mxu0 %v10403
    %10447 = vmatpush.bf16.msra.mxu0 %v10402
    %10448 = vmatmul.bf16.gmra.mxu0 %v10327
    %v10449 = vpop.f32.mrf.mxu0
    %v10450 = vadd.f32 %v10436, %v10449
    %v10451 = vpop.f32.mrf.mxu0
    %v10452 = vadd.f32 %v10438, %v10451
    %10453 = vdwg.mxu0
    %v10456 = vunpack.c.l.b16 %v10245
    %v10457 = vunpack.c.h.b16 %v10245
    %v10458 = vunpack.c.l.b16 %v10246
    %v10459 = vunpack.c.h.b16 %v10246
    %v10460 = vpack.c.b16 %v10458, %v10456
    %v10461 = vpack.c.b16 %v10459, %v10457
    %v10496 = vunpack.c.l.b16 %v10255
    %v10497 = vunpack.c.l.b16 %v10256
    %v10498 = vunpack.c.l.b16 %v10257
    %v10499 = vunpack.c.l.b16 %v10258
    %v10500 = vunpack.c.l.b16 %v10259
    %v10501 = vunpack.c.l.b16 %v10260
    %v10502 = vunpack.c.l.b16 %v10261
    %v10503 = vunpack.c.l.b16 %v10262
    %v10504 = vunpack.c.l.b16 %v10263
    %v10505 = vunpack.c.l.b16 %v10264
    %v10506 = vunpack.c.l.b16 %v10265
    %v10507 = vunpack.c.l.b16 %v10266
    %v10508 = vunpack.c.l.b16 %v10267
    %v10509 = vunpack.c.l.b16 %v10268
    %v10510 = vunpack.c.l.b16 %v10269
    %v10511 = vunpack.c.l.b16 %v10270
    %v10512 = vunpack.c.l.b16 %v10271
    %v10513 = vunpack.c.l.b16 %v10272
    %v10514 = vunpack.c.l.b16 %v10273
    %v10515 = vunpack.c.l.b16 %v10274
    %v10516 = vunpack.c.l.b16 %v10275
    %v10517 = vunpack.c.l.b16 %v10276
    %v10518 = vunpack.c.l.b16 %v10277
    %v10519 = vunpack.c.l.b16 %v10278
    %v10520 = vunpack.c.l.b16 %v10279
    %v10521 = vunpack.c.l.b16 %v10280
    %v10522 = vunpack.c.l.b16 %v10281
    %v10523 = vunpack.c.l.b16 %v10282
    %v10524 = vunpack.c.l.b16 %v10283
    %v10525 = vunpack.c.l.b16 %v10284
    %v10526 = vunpack.c.l.b16 %v10285
    %v10527 = vunpack.c.l.b16 %v10286
    %v10528 = vpack.c.b16 %v10497, %v10496
    %v10529 = vpack.c.b16 %v10499, %v10498
    %v10530 = vpack.c.b16 %v10501, %v10500
    %v10531 = vpack.c.b16 %v10503, %v10502
    %v10532 = vpack.c.b16 %v10505, %v10504
    %v10533 = vpack.c.b16 %v10507, %v10506
    %v10534 = vpack.c.b16 %v10509, %v10508
    %v10535 = vpack.c.b16 %v10511, %v10510
    %v10536 = vpack.c.b16 %v10513, %v10512
    %v10537 = vpack.c.b16 %v10515, %v10514
    %v10538 = vpack.c.b16 %v10517, %v10516
    %v10539 = vpack.c.b16 %v10519, %v10518
    %v10540 = vpack.c.b16 %v10521, %v10520
    %v10541 = vpack.c.b16 %v10523, %v10522
    %v10542 = vpack.c.b16 %v10525, %v10524
    %v10543 = vpack.c.b16 %v10527, %v10526
    %10560 = vmatpush.bf16.msra.mxu0 %v10535
    %10561 = vmatpush.bf16.msra.mxu0 %v10534
    %10562 = vmatpush.bf16.msra.mxu0 %v10533
    %10563 = vmatpush.bf16.msra.mxu0 %v10532
    %10564 = vmatpush.bf16.msra.mxu0 %v10531
    %10565 = vmatpush.bf16.msra.mxu0 %v10530
    %10566 = vmatpush.bf16.msra.mxu0 %v10529
    %10567 = vmatpush.bf16.msra.mxu0 %v10528
    %10568 = vmatmul.bf16.gmra.mxu0 %v10460
    %v10569 = vpop.f32.mrf.mxu0
    %v10570 = vadd.f32 %v10450, %v10569
    %v10571 = vpop.f32.mrf.mxu0
    %v10572 = vadd.f32 %v10452, %v10571
    %10573 = vdwg.mxu0
    %10574 = vmatpush.bf16.msra.mxu0 %v10543
    %10575 = vmatpush.bf16.msra.mxu0 %v10542
    %10576 = vmatpush.bf16.msra.mxu0 %v10541
    %10577 = vmatpush.bf16.msra.mxu0 %v10540
    %10578 = vmatpush.bf16.msra.mxu0 %v10539
    %10579 = vmatpush.bf16.msra.mxu0 %v10538
    %10580 = vmatpush.bf16.msra.mxu0 %v10537
    %10581 = vmatpush.bf16.msra.mxu0 %v10536
    %10582 = vmatmul.bf16.gmra.mxu0 %v10461
    %v10583 = vpop.f32.mrf.mxu0
    %v10584 = vadd.f32 %v10570, %v10583
    %v10585 = vpop.f32.mrf.mxu0
    %v10586 = vadd.f32 %v10572, %v10585
    %10587 = vdwg.mxu0
    %s10588 = scalar_lea.vmem [#allocation9], 256
    %v10589 = vld [vmem:[%s10588] sm:$0xf]
    %v10590 = vld [vmem:[%s10588 + $0x4] sm:$0xf]
    %v10591 = vld [vmem:[%s10588 + $0x8] sm:$0xf]
    %v10592 = vld [vmem:[%s10588 + $0xc] sm:$0xf]
    %v10593 = vld [vmem:[%s10588 + $0x10] sm:$0xf]
    %v10594 = vld [vmem:[%s10588 + $0x14] sm:$0xf]
    %v10595 = vld [vmem:[%s10588 + $0x18] sm:$0xf]
    %v10596 = vld [vmem:[%s10588 + $0x1c] sm:$0xf]
    %v10597 = vld [vmem:[%s10588 + $0x20] sm:$0xf]
    %v10598 = vld [vmem:[%s10588 + $0x24] sm:$0xf]
    %v10599 = vld [vmem:[%s10588 + $0x28] sm:$0xf]
    %v10600 = vld [vmem:[%s10588 + $0x2c] sm:$0xf]
    %v10601 = vld [vmem:[%s10588 + $0x30] sm:$0xf]
    %v10602 = vld [vmem:[%s10588 + $0x34] sm:$0xf]
    %v10603 = vld [vmem:[%s10588 + $0x38] sm:$0xf]
    %v10604 = vld [vmem:[%s10588 + $0x3c] sm:$0xf]
    %v10605 = vld [vmem:[%s10588 + $0x40] sm:$0xf]
    %v10606 = vld [vmem:[%s10588 + $0x44] sm:$0xf]
    %v10607 = vld [vmem:[%s10588 + $0x48] sm:$0xf]
    %v10608 = vld [vmem:[%s10588 + $0x4c] sm:$0xf]
    %v10609 = vld [vmem:[%s10588 + $0x50] sm:$0xf]
    %v10610 = vld [vmem:[%s10588 + $0x54] sm:$0xf]
    %v10611 = vld [vmem:[%s10588 + $0x58] sm:$0xf]
    %v10612 = vld [vmem:[%s10588 + $0x5c] sm:$0xf]
    %v10613 = vld [vmem:[%s10588 + $0x60] sm:$0xf]
    %v10614 = vld [vmem:[%s10588 + $0x64] sm:$0xf]
    %v10615 = vld [vmem:[%s10588 + $0x68] sm:$0xf]
    %v10616 = vld [vmem:[%s10588 + $0x6c] sm:$0xf]
    %v10617 = vld [vmem:[%s10588 + $0x70] sm:$0xf]
    %v10618 = vld [vmem:[%s10588 + $0x74] sm:$0xf]
    %v10619 = vld [vmem:[%s10588 + $0x78] sm:$0xf]
    %v10620 = vld [vmem:[%s10588 + $0x7c] sm:$0xf]
    %v10623 = vunpack.c.l.b16 %v10249
    %v10624 = vunpack.c.h.b16 %v10249
    %v10625 = vunpack.c.l.b16 %v10250
    %v10626 = vunpack.c.h.b16 %v10250
    %v10627 = vpack.c.b16 %v10625, %v10623
    %v10628 = vpack.c.b16 %v10626, %v10624
    %v10663 = vunpack.c.l.b16 %v10589
    %v10664 = vunpack.c.l.b16 %v10590
    %v10665 = vunpack.c.l.b16 %v10591
    %v10666 = vunpack.c.l.b16 %v10592
    %v10667 = vunpack.c.l.b16 %v10593
    %v10668 = vunpack.c.l.b16 %v10594
    %v10669 = vunpack.c.l.b16 %v10595
    %v10670 = vunpack.c.l.b16 %v10596
    %v10671 = vunpack.c.l.b16 %v10597
    %v10672 = vunpack.c.l.b16 %v10598
    %v10673 = vunpack.c.l.b16 %v10599
    %v10674 = vunpack.c.l.b16 %v10600
    %v10675 = vunpack.c.l.b16 %v10601
    %v10676 = vunpack.c.l.b16 %v10602
    %v10677 = vunpack.c.l.b16 %v10603
    %v10678 = vunpack.c.l.b16 %v10604
    %v10679 = vunpack.c.l.b16 %v10605
    %v10680 = vunpack.c.l.b16 %v10606
    %v10681 = vunpack.c.l.b16 %v10607
    %v10682 = vunpack.c.l.b16 %v10608
    %v10683 = vunpack.c.l.b16 %v10609
    %v10684 = vunpack.c.l.b16 %v10610
    %v10685 = vunpack.c.l.b16 %v10611
    %v10686 = vunpack.c.l.b16 %v10612
    %v10687 = vunpack.c.l.b16 %v10613
    %v10688 = vunpack.c.l.b16 %v10614
    %v10689 = vunpack.c.l.b16 %v10615
    %v10690 = vunpack.c.l.b16 %v10616
    %v10691 = vunpack.c.l.b16 %v10617
    %v10692 = vunpack.c.l.b16 %v10618
    %v10693 = vunpack.c.l.b16 %v10619
    %v10694 = vunpack.c.l.b16 %v10620
    %v10695 = vpack.c.b16 %v10664, %v10663
    %v10696 = vpack.c.b16 %v10666, %v10665
    %v10697 = vpack.c.b16 %v10668, %v10667
    %v10698 = vpack.c.b16 %v10670, %v10669
    %v10699 = vpack.c.b16 %v10672, %v10671
    %v10700 = vpack.c.b16 %v10674, %v10673
    %v10701 = vpack.c.b16 %v10676, %v10675
    %v10702 = vpack.c.b16 %v10678, %v10677
    %v10703 = vpack.c.b16 %v10680, %v10679
    %v10704 = vpack.c.b16 %v10682, %v10681
    %v10705 = vpack.c.b16 %v10684, %v10683
    %v10706 = vpack.c.b16 %v10686, %v10685
    %v10707 = vpack.c.b16 %v10688, %v10687
    %v10708 = vpack.c.b16 %v10690, %v10689
    %v10709 = vpack.c.b16 %v10692, %v10691
    %v10710 = vpack.c.b16 %v10694, %v10693
    %10727 = vmatpush.bf16.msra.mxu0 %v10702
    %10728 = vmatpush.bf16.msra.mxu0 %v10701
    %10729 = vmatpush.bf16.msra.mxu0 %v10700
    %10730 = vmatpush.bf16.msra.mxu0 %v10699
    %10731 = vmatpush.bf16.msra.mxu0 %v10698
    %10732 = vmatpush.bf16.msra.mxu0 %v10697
    %10733 = vmatpush.bf16.msra.mxu0 %v10696
    %10734 = vmatpush.bf16.msra.mxu0 %v10695
    %10735 = vmatmul.bf16.gmra.mxu0 %v10627
    %v10736 = vpop.f32.mrf.mxu0
    %v10737 = vadd.f32 0.0, %v10736
    %v10738 = vpop.f32.mrf.mxu0
    %v10739 = vadd.f32 0.0, %v10738
    %10740 = vdwg.mxu0
    %10741 = vmatpush.bf16.msra.mxu0 %v10710
    %10742 = vmatpush.bf16.msra.mxu0 %v10709
    %10743 = vmatpush.bf16.msra.mxu0 %v10708
    %10744 = vmatpush.bf16.msra.mxu0 %v10707
    %10745 = vmatpush.bf16.msra.mxu0 %v10706
    %10746 = vmatpush.bf16.msra.mxu0 %v10705
    %10747 = vmatpush.bf16.msra.mxu0 %v10704
    %10748 = vmatpush.bf16.msra.mxu0 %v10703
    %10749 = vmatmul.bf16.gmra.mxu0 %v10628
    %v10750 = vpop.f32.mrf.mxu0
    %v10751 = vadd.f32 %v10737, %v10750
    %v10752 = vpop.f32.mrf.mxu0
    %v10753 = vadd.f32 %v10739, %v10752
    %10754 = vdwg.mxu0
    %v10755 = vadd.f32 %v10584, %v10751
    %v10756 = vadd.f32 %v10586, %v10753
    %s10757 = scalar_lea.vmem [#allocation9], 384
    %v10758 = vld [vmem:[%s10757] sm:$0xf]
    %v10759 = vld [vmem:[%s10757 + $0x4] sm:$0xf]
    %v10760 = vld [vmem:[%s10757 + $0x8] sm:$0xf]
    %v10761 = vld [vmem:[%s10757 + $0xc] sm:$0xf]
    %v10762 = vld [vmem:[%s10757 + $0x10] sm:$0xf]
    %v10763 = vld [vmem:[%s10757 + $0x14] sm:$0xf]
    %v10764 = vld [vmem:[%s10757 + $0x18] sm:$0xf]
    %v10765 = vld [vmem:[%s10757 + $0x1c] sm:$0xf]
    %v10766 = vld [vmem:[%s10757 + $0x20] sm:$0xf]
    %v10767 = vld [vmem:[%s10757 + $0x24] sm:$0xf]
    %v10768 = vld [vmem:[%s10757 + $0x28] sm:$0xf]
    %v10769 = vld [vmem:[%s10757 + $0x2c] sm:$0xf]
    %v10770 = vld [vmem:[%s10757 + $0x30] sm:$0xf]
    %v10771 = vld [vmem:[%s10757 + $0x34] sm:$0xf]
    %v10772 = vld [vmem:[%s10757 + $0x38] sm:$0xf]
    %v10773 = vld [vmem:[%s10757 + $0x3c] sm:$0xf]
    %v10774 = vld [vmem:[%s10757 + $0x40] sm:$0xf]
    %v10775 = vld [vmem:[%s10757 + $0x44] sm:$0xf]
    %v10776 = vld [vmem:[%s10757 + $0x48] sm:$0xf]
    %v10777 = vld [vmem:[%s10757 + $0x4c] sm:$0xf]
    %v10778 = vld [vmem:[%s10757 + $0x50] sm:$0xf]
    %v10779 = vld [vmem:[%s10757 + $0x54] sm:$0xf]
    %v10780 = vld [vmem:[%s10757 + $0x58] sm:$0xf]
    %v10781 = vld [vmem:[%s10757 + $0x5c] sm:$0xf]
    %v10782 = vld [vmem:[%s10757 + $0x60] sm:$0xf]
    %v10783 = vld [vmem:[%s10757 + $0x64] sm:$0xf]
    %v10784 = vld [vmem:[%s10757 + $0x68] sm:$0xf]
    %v10785 = vld [vmem:[%s10757 + $0x6c] sm:$0xf]
    %v10786 = vld [vmem:[%s10757 + $0x70] sm:$0xf]
    %v10787 = vld [vmem:[%s10757 + $0x74] sm:$0xf]
    %v10788 = vld [vmem:[%s10757 + $0x78] sm:$0xf]
    %v10789 = vld [vmem:[%s10757 + $0x7c] sm:$0xf]
    %v10792 = vunpack.c.l.b16 %v10251
    %v10793 = vunpack.c.h.b16 %v10251
    %v10794 = vunpack.c.l.b16 %v10252
    %v10795 = vunpack.c.h.b16 %v10252
    %v10796 = vpack.c.b16 %v10794, %v10792
    %v10797 = vpack.c.b16 %v10795, %v10793
    %v10832 = vunpack.c.l.b16 %v10758
    %v10833 = vunpack.c.l.b16 %v10759
    %v10834 = vunpack.c.l.b16 %v10760
    %v10835 = vunpack.c.l.b16 %v10761
    %v10836 = vunpack.c.l.b16 %v10762
    %v10837 = vunpack.c.l.b16 %v10763
    %v10838 = vunpack.c.l.b16 %v10764
    %v10839 = vunpack.c.l.b16 %v10765
    %v10840 = vunpack.c.l.b16 %v10766
    %v10841 = vunpack.c.l.b16 %v10767
    %v10842 = vunpack.c.l.b16 %v10768
    %v10843 = vunpack.c.l.b16 %v10769
    %v10844 = vunpack.c.l.b16 %v10770
    %v10845 = vunpack.c.l.b16 %v10771
    %v10846 = vunpack.c.l.b16 %v10772
    %v10847 = vunpack.c.l.b16 %v10773
    %v10848 = vunpack.c.l.b16 %v10774
    %v10849 = vunpack.c.l.b16 %v10775
    %v10850 = vunpack.c.l.b16 %v10776
    %v10851 = vunpack.c.l.b16 %v10777
    %v10852 = vunpack.c.l.b16 %v10778
    %v10853 = vunpack.c.l.b16 %v10779
    %v10854 = vunpack.c.l.b16 %v10780
    %v10855 = vunpack.c.l.b16 %v10781
    %v10856 = vunpack.c.l.b16 %v10782
    %v10857 = vunpack.c.l.b16 %v10783
    %v10858 = vunpack.c.l.b16 %v10784
    %v10859 = vunpack.c.l.b16 %v10785
    %v10860 = vunpack.c.l.b16 %v10786
    %v10861 = vunpack.c.l.b16 %v10787
    %v10862 = vunpack.c.l.b16 %v10788
    %v10863 = vunpack.c.l.b16 %v10789
    %v10864 = vpack.c.b16 %v10833, %v10832
    %v10865 = vpack.c.b16 %v10835, %v10834
    %v10866 = vpack.c.b16 %v10837, %v10836
    %v10867 = vpack.c.b16 %v10839, %v10838
    %v10868 = vpack.c.b16 %v10841, %v10840
    %v10869 = vpack.c.b16 %v10843, %v10842
    %v10870 = vpack.c.b16 %v10845, %v10844
    %v10871 = vpack.c.b16 %v10847, %v10846
    %v10872 = vpack.c.b16 %v10849, %v10848
    %v10873 = vpack.c.b16 %v10851, %v10850
    %v10874 = vpack.c.b16 %v10853, %v10852
    %v10875 = vpack.c.b16 %v10855, %v10854
    %v10876 = vpack.c.b16 %v10857, %v10856
    %v10877 = vpack.c.b16 %v10859, %v10858
    %v10878 = vpack.c.b16 %v10861, %v10860
    %v10879 = vpack.c.b16 %v10863, %v10862
    %10896 = vmatpush.bf16.msra.mxu0 %v10871
    %10897 = vmatpush.bf16.msra.mxu0 %v10870
    %10898 = vmatpush.bf16.msra.mxu0 %v10869
    %10899 = vmatpush.bf16.msra.mxu0 %v10868
    %10900 = vmatpush.bf16.msra.mxu0 %v10867
    %10901 = vmatpush.bf16.msra.mxu0 %v10866
    %10902 = vmatpush.bf16.msra.mxu0 %v10865
    %10903 = vmatpush.bf16.msra.mxu0 %v10864
    %10904 = vmatmul.bf16.gmra.mxu0 %v10796
    %v10905 = vpop.f32.mrf.mxu0
    %v10906 = vadd.f32 0.0, %v10905
    %v10907 = vpop.f32.mrf.mxu0
    %v10908 = vadd.f32 0.0, %v10907
    %10909 = vdwg.mxu0
    %10910 = vmatpush.bf16.msra.mxu0 %v10879
    %10911 = vmatpush.bf16.msra.mxu0 %v10878
    %10912 = vmatpush.bf16.msra.mxu0 %v10877
    %10913 = vmatpush.bf16.msra.mxu0 %v10876
    %10914 = vmatpush.bf16.msra.mxu0 %v10875
    %10915 = vmatpush.bf16.msra.mxu0 %v10874
    %10916 = vmatpush.bf16.msra.mxu0 %v10873
    %10917 = vmatpush.bf16.msra.mxu0 %v10872
    %10918 = vmatmul.bf16.gmra.mxu0 %v10797
    %v10919 = vpop.f32.mrf.mxu0
    %v10920 = vadd.f32 %v10906, %v10919
    %v10921 = vpop.f32.mrf.mxu0
    %v10922 = vadd.f32 %v10908, %v10921
    %10923 = vdwg.mxu0
    %v10924 = vadd.f32 %v10755, %v10920
    %v10925 = vadd.f32 %v10756, %v10922
    %s10926 = scalar_lea.vmem [#allocation9], 512
    %v10927 = vld [vmem:[%s10926] sm:$0xf]
    %v10928 = vld [vmem:[%s10926 + $0x4] sm:$0xf]
    %v10929 = vld [vmem:[%s10926 + $0x8] sm:$0xf]
    %v10930 = vld [vmem:[%s10926 + $0xc] sm:$0xf]
    %v10931 = vld [vmem:[%s10926 + $0x10] sm:$0xf]
    %v10932 = vld [vmem:[%s10926 + $0x14] sm:$0xf]
    %v10933 = vld [vmem:[%s10926 + $0x18] sm:$0xf]
    %v10934 = vld [vmem:[%s10926 + $0x1c] sm:$0xf]
    %v10935 = vld [vmem:[%s10926 + $0x20] sm:$0xf]
    %v10936 = vld [vmem:[%s10926 + $0x24] sm:$0xf]
    %v10937 = vld [vmem:[%s10926 + $0x28] sm:$0xf]
    %v10938 = vld [vmem:[%s10926 + $0x2c] sm:$0xf]
    %v10939 = vld [vmem:[%s10926 + $0x30] sm:$0xf]
    %v10940 = vld [vmem:[%s10926 + $0x34] sm:$0xf]
    %v10941 = vld [vmem:[%s10926 + $0x38] sm:$0xf]
    %v10942 = vld [vmem:[%s10926 + $0x3c] sm:$0xf]
    %v10943 = vld [vmem:[%s10926 + $0x40] sm:$0xf]
    %v10944 = vld [vmem:[%s10926 + $0x44] sm:$0xf]
    %v10945 = vld [vmem:[%s10926 + $0x48] sm:$0xf]
    %v10946 = vld [vmem:[%s10926 + $0x4c] sm:$0xf]
    %v10947 = vld [vmem:[%s10926 + $0x50] sm:$0xf]
    %v10948 = vld [vmem:[%s10926 + $0x54] sm:$0xf]
    %v10949 = vld [vmem:[%s10926 + $0x58] sm:$0xf]
    %v10950 = vld [vmem:[%s10926 + $0x5c] sm:$0xf]
    %v10951 = vld [vmem:[%s10926 + $0x60] sm:$0xf]
    %v10952 = vld [vmem:[%s10926 + $0x64] sm:$0xf]
    %v10953 = vld [vmem:[%s10926 + $0x68] sm:$0xf]
    %v10954 = vld [vmem:[%s10926 + $0x6c] sm:$0xf]
    %v10955 = vld [vmem:[%s10926 + $0x70] sm:$0xf]
    %v10956 = vld [vmem:[%s10926 + $0x74] sm:$0xf]
    %v10957 = vld [vmem:[%s10926 + $0x78] sm:$0xf]
    %v10958 = vld [vmem:[%s10926 + $0x7c] sm:$0xf]
    %v10961 = vunpack.c.l.b16 %v10253
    %v10962 = vunpack.c.h.b16 %v10253
    %v10963 = vunpack.c.l.b16 %v10254
    %v10964 = vunpack.c.h.b16 %v10254
    %v10965 = vpack.c.b16 %v10963, %v10961
    %v10966 = vpack.c.b16 %v10964, %v10962
    %v11001 = vunpack.c.l.b16 %v10927
    %v11002 = vunpack.c.l.b16 %v10928
    %v11003 = vunpack.c.l.b16 %v10929
    %v11004 = vunpack.c.l.b16 %v10930
    %v11005 = vunpack.c.l.b16 %v10931
    %v11006 = vunpack.c.l.b16 %v10932
    %v11007 = vunpack.c.l.b16 %v10933
    %v11008 = vunpack.c.l.b16 %v10934
    %v11009 = vunpack.c.l.b16 %v10935
    %v11010 = vunpack.c.l.b16 %v10936
    %v11011 = vunpack.c.l.b16 %v10937
    %v11012 = vunpack.c.l.b16 %v10938
    %v11013 = vunpack.c.l.b16 %v10939
    %v11014 = vunpack.c.l.b16 %v10940
    %v11015 = vunpack.c.l.b16 %v10941
    %v11016 = vunpack.c.l.b16 %v10942
    %v11017 = vunpack.c.l.b16 %v10943
    %v11018 = vunpack.c.l.b16 %v10944
    %v11019 = vunpack.c.l.b16 %v10945
    %v11020 = vunpack.c.l.b16 %v10946
    %v11021 = vunpack.c.l.b16 %v10947
    %v11022 = vunpack.c.l.b16 %v10948
    %v11023 = vunpack.c.l.b16 %v10949
    %v11024 = vunpack.c.l.b16 %v10950
    %v11025 = vunpack.c.l.b16 %v10951
    %v11026 = vunpack.c.l.b16 %v10952
    %v11027 = vunpack.c.l.b16 %v10953
    %v11028 = vunpack.c.l.b16 %v10954
    %v11029 = vunpack.c.l.b16 %v10955
    %v11030 = vunpack.c.l.b16 %v10956
    %v11031 = vunpack.c.l.b16 %v10957
    %v11032 = vunpack.c.l.b16 %v10958
    %v11033 = vpack.c.b16 %v11002, %v11001
    %v11034 = vpack.c.b16 %v11004, %v11003
    %v11035 = vpack.c.b16 %v11006, %v11005
    %v11036 = vpack.c.b16 %v11008, %v11007
    %v11037 = vpack.c.b16 %v11010, %v11009
    %v11038 = vpack.c.b16 %v11012, %v11011
    %v11039 = vpack.c.b16 %v11014, %v11013
    %v11040 = vpack.c.b16 %v11016, %v11015
    %v11041 = vpack.c.b16 %v11018, %v11017
    %v11042 = vpack.c.b16 %v11020, %v11019
    %v11043 = vpack.c.b16 %v11022, %v11021
    %v11044 = vpack.c.b16 %v11024, %v11023
    %v11045 = vpack.c.b16 %v11026, %v11025
    %v11046 = vpack.c.b16 %v11028, %v11027
    %v11047 = vpack.c.b16 %v11030, %v11029
    %v11048 = vpack.c.b16 %v11032, %v11031
    %11065 = vmatpush.bf16.msra.mxu0 %v11040
    %11066 = vmatpush.bf16.msra.mxu0 %v11039
    %11067 = vmatpush.bf16.msra.mxu0 %v11038
    %11068 = vmatpush.bf16.msra.mxu0 %v11037
    %11069 = vmatpush.bf16.msra.mxu0 %v11036
    %11070 = vmatpush.bf16.msra.mxu0 %v11035
    %11071 = vmatpush.bf16.msra.mxu0 %v11034
    %11072 = vmatpush.bf16.msra.mxu0 %v11033
    %11073 = vmatmul.bf16.gmra.mxu0 %v10965
    %v11074 = vpop.f32.mrf.mxu0
    %v11075 = vadd.f32 0.0, %v11074
    %v11076 = vpop.f32.mrf.mxu0
    %v11077 = vadd.f32 0.0, %v11076
    %11078 = vdwg.mxu0
    %11079 = vmatpush.bf16.msra.mxu0 %v11048
    %11080 = vmatpush.bf16.msra.mxu0 %v11047
    %11081 = vmatpush.bf16.msra.mxu0 %v11046
    %11082 = vmatpush.bf16.msra.mxu0 %v11045
    %11083 = vmatpush.bf16.msra.mxu0 %v11044
    %11084 = vmatpush.bf16.msra.mxu0 %v11043
    %11085 = vmatpush.bf16.msra.mxu0 %v11042
    %11086 = vmatpush.bf16.msra.mxu0 %v11041
    %11087 = vmatmul.bf16.gmra.mxu0 %v10966
    %v11088 = vpop.f32.mrf.mxu0
    %v11089 = vadd.f32 %v11075, %v11088
    %v11090 = vpop.f32.mrf.mxu0
    %v11091 = vadd.f32 %v11077, %v11090
    %11092 = vdwg.mxu0
    %v11093 = vadd.f32 %v10924, %v11089
    %v11094 = vadd.f32 %v10925, %v11091
    %v11095 = vld [vmem:[#allocation10] sm:$0x1]
    %v11097 = vperm.slane %v11095, 0
    %v11099 = vadd.f32 %v11093, %v11097
    %v11100 = vadd.f32 %v11094, %v11097
    %11101 = vst [vmem:[%s7] sm:$0xff] %v11099
    %11102 = vst [vmem:[%s7 + $0x8] sm:$0xff] %v11100
    // Predicated region
    $region54: #{cnn_forward.1} parent=1 // pred_check
      _
    $region55: #{cnn_forward.1} parent=1 // pred_check_branch
      %11104 = sbr.rel (0) target = $region57
    $region56: #{cnn_forward.1} parent=1 // pred_region
      _
    $region57: #{cnn_forward.1} parent=1 // pred_fallthru
      _
    // Predicated region
    $region58: #{cnn_forward.1} parent=1 // pred_check
      _
    $region59: #{cnn_forward.1} parent=1 // pred_check_branch
      %11106 = sbr.rel (0) target = $region61
    $region60: #{cnn_forward.1} parent=1 // pred_region
      _
    $region61: #{cnn_forward.1} parent=1 // pred_fallthru
      _
    %11107 = vsyncpa [#allocation3], 1
    %11108 = vsyncpa [#allocation5], 1
    %11109 = vsyncpa [#allocation8], 1
    %11110 = vsyncpa [#allocation11], 1

</llo_original>
